<compile_context>
chip_gen: v6e
topology: v6e:2x2x1
jax: 0.10.0
libtpu: 0.0.40
codegen_flags: <defaults>
</compile_context>

<pallas_src>
import functools

import jax
import jax.numpy as jnp
from jax.experimental import pallas as pl
from jax.experimental.pallas import tpu as pltpu

BN_EPS = 1e-5
LANE = 128
VMEM_LIMIT_BYTES = 48 * 1024 * 1024  # safe on v5e/v6e (128 MiB) and v7x (64 MiB)


def _round_up(x, m):
    return (x + m - 1) // m * m


# ---------------------------------------------------------------------------
# Residual-tower kernel: 3x3 conv(s) on the flattened padded-board layout.
# One kernel instance handles either a single conv+bn+relu (initial conv) or a
# full fused BasicBlock (conv+bn+relu, conv+bn+residual+relu).
# ---------------------------------------------------------------------------
def _make_tower_kernel(offsets, tile_rows, two_convs):
    def conv9(x32, w_ref):
        # sum_k rowshift(x, off_k) @ W_k ; f32 accumulation on the MXU.
        acc = None
        for k, off in enumerate(offsets):
            if off == 0:
                xs = x32
            else:
                # wrapped rows only land on the zero ring, which the mask
                # re-zeroes in the epilogue, so a plain rotate is correct.
                xs = pltpu.roll(x32, shift=(-off) % tile_rows, axis=0)
            d = jnp.dot(xs.astype(jnp.bfloat16), w_ref[k],
                        preferred_element_type=jnp.float32)
            acc = d if acc is None else acc + d
        return acc

    if two_convs:
        def kernel(x_ref, w1_ref, s1_ref, w2_ref, s2_ref, mask_ref, o_ref):
            x32 = x_ref[...].astype(jnp.float32)
            mask = mask_ref[...]
            a1 = jnp.maximum(conv9(x32, w1_ref) + s1_ref[...], 0.0) * mask
            a2 = conv9(a1, w2_ref) + s2_ref[...] + x32          # residual add
            o_ref[...] = (jnp.maximum(a2, 0.0) * mask).astype(o_ref.dtype)
    else:
        def kernel(x_ref, w1_ref, s1_ref, mask_ref, o_ref):
            x32 = x_ref[...].astype(jnp.float32)
            a1 = jnp.maximum(conv9(x32, w1_ref) + s1_ref[...], 0.0)
            o_ref[...] = (a1 * mask_ref[...]).astype(o_ref.dtype)

    return kernel


def conv_tower_layer(h, mask, w1, s1, w2=None, s2=None, *, offsets,
                     rows_per_image, images_per_tile):
    """One 3x3 conv+bn+relu (w2 is None) or one fused BasicBlock."""
    R, cp = h.shape
    ntaps, _, coutp = w1.shape
    tile_rows = images_per_tile * rows_per_image
    assert R % tile_rows == 0
    assert tile_rows % 8 == 0 or tile_rows == R
    n_tiles = R // tile_rows
    two = w2 is not None

    in_specs = [
        pl.BlockSpec((tile_rows, cp), lambda i: (i, 0)),
        pl.BlockSpec((ntaps, cp, coutp), lambda i: (0, 0, 0)),   # VMEM-resident
        pl.BlockSpec((1, coutp), lambda i: (0, 0)),
    ]
    operands = [h, w1, s1]
    if two:
        in_specs += [
            pl.BlockSpec((ntaps, coutp, coutp), lambda i: (0, 0, 0)),
            pl.BlockSpec((1, coutp), lambda i: (0, 0)),
        ]
        operands += [w2, s2]
    in_specs.append(pl.BlockSpec((tile_rows, 1), lambda i: (i, 0)))
    operands.append(mask)

    return pl.pallas_call(
        _make_tower_kernel(offsets, tile_rows, two),
        out_shape=jax.ShapeDtypeStruct((R, coutp), jnp.bfloat16),
        grid_spec=pltpu.PrefetchScalarGridSpec(
            num_scalar_prefetch=0,
            grid=(n_tiles,),
            in_specs=in_specs,
            out_specs=pl.BlockSpec((tile_rows, coutp), lambda i: (i, 0)),
        ),
        compiler_params=pltpu.CompilerParams(
            dimension_semantics=("parallel",),
            vmem_limit_bytes=VMEM_LIMIT_BYTES,
        ),
    )(*operands)


# ---------------------------------------------------------------------------
# Dense kernel: act(x @ w + b) with bf16 operands, f32 epilogue.
# Used for the merged 1x1 heads and the FC layers; log_softmax is fused.
# ---------------------------------------------------------------------------
def _make_dense_kernel(activation, valid_cols):
    def kernel(x_ref, w_ref, b_ref, o_ref):
        out = jnp.dot(x_ref[...], w_ref[...],
                      preferred_element_type=jnp.float32) + b_ref[...]
        if activation == "relu":
            out = jnp.maximum(out, 0.0)
        elif activation == "tanh":
            out = jnp.tanh(out)
        elif activation == "log_softmax":
            col = jax.lax.broadcasted_iota(jnp.int32, out.shape, 1)
            valid = col < valid_cols
            m = jnp.max(jnp.where(valid, out, -jnp.inf), axis=-1, keepdims=True)
            e = jnp.where(valid, jnp.exp(out - m), 0.0)
            out = out - (jnp.log(jnp.sum(e, axis=-1, keepdims=True)) + m)
        o_ref[...] = out
    return kernel


def dense(x, w, b, activation="none", valid_cols=0, tm=512):
    """act(x @ w + b); w (Kp, Np) bf16 and b (1, Np) f32 are pre-padded."""
    M, K = x.shape
    kp, np_ = w.shape
    mp = _round_up(M, 8)
    tm = min(tm, mp)
    mp = _round_up(mp, tm)
    if x.shape == (mp, kp) and x.dtype == jnp.bfloat16:
        xp = x                                # fast path: already tile-aligned
    else:
        xp = jnp.zeros((mp, kp), jnp.bfloat16).at[:M, :K].set(
            x.astype(jnp.bfloat16))
    return pl.pallas_call(
        _make_dense_kernel(activation, valid_cols),
        out_shape=jax.ShapeDtypeStruct((mp, np_), jnp.float32),
        grid_spec=pltpu.PrefetchScalarGridSpec(
            num_scalar_prefetch=0,
            grid=(mp // tm,),
            in_specs=[
                pl.BlockSpec((tm, kp), lambda i: (i, 0)),
                pl.BlockSpec((kp, np_), lambda i: (0, 0)),
                pl.BlockSpec((1, np_), lambda i: (0, 0)),
            ],
            out_specs=pl.BlockSpec((tm, np_), lambda i: (i, 0)),
        ),
        compiler_params=pltpu.CompilerParams(
            dimension_semantics=("parallel",),
            vmem_limit_bytes=VMEM_LIMIT_BYTES,
        ),
    )(xp, w, b)


# ---------------------------------------------------------------------------
# Parameter init (mirrors the PyTorch __init__ shapes / inits at reduced
# width & depth; full model = 256 channels, 19 blocks, 256 value hidden).
# ---------------------------------------------------------------------------
def _kaiming_conv(key, cout, cin, kh, kw):
    fan_out = cout * kh * kw
    std = (2.0 / fan_out) ** 0.5
    return jax.random.normal(key, (cout, cin, kh, kw), jnp.float32) * std


def _linear(key, out_f, in_f):
    kw_, kb = jax.random.split(key)
    bound = 1.0 / (in_f ** 0.5)
    w = jax.random.uniform(kw_, (out_f, in_f), jnp.float32, -bound, bound)
    b = jax.random.uniform(kb, (out_f,), jnp.float32, -bound, bound)
    return w, b


def _bn_scale_shift(c):
    # eval-mode BatchNorm with default affine / running stats.
    gamma = jnp.ones((c,), jnp.float32)
    beta = jnp.zeros((c,), jnp.float32)
    mean = jnp.zeros((c,), jnp.float32)
    var = jnp.ones((c,), jnp.float32)
    scale = gamma / jnp.sqrt(var + BN_EPS)
    shift = beta - mean * scale
    return scale, shift


def init_params(key, channels, num_blocks, board_x, board_y, action_size,
                v_hidden):
    keys = jax.random.split(key, 6 + 2 * num_blocks)
    ki = iter(keys)
    p = {"conv1_w": _kaiming_conv(next(ki), channels, 1, 3, 3)}
    blocks = []
    for _ in range(num_blocks):
        blocks.append({
            "conv1_w": _kaiming_conv(next(ki), channels, channels, 3, 3),
            "conv2_w": _kaiming_conv(next(ki), channels, channels, 3, 3),
        })
    p["blocks"] = blocks
    p["conv_pi_w"] = _kaiming_conv(next(ki), 2, channels, 1, 1)
    p["fc_pi_w"], p["fc_pi_b"] = _linear(next(ki), action_size,
                                         2 * board_x * board_y)
    p["conv_v_w"] = _kaiming_conv(next(ki), 1, channels, 1, 1)
    p["fc_v_w"], p["fc_v_b"] = _linear(next(ki), v_hidden, board_x * board_y)
    p["fc_v2_w"], p["fc_v2_b"] = _linear(next(ki), 1, v_hidden)
    return p


# ---------------------------------------------------------------------------
# One-time weight preparation: fold BN scale into conv weights, transpose into
# matmul layout, pad to (8, 128) tiles, cast to bf16.
# ---------------------------------------------------------------------------
def _prep_conv3x3(w, bn_scale, cin_p, cout_p):
    cout, cin = w.shape[0], w.shape[1]
    w = w * bn_scale[:, None, None, None]                      # fold BN scale
    w = jnp.transpose(w, (2, 3, 1, 0)).reshape(9, cin, cout)   # tap-major
    wpad = jnp.zeros((9, cin_p, cout_p), jnp.float32).at[:, :cin, :cout].set(w)
    return wpad.astype(jnp.bfloat16)


def _prep_shift(shift, cout_p):
    return jnp.zeros((1, cout_p), jnp.float32).at[0, :shift.shape[0]].set(shift)


def _prep_linear(w, b):
    out_f, in_f = w.shape
    kp, np_ = _round_up(in_f, LANE), _round_up(out_f, LANE)
    wpad = jnp.zeros((kp, np_), jnp.float32).at[:in_f, :out_f].set(w.T)
    bpad = jnp.zeros((1, np_), jnp.float32).at[0, :out_f].set(b)
    return wpad.astype(jnp.bfloat16), bpad


def prepare_params(p, channels):
    cp = _round_up(channels, LANE)
    prep = {}
    s, t = _bn_scale_shift(channels)
    prep["conv1_w"] = _prep_conv3x3(p["conv1_w"], s, LANE, cp)  # Cin=1 -> 128
    prep["conv1_shift"] = _prep_shift(t, cp)
    blocks = []
    for blk in p["blocks"]:
        s1, t1 = _bn_scale_shift(channels)
        s2, t2 = _bn_scale_shift(channels)
        blocks.append({
            "w1": _prep_conv3x3(blk["conv1_w"], s1, cp, cp),
            "s1": _prep_shift(t1, cp),
            "w2": _prep_conv3x3(blk["conv2_w"], s2, cp, cp),
            "s2": _prep_shift(t2, cp),
        })
    prep["blocks"] = blocks
    # merged 1x1 policy (2 ch) + value (1 ch) head conv, BN folded
    s_pi, t_pi = _bn_scale_shift(2)
    s_v, t_v = _bn_scale_shift(1)
    w_pi = p["conv_pi_w"][:, :, 0, 0] * s_pi[:, None]           # (2, C)
    w_v = p["conv_v_w"][:, :, 0, 0] * s_v[:, None]              # (1, C)
    head_w = jnp.zeros((cp, LANE), jnp.float32)
    head_w = head_w.at[:channels, 0:2].set(w_pi.T)
    head_w = head_w.at[:channels, 2:3].set(w_v.T)
    prep["head_w"] = head_w.astype(jnp.bfloat16)
    prep["head_b"] = (jnp.zeros((1, LANE), jnp.float32)
                      .at[0, 0:2].set(t_pi).at[0, 2].set(t_v[0]))
    prep["fc_pi_w"], prep["fc_pi_b"] = _prep_linear(p["fc_pi_w"], p["fc_pi_b"])
    prep["fc_v_w"], prep["fc_v_b"] = _prep_linear(p["fc_v_w"], p["fc_v_b"])
    prep["fc_v2_w"], prep["fc_v2_b"] = _prep_linear(p["fc_v2_w"], p["fc_v2_b"])
    return prep


# ---------------------------------------------------------------------------
# Forward pass
# ---------------------------------------------------------------------------
def alphazero_forward(prep, x, *, board_x, board_y, action_size, v_hidden,
                      images_per_tile=16):
    B = x.shape[0]
    H, W = board_x, board_y
    hp, wp = H + 2, W + 2
    rows = hp * wp                               # flattened padded board size
    assert rows % 8 == 0, "padded board must be sublane-aligned"
    offsets = tuple((dh - 1) * wp + (dw - 1) for dh in range(3)
                    for dw in range(3))

    bt = max(1, min(images_per_tile, B))
    bp = _round_up(B, bt)

    # Embed the input into the padded-board layout; the zero ring provides the
    # conv padding and is re-zeroed by the mask after every layer.
    x = x.reshape(B, H, W)                       # torch: x.view(-1, 1, bx, by)
    h = jnp.zeros((bp, hp, wp, LANE), jnp.bfloat16)
    h = h.at[:B, 1:1 + H, 1:1 + W, 0].set(x.astype(jnp.bfloat16))
    h = h.reshape(bp * rows, LANE)
    m = jnp.zeros((hp, wp), jnp.float32).at[1:1 + H, 1:1 + W].set(1.0)
    mask = jnp.tile(m.reshape(1, rows), (bp, 1)).reshape(bp * rows, 1)

    layer = functools.partial(conv_tower_layer, offsets=offsets,
                              rows_per_image=rows, images_per_tile=bt)
    # initial conv + bn + relu
    h = layer(h, mask, prep["conv1_w"], prep["conv1_shift"])
    # residual tower: one fused kernel per BasicBlock
    for blk in prep["blocks"]:
        h = layer(h, mask, blk["w1"], blk["s1"], blk["w2"], blk["s2"])

    # merged policy/value 1x1 conv + bn + relu (reads h once)
    heads = dense(h, prep["head_w"], prep["head_b"], activation="relu")
    heads = heads[:bp * rows].reshape(bp, hp, wp, LANE)[:B, 1:1 + H, 1:1 + W, :3]

    # NCHW flattening order to match torch .view(B, -1)
    pi_feats = jnp.transpose(heads[..., 0:2], (0, 3, 1, 2)).reshape(B, 2 * H * W)
    v_feats = heads[..., 2].reshape(B, H * W)

    log_pi = dense(pi_feats, prep["fc_pi_w"], prep["fc_pi_b"],
                   activation="log_softmax", valid_cols=action_size)
    log_pi = log_pi[:B, :action_size]

    v = dense(v_feats, prep["fc_v_w"], prep["fc_v_b"],
              activation="relu")[:B, :v_hidden]
    v = dense(v, prep["fc_v2_w"], prep["fc_v2_b"], activation="tanh")[:B, :1]
    return log_pi, v


if __name__ == "__main__":
    # Connect4 geometry; reduced width/depth for a small runnable example
    # (full model: channels=256, num_blocks=19, v_hidden=256, large batch).
    BOARD_X, BOARD_Y = 6, 7
    ACTION_SIZE = 7
    CHANNELS = 32
    NUM_BLOCKS = 2
    V_HIDDEN = 32
    BATCH = 4

    key = jax.random.PRNGKey(0)
    pkey, xkey = jax.random.split(key)
    raw = init_params(pkey, CHANNELS, NUM_BLOCKS, BOARD_X, BOARD_Y,
                      ACTION_SIZE, V_HIDDEN)
    prep = prepare_params(raw, CHANNELS)
    x = jax.random.normal(xkey, (BATCH, BOARD_X, BOARD_Y), jnp.float32)

    fwd = jax.jit(functools.partial(
        alphazero_forward, board_x=BOARD_X, board_y=BOARD_Y,
        action_size=ACTION_SIZE, v_hidden=V_HIDDEN, images_per_tile=4))
    log_pi, v = fwd(prep, x)
    jax.block_until_ready((log_pi, v))

    assert log_pi.shape == (BATCH, ACTION_SIZE)
    assert v.shape == (BATCH, 1)
    assert bool(jnp.all(jnp.isfinite(log_pi))) and bool(jnp.all(jnp.isfinite(v)))
    # log_softmax rows must sum to 1 in prob space; tanh output in [-1, 1]
    assert bool(jnp.allclose(jnp.sum(jnp.exp(log_pi), axis=1), 1.0, atol=1e-4))
    assert bool(jnp.all(jnp.abs(v) <= 1.0 + 1e-6))
    print("KERNEL_OK")
</pallas_src>

<mosaic_0001>
module attributes {stable_mosaic.version = 11 : i64} {
  func.func @kernel(%arg0: i32, %arg1: memref<288x128xbf16, #tpu.memory_space<vmem>>, %arg2: memref<128x128xbf16, #tpu.memory_space<vmem>>, %arg3: memref<1x128xf32, #tpu.memory_space<vmem>>, %arg4: memref<288x128xf32, #tpu.memory_space<vmem>>) attributes {dimension_semantics = [#tpu.dimension_semantics<parallel>], iteration_bounds = array<i64: 1>, scalar_prefetch = 0 : i64, scratch_operands = 0 : i64, tpu.core_type = #tpu.core_type<tc>, window_params = [{transform_indices = @transform_0, window_bounds = array<i64: 288, 128>}, {pipeline_mode = #tpu.pipeline_mode<synchronous>, transform_indices = @transform_1, window_bounds = array<i64: 128, 128>}, {pipeline_mode = #tpu.pipeline_mode<synchronous>, transform_indices = @transform_2, window_bounds = array<i64: 1, 128>}, {transform_indices = @transform_3, window_bounds = array<i64: 288, 128>}]} {
    %c0 = arith.constant 0 : index
    %c0_0 = arith.constant 0 : index
    %0 = vector.load %arg1[%c0, %c0_0] : memref<288x128xbf16, #tpu.memory_space<vmem>>, vector<288x128xbf16>
    %c0_1 = arith.constant 0 : index
    %c0_2 = arith.constant 0 : index
    %1 = vector.load %arg2[%c0_1, %c0_2] : memref<128x128xbf16, #tpu.memory_space<vmem>>, vector<128x128xbf16>
    %cst = arith.constant dense<0.000000e+00> : vector<288x128xf32>
    %2 = tpu.matmul %0, %1, %cst {dimension_numbers = #tpu.dot_dimension_numbers<[1], [0], [0], [1], [0, 0, 1, 1], [], []>} : vector<288x128xbf16>, vector<128x128xbf16>, vector<288x128xf32> -> vector<288x128xf32>
    %c0_3 = arith.constant 0 : index
    %c0_4 = arith.constant 0 : index
    %3 = vector.load %arg3[%c0_3, %c0_4] : memref<1x128xf32, #tpu.memory_space<vmem>>, vector<1x128xf32>
    %4 = vector.broadcast %3 : vector<1x128xf32> to vector<288x128xf32>
    %5 = arith.addf %2, %4 : vector<288x128xf32>
    %cst_5 = arith.constant 0.000000e+00 : f32
    %6 = vector.broadcast %cst_5 : f32 to vector<288x128xf32>
    %7 = arith.maximumf %5, %6 : vector<288x128xf32>
    %c0_6 = arith.constant 0 : index
    %c0_7 = arith.constant 0 : index
    %8 = vector.load %arg4[%c0_6, %c0_7] : memref<288x128xf32, #tpu.memory_space<vmem>>, vector<288x128xf32>
    tpu.vector_store %arg4[%c0_6, %c0_7], %7 {strides = array<i32>} : memref<288x128xf32, #tpu.memory_space<vmem>>, vector<288x128xf32>,
    return
  }
  func.func @transform_0(%arg0: i32) -> (i32, i32) {
    %c0_i32 = arith.constant 0 : i32
    %c0_i32_0 = arith.constant 0 : i32
    return %arg0, %c0_i32 : i32, i32
  }
  func.func @transform_1(%arg0: i32) -> (i32, i32) {
    %c0_i32 = arith.constant 0 : i32
    %c0_i32_0 = arith.constant 0 : i32
    %c0_i32_1 = arith.constant 0 : i32
    return %c0_i32, %c0_i32_0 : i32, i32
  }
  func.func @transform_2(%arg0: i32) -> (i32, i32) {
    %c0_i32 = arith.constant 0 : i32
    %c0_i32_0 = arith.constant 0 : i32
    %c0_i32_1 = arith.constant 0 : i32
    return %c0_i32, %c0_i32_0 : i32, i32
  }
  func.func @transform_3(%arg0: i32) -> (i32, i32) {
    %c0_i32 = arith.constant 0 : i32
    %c0_i32_0 = arith.constant 0 : i32
    return %arg0, %c0_i32 : i32, i32
  }
}

module attributes {stable_mosaic.version = 11 : i64} {
  func.func @kernel(%arg0: i32, %arg1: memref<288x128xbf16, #tpu.memory_space<vmem>>, %arg2: memref<9x128x128xbf16, #tpu.memory_space<vmem>>, %arg3: memref<1x128xf32, #tpu.memory_space<vmem>>, %arg4: memref<288x1xf32, #tpu.memory_space<vmem>>, %arg5: memref<288x128xbf16, #tpu.memory_space<vmem>>) attributes {dimension_semantics = [#tpu.dimension_semantics<parallel>], iteration_bounds = array<i64: 1>, scalar_prefetch = 0 : i64, scratch_operands = 0 : i64, tpu.core_type = #tpu.core_type<tc>, window_params = [{transform_indices = @transform_0, window_bounds = array<i64: 288, 128>}, {pipeline_mode = #tpu.pipeline_mode<synchronous>, transform_indices = @transform_1, window_bounds = array<i64: 9, 128, 128>}, {pipeline_mode = #tpu.pipeline_mode<synchronous>, transform_indices = @transform_2, window_bounds = array<i64: 1, 128>}, {transform_indices = @transform_3, window_bounds = array<i64: 288, 1>}, {transform_indices = @transform_4, window_bounds = array<i64: 288, 128>}]} {
    %c0 = arith.constant 0 : index
    %c0_0 = arith.constant 0 : index
    %0 = vector.load %arg1[%c0, %c0_0] : memref<288x128xbf16, #tpu.memory_space<vmem>>, vector<288x128xbf16>
    %1 = arith.extf %0 : vector<288x128xbf16> to vector<288x128xf32>
    %c10_i32 = arith.constant 10 : i32
    %2 = tpu.dynamic_rotate %1 by %c10_i32 dim 0 : vector<288x128xf32>, i32 -> vector<288x128xf32>
    %3 = arith.truncf %2 : vector<288x128xf32> to vector<288x128xbf16>
    %c0_1 = arith.constant 0 : index
    %c0_2 = arith.constant 0 : index
    %c0_3 = arith.constant 0 : index
    %4 = vector.load %arg2[%c0_1, %c0_2, %c0_3] : memref<9x128x128xbf16, #tpu.memory_space<vmem>>, vector<1x128x128xbf16>
    %5 = vector.shape_cast %4 : vector<1x128x128xbf16> to vector<128x128xbf16>
    %cst = arith.constant dense<0.000000e+00> : vector<288x128xf32>
    %6 = tpu.matmul %3, %5, %cst {dimension_numbers = #tpu.dot_dimension_numbers<[1], [0], [0], [1], [0, 0, 1, 1], [], []>} : vector<288x128xbf16>, vector<128x128xbf16>, vector<288x128xf32> -> vector<288x128xf32>
    %c9_i32 = arith.constant 9 : i32
    %7 = tpu.dynamic_rotate %1 by %c9_i32 dim 0 : vector<288x128xf32>, i32 -> vector<288x128xf32>
    %8 = arith.truncf %7 : vector<288x128xf32> to vector<288x128xbf16>
    %c1 = arith.constant 1 : index
    %c0_4 = arith.constant 0 : index
    %c0_5 = arith.constant 0 : index
    %9 = vector.load %arg2[%c1, %c0_4, %c0_5] : memref<9x128x128xbf16, #tpu.memory_space<vmem>>, vector<1x128x128xbf16>
    %10 = vector.shape_cast %9 : vector<1x128x128xbf16> to vector<128x128xbf16>
    %cst_6 = arith.constant dense<0.000000e+00> : vector<288x128xf32>
    %11 = tpu.matmul %8, %10, %cst_6 {dimension_numbers = #tpu.dot_dimension_numbers<[1], [0], [0], [1], [0, 0, 1, 1], [], []>} : vector<288x128xbf16>, vector<128x128xbf16>, vector<288x128xf32> -> vector<288x128xf32>
    %12 = arith.addf %6, %11 : vector<288x128xf32>
    %c8_i32 = arith.constant 8 : i32
    %13 = tpu.dynamic_rotate %1 by %c8_i32 dim 0 : vector<288x128xf32>, i32 -> vector<288x128xf32>
    %14 = arith.truncf %13 : vector<288x128xf32> to vector<288x128xbf16>
    %c2 = arith.constant 2 : index
    %c0_7 = arith.constant 0 : index
    %c0_8 = arith.constant 0 : index
    %15 = vector.load %arg2[%c2, %c0_7, %c0_8] : memref<9x128x128xbf16, #tpu.memory_space<vmem>>, vector<1x128x128xbf16>
    %16 = vector.shape_cast %15 : vector<1x128x128xbf16> to vector<128x128xbf16>
    %cst_9 = arith.constant dense<0.000000e+00> : vector<288x128xf32>
    %17 = tpu.matmul %14, %16, %cst_9 {dimension_numbers = #tpu.dot_dimension_numbers<[1], [0], [0], [1], [0, 0, 1, 1], [], []>} : vector<288x128xbf16>, vector<128x128xbf16>, vector<288x128xf32> -> vector<288x128xf32>
    %18 = arith.addf %12, %17 : vector<288x128xf32>
    %c1_i32 = arith.constant 1 : i32
    %19 = tpu.dynamic_rotate %1 by %c1_i32 dim 0 : vector<288x128xf32>, i32 -> vector<288x128xf32>
    %20 = arith.truncf %19 : vector<288x128xf32> to vector<288x128xbf16>
    %c3 = arith.constant 3 : index
    %c0_10 = arith.constant 0 : index
    %c0_11 = arith.constant 0 : index
    %21 = vector.load %arg2[%c3, %c0_10, %c0_11] : memref<9x128x128xbf16, #tpu.memory_space<vmem>>, vector<1x128x128xbf16>
    %22 = vector.shape_cast %21 : vector<1x128x128xbf16> to vector<128x128xbf16>
    %cst_12 = arith.constant dense<0.000000e+00> : vector<288x128xf32>
    %23 = tpu.matmul %20, %22, %cst_12 {dimension_numbers = #tpu.dot_dimension_numbers<[1], [0], [0], [1], [0, 0, 1, 1], [], []>} : vector<288x128xbf16>, vector<128x128xbf16>, vector<288x128xf32> -> vector<288x128xf32>
    %24 = arith.addf %18, %23 : vector<288x128xf32>
    %25 = arith.truncf %1 : vector<288x128xf32> to vector<288x128xbf16>
    %c4 = arith.constant 4 : index
    %c0_13 = arith.constant 0 : index
    %c0_14 = arith.constant 0 : index
    %26 = vector.load %arg2[%c4, %c0_13, %c0_14] : memref<9x128x128xbf16, #tpu.memory_space<vmem>>, vector<1x128x128xbf16>
    %27 = vector.shape_cast %26 : vector<1x128x128xbf16> to vector<128x128xbf16>
    %cst_15 = arith.constant dense<0.000000e+00> : vector<288x128xf32>
    %28 = tpu.matmul %25, %27, %cst_15 {dimension_numbers = #tpu.dot_dimension_numbers<[1], [0], [0], [1], [0, 0, 1, 1], [], []>} : vector<288x128xbf16>, vector<128x128xbf16>, vector<288x128xf32> -> vector<288x128xf32>
    %29 = arith.addf %24, %28 : vector<288x128xf32>
    %c287_i32 = arith.constant 287 : i32
    %30 = tpu.dynamic_rotate %1 by %c287_i32 dim 0 : vector<288x128xf32>, i32 -> vector<288x128xf32>
    %31 = arith.truncf %30 : vector<288x128xf32> to vector<288x128xbf16>
    %c5 = arith.constant 5 : index
    %c0_16 = arith.constant 0 : index
    %c0_17 = arith.constant 0 : index
    %32 = vector.load %arg2[%c5, %c0_16, %c0_17] : memref<9x128x128xbf16, #tpu.memory_space<vmem>>, vector<1x128x128xbf16>
    %33 = vector.shape_cast %32 : vector<1x128x128xbf16> to vector<128x128xbf16>
    %cst_18 = arith.constant dense<0.000000e+00> : vector<288x128xf32>
    %34 = tpu.matmul %31, %33, %cst_18 {dimension_numbers = #tpu.dot_dimension_numbers<[1], [0], [0], [1], [0, 0, 1, 1], [], []>} : vector<288x128xbf16>, vector<128x128xbf16>, vector<288x128xf32> -> vector<288x128xf32>
    %35 = arith.addf %29, %34 : vector<288x128xf32>
    %c280_i32 = arith.constant 280 : i32
    %36 = tpu.dynamic_rotate %1 by %c280_i32 dim 0 : vector<288x128xf32>, i32 -> vector<288x128xf32>
    %37 = arith.truncf %36 : vector<288x128xf32> to vector<288x128xbf16>
    %c6 = arith.constant 6 : index
    %c0_19 = arith.constant 0 : index
    %c0_20 = arith.constant 0 : index
    %38 = vector.load %arg2[%c6, %c0_19, %c0_20] : memref<9x128x128xbf16, #tpu.memory_space<vmem>>, vector<1x128x128xbf16>
    %39 = vector.shape_cast %38 : vector<1x128x128xbf16> to vector<128x128xbf16>
    %cst_21 = arith.constant dense<0.000000e+00> : vector<288x128xf32>
    %40 = tpu.matmul %37, %39, %cst_21 {dimension_numbers = #tpu.dot_dimension_numbers<[1], [0], [0], [1], [0, 0, 1, 1], [], []>} : vector<288x128xbf16>, vector<128x128xbf16>, vector<288x128xf32> -> vector<288x128xf32>
    %41 = arith.addf %35, %40 : vector<288x128xf32>
    %c279_i32 = arith.constant 279 : i32
    %42 = tpu.dynamic_rotate %1 by %c279_i32 dim 0 : vector<288x128xf32>, i32 -> vector<288x128xf32>
    %43 = arith.truncf %42 : vector<288x128xf32> to vector<288x128xbf16>
    %c7 = arith.constant 7 : index
    %c0_22 = arith.constant 0 : index
    %c0_23 = arith.constant 0 : index
    %44 = vector.load %arg2[%c7, %c0_22, %c0_23] : memref<9x128x128xbf16, #tpu.memory_space<vmem>>, vector<1x128x128xbf16>
    %45 = vector.shape_cast %44 : vector<1x128x128xbf16> to vector<128x128xbf16>
    %cst_24 = arith.constant dense<0.000000e+00> : vector<288x128xf32>
    %46 = tpu.matmul %43, %45, %cst_24 {dimension_numbers = #tpu.dot_dimension_numbers<[1], [0], [0], [1], [0, 0, 1, 1], [], []>} : vector<288x128xbf16>, vector<128x128xbf16>, vector<288x128xf32> -> vector<288x128xf32>
    %47 = arith.addf %41, %46 : vector<288x128xf32>
    %c278_i32 = arith.constant 278 : i32
    %48 = tpu.dynamic_rotate %1 by %c278_i32 dim 0 : vector<288x128xf32>, i32 -> vector<288x128xf32>
    %49 = arith.truncf %48 : vector<288x128xf32> to vector<288x128xbf16>
    %c8 = arith.constant 8 : index
    %c0_25 = arith.constant 0 : index
    %c0_26 = arith.constant 0 : index
    %50 = vector.load %arg2[%c8, %c0_25, %c0_26] : memref<9x128x128xbf16, #tpu.memory_space<vmem>>, vector<1x128x128xbf16>
    %51 = vector.shape_cast %50 : vector<1x128x128xbf16> to vector<128x128xbf16>
    %cst_27 = arith.constant dense<0.000000e+00> : vector<288x128xf32>
    %52 = tpu.matmul %49, %51, %cst_27 {dimension_numbers = #tpu.dot_dimension_numbers<[1], [0], [0], [1], [0, 0, 1, 1], [], []>} : vector<288x128xbf16>, vector<128x128xbf16>, vector<288x128xf32> -> vector<288x128xf32>
    %53 = arith.addf %47, %52 : vector<288x128xf32>
    %c0_28 = arith.constant 0 : index
    %c0_29 = arith.constant 0 : index
    %54 = vector.load %arg3[%c0_28, %c0_29] : memref<1x128xf32, #tpu.memory_space<vmem>>, vector<1x128xf32>
    %55 = vector.broadcast %54 : vector<1x128xf32> to vector<288x128xf32>
    %56 = arith.addf %53, %55 : vector<288x128xf32>
    %cst_30 = arith.constant 0.000000e+00 : f32
    %57 = vector.broadcast %cst_30 : f32 to vector<288x128xf32>
    %58 = arith.maximumf %56, %57 : vector<288x128xf32>
    %c0_31 = arith.constant 0 : index
    %c0_32 = arith.constant 0 : index
    %59 = vector.load %arg4[%c0_31, %c0_32] : memref<288x1xf32, #tpu.memory_space<vmem>>, vector<288x1xf32>
    %60 = vector.broadcast %59 : vector<288x1xf32> to vector<288x128xf32>
    %61 = arith.mulf %58, %60 : vector<288x128xf32>
    %62 = arith.truncf %61 : vector<288x128xf32> to vector<288x128xbf16>
    %c0_33 = arith.constant 0 : index
    %c0_34 = arith.constant 0 : index
    %63 = vector.load %arg5[%c0_33, %c0_34] : memref<288x128xbf16, #tpu.memory_space<vmem>>, vector<288x128xbf16>
    tpu.vector_store %arg5[%c0_33, %c0_34], %62 {strides = array<i32>} : memref<288x128xbf16, #tpu.memory_space<vmem>>, vector<288x128xbf16>,
    return
  }
  func.func @transform_0(%arg0: i32) -> (i32, i32) {
    %c0_i32 = arith.constant 0 : i32
    %c0_i32_0 = arith.constant 0 : i32
    return %arg0, %c0_i32 : i32, i32
  }
  func.func @transform_1(%arg0: i32) -> (i32, i32, i32) {
    %c0_i32 = arith.constant 0 : i32
    %c0_i32_0 = arith.constant 0 : i32
    %c0_i32_1 = arith.constant 0 : i32
    %c0_i32_2 = arith.constant 0 : i32
    return %c0_i32, %c0_i32_0, %c0_i32_1 : i32, i32, i32
  }
  func.func @transform_2(%arg0: i32) -> (i32, i32) {
    %c0_i32 = arith.constant 0 : i32
    %c0_i32_0 = arith.constant 0 : i32
    %c0_i32_1 = arith.constant 0 : i32
    return %c0_i32, %c0_i32_0 : i32, i32
  }
  func.func @transform_3(%arg0: i32) -> (i32, i32) {
    %c0_i32 = arith.constant 0 : i32
    %c0_i32_0 = arith.constant 0 : i32
    return %arg0, %c0_i32 : i32, i32
  }
  func.func @transform_4(%arg0: i32) -> (i32, i32) {
    %c0_i32 = arith.constant 0 : i32
    %c0_i32_0 = arith.constant 0 : i32
    return %arg0, %c0_i32 : i32, i32
  }
}

module attributes {stable_mosaic.version = 11 : i64} {
  func.func @kernel(%arg0: i32, %arg1: memref<288x128xbf16, #tpu.memory_space<vmem>>, %arg2: memref<9x128x128xbf16, #tpu.memory_space<vmem>>, %arg3: memref<1x128xf32, #tpu.memory_space<vmem>>, %arg4: memref<9x128x128xbf16, #tpu.memory_space<vmem>>, %arg5: memref<1x128xf32, #tpu.memory_space<vmem>>, %arg6: memref<288x1xf32, #tpu.memory_space<vmem>>, %arg7: memref<288x128xbf16, #tpu.memory_space<vmem>>) attributes {dimension_semantics = [#tpu.dimension_semantics<parallel>], iteration_bounds = array<i64: 1>, scalar_prefetch = 0 : i64, scratch_operands = 0 : i64, tpu.core_type = #tpu.core_type<tc>, window_params = [{transform_indices = @transform_0, window_bounds = array<i64: 288, 128>}, {pipeline_mode = #tpu.pipeline_mode<synchronous>, transform_indices = @transform_1, window_bounds = array<i64: 9, 128, 128>}, {pipeline_mode = #tpu.pipeline_mode<synchronous>, transform_indices = @transform_2, window_bounds = array<i64: 1, 128>}, {pipeline_mode = #tpu.pipeline_mode<synchronous>, transform_indices = @transform_3, window_bounds = array<i64: 9, 128, 128>}, {pipeline_mode = #tpu.pipeline_mode<synchronous>, transform_indices = @transform_4, window_bounds = array<i64: 1, 128>}, {transform_indices = @transform_5, window_bounds = array<i64: 288, 1>}, {transform_indices = @transform_6, window_bounds = array<i64: 288, 128>}]} {
    %c0 = arith.constant 0 : index
    %c0_0 = arith.constant 0 : index
    %0 = vector.load %arg1[%c0, %c0_0] : memref<288x128xbf16, #tpu.memory_space<vmem>>, vector<288x128xbf16>
    %1 = arith.extf %0 : vector<288x128xbf16> to vector<288x128xf32>
    %c0_1 = arith.constant 0 : index
    %c0_2 = arith.constant 0 : index
    %2 = vector.load %arg6[%c0_1, %c0_2] : memref<288x1xf32, #tpu.memory_space<vmem>>, vector<288x1xf32>
    %c10_i32 = arith.constant 10 : i32
    %3 = tpu.dynamic_rotate %1 by %c10_i32 dim 0 : vector<288x128xf32>, i32 -> vector<288x128xf32>
    %4 = arith.truncf %3 : vector<288x128xf32> to vector<288x128xbf16>
    %c0_3 = arith.constant 0 : index
    %c0_4 = arith.constant 0 : index
    %c0_5 = arith.constant 0 : index
    %5 = vector.load %arg2[%c0_3, %c0_4, %c0_5] : memref<9x128x128xbf16, #tpu.memory_space<vmem>>, vector<1x128x128xbf16>
    %6 = vector.shape_cast %5 : vector<1x128x128xbf16> to vector<128x128xbf16>
    %cst = arith.constant dense<0.000000e+00> : vector<288x128xf32>
    %7 = tpu.matmul %4, %6, %cst {dimension_numbers = #tpu.dot_dimension_numbers<[1], [0], [0], [1], [0, 0, 1, 1], [], []>} : vector<288x128xbf16>, vector<128x128xbf16>, vector<288x128xf32> -> vector<288x128xf32>
    %c9_i32 = arith.constant 9 : i32
    %8 = tpu.dynamic_rotate %1 by %c9_i32 dim 0 : vector<288x128xf32>, i32 -> vector<288x128xf32>
    %9 = arith.truncf %8 : vector<288x128xf32> to vector<288x128xbf16>
    %c1 = arith.constant 1 : index
    %c0_6 = arith.constant 0 : index
    %c0_7 = arith.constant 0 : index
    %10 = vector.load %arg2[%c1, %c0_6, %c0_7] : memref<9x128x128xbf16, #tpu.memory_space<vmem>>, vector<1x128x128xbf16>
    %11 = vector.shape_cast %10 : vector<1x128x128xbf16> to vector<128x128xbf16>
    %cst_8 = arith.constant dense<0.000000e+00> : vector<288x128xf32>
    %12 = tpu.matmul %9, %11, %cst_8 {dimension_numbers = #tpu.dot_dimension_numbers<[1], [0], [0], [1], [0, 0, 1, 1], [], []>} : vector<288x128xbf16>, vector<128x128xbf16>, vector<288x128xf32> -> vector<288x128xf32>
    %13 = arith.addf %7, %12 : vector<288x128xf32>
    %c8_i32 = arith.constant 8 : i32
    %14 = tpu.dynamic_rotate %1 by %c8_i32 dim 0 : vector<288x128xf32>, i32 -> vector<288x128xf32>
    %15 = arith.truncf %14 : vector<288x128xf32> to vector<288x128xbf16>
    %c2 = arith.constant 2 : index
    %c0_9 = arith.constant 0 : index
    %c0_10 = arith.constant 0 : index
    %16 = vector.load %arg2[%c2, %c0_9, %c0_10] : memref<9x128x128xbf16, #tpu.memory_space<vmem>>, vector<1x128x128xbf16>
    %17 = vector.shape_cast %16 : vector<1x128x128xbf16> to vector<128x128xbf16>
    %cst_11 = arith.constant dense<0.000000e+00> : vector<288x128xf32>
    %18 = tpu.matmul %15, %17, %cst_11 {dimension_numbers = #tpu.dot_dimension_numbers<[1], [0], [0], [1], [0, 0, 1, 1], [], []>} : vector<288x128xbf16>, vector<128x128xbf16>, vector<288x128xf32> -> vector<288x128xf32>
    %19 = arith.addf %13, %18 : vector<288x128xf32>
    %c1_i32 = arith.constant 1 : i32
    %20 = tpu.dynamic_rotate %1 by %c1_i32 dim 0 : vector<288x128xf32>, i32 -> vector<288x128xf32>
    %21 = arith.truncf %20 : vector<288x128xf32> to vector<288x128xbf16>
    %c3 = arith.constant 3 : index
    %c0_12 = arith.constant 0 : index
    %c0_13 = arith.constant 0 : index
    %22 = vector.load %arg2[%c3, %c0_12, %c0_13] : memref<9x128x128xbf16, #tpu.memory_space<vmem>>, vector<1x128x128xbf16>
    %23 = vector.shape_cast %22 : vector<1x128x128xbf16> to vector<128x128xbf16>
    %cst_14 = arith.constant dense<0.000000e+00> : vector<288x128xf32>
    %24 = tpu.matmul %21, %23, %cst_14 {dimension_numbers = #tpu.dot_dimension_numbers<[1], [0], [0], [1], [0, 0, 1, 1], [], []>} : vector<288x128xbf16>, vector<128x128xbf16>, vector<288x128xf32> -> vector<288x128xf32>
    %25 = arith.addf %19, %24 : vector<288x128xf32>
    %26 = arith.truncf %1 : vector<288x128xf32> to vector<288x128xbf16>
    %c4 = arith.constant 4 : index
    %c0_15 = arith.constant 0 : index
    %c0_16 = arith.constant 0 : index
    %27 = vector.load %arg2[%c4, %c0_15, %c0_16] : memref<9x128x128xbf16, #tpu.memory_space<vmem>>, vector<1x128x128xbf16>
    %28 = vector.shape_cast %27 : vector<1x128x128xbf16> to vector<128x128xbf16>
    %cst_17 = arith.constant dense<0.000000e+00> : vector<288x128xf32>
    %29 = tpu.matmul %26, %28, %cst_17 {dimension_numbers = #tpu.dot_dimension_numbers<[1], [0], [0], [1], [0, 0, 1, 1], [], []>} : vector<288x128xbf16>, vector<128x128xbf16>, vector<288x128xf32> -> vector<288x128xf32>
    %30 = arith.addf %25, %29 : vector<288x128xf32>
    %c287_i32 = arith.constant 287 : i32
    %31 = tpu.dynamic_rotate %1 by %c287_i32 dim 0 : vector<288x128xf32>, i32 -> vector<288x128xf32>
    %32 = arith.truncf %31 : vector<288x128xf32> to vector<288x128xbf16>
    %c5 = arith.constant 5 : index
    %c0_18 = arith.constant 0 : index
    %c0_19 = arith.constant 0 : index
    %33 = vector.load %arg2[%c5, %c0_18, %c0_19] : memref<9x128x128xbf16, #tpu.memory_space<vmem>>, vector<1x128x128xbf16>
    %34 = vector.shape_cast %33 : vector<1x128x128xbf16> to vector<128x128xbf16>
    %cst_20 = arith.constant dense<0.000000e+00> : vector<288x128xf32>
    %35 = tpu.matmul %32, %34, %cst_20 {dimension_numbers = #tpu.dot_dimension_numbers<[1], [0], [0], [1], [0, 0, 1, 1], [], []>} : vector<288x128xbf16>, vector<128x128xbf16>, vector<288x128xf32> -> vector<288x128xf32>
    %36 = arith.addf %30, %35 : vector<288x128xf32>
    %c280_i32 = arith.constant 280 : i32
    %37 = tpu.dynamic_rotate %1 by %c280_i32 dim 0 : vector<288x128xf32>, i32 -> vector<288x128xf32>
    %38 = arith.truncf %37 : vector<288x128xf32> to vector<288x128xbf16>
    %c6 = arith.constant 6 : index
    %c0_21 = arith.constant 0 : index
    %c0_22 = arith.constant 0 : index
    %39 = vector.load %arg2[%c6, %c0_21, %c0_22] : memref<9x128x128xbf16, #tpu.memory_space<vmem>>, vector<1x128x128xbf16>
    %40 = vector.shape_cast %39 : vector<1x128x128xbf16> to vector<128x128xbf16>
    %cst_23 = arith.constant dense<0.000000e+00> : vector<288x128xf32>
    %41 = tpu.matmul %38, %40, %cst_23 {dimension_numbers = #tpu.dot_dimension_numbers<[1], [0], [0], [1], [0, 0, 1, 1], [], []>} : vector<288x128xbf16>, vector<128x128xbf16>, vector<288x128xf32> -> vector<288x128xf32>
    %42 = arith.addf %36, %41 : vector<288x128xf32>
    %c279_i32 = arith.constant 279 : i32
    %43 = tpu.dynamic_rotate %1 by %c279_i32 dim 0 : vector<288x128xf32>, i32 -> vector<288x128xf32>
    %44 = arith.truncf %43 : vector<288x128xf32> to vector<288x128xbf16>
    %c7 = arith.constant 7 : index
    %c0_24 = arith.constant 0 : index
    %c0_25 = arith.constant 0 : index
    %45 = vector.load %arg2[%c7, %c0_24, %c0_25] : memref<9x128x128xbf16, #tpu.memory_space<vmem>>, vector<1x128x128xbf16>
    %46 = vector.shape_cast %45 : vector<1x128x128xbf16> to vector<128x128xbf16>
    %cst_26 = arith.constant dense<0.000000e+00> : vector<288x128xf32>
    %47 = tpu.matmul %44, %46, %cst_26 {dimension_numbers = #tpu.dot_dimension_numbers<[1], [0], [0], [1], [0, 0, 1, 1], [], []>} : vector<288x128xbf16>, vector<128x128xbf16>, vector<288x128xf32> -> vector<288x128xf32>
    %48 = arith.addf %42, %47 : vector<288x128xf32>
    %c278_i32 = arith.constant 278 : i32
    %49 = tpu.dynamic_rotate %1 by %c278_i32 dim 0 : vector<288x128xf32>, i32 -> vector<288x128xf32>
    %50 = arith.truncf %49 : vector<288x128xf32> to vector<288x128xbf16>
    %c8 = arith.constant 8 : index
    %c0_27 = arith.constant 0 : index
    %c0_28 = arith.constant 0 : index
    %51 = vector.load %arg2[%c8, %c0_27, %c0_28] : memref<9x128x128xbf16, #tpu.memory_space<vmem>>, vector<1x128x128xbf16>
    %52 = vector.shape_cast %51 : vector<1x128x128xbf16> to vector<128x128xbf16>
    %cst_29 = arith.constant dense<0.000000e+00> : vector<288x128xf32>
    %53 = tpu.matmul %50, %52, %cst_29 {dimension_numbers = #tpu.dot_dimension_numbers<[1], [0], [0], [1], [0, 0, 1, 1], [], []>} : vector<288x128xbf16>, vector<128x128xbf16>, vector<288x128xf32> -> vector<288x128xf32>
    %54 = arith.addf %48, %53 : vector<288x128xf32>
    %c0_30 = arith.constant 0 : index
    %c0_31 = arith.constant 0 : index
    %55 = vector.load %arg3[%c0_30, %c0_31] : memref<1x128xf32, #tpu.memory_space<vmem>>, vector<1x128xf32>
    %56 = vector.broadcast %55 : vector<1x128xf32> to vector<288x128xf32>
    %57 = arith.addf %54, %56 : vector<288x128xf32>
    %cst_32 = arith.constant 0.000000e+00 : f32
    %58 = vector.broadcast %cst_32 : f32 to vector<288x128xf32>
    %59 = arith.maximumf %57, %58 : vector<288x128xf32>
    %60 = vector.broadcast %2 : vector<288x1xf32> to vector<288x128xf32>
    %61 = arith.mulf %59, %60 : vector<288x128xf32>
    %c10_i32_33 = arith.constant 10 : i32
    %62 = tpu.dynamic_rotate %61 by %c10_i32_33 dim 0 : vector<288x128xf32>, i32 -> vector<288x128xf32>
    %63 = arith.truncf %62 : vector<288x128xf32> to vector<288x128xbf16>
    %c0_34 = arith.constant 0 : index
    %c0_35 = arith.constant 0 : index
    %c0_36 = arith.constant 0 : index
    %64 = vector.load %arg4[%c0_34, %c0_35, %c0_36] : memref<9x128x128xbf16, #tpu.memory_space<vmem>>, vector<1x128x128xbf16>
    %65 = vector.shape_cast %64 : vector<1x128x128xbf16> to vector<128x128xbf16>
    %cst_37 = arith.constant dense<0.000000e+00> : vector<288x128xf32>
    %66 = tpu.matmul %63, %65, %cst_37 {dimension_numbers = #tpu.dot_dimension_numbers<[1], [0], [0], [1], [0, 0, 1, 1], [], []>} : vector<288x128xbf16>, vector<128x128xbf16>, vector<288x128xf32> -> vector<288x128xf32>
    %c9_i32_38 = arith.constant 9 : i32
    %67 = tpu.dynamic_rotate %61 by %c9_i32_38 dim 0 : vector<288x128xf32>, i32 -> vector<288x128xf32>
    %68 = arith.truncf %67 : vector<288x128xf32> to vector<288x128xbf16>
    %c1_39 = arith.constant 1 : index
    %c0_40 = arith.constant 0 : index
    %c0_41 = arith.constant 0 : index
    %69 = vector.load %arg4[%c1_39, %c0_40, %c0_41] : memref<9x128x128xbf16, #tpu.memory_space<vmem>>, vector<1x128x128xbf16>
    %70 = vector.shape_cast %69 : vector<1x128x128xbf16> to vector<128x128xbf16>
    %cst_42 = arith.constant dense<0.000000e+00> : vector<288x128xf32>
    %71 = tpu.matmul %68, %70, %cst_42 {dimension_numbers = #tpu.dot_dimension_numbers<[1], [0], [0], [1], [0, 0, 1, 1], [], []>} : vector<288x128xbf16>, vector<128x128xbf16>, vector<288x128xf32> -> vector<288x128xf32>
    %72 = arith.addf %66, %71 : vector<288x128xf32>
    %c8_i32_43 = arith.constant 8 : i32
    %73 = tpu.dynamic_rotate %61 by %c8_i32_43 dim 0 : vector<288x128xf32>, i32 -> vector<288x128xf32>
    %74 = arith.truncf %73 : vector<288x128xf32> to vector<288x128xbf16>
    %c2_44 = arith.constant 2 : index
    %c0_45 = arith.constant 0 : index
    %c0_46 = arith.constant 0 : index
    %75 = vector.load %arg4[%c2_44, %c0_45, %c0_46] : memref<9x128x128xbf16, #tpu.memory_space<vmem>>, vector<1x128x128xbf16>
    %76 = vector.shape_cast %75 : vector<1x128x128xbf16> to vector<128x128xbf16>
    %cst_47 = arith.constant dense<0.000000e+00> : vector<288x128xf32>
    %77 = tpu.matmul %74, %76, %cst_47 {dimension_numbers = #tpu.dot_dimension_numbers<[1], [0], [0], [1], [0, 0, 1, 1], [], []>} : vector<288x128xbf16>, vector<128x128xbf16>, vector<288x128xf32> -> vector<288x128xf32>
    %78 = arith.addf %72, %77 : vector<288x128xf32>
    %c1_i32_48 = arith.constant 1 : i32
    %79 = tpu.dynamic_rotate %61 by %c1_i32_48 dim 0 : vector<288x128xf32>, i32 -> vector<288x128xf32>
    %80 = arith.truncf %79 : vector<288x128xf32> to vector<288x128xbf16>
    %c3_49 = arith.constant 3 : index
    %c0_50 = arith.constant 0 : index
    %c0_51 = arith.constant 0 : index
    %81 = vector.load %arg4[%c3_49, %c0_50, %c0_51] : memref<9x128x128xbf16, #tpu.memory_space<vmem>>, vector<1x128x128xbf16>
    %82 = vector.shape_cast %81 : vector<1x128x128xbf16> to vector<128x128xbf16>
    %cst_52 = arith.constant dense<0.000000e+00> : vector<288x128xf32>
    %83 = tpu.matmul %80, %82, %cst_52 {dimension_numbers = #tpu.dot_dimension_numbers<[1], [0], [0], [1], [0, 0, 1, 1], [], []>} : vector<288x128xbf16>, vector<128x128xbf16>, vector<288x128xf32> -> vector<288x128xf32>
    %84 = arith.addf %78, %83 : vector<288x128xf32>
    %85 = arith.truncf %61 : vector<288x128xf32> to vector<288x128xbf16>
    %c4_53 = arith.constant 4 : index
    %c0_54 = arith.constant 0 : index
    %c0_55 = arith.constant 0 : index
    %86 = vector.load %arg4[%c4_53, %c0_54, %c0_55] : memref<9x128x128xbf16, #tpu.memory_space<vmem>>, vector<1x128x128xbf16>
    %87 = vector.shape_cast %86 : vector<1x128x128xbf16> to vector<128x128xbf16>
    %cst_56 = arith.constant dense<0.000000e+00> : vector<288x128xf32>
    %88 = tpu.matmul %85, %87, %cst_56 {dimension_numbers = #tpu.dot_dimension_numbers<[1], [0], [0], [1], [0, 0, 1, 1], [], []>} : vector<288x128xbf16>, vector<128x128xbf16>, vector<288x128xf32> -> vector<288x128xf32>
    %89 = arith.addf %84, %88 : vector<288x128xf32>
    %c287_i32_57 = arith.constant 287 : i32
    %90 = tpu.dynamic_rotate %61 by %c287_i32_57 dim 0 : vector<288x128xf32>, i32 -> vector<288x128xf32>
    %91 = arith.truncf %90 : vector<288x128xf32> to vector<288x128xbf16>
    %c5_58 = arith.constant 5 : index
    %c0_59 = arith.constant 0 : index
    %c0_60 = arith.constant 0 : index
    %92 = vector.load %arg4[%c5_58, %c0_59, %c0_60] : memref<9x128x128xbf16, #tpu.memory_space<vmem>>, vector<1x128x128xbf16>
    %93 = vector.shape_cast %92 : vector<1x128x128xbf16> to vector<128x128xbf16>
    %cst_61 = arith.constant dense<0.000000e+00> : vector<288x128xf32>
    %94 = tpu.matmul %91, %93, %cst_61 {dimension_numbers = #tpu.dot_dimension_numbers<[1], [0], [0], [1], [0, 0, 1, 1], [], []>} : vector<288x128xbf16>, vector<128x128xbf16>, vector<288x128xf32> -> vector<288x128xf32>
    %95 = arith.addf %89, %94 : vector<288x128xf32>
    %c280_i32_62 = arith.constant 280 : i32
    %96 = tpu.dynamic_rotate %61 by %c280_i32_62 dim 0 : vector<288x128xf32>, i32 -> vector<288x128xf32>
    %97 = arith.truncf %96 : vector<288x128xf32> to vector<288x128xbf16>
    %c6_63 = arith.constant 6 : index
    %c0_64 = arith.constant 0 : index
    %c0_65 = arith.constant 0 : index
    %98 = vector.load %arg4[%c6_63, %c0_64, %c0_65] : memref<9x128x128xbf16, #tpu.memory_space<vmem>>, vector<1x128x128xbf16>
    %99 = vector.shape_cast %98 : vector<1x128x128xbf16> to vector<128x128xbf16>
    %cst_66 = arith.constant dense<0.000000e+00> : vector<288x128xf32>
    %100 = tpu.matmul %97, %99, %cst_66 {dimension_numbers = #tpu.dot_dimension_numbers<[1], [0], [0], [1], [0, 0, 1, 1], [], []>} : vector<288x128xbf16>, vector<128x128xbf16>, vector<288x128xf32> -> vector<288x128xf32>
    %101 = arith.addf %95, %100 : vector<288x128xf32>
    %c279_i32_67 = arith.constant 279 : i32
    %102 = tpu.dynamic_rotate %61 by %c279_i32_67 dim 0 : vector<288x128xf32>, i32 -> vector<288x128xf32>
    %103 = arith.truncf %102 : vector<288x128xf32> to vector<288x128xbf16>
    %c7_68 = arith.constant 7 : index
    %c0_69 = arith.constant 0 : index
    %c0_70 = arith.constant 0 : index
    %104 = vector.load %arg4[%c7_68, %c0_69, %c0_70] : memref<9x128x128xbf16, #tpu.memory_space<vmem>>, vector<1x128x128xbf16>
    %105 = vector.shape_cast %104 : vector<1x128x128xbf16> to vector<128x128xbf16>
    %cst_71 = arith.constant dense<0.000000e+00> : vector<288x128xf32>
    %106 = tpu.matmul %103, %105, %cst_71 {dimension_numbers = #tpu.dot_dimension_numbers<[1], [0], [0], [1], [0, 0, 1, 1], [], []>} : vector<288x128xbf16>, vector<128x128xbf16>, vector<288x128xf32> -> vector<288x128xf32>
    %107 = arith.addf %101, %106 : vector<288x128xf32>
    %c278_i32_72 = arith.constant 278 : i32
    %108 = tpu.dynamic_rotate %61 by %c278_i32_72 dim 0 : vector<288x128xf32>, i32 -> vector<288x128xf32>
    %109 = arith.truncf %108 : vector<288x128xf32> to vector<288x128xbf16>
    %c8_73 = arith.constant 8 : index
    %c0_74 = arith.constant 0 : index
    %c0_75 = arith.constant 0 : index
    %110 = vector.load %arg4[%c8_73, %c0_74, %c0_75] : memref<9x128x128xbf16, #tpu.memory_space<vmem>>, vector<1x128x128xbf16>
    %111 = vector.shape_cast %110 : vector<1x128x128xbf16> to vector<128x128xbf16>
    %cst_76 = arith.constant dense<0.000000e+00> : vector<288x128xf32>
    %112 = tpu.matmul %109, %111, %cst_76 {dimension_numbers = #tpu.dot_dimension_numbers<[1], [0], [0], [1], [0, 0, 1, 1], [], []>} : vector<288x128xbf16>, vector<128x128xbf16>, vector<288x128xf32> -> vector<288x128xf32>
    %113 = arith.addf %107, %112 : vector<288x128xf32>
    %c0_77 = arith.constant 0 : index
    %c0_78 = arith.constant 0 : index
    %114 = vector.load %arg5[%c0_77, %c0_78] : memref<1x128xf32, #tpu.memory_space<vmem>>, vector<1x128xf32>
    %115 = vector.broadcast %114 : vector<1x128xf32> to vector<288x128xf32>
    %116 = arith.addf %113, %115 : vector<288x128xf32>
    %117 = arith.addf %116, %1 : vector<288x128xf32>
    %cst_79 = arith.constant 0.000000e+00 : f32
    %118 = vector.broadcast %cst_79 : f32 to vector<288x128xf32>
    %119 = arith.maximumf %117, %118 : vector<288x128xf32>
    %120 = vector.broadcast %2 : vector<288x1xf32> to vector<288x128xf32>
    %121 = arith.mulf %119, %120 : vector<288x128xf32>
    %122 = arith.truncf %121 : vector<288x128xf32> to vector<288x128xbf16>
    %c0_80 = arith.constant 0 : index
    %c0_81 = arith.constant 0 : index
    %123 = vector.load %arg7[%c0_80, %c0_81] : memref<288x128xbf16, #tpu.memory_space<vmem>>, vector<288x128xbf16>
    tpu.vector_store %arg7[%c0_80, %c0_81], %122 {strides = array<i32>} : memref<288x128xbf16, #tpu.memory_space<vmem>>, vector<288x128xbf16>,
    return
  }
  func.func @transform_0(%arg0: i32) -> (i32, i32) {
    %c0_i32 = arith.constant 0 : i32
    %c0_i32_0 = arith.constant 0 : i32
    return %arg0, %c0_i32 : i32, i32
  }
  func.func @transform_1(%arg0: i32) -> (i32, i32, i32) {
    %c0_i32 = arith.constant 0 : i32
    %c0_i32_0 = arith.constant 0 : i32
    %c0_i32_1 = arith.constant 0 : i32
    %c0_i32_2 = arith.constant 0 : i32
    return %c0_i32, %c0_i32_0, %c0_i32_1 : i32, i32, i32
  }
  func.func @transform_2(%arg0: i32) -> (i32, i32) {
    %c0_i32 = arith.constant 0 : i32
    %c0_i32_0 = arith.constant 0 : i32
    %c0_i32_1 = arith.constant 0 : i32
    return %c0_i32, %c0_i32_0 : i32, i32
  }
  func.func @transform_3(%arg0: i32) -> (i32, i32, i32) {
    %c0_i32 = arith.constant 0 : i32
    %c0_i32_0 = arith.constant 0 : i32
    %c0_i32_1 = arith.constant 0 : i32
    %c0_i32_2 = arith.constant 0 : i32
    return %c0_i32, %c0_i32_0, %c0_i32_1 : i32, i32, i32
  }
  func.func @transform_4(%arg0: i32) -> (i32, i32) {
    %c0_i32 = arith.constant 0 : i32
    %c0_i32_0 = arith.constant 0 : i32
    %c0_i32_1 = arith.constant 0 : i32
    return %c0_i32, %c0_i32_0 : i32, i32
  }
  func.func @transform_5(%arg0: i32) -> (i32, i32) {
    %c0_i32 = arith.constant 0 : i32
    %c0_i32_0 = arith.constant 0 : i32
    return %arg0, %c0_i32 : i32, i32
  }
  func.func @transform_6(%arg0: i32) -> (i32, i32) {
    %c0_i32 = arith.constant 0 : i32
    %c0_i32_0 = arith.constant 0 : i32
    return %arg0, %c0_i32 : i32, i32
  }
}

module attributes {stable_mosaic.version = 11 : i64} {
  func.func @kernel(%arg0: i32, %arg1: memref<8x128xbf16, #tpu.memory_space<vmem>>, %arg2: memref<128x128xbf16, #tpu.memory_space<vmem>>, %arg3: memref<1x128xf32, #tpu.memory_space<vmem>>, %arg4: memref<8x128xf32, #tpu.memory_space<vmem>>) attributes {dimension_semantics = [#tpu.dimension_semantics<parallel>], iteration_bounds = array<i64: 1>, scalar_prefetch = 0 : i64, scratch_operands = 0 : i64, tpu.core_type = #tpu.core_type<tc>, window_params = [{transform_indices = @transform_0, window_bounds = array<i64: 8, 128>}, {pipeline_mode = #tpu.pipeline_mode<synchronous>, transform_indices = @transform_1, window_bounds = array<i64: 128, 128>}, {pipeline_mode = #tpu.pipeline_mode<synchronous>, transform_indices = @transform_2, window_bounds = array<i64: 1, 128>}, {transform_indices = @transform_3, window_bounds = array<i64: 8, 128>}]} {
    %c0 = arith.constant 0 : index
    %c0_0 = arith.constant 0 : index
    %0 = vector.load %arg1[%c0, %c0_0] : memref<8x128xbf16, #tpu.memory_space<vmem>>, vector<8x128xbf16>
    %c0_1 = arith.constant 0 : index
    %c0_2 = arith.constant 0 : index
    %1 = vector.load %arg2[%c0_1, %c0_2] : memref<128x128xbf16, #tpu.memory_space<vmem>>, vector<128x128xbf16>
    %cst = arith.constant dense<0.000000e+00> : vector<8x128xf32>
    %2 = tpu.matmul %0, %1, %cst {dimension_numbers = #tpu.dot_dimension_numbers<[1], [0], [0], [1], [0, 0, 1, 1], [], []>} : vector<8x128xbf16>, vector<128x128xbf16>, vector<8x128xf32> -> vector<8x128xf32>
    %c0_3 = arith.constant 0 : index
    %c0_4 = arith.constant 0 : index
    %3 = vector.load %arg3[%c0_3, %c0_4] : memref<1x128xf32, #tpu.memory_space<vmem>>, vector<1x128xf32>
    %4 = vector.broadcast %3 : vector<1x128xf32> to vector<8x128xf32>
    %5 = arith.addf %2, %4 : vector<8x128xf32>
    %6 = tpu.iota {dimensions = array<i32: 1>} : vector<8x128xi32>
    %c7_i32 = arith.constant 7 : i32
    %7 = vector.broadcast %c7_i32 : i32 to vector<8x128xi32>
    %8 = arith.cmpi slt, %6, %7 : vector<8x128xi32>
    %cst_5 = arith.constant 0xFF800000 : f32
    %9 = vector.broadcast %cst_5 : f32 to vector<8x128xf32>
    %10 = arith.select %8, %5, %9 : vector<8x128xi1>, vector<8x128xf32>
    %cst_6 = arith.constant dense<0xFF800000> : vector<8xf32>
    %11 = vector.multi_reduction <maximumf>, %10, %cst_6 [1] : vector<8x128xf32> to vector<8xf32>
    %12 = vector.shape_cast %11 : vector<8xf32> to vector<8x1xf32>
    %13 = vector.broadcast %12 : vector<8x1xf32> to vector<8x128xf32>
    %14 = arith.subf %5, %13 : vector<8x128xf32>
    %15 = math.exp %14 : vector<8x128xf32>
    %cst_7 = arith.constant 0.000000e+00 : f32
    %16 = vector.broadcast %cst_7 : f32 to vector<8x128xf32>
    %17 = arith.select %8, %15, %16 : vector<8x128xi1>, vector<8x128xf32>
    %cst_8 = arith.constant dense<0.000000e+00> : vector<8xf32>
    %18 = vector.multi_reduction <add>, %17, %cst_8 [1] : vector<8x128xf32> to vector<8xf32>
    %19 = vector.shape_cast %18 : vector<8xf32> to vector<8x1xf32>
    %20 = math.log %19 : vector<8x1xf32>
    %21 = arith.addf %20, %12 : vector<8x1xf32>
    %22 = vector.broadcast %21 : vector<8x1xf32> to vector<8x128xf32>
    %23 = arith.subf %5, %22 : vector<8x128xf32>
    %c0_9 = arith.constant 0 : index
    %c0_10 = arith.constant 0 : index
    %24 = vector.load %arg4[%c0_9, %c0_10] : memref<8x128xf32, #tpu.memory_space<vmem>>, vector<8x128xf32>
    tpu.vector_store %arg4[%c0_9, %c0_10], %23 {strides = array<i32>} : memref<8x128xf32, #tpu.memory_space<vmem>>, vector<8x128xf32>,
    return
  }
  func.func @transform_0(%arg0: i32) -> (i32, i32) {
    %c0_i32 = arith.constant 0 : i32
    %c0_i32_0 = arith.constant 0 : i32
    return %arg0, %c0_i32 : i32, i32
  }
  func.func @transform_1(%arg0: i32) -> (i32, i32) {
    %c0_i32 = arith.constant 0 : i32
    %c0_i32_0 = arith.constant 0 : i32
    %c0_i32_1 = arith.constant 0 : i32
    return %c0_i32, %c0_i32_0 : i32, i32
  }
  func.func @transform_2(%arg0: i32) -> (i32, i32) {
    %c0_i32 = arith.constant 0 : i32
    %c0_i32_0 = arith.constant 0 : i32
    %c0_i32_1 = arith.constant 0 : i32
    return %c0_i32, %c0_i32_0 : i32, i32
  }
  func.func @transform_3(%arg0: i32) -> (i32, i32) {
    %c0_i32 = arith.constant 0 : i32
    %c0_i32_0 = arith.constant 0 : i32
    return %arg0, %c0_i32 : i32, i32
  }
}

module attributes {stable_mosaic.version = 11 : i64} {
  func.func @kernel(%arg0: i32, %arg1: memref<8x128xbf16, #tpu.memory_space<vmem>>, %arg2: memref<128x128xbf16, #tpu.memory_space<vmem>>, %arg3: memref<1x128xf32, #tpu.memory_space<vmem>>, %arg4: memref<8x128xf32, #tpu.memory_space<vmem>>) attributes {dimension_semantics = [#tpu.dimension_semantics<parallel>], iteration_bounds = array<i64: 1>, scalar_prefetch = 0 : i64, scratch_operands = 0 : i64, tpu.core_type = #tpu.core_type<tc>, window_params = [{transform_indices = @transform_0, window_bounds = array<i64: 8, 128>}, {pipeline_mode = #tpu.pipeline_mode<synchronous>, transform_indices = @transform_1, window_bounds = array<i64: 128, 128>}, {pipeline_mode = #tpu.pipeline_mode<synchronous>, transform_indices = @transform_2, window_bounds = array<i64: 1, 128>}, {transform_indices = @transform_3, window_bounds = array<i64: 8, 128>}]} {
    %c0 = arith.constant 0 : index
    %c0_0 = arith.constant 0 : index
    %0 = vector.load %arg1[%c0, %c0_0] : memref<8x128xbf16, #tpu.memory_space<vmem>>, vector<8x128xbf16>
    %c0_1 = arith.constant 0 : index
    %c0_2 = arith.constant 0 : index
    %1 = vector.load %arg2[%c0_1, %c0_2] : memref<128x128xbf16, #tpu.memory_space<vmem>>, vector<128x128xbf16>
    %cst = arith.constant dense<0.000000e+00> : vector<8x128xf32>
    %2 = tpu.matmul %0, %1, %cst {dimension_numbers = #tpu.dot_dimension_numbers<[1], [0], [0], [1], [0, 0, 1, 1], [], []>} : vector<8x128xbf16>, vector<128x128xbf16>, vector<8x128xf32> -> vector<8x128xf32>
    %c0_3 = arith.constant 0 : index
    %c0_4 = arith.constant 0 : index
    %3 = vector.load %arg3[%c0_3, %c0_4] : memref<1x128xf32, #tpu.memory_space<vmem>>, vector<1x128xf32>
    %4 = vector.broadcast %3 : vector<1x128xf32> to vector<8x128xf32>
    %5 = arith.addf %2, %4 : vector<8x128xf32>
    %cst_5 = arith.constant 0.000000e+00 : f32
    %6 = vector.broadcast %cst_5 : f32 to vector<8x128xf32>
    %7 = arith.maximumf %5, %6 : vector<8x128xf32>
    %c0_6 = arith.constant 0 : index
    %c0_7 = arith.constant 0 : index
    %8 = vector.load %arg4[%c0_6, %c0_7] : memref<8x128xf32, #tpu.memory_space<vmem>>, vector<8x128xf32>
    tpu.vector_store %arg4[%c0_6, %c0_7], %7 {strides = array<i32>} : memref<8x128xf32, #tpu.memory_space<vmem>>, vector<8x128xf32>,
    return
  }
  func.func @transform_0(%arg0: i32) -> (i32, i32) {
    %c0_i32 = arith.constant 0 : i32
    %c0_i32_0 = arith.constant 0 : i32
    return %arg0, %c0_i32 : i32, i32
  }
  func.func @transform_1(%arg0: i32) -> (i32, i32) {
    %c0_i32 = arith.constant 0 : i32
    %c0_i32_0 = arith.constant 0 : i32
    %c0_i32_1 = arith.constant 0 : i32
    return %c0_i32, %c0_i32_0 : i32, i32
  }
  func.func @transform_2(%arg0: i32) -> (i32, i32) {
    %c0_i32 = arith.constant 0 : i32
    %c0_i32_0 = arith.constant 0 : i32
    %c0_i32_1 = arith.constant 0 : i32
    return %c0_i32, %c0_i32_0 : i32, i32
  }
  func.func @transform_3(%arg0: i32) -> (i32, i32) {
    %c0_i32 = arith.constant 0 : i32
    %c0_i32_0 = arith.constant 0 : i32
    return %arg0, %c0_i32 : i32, i32
  }
}

module attributes {stable_mosaic.version = 11 : i64} {
  func.func @kernel(%arg0: i32, %arg1: memref<8x128xbf16, #tpu.memory_space<vmem>>, %arg2: memref<128x128xbf16, #tpu.memory_space<vmem>>, %arg3: memref<1x128xf32, #tpu.memory_space<vmem>>, %arg4: memref<8x128xf32, #tpu.memory_space<vmem>>) attributes {dimension_semantics = [#tpu.dimension_semantics<parallel>], iteration_bounds = array<i64: 1>, scalar_prefetch = 0 : i64, scratch_operands = 0 : i64, tpu.core_type = #tpu.core_type<tc>, window_params = [{transform_indices = @transform_0, window_bounds = array<i64: 8, 128>}, {pipeline_mode = #tpu.pipeline_mode<synchronous>, transform_indices = @transform_1, window_bounds = array<i64: 128, 128>}, {pipeline_mode = #tpu.pipeline_mode<synchronous>, transform_indices = @transform_2, window_bounds = array<i64: 1, 128>}, {transform_indices = @transform_3, window_bounds = array<i64: 8, 128>}]} {
    %c0 = arith.constant 0 : index
    %c0_0 = arith.constant 0 : index
    %0 = vector.load %arg1[%c0, %c0_0] : memref<8x128xbf16, #tpu.memory_space<vmem>>, vector<8x128xbf16>
    %c0_1 = arith.constant 0 : index
    %c0_2 = arith.constant 0 : index
    %1 = vector.load %arg2[%c0_1, %c0_2] : memref<128x128xbf16, #tpu.memory_space<vmem>>, vector<128x128xbf16>
    %cst = arith.constant dense<0.000000e+00> : vector<8x128xf32>
    %2 = tpu.matmul %0, %1, %cst {dimension_numbers = #tpu.dot_dimension_numbers<[1], [0], [0], [1], [0, 0, 1, 1], [], []>} : vector<8x128xbf16>, vector<128x128xbf16>, vector<8x128xf32> -> vector<8x128xf32>
    %c0_3 = arith.constant 0 : index
    %c0_4 = arith.constant 0 : index
    %3 = vector.load %arg3[%c0_3, %c0_4] : memref<1x128xf32, #tpu.memory_space<vmem>>, vector<1x128xf32>
    %4 = vector.broadcast %3 : vector<1x128xf32> to vector<8x128xf32>
    %5 = arith.addf %2, %4 : vector<8x128xf32>
    %6 = math.tanh %5 : vector<8x128xf32>
    %c0_5 = arith.constant 0 : index
    %c0_6 = arith.constant 0 : index
    %7 = vector.load %arg4[%c0_5, %c0_6] : memref<8x128xf32, #tpu.memory_space<vmem>>, vector<8x128xf32>
    tpu.vector_store %arg4[%c0_5, %c0_6], %6 {strides = array<i32>} : memref<8x128xf32, #tpu.memory_space<vmem>>, vector<8x128xf32>,
    return
  }
  func.func @transform_0(%arg0: i32) -> (i32, i32) {
    %c0_i32 = arith.constant 0 : i32
    %c0_i32_0 = arith.constant 0 : i32
    return %arg0, %c0_i32 : i32, i32
  }
  func.func @transform_1(%arg0: i32) -> (i32, i32) {
    %c0_i32 = arith.constant 0 : i32
    %c0_i32_0 = arith.constant 0 : i32
    %c0_i32_1 = arith.constant 0 : i32
    return %c0_i32, %c0_i32_0 : i32, i32
  }
  func.func @transform_2(%arg0: i32) -> (i32, i32) {
    %c0_i32 = arith.constant 0 : i32
    %c0_i32_0 = arith.constant 0 : i32
    %c0_i32_1 = arith.constant 0 : i32
    return %c0_i32, %c0_i32_0 : i32, i32
  }
  func.func @transform_3(%arg0: i32) -> (i32, i32) {
    %c0_i32 = arith.constant 0 : i32
    %c0_i32_0 = arith.constant 0 : i32
    return %arg0, %c0_i32 : i32, i32
  }
}

</mosaic_0001>

<llo_original>
// kernel: tile.6
$region0: #{tile.6}
  #allocation0 [shape = 's32[1]{0}', space=sflag, size = 0x4, scoped, tag = 'scoped memory for tile.6']
  %s0 = inlined_call_operand.vmem [shape: f32[72], index: 0, kind: input, shape index: {}]
  %s1 = inlined_call_operand.vmem [shape: f32[4,1,1,72], index: 1, kind: output, shape index: {}]
  // Predicated region
  $region2: #{tile.6} parent=0 // pred_check
    _
  $region3: #{tile.6} parent=0 // pred_check_branch
    %3 = sbr.rel (0) target = $region5
  $region4: #{tile.6} parent=0 // pred_region
    _
  $region5: #{tile.6} parent=0 // pred_fallthru
    _
  %v4 = vld [vmem:[%s0] ss:$0 sm:$0xff]
  %5 = vst [vmem:[%s1] sm:$0xf] %v4

// kernel: tile.0
$region0: #{tile.0}
  %s0 = inlined_call_operand.vmem [shape: f32[4,1,1,72], index: 0, kind: input, shape index: {}]
  %s1 = inlined_call_operand.vmem [shape: f32[288,1], index: 1, kind: output, shape index: {}]
  $region1: #{tile.0} parent=0
    #allocation0 [shape = 'u8[4096]{0}', space=vmem, size = 0x1000, scoped, tag = 'scoped mem for input reshape']
    %s3 = sshll.u32 1, 4
    %s4 = ssub.s32 %s3, 1
    %v5 = vld [vmem:[%s0] sm:%s4]
    %6 = vst [vmem:[#allocation0] sm:%s4] %v5
    %v7 = vld [vmem:[#allocation0] sm:$0xf]
    %vm8 = vcmask 7168
    %9 = vst.msk [vmem:[%s1] ss:$72 sm:$0xf] %vm8, %v7
    %v10 = vld [vmem:[#allocation0] sm:$0xf]
    %11 = vrot.lane.b32.xlu0 %v10, 127
    %v12 = vpop.permute.xlu0 %11
    %vm13 = vcmask 7168
    %s14 = scalar_lea.vmem %s1, 1
    %15 = vst.msk [vmem:[%s14] ss:$72 sm:$0xf] %vm13, %v12
    %v16 = vld [vmem:[#allocation0] sm:$0xf]
    %17 = vrot.lane.b32.xlu0 %v16, 126
    %v18 = vpop.permute.xlu0 %17
    %vm19 = vcmask 7168
    %s20 = scalar_lea.vmem %s1, 2
    %21 = vst.msk [vmem:[%s20] ss:$72 sm:$0xf] %vm19, %v18
    %v22 = vld [vmem:[#allocation0] sm:$0xf]
    %23 = vrot.lane.b32.xlu0 %v22, 125
    %v24 = vpop.permute.xlu0 %23
    %vm25 = vcmask 7168
    %s26 = scalar_lea.vmem %s1, 3
    %27 = vst.msk [vmem:[%s26] ss:$72 sm:$0xf] %vm25, %v24
    %v28 = vld [vmem:[#allocation0] sm:$0xf]
    %29 = vrot.lane.b32.xlu0 %v28, 124
    %v30 = vpop.permute.xlu0 %29
    %vm31 = vcmask 7168
    %s32 = scalar_lea.vmem %s1, 4
    %33 = vst.msk [vmem:[%s32] ss:$72 sm:$0xf] %vm31, %v30
    %v34 = vld [vmem:[#allocation0] sm:$0xf]
    %35 = vrot.lane.b32.xlu0 %v34, 123
    %v36 = vpop.permute.xlu0 %35
    %vm37 = vcmask 7168
    %s38 = scalar_lea.vmem %s1, 5
    %39 = vst.msk [vmem:[%s38] ss:$72 sm:$0xf] %vm37, %v36
    %v40 = vld [vmem:[#allocation0] sm:$0xf]
    %41 = vrot.lane.b32.xlu0 %v40, 122
    %v42 = vpop.permute.xlu0 %41
    %vm43 = vcmask 7168
    %s44 = scalar_lea.vmem %s1, 6
    %45 = vst.msk [vmem:[%s44] ss:$72 sm:$0xf] %vm43, %v42
    %v46 = vld [vmem:[#allocation0] sm:$0xf]
    %47 = vrot.lane.b32.xlu0 %v46, 121
    %v48 = vpop.permute.xlu0 %47
    %vm49 = vcmask 7168
    %s50 = scalar_lea.vmem %s1, 7
    %51 = vst.msk [vmem:[%s50] ss:$72 sm:$0xf] %vm49, %v48
    %v52 = vld.sshfl [vmem:[#allocation0] sm:$0xff pattern:$0x22222103]
    %53 = vrot.lane.b32.xlu0 %v52, 120
    %v54 = vpop.permute.xlu0 %53
    %vm55 = vcmask 7168
    %s56 = scalar_lea.vmem %s1, 224
    %57 = vst.msk [vmem:[%s56] ss:$-216 sm:$0x3] %vm55, %v54
    %s58 = scalar_lea.vmem %s1, 4294967232
    %59 = vst.msk [vmem:[%s58] ss:$72 sm:$0xc] %vm55, %v54
    %v60 = vld.sshfl [vmem:[#allocation0] sm:$0xff pattern:$0x22222103]
    %61 = vrot.lane.b32.xlu0 %v60, 119
    %v62 = vpop.permute.xlu0 %61
    %vm63 = vcmask 7168
    %s64 = scalar_lea.vmem %s1, 225
    %65 = vst.msk [vmem:[%s64] ss:$-216 sm:$0x3] %vm63, %v62
    %s66 = scalar_lea.vmem %s1, 4294967233
    %67 = vst.msk [vmem:[%s66] ss:$72 sm:$0xc] %vm63, %v62
    %v68 = vld.sshfl [vmem:[#allocation0] sm:$0xff pattern:$0x22222103]
    %69 = vrot.lane.b32.xlu0 %v68, 118
    %v70 = vpop.permute.xlu0 %69
    %vm71 = vcmask 7168
    %s72 = scalar_lea.vmem %s1, 226
    %73 = vst.msk [vmem:[%s72] ss:$-216 sm:$0x3] %vm71, %v70
    %s74 = scalar_lea.vmem %s1, 4294967234
    %75 = vst.msk [vmem:[%s74] ss:$72 sm:$0xc] %vm71, %v70
    %v76 = vld.sshfl [vmem:[#allocation0] sm:$0xff pattern:$0x22222103]
    %77 = vrot.lane.b32.xlu0 %v76, 117
    %v78 = vpop.permute.xlu0 %77
    %vm79 = vcmask 7168
    %s80 = scalar_lea.vmem %s1, 227
    %81 = vst.msk [vmem:[%s80] ss:$-216 sm:$0x3] %vm79, %v78
    %s82 = scalar_lea.vmem %s1, 4294967235
    %83 = vst.msk [vmem:[%s82] ss:$72 sm:$0xc] %vm79, %v78
    %v84 = vld.sshfl [vmem:[#allocation0] sm:$0xff pattern:$0x22222103]
    %85 = vrot.lane.b32.xlu0 %v84, 116
    %v86 = vpop.permute.xlu0 %85
    %vm87 = vcmask 7168
    %s88 = scalar_lea.vmem %s1, 228
    %89 = vst.msk [vmem:[%s88] ss:$-216 sm:$0x3] %vm87, %v86
    %s90 = scalar_lea.vmem %s1, 4294967236
    %91 = vst.msk [vmem:[%s90] ss:$72 sm:$0xc] %vm87, %v86
    %v92 = vld.sshfl [vmem:[#allocation0] sm:$0xff pattern:$0x22222103]
    %93 = vrot.lane.b32.xlu0 %v92, 115
    %v94 = vpop.permute.xlu0 %93
    %vm95 = vcmask 7168
    %s96 = scalar_lea.vmem %s1, 229
    %97 = vst.msk [vmem:[%s96] ss:$-216 sm:$0x3] %vm95, %v94
    %s98 = scalar_lea.vmem %s1, 4294967237
    %99 = vst.msk [vmem:[%s98] ss:$72 sm:$0xc] %vm95, %v94
    %v100 = vld.sshfl [vmem:[#allocation0] sm:$0xff pattern:$0x22222103]
    %101 = vrot.lane.b32.xlu0 %v100, 114
    %v102 = vpop.permute.xlu0 %101
    %vm103 = vcmask 7168
    %s104 = scalar_lea.vmem %s1, 230
    %105 = vst.msk [vmem:[%s104] ss:$-216 sm:$0x3] %vm103, %v102
    %s106 = scalar_lea.vmem %s1, 4294967238
    %107 = vst.msk [vmem:[%s106] ss:$72 sm:$0xc] %vm103, %v102
    %v108 = vld.sshfl [vmem:[#allocation0] sm:$0xff pattern:$0x22222103]
    %109 = vrot.lane.b32.xlu0 %v108, 113
    %v110 = vpop.permute.xlu0 %109
    %vm111 = vcmask 7168
    %s112 = scalar_lea.vmem %s1, 231
    %113 = vst.msk [vmem:[%s112] ss:$-216 sm:$0x3] %vm111, %v110
    %s114 = scalar_lea.vmem %s1, 4294967239
    %115 = vst.msk [vmem:[%s114] ss:$72 sm:$0xc] %vm111, %v110
    %v116 = vld.sshfl [vmem:[#allocation0] sm:$0xff pattern:$0x11111032]
    %117 = vrot.lane.b32.xlu0 %v116, 112
    %v118 = vpop.permute.xlu0 %117
    %vm119 = vcmask 7168
    %s120 = scalar_lea.vmem %s1, 160
    %121 = vst.msk [vmem:[%s120] ss:$72 sm:$0x3] %vm119, %v118
    %s122 = scalar_lea.vmem %s1, 4294967168
    %123 = vst.msk [vmem:[%s122] ss:$72 sm:$0xc] %vm119, %v118
    %v124 = vld.sshfl [vmem:[#allocation0] sm:$0xff pattern:$0x11111032]
    %125 = vrot.lane.b32.xlu0 %v124, 111
    %v126 = vpop.permute.xlu0 %125
    %vm127 = vcmask 7168
    %s128 = scalar_lea.vmem %s1, 161
    %129 = vst.msk [vmem:[%s128] ss:$72 sm:$0x3] %vm127, %v126
    %s130 = scalar_lea.vmem %s1, 4294967169
    %131 = vst.msk [vmem:[%s130] ss:$72 sm:$0xc] %vm127, %v126
    %v132 = vld.sshfl [vmem:[#allocation0] sm:$0xff pattern:$0x11111032]
    %133 = vrot.lane.b32.xlu0 %v132, 110
    %v134 = vpop.permute.xlu0 %133
    %vm135 = vcmask 7168
    %s136 = scalar_lea.vmem %s1, 162
    %137 = vst.msk [vmem:[%s136] ss:$72 sm:$0x3] %vm135, %v134
    %s138 = scalar_lea.vmem %s1, 4294967170
    %139 = vst.msk [vmem:[%s138] ss:$72 sm:$0xc] %vm135, %v134
    %v140 = vld.sshfl [vmem:[#allocation0] sm:$0xff pattern:$0x11111032]
    %141 = vrot.lane.b32.xlu0 %v140, 109
    %v142 = vpop.permute.xlu0 %141
    %vm143 = vcmask 7168
    %s144 = scalar_lea.vmem %s1, 163
    %145 = vst.msk [vmem:[%s144] ss:$72 sm:$0x3] %vm143, %v142
    %s146 = scalar_lea.vmem %s1, 4294967171
    %147 = vst.msk [vmem:[%s146] ss:$72 sm:$0xc] %vm143, %v142
    %v148 = vld.sshfl [vmem:[#allocation0] sm:$0xff pattern:$0x11111032]
    %149 = vrot.lane.b32.xlu0 %v148, 108
    %v150 = vpop.permute.xlu0 %149
    %vm151 = vcmask 7168
    %s152 = scalar_lea.vmem %s1, 164
    %153 = vst.msk [vmem:[%s152] ss:$72 sm:$0x3] %vm151, %v150
    %s154 = scalar_lea.vmem %s1, 4294967172
    %155 = vst.msk [vmem:[%s154] ss:$72 sm:$0xc] %vm151, %v150
    %v156 = vld.sshfl [vmem:[#allocation0] sm:$0xff pattern:$0x11111032]
    %157 = vrot.lane.b32.xlu0 %v156, 107
    %v158 = vpop.permute.xlu0 %157
    %vm159 = vcmask 7168
    %s160 = scalar_lea.vmem %s1, 165
    %161 = vst.msk [vmem:[%s160] ss:$72 sm:$0x3] %vm159, %v158
    %s162 = scalar_lea.vmem %s1, 4294967173
    %163 = vst.msk [vmem:[%s162] ss:$72 sm:$0xc] %vm159, %v158
    %v164 = vld.sshfl [vmem:[#allocation0] sm:$0xff pattern:$0x11111032]
    %165 = vrot.lane.b32.xlu0 %v164, 106
    %v166 = vpop.permute.xlu0 %165
    %vm167 = vcmask 7168
    %s168 = scalar_lea.vmem %s1, 166
    %169 = vst.msk [vmem:[%s168] ss:$72 sm:$0x3] %vm167, %v166
    %s170 = scalar_lea.vmem %s1, 4294967174
    %171 = vst.msk [vmem:[%s170] ss:$72 sm:$0xc] %vm167, %v166
    %v172 = vld.sshfl [vmem:[#allocation0] sm:$0xff pattern:$0x11111032]
    %173 = vrot.lane.b32.xlu0 %v172, 105
    %v174 = vpop.permute.xlu0 %173
    %vm175 = vcmask 7168
    %s176 = scalar_lea.vmem %s1, 167
    %177 = vst.msk [vmem:[%s176] ss:$72 sm:$0x3] %vm175, %v174
    %s178 = scalar_lea.vmem %s1, 4294967175
    %179 = vst.msk [vmem:[%s178] ss:$72 sm:$0xc] %vm175, %v174
    %v180 = vld.sshfl [vmem:[#allocation0] sm:$0xff pattern:$0x321]
    %181 = vrot.lane.b32.xlu0 %v180, 104
    %v182 = vpop.permute.xlu0 %181
    %vm183 = vcmask 7168
    %s184 = scalar_lea.vmem %s1, 96
    %185 = vst.msk [vmem:[%s184] ss:$72 sm:$0x7] %vm183, %v182
    %s186 = scalar_lea.vmem %s1, 21
    %187 = vst.msk [vmem:[%s186] sm:$0x8] %vm183, %v182
    %v188 = vld.sshfl [vmem:[#allocation0] sm:$0xff pattern:$0x321]
    %189 = vrot.lane.b32.xlu0 %v188, 103
    %v190 = vpop.permute.xlu0 %189
    %vm191 = vcmask 7168
    %s192 = scalar_lea.vmem %s1, 97
    %193 = vst.msk [vmem:[%s192] ss:$72 sm:$0x7] %vm191, %v190
    %s194 = scalar_lea.vmem %s1, 22
    %195 = vst.msk [vmem:[%s194] sm:$0x8] %vm191, %v190
    %v196 = vld.sshfl [vmem:[#allocation0] sm:$0xff pattern:$0x321]
    %197 = vrot.lane.b32.xlu0 %v196, 102
    %v198 = vpop.permute.xlu0 %197
    %vm199 = vcmask 7168
    %s200 = scalar_lea.vmem %s1, 98
    %201 = vst.msk [vmem:[%s200] ss:$72 sm:$0x7] %vm199, %v198
    %s202 = scalar_lea.vmem %s1, 23
    %203 = vst.msk [vmem:[%s202] sm:$0x8] %vm199, %v198
    %v204 = vld.sshfl [vmem:[#allocation0] sm:$0xff pattern:$0x321]
    %205 = vrot.lane.b32.xlu0 %v204, 101
    %v206 = vpop.permute.xlu0 %205
    %vm207 = vcmask 7168
    %s208 = scalar_lea.vmem %s1, 99
    %209 = vst.msk [vmem:[%s208] ss:$72 sm:$0x7] %vm207, %v206
    %s210 = scalar_lea.vmem %s1, 24
    %211 = vst.msk [vmem:[%s210] sm:$0x8] %vm207, %v206
    %v212 = vld.sshfl [vmem:[#allocation0] sm:$0xff pattern:$0x321]
    %213 = vrot.lane.b32.xlu0 %v212, 100
    %v214 = vpop.permute.xlu0 %213
    %vm215 = vcmask 7168
    %s216 = scalar_lea.vmem %s1, 100
    %217 = vst.msk [vmem:[%s216] ss:$72 sm:$0x7] %vm215, %v214
    %s218 = scalar_lea.vmem %s1, 25
    %219 = vst.msk [vmem:[%s218] sm:$0x8] %vm215, %v214
    %v220 = vld.sshfl [vmem:[#allocation0] sm:$0xff pattern:$0x321]
    %221 = vrot.lane.b32.xlu0 %v220, 99
    %v222 = vpop.permute.xlu0 %221
    %vm223 = vcmask 7168
    %s224 = scalar_lea.vmem %s1, 101
    %225 = vst.msk [vmem:[%s224] ss:$72 sm:$0x7] %vm223, %v222
    %s226 = scalar_lea.vmem %s1, 26
    %227 = vst.msk [vmem:[%s226] sm:$0x8] %vm223, %v222
    %v228 = vld.sshfl [vmem:[#allocation0] sm:$0xff pattern:$0x321]
    %229 = vrot.lane.b32.xlu0 %v228, 98
    %v230 = vpop.permute.xlu0 %229
    %vm231 = vcmask 7168
    %s232 = scalar_lea.vmem %s1, 102
    %233 = vst.msk [vmem:[%s232] ss:$72 sm:$0x7] %vm231, %v230
    %s234 = scalar_lea.vmem %s1, 27
    %235 = vst.msk [vmem:[%s234] sm:$0x8] %vm231, %v230
    %v236 = vld.sshfl [vmem:[#allocation0] sm:$0xff pattern:$0x321]
    %237 = vrot.lane.b32.xlu0 %v236, 97
    %v238 = vpop.permute.xlu0 %237
    %vm239 = vcmask 7168
    %s240 = scalar_lea.vmem %s1, 103
    %241 = vst.msk [vmem:[%s240] ss:$72 sm:$0x7] %vm239, %v238
    %s242 = scalar_lea.vmem %s1, 28
    %243 = vst.msk [vmem:[%s242] sm:$0x8] %vm239, %v238
    %v244 = vld [vmem:[#allocation0] sm:$0xf]
    %245 = vrot.lane.b32.xlu0 %v244, 96
    %v246 = vpop.permute.xlu0 %245
    %vm247 = vcmask 7168
    %s248 = scalar_lea.vmem %s1, 32
    %249 = vst.msk [vmem:[%s248] ss:$72 sm:$0xf] %vm247, %v246
    %v250 = vld [vmem:[#allocation0] sm:$0xf]
    %251 = vrot.lane.b32.xlu0 %v250, 95
    %v252 = vpop.permute.xlu0 %251
    %vm253 = vcmask 7168
    %s254 = scalar_lea.vmem %s1, 33
    %255 = vst.msk [vmem:[%s254] ss:$72 sm:$0xf] %vm253, %v252
    %v256 = vld [vmem:[#allocation0] sm:$0xf]
    %257 = vrot.lane.b32.xlu0 %v256, 94
    %v258 = vpop.permute.xlu0 %257
    %vm259 = vcmask 7168
    %s260 = scalar_lea.vmem %s1, 34
    %261 = vst.msk [vmem:[%s260] ss:$72 sm:$0xf] %vm259, %v258
    %v262 = vld [vmem:[#allocation0] sm:$0xf]
    %263 = vrot.lane.b32.xlu0 %v262, 93
    %v264 = vpop.permute.xlu0 %263
    %vm265 = vcmask 7168
    %s266 = scalar_lea.vmem %s1, 35
    %267 = vst.msk [vmem:[%s266] ss:$72 sm:$0xf] %vm265, %v264
    %v268 = vld [vmem:[#allocation0] sm:$0xf]
    %269 = vrot.lane.b32.xlu0 %v268, 92
    %v270 = vpop.permute.xlu0 %269
    %vm271 = vcmask 7168
    %s272 = scalar_lea.vmem %s1, 36
    %273 = vst.msk [vmem:[%s272] ss:$72 sm:$0xf] %vm271, %v270
    %v274 = vld [vmem:[#allocation0] sm:$0xf]
    %275 = vrot.lane.b32.xlu0 %v274, 91
    %v276 = vpop.permute.xlu0 %275
    %vm277 = vcmask 7168
    %s278 = scalar_lea.vmem %s1, 37
    %279 = vst.msk [vmem:[%s278] ss:$72 sm:$0xf] %vm277, %v276
    %v280 = vld [vmem:[#allocation0] sm:$0xf]
    %281 = vrot.lane.b32.xlu0 %v280, 90
    %v282 = vpop.permute.xlu0 %281
    %vm283 = vcmask 7168
    %s284 = scalar_lea.vmem %s1, 38
    %285 = vst.msk [vmem:[%s284] ss:$72 sm:$0xf] %vm283, %v282
    %v286 = vld [vmem:[#allocation0] sm:$0xf]
    %287 = vrot.lane.b32.xlu0 %v286, 89
    %v288 = vpop.permute.xlu0 %287
    %vm289 = vcmask 7168
    %s290 = scalar_lea.vmem %s1, 39
    %291 = vst.msk [vmem:[%s290] ss:$72 sm:$0xf] %vm289, %v288
    %v292 = vld.sshfl [vmem:[#allocation0] sm:$0xff pattern:$0x22222103]
    %293 = vrot.lane.b32.xlu0 %v292, 88
    %v294 = vpop.permute.xlu0 %293
    %vm295 = vcmask 7168
    %s296 = scalar_lea.vmem %s1, 256
    %297 = vst.msk [vmem:[%s296] ss:$-216 sm:$0x3] %vm295, %v294
    %s298 = scalar_lea.vmem %s1, 4294967264
    %299 = vst.msk [vmem:[%s298] ss:$72 sm:$0xc] %vm295, %v294
    %v300 = vld.sshfl [vmem:[#allocation0] sm:$0xff pattern:$0x22222103]
    %301 = vrot.lane.b32.xlu0 %v300, 87
    %v302 = vpop.permute.xlu0 %301
    %vm303 = vcmask 7168
    %s304 = scalar_lea.vmem %s1, 257
    %305 = vst.msk [vmem:[%s304] ss:$-216 sm:$0x3] %vm303, %v302
    %s306 = scalar_lea.vmem %s1, 4294967265
    %307 = vst.msk [vmem:[%s306] ss:$72 sm:$0xc] %vm303, %v302
    %v308 = vld.sshfl [vmem:[#allocation0] sm:$0xff pattern:$0x22222103]
    %309 = vrot.lane.b32.xlu0 %v308, 86
    %v310 = vpop.permute.xlu0 %309
    %vm311 = vcmask 7168
    %s312 = scalar_lea.vmem %s1, 258
    %313 = vst.msk [vmem:[%s312] ss:$-216 sm:$0x3] %vm311, %v310
    %s314 = scalar_lea.vmem %s1, 4294967266
    %315 = vst.msk [vmem:[%s314] ss:$72 sm:$0xc] %vm311, %v310
    %v316 = vld.sshfl [vmem:[#allocation0] sm:$0xff pattern:$0x22222103]
    %317 = vrot.lane.b32.xlu0 %v316, 85
    %v318 = vpop.permute.xlu0 %317
    %vm319 = vcmask 7168
    %s320 = scalar_lea.vmem %s1, 259
    %321 = vst.msk [vmem:[%s320] ss:$-216 sm:$0x3] %vm319, %v318
    %s322 = scalar_lea.vmem %s1, 4294967267
    %323 = vst.msk [vmem:[%s322] ss:$72 sm:$0xc] %vm319, %v318
    %v324 = vld.sshfl [vmem:[#allocation0] sm:$0xff pattern:$0x22222103]
    %325 = vrot.lane.b32.xlu0 %v324, 84
    %v326 = vpop.permute.xlu0 %325
    %vm327 = vcmask 7168
    %s328 = scalar_lea.vmem %s1, 260
    %329 = vst.msk [vmem:[%s328] ss:$-216 sm:$0x3] %vm327, %v326
    %s330 = scalar_lea.vmem %s1, 4294967268
    %331 = vst.msk [vmem:[%s330] ss:$72 sm:$0xc] %vm327, %v326
    %v332 = vld.sshfl [vmem:[#allocation0] sm:$0xff pattern:$0x22222103]
    %333 = vrot.lane.b32.xlu0 %v332, 83
    %v334 = vpop.permute.xlu0 %333
    %vm335 = vcmask 7168
    %s336 = scalar_lea.vmem %s1, 261
    %337 = vst.msk [vmem:[%s336] ss:$-216 sm:$0x3] %vm335, %v334
    %s338 = scalar_lea.vmem %s1, 4294967269
    %339 = vst.msk [vmem:[%s338] ss:$72 sm:$0xc] %vm335, %v334
    %v340 = vld.sshfl [vmem:[#allocation0] sm:$0xff pattern:$0x22222103]
    %341 = vrot.lane.b32.xlu0 %v340, 82
    %v342 = vpop.permute.xlu0 %341
    %vm343 = vcmask 7168
    %s344 = scalar_lea.vmem %s1, 262
    %345 = vst.msk [vmem:[%s344] ss:$-216 sm:$0x3] %vm343, %v342
    %s346 = scalar_lea.vmem %s1, 4294967270
    %347 = vst.msk [vmem:[%s346] ss:$72 sm:$0xc] %vm343, %v342
    %v348 = vld.sshfl [vmem:[#allocation0] sm:$0xff pattern:$0x22222103]
    %349 = vrot.lane.b32.xlu0 %v348, 81
    %v350 = vpop.permute.xlu0 %349
    %vm351 = vcmask 7168
    %s352 = scalar_lea.vmem %s1, 263
    %353 = vst.msk [vmem:[%s352] ss:$-216 sm:$0x3] %vm351, %v350
    %s354 = scalar_lea.vmem %s1, 4294967271
    %355 = vst.msk [vmem:[%s354] ss:$72 sm:$0xc] %vm351, %v350
    %v356 = vld.sshfl [vmem:[#allocation0] sm:$0xff pattern:$0x11111032]
    %357 = vrot.lane.b32.xlu0 %v356, 80
    %v358 = vpop.permute.xlu0 %357
    %vm359 = vcmask 7168
    %s360 = scalar_lea.vmem %s1, 192
    %361 = vst.msk [vmem:[%s360] ss:$72 sm:$0x3] %vm359, %v358
    %s362 = scalar_lea.vmem %s1, 4294967200
    %363 = vst.msk [vmem:[%s362] ss:$72 sm:$0xc] %vm359, %v358
    %v364 = vld.sshfl [vmem:[#allocation0] sm:$0xff pattern:$0x11111032]
    %365 = vrot.lane.b32.xlu0 %v364, 79
    %v366 = vpop.permute.xlu0 %365
    %vm367 = vcmask 7168
    %s368 = scalar_lea.vmem %s1, 193
    %369 = vst.msk [vmem:[%s368] ss:$72 sm:$0x3] %vm367, %v366
    %s370 = scalar_lea.vmem %s1, 4294967201
    %371 = vst.msk [vmem:[%s370] ss:$72 sm:$0xc] %vm367, %v366
    %v372 = vld.sshfl [vmem:[#allocation0] sm:$0xff pattern:$0x11111032]
    %373 = vrot.lane.b32.xlu0 %v372, 78
    %v374 = vpop.permute.xlu0 %373
    %vm375 = vcmask 7168
    %s376 = scalar_lea.vmem %s1, 194
    %377 = vst.msk [vmem:[%s376] ss:$72 sm:$0x3] %vm375, %v374
    %s378 = scalar_lea.vmem %s1, 4294967202
    %379 = vst.msk [vmem:[%s378] ss:$72 sm:$0xc] %vm375, %v374
    %v380 = vld.sshfl [vmem:[#allocation0] sm:$0xff pattern:$0x11111032]
    %381 = vrot.lane.b32.xlu0 %v380, 77
    %v382 = vpop.permute.xlu0 %381
    %vm383 = vcmask 7168
    %s384 = scalar_lea.vmem %s1, 195
    %385 = vst.msk [vmem:[%s384] ss:$72 sm:$0x3] %vm383, %v382
    %s386 = scalar_lea.vmem %s1, 4294967203
    %387 = vst.msk [vmem:[%s386] ss:$72 sm:$0xc] %vm383, %v382
    %v388 = vld.sshfl [vmem:[#allocation0] sm:$0xff pattern:$0x11111032]
    %389 = vrot.lane.b32.xlu0 %v388, 76
    %v390 = vpop.permute.xlu0 %389
    %vm391 = vcmask 7168
    %s392 = scalar_lea.vmem %s1, 196
    %393 = vst.msk [vmem:[%s392] ss:$72 sm:$0x3] %vm391, %v390
    %s394 = scalar_lea.vmem %s1, 4294967204
    %395 = vst.msk [vmem:[%s394] ss:$72 sm:$0xc] %vm391, %v390
    %v396 = vld.sshfl [vmem:[#allocation0] sm:$0xff pattern:$0x11111032]
    %397 = vrot.lane.b32.xlu0 %v396, 75
    %v398 = vpop.permute.xlu0 %397
    %vm399 = vcmask 7168
    %s400 = scalar_lea.vmem %s1, 197
    %401 = vst.msk [vmem:[%s400] ss:$72 sm:$0x3] %vm399, %v398
    %s402 = scalar_lea.vmem %s1, 4294967205
    %403 = vst.msk [vmem:[%s402] ss:$72 sm:$0xc] %vm399, %v398
    %v404 = vld.sshfl [vmem:[#allocation0] sm:$0xff pattern:$0x11111032]
    %405 = vrot.lane.b32.xlu0 %v404, 74
    %v406 = vpop.permute.xlu0 %405
    %vm407 = vcmask 7168
    %s408 = scalar_lea.vmem %s1, 198
    %409 = vst.msk [vmem:[%s408] ss:$72 sm:$0x3] %vm407, %v406
    %s410 = scalar_lea.vmem %s1, 4294967206
    %411 = vst.msk [vmem:[%s410] ss:$72 sm:$0xc] %vm407, %v406
    %v412 = vld.sshfl [vmem:[#allocation0] sm:$0xff pattern:$0x11111032]
    %413 = vrot.lane.b32.xlu0 %v412, 73
    %v414 = vpop.permute.xlu0 %413
    %vm415 = vcmask 7168
    %s416 = scalar_lea.vmem %s1, 199
    %417 = vst.msk [vmem:[%s416] ss:$72 sm:$0x3] %vm415, %v414
    %s418 = scalar_lea.vmem %s1, 4294967207
    %419 = vst.msk [vmem:[%s418] ss:$72 sm:$0xc] %vm415, %v414
    %v420 = vld.sshfl [vmem:[#allocation0] sm:$0xff pattern:$0x321]
    %421 = vrot.lane.b32.xlu0 %v420, 72
    %v422 = vpop.permute.xlu0 %421
    %vm423 = vcmask 7168
    %s424 = scalar_lea.vmem %s1, 128
    %425 = vst.msk [vmem:[%s424] ss:$72 sm:$0x7] %vm423, %v422
    %s426 = scalar_lea.vmem %s1, 53
    %427 = vst.msk [vmem:[%s426] sm:$0x8] %vm423, %v422
    %v428 = vld.sshfl [vmem:[#allocation0] sm:$0xff pattern:$0x321]
    %429 = vrot.lane.b32.xlu0 %v428, 71
    %v430 = vpop.permute.xlu0 %429
    %vm431 = vcmask 7168
    %s432 = scalar_lea.vmem %s1, 129
    %433 = vst.msk [vmem:[%s432] ss:$72 sm:$0x7] %vm431, %v430
    %s434 = scalar_lea.vmem %s1, 54
    %435 = vst.msk [vmem:[%s434] sm:$0x8] %vm431, %v430
    %v436 = vld.sshfl [vmem:[#allocation0] sm:$0xff pattern:$0x321]
    %437 = vrot.lane.b32.xlu0 %v436, 70
    %v438 = vpop.permute.xlu0 %437
    %vm439 = vcmask 7168
    %s440 = scalar_lea.vmem %s1, 130
    %441 = vst.msk [vmem:[%s440] ss:$72 sm:$0x7] %vm439, %v438
    %s442 = scalar_lea.vmem %s1, 55
    %443 = vst.msk [vmem:[%s442] sm:$0x8] %vm439, %v438
    %v444 = vld.sshfl [vmem:[#allocation0] sm:$0xff pattern:$0x321]
    %445 = vrot.lane.b32.xlu0 %v444, 69
    %v446 = vpop.permute.xlu0 %445
    %vm447 = vcmask 7168
    %s448 = scalar_lea.vmem %s1, 131
    %449 = vst.msk [vmem:[%s448] ss:$72 sm:$0x7] %vm447, %v446
    %s450 = scalar_lea.vmem %s1, 56
    %451 = vst.msk [vmem:[%s450] sm:$0x8] %vm447, %v446
    %v452 = vld.sshfl [vmem:[#allocation0] sm:$0xff pattern:$0x321]
    %453 = vrot.lane.b32.xlu0 %v452, 68
    %v454 = vpop.permute.xlu0 %453
    %vm455 = vcmask 7168
    %s456 = scalar_lea.vmem %s1, 132
    %457 = vst.msk [vmem:[%s456] ss:$72 sm:$0x7] %vm455, %v454
    %s458 = scalar_lea.vmem %s1, 57
    %459 = vst.msk [vmem:[%s458] sm:$0x8] %vm455, %v454
    %v460 = vld.sshfl [vmem:[#allocation0] sm:$0xff pattern:$0x321]
    %461 = vrot.lane.b32.xlu0 %v460, 67
    %v462 = vpop.permute.xlu0 %461
    %vm463 = vcmask 7168
    %s464 = scalar_lea.vmem %s1, 133
    %465 = vst.msk [vmem:[%s464] ss:$72 sm:$0x7] %vm463, %v462
    %s466 = scalar_lea.vmem %s1, 58
    %467 = vst.msk [vmem:[%s466] sm:$0x8] %vm463, %v462
    %v468 = vld.sshfl [vmem:[#allocation0] sm:$0xff pattern:$0x321]
    %469 = vrot.lane.b32.xlu0 %v468, 66
    %v470 = vpop.permute.xlu0 %469
    %vm471 = vcmask 7168
    %s472 = scalar_lea.vmem %s1, 134
    %473 = vst.msk [vmem:[%s472] ss:$72 sm:$0x7] %vm471, %v470
    %s474 = scalar_lea.vmem %s1, 59
    %475 = vst.msk [vmem:[%s474] sm:$0x8] %vm471, %v470
    %v476 = vld.sshfl [vmem:[#allocation0] sm:$0xff pattern:$0x321]
    %477 = vrot.lane.b32.xlu0 %v476, 65
    %v478 = vpop.permute.xlu0 %477
    %vm479 = vcmask 7168
    %s480 = scalar_lea.vmem %s1, 135
    %481 = vst.msk [vmem:[%s480] ss:$72 sm:$0x7] %vm479, %v478
    %s482 = scalar_lea.vmem %s1, 60
    %483 = vst.msk [vmem:[%s482] sm:$0x8] %vm479, %v478
    %v484 = vld [vmem:[#allocation0] sm:$0xf]
    %485 = vrot.lane.b32.xlu0 %v484, 64
    %v486 = vpop.permute.xlu0 %485
    %vm487 = vcmask 7168
    %s488 = scalar_lea.vmem %s1, 64
    %489 = vst.msk [vmem:[%s488] ss:$72 sm:$0xf] %vm487, %v486
    %v490 = vld [vmem:[#allocation0] sm:$0xf]
    %491 = vrot.lane.b32.xlu0 %v490, 63
    %v492 = vpop.permute.xlu0 %491
    %vm493 = vcmask 7168
    %s494 = scalar_lea.vmem %s1, 65
    %495 = vst.msk [vmem:[%s494] ss:$72 sm:$0xf] %vm493, %v492
    %v496 = vld [vmem:[#allocation0] sm:$0xf]
    %497 = vrot.lane.b32.xlu0 %v496, 62
    %v498 = vpop.permute.xlu0 %497
    %vm499 = vcmask 7168
    %s500 = scalar_lea.vmem %s1, 66
    %501 = vst.msk [vmem:[%s500] ss:$72 sm:$0xf] %vm499, %v498
    %v502 = vld [vmem:[#allocation0] sm:$0xf]
    %503 = vrot.lane.b32.xlu0 %v502, 61
    %v504 = vpop.permute.xlu0 %503
    %vm505 = vcmask 7168
    %s506 = scalar_lea.vmem %s1, 67
    %507 = vst.msk [vmem:[%s506] ss:$72 sm:$0xf] %vm505, %v504
    %v508 = vld [vmem:[#allocation0] sm:$0xf]
    %509 = vrot.lane.b32.xlu0 %v508, 60
    %v510 = vpop.permute.xlu0 %509
    %vm511 = vcmask 7168
    %s512 = scalar_lea.vmem %s1, 68
    %513 = vst.msk [vmem:[%s512] ss:$72 sm:$0xf] %vm511, %v510
    %v514 = vld [vmem:[#allocation0] sm:$0xf]
    %515 = vrot.lane.b32.xlu0 %v514, 59
    %v516 = vpop.permute.xlu0 %515
    %vm517 = vcmask 7168
    %s518 = scalar_lea.vmem %s1, 69
    %519 = vst.msk [vmem:[%s518] ss:$72 sm:$0xf] %vm517, %v516
    %v520 = vld [vmem:[#allocation0] sm:$0xf]
    %521 = vrot.lane.b32.xlu0 %v520, 58
    %v522 = vpop.permute.xlu0 %521
    %vm523 = vcmask 7168
    %s524 = scalar_lea.vmem %s1, 70
    %525 = vst.msk [vmem:[%s524] ss:$72 sm:$0xf] %vm523, %v522
    %v526 = vld [vmem:[#allocation0] sm:$0xf]
    %527 = vrot.lane.b32.xlu0 %v526, 57
    %v528 = vpop.permute.xlu0 %527
    %vm529 = vcmask 7168
    %s530 = scalar_lea.vmem %s1, 71
    %531 = vst.msk [vmem:[%s530] ss:$72 sm:$0xf] %vm529, %v528

// kernel: alphazero_forward.10
$region0: #{alphazero_forward.10}
  #allocation0 [shape = 'u32[]', space=smem, size = 0x4, offset = 0x4, fixed_abs, tag = 'smem constant byte address 0x4 - core index']
  #allocation1 [shape = 'u32[144,128]{1,0:T(1,128)}', space=vmem, size = 0x12000, scoped, tag = 'internal scratch']
  %s0 = inlined_call_operand.vmem [shape: bf16[288,128], index: 0, kind: input, shape index: {}]
  %s1 = inlined_call_operand.vmem [shape: bf16[128,128], index: 1, kind: input, shape index: {}]
  %s2 = inlined_call_operand.vmem [shape: f32[1,128], index: 2, kind: input, shape index: {}]
  %s3 = inlined_call_operand.vmem [shape: f32[288,128], index: 3, kind: output, shape index: {}]
  %s4 = sld [smem:[#allocation0]]
  $region22: #{alphazero_forward.10} parent=0
    _
  %s6 = ssub.s32 1, %s4
  %s7 = scalar_select 0, %s6, %s4
  // Predicated region
  $region2: #{alphazero_forward.10} parent=0 // pred_check
    _
  $region3: #{alphazero_forward.10} parent=0 // pred_check_branch
    %9 = sbr.rel (0) target = $region5
  $region4: #{alphazero_forward.10} parent=0 // pred_region
    _
  $region5: #{alphazero_forward.10} parent=0 // pred_fallthru
    _
  // Predicated region
  $region6: #{alphazero_forward.10} parent=0 // pred_check
    _
  $region7: #{alphazero_forward.10} parent=0 // pred_check_branch
    %11 = sbr.rel (0) target = $region9
  $region8: #{alphazero_forward.10} parent=0 // pred_region
    _
  $region9: #{alphazero_forward.10} parent=0 // pred_fallthru
    _
  // Predicated region
  $region10: #{alphazero_forward.10} parent=0 // pred_check
    _
  $region11: #{alphazero_forward.10} parent=0 // pred_check_branch
    %13 = sbr.rel (0) target = $region13
  $region12: #{alphazero_forward.10} parent=0 // pred_region
    _
  $region13: #{alphazero_forward.10} parent=0 // pred_fallthru
    _
  %v15 = vld [vmem:[%s0] sm:$0xf]
  %v16 = vld [vmem:[%s0 + $0x4] sm:$0xf]
  %v17 = vld [vmem:[%s0 + $0x8] sm:$0xf]
  %v18 = vld [vmem:[%s0 + $0xc] sm:$0xf]
  %v19 = vld [vmem:[%s0 + $0x10] sm:$0xf]
  %v20 = vld [vmem:[%s0 + $0x14] sm:$0xf]
  %v21 = vld [vmem:[%s0 + $0x18] sm:$0xf]
  %v22 = vld [vmem:[%s0 + $0x1c] sm:$0xf]
  %v23 = vld [vmem:[%s0 + $0x20] sm:$0xf]
  %v24 = vld [vmem:[%s0 + $0x24] sm:$0xf]
  %v25 = vld [vmem:[%s0 + $0x28] sm:$0xf]
  %v26 = vld [vmem:[%s0 + $0x2c] sm:$0xf]
  %v27 = vld [vmem:[%s0 + $0x30] sm:$0xf]
  %v28 = vld [vmem:[%s0 + $0x34] sm:$0xf]
  %v29 = vld [vmem:[%s0 + $0x38] sm:$0xf]
  %v30 = vld [vmem:[%s0 + $0x3c] sm:$0xf]
  %v31 = vld [vmem:[%s0 + $0x40] sm:$0xf]
  %v32 = vld [vmem:[%s0 + $0x44] sm:$0xf]
  %v33 = vld [vmem:[%s0 + $0x48] sm:$0xf]
  %v34 = vld [vmem:[%s0 + $0x4c] sm:$0xf]
  %v35 = vld [vmem:[%s0 + $0x50] sm:$0xf]
  %v36 = vld [vmem:[%s0 + $0x54] sm:$0xf]
  %v37 = vld [vmem:[%s0 + $0x58] sm:$0xf]
  %v38 = vld [vmem:[%s0 + $0x5c] sm:$0xf]
  %v39 = vld [vmem:[%s0 + $0x60] sm:$0xf]
  %v40 = vld [vmem:[%s0 + $0x64] sm:$0xf]
  %v41 = vld [vmem:[%s0 + $0x68] sm:$0xf]
  %v42 = vld [vmem:[%s0 + $0x6c] sm:$0xf]
  %v43 = vld [vmem:[%s0 + $0x70] sm:$0xf]
  %v44 = vld [vmem:[%s0 + $0x74] sm:$0xf]
  %v45 = vld [vmem:[%s0 + $0x78] sm:$0xf]
  %v46 = vld [vmem:[%s0 + $0x7c] sm:$0xf]
  %v47 = vld [vmem:[%s0 + $0x80] sm:$0xf]
  %v48 = vld [vmem:[%s0 + $0x84] sm:$0xf]
  %v49 = vld [vmem:[%s0 + $0x88] sm:$0xf]
  %v50 = vld [vmem:[%s0 + $0x8c] sm:$0xf]
  %v51 = vld [vmem:[%s1] sm:$0xf]
  %v52 = vld [vmem:[%s1 + $0x4] sm:$0xf]
  %v53 = vld [vmem:[%s1 + $0x8] sm:$0xf]
  %v54 = vld [vmem:[%s1 + $0xc] sm:$0xf]
  %v55 = vld [vmem:[%s1 + $0x10] sm:$0xf]
  %v56 = vld [vmem:[%s1 + $0x14] sm:$0xf]
  %v57 = vld [vmem:[%s1 + $0x18] sm:$0xf]
  %v58 = vld [vmem:[%s1 + $0x1c] sm:$0xf]
  %v59 = vld [vmem:[%s1 + $0x20] sm:$0xf]
  %v60 = vld [vmem:[%s1 + $0x24] sm:$0xf]
  %v61 = vld [vmem:[%s1 + $0x28] sm:$0xf]
  %v62 = vld [vmem:[%s1 + $0x2c] sm:$0xf]
  %v63 = vld [vmem:[%s1 + $0x30] sm:$0xf]
  %v64 = vld [vmem:[%s1 + $0x34] sm:$0xf]
  %v65 = vld [vmem:[%s1 + $0x38] sm:$0xf]
  %v66 = vld [vmem:[%s1 + $0x3c] sm:$0xf]
  %v67 = vld [vmem:[%s2] sm:$0x1]
  %v69 = vlaneseq
  %v70 = vshrl.u32 %v69, 7
  %v71 = vsub.s32 0, %v70
  %v72 = vrot.slane %v67, %v71
  %v110 = vunpack.c.l.b16 %v15
  %v111 = vunpack.c.l.b16 %v16
  %v112 = vunpack.c.l.b16 %v17
  %v113 = vunpack.c.l.b16 %v18
  %v114 = vunpack.c.l.b16 %v19
  %v115 = vunpack.c.l.b16 %v20
  %v116 = vunpack.c.l.b16 %v21
  %v117 = vunpack.c.l.b16 %v22
  %v118 = vunpack.c.l.b16 %v23
  %v119 = vunpack.c.l.b16 %v24
  %v120 = vunpack.c.l.b16 %v25
  %v121 = vunpack.c.l.b16 %v26
  %v122 = vunpack.c.l.b16 %v27
  %v123 = vunpack.c.l.b16 %v28
  %v124 = vunpack.c.l.b16 %v29
  %v125 = vunpack.c.l.b16 %v30
  %v126 = vunpack.c.l.b16 %v31
  %v127 = vunpack.c.l.b16 %v32
  %v128 = vunpack.c.l.b16 %v33
  %v129 = vunpack.c.l.b16 %v34
  %v130 = vunpack.c.l.b16 %v35
  %v131 = vunpack.c.l.b16 %v36
  %v132 = vunpack.c.l.b16 %v37
  %v133 = vunpack.c.l.b16 %v38
  %v134 = vunpack.c.l.b16 %v39
  %v135 = vunpack.c.l.b16 %v40
  %v136 = vunpack.c.l.b16 %v41
  %v137 = vunpack.c.l.b16 %v42
  %v138 = vunpack.c.l.b16 %v43
  %v139 = vunpack.c.l.b16 %v44
  %v140 = vunpack.c.l.b16 %v45
  %v141 = vunpack.c.l.b16 %v46
  %v142 = vunpack.c.l.b16 %v47
  %v143 = vunpack.c.l.b16 %v48
  %v144 = vunpack.c.l.b16 %v49
  %v145 = vunpack.c.l.b16 %v50
  %v146 = vpack.c.b16 %v111, %v110
  %v147 = vpack.c.b16 %v113, %v112
  %v148 = vpack.c.b16 %v115, %v114
  %v149 = vpack.c.b16 %v117, %v116
  %v150 = vpack.c.b16 %v119, %v118
  %v151 = vpack.c.b16 %v121, %v120
  %v152 = vpack.c.b16 %v123, %v122
  %v153 = vpack.c.b16 %v125, %v124
  %v154 = vpack.c.b16 %v127, %v126
  %v155 = vpack.c.b16 %v129, %v128
  %v156 = vpack.c.b16 %v131, %v130
  %v157 = vpack.c.b16 %v133, %v132
  %v158 = vpack.c.b16 %v135, %v134
  %v159 = vpack.c.b16 %v137, %v136
  %v160 = vpack.c.b16 %v139, %v138
  %v161 = vpack.c.b16 %v141, %v140
  %v162 = vpack.c.b16 %v143, %v142
  %v163 = vpack.c.b16 %v145, %v144
  %v198 = vunpack.c.l.b16 %v51
  %v199 = vunpack.c.l.b16 %v52
  %v200 = vunpack.c.l.b16 %v53
  %v201 = vunpack.c.l.b16 %v54
  %v202 = vunpack.c.l.b16 %v55
  %v203 = vunpack.c.l.b16 %v56
  %v204 = vunpack.c.l.b16 %v57
  %v205 = vunpack.c.l.b16 %v58
  %v206 = vunpack.c.l.b16 %v59
  %v207 = vunpack.c.l.b16 %v60
  %v208 = vunpack.c.l.b16 %v61
  %v209 = vunpack.c.l.b16 %v62
  %v210 = vunpack.c.l.b16 %v63
  %v211 = vunpack.c.l.b16 %v64
  %v212 = vunpack.c.l.b16 %v65
  %v213 = vunpack.c.l.b16 %v66
  %v214 = vpack.c.b16 %v199, %v198
  %v215 = vpack.c.b16 %v201, %v200
  %v216 = vpack.c.b16 %v203, %v202
  %v217 = vpack.c.b16 %v205, %v204
  %v218 = vpack.c.b16 %v207, %v206
  %v219 = vpack.c.b16 %v209, %v208
  %v220 = vpack.c.b16 %v211, %v210
  %v221 = vpack.c.b16 %v213, %v212
  %230 = vmatprep.subr.bf16.mxu0 0
  %231 = vmatpush1.bf16.msra.mxu0 %v221
  %232 = vmatprep.subr.bf16.mxu0 0
  %233 = vmatpush1.bf16.msra.mxu0 %v220
  %234 = vmatprep.subr.bf16.mxu0 0
  %235 = vmatpush1.bf16.msra.mxu0 %v219
  %236 = vmatprep.subr.bf16.mxu0 0
  %237 = vmatpush1.bf16.msra.mxu0 %v218
  %238 = vmatprep.subr.bf16.mxu0 0
  %239 = vmatpush1.bf16.msra.mxu0 %v217
  %240 = vmatprep.subr.bf16.mxu0 0
  %241 = vmatpush1.bf16.msra.mxu0 %v216
  %242 = vmatprep.subr.bf16.mxu0 0
  %243 = vmatpush1.bf16.msra.mxu0 %v215
  %244 = vmatprep.subr.bf16.mxu0 0
  %245 = vmatpush1.bf16.msra.mxu0 %v214
  %246 = vmatprep.subr.bf16.mxu0 0
  %247 = vmatpush2.bf16.msra.mxu0 0
  %248 = vmatprep.subr.bf16.mxu0 0
  %249 = vmatpush2.bf16.msra.mxu0 0
  %250 = vmatprep.subr.bf16.mxu0 0
  %251 = vmatpush2.bf16.msra.mxu0 0
  %252 = vmatprep.subr.bf16.mxu0 0
  %253 = vmatpush2.bf16.msra.mxu0 0
  %254 = vmatprep.subr.bf16.mxu0 0
  %255 = vmatpush2.bf16.msra.mxu0 0
  %256 = vmatprep.subr.bf16.mxu0 0
  %257 = vmatpush2.bf16.msra.mxu0 0
  %258 = vmatprep.subr.bf16.mxu0 0
  %259 = vmatpush2.bf16.msra.mxu0 0
  %260 = vmatprep.subr.bf16.mxu0 0
  %261 = vmatpush2.bf16.msra.mxu0 0
  %262 = vmatprep.mubr.bf16.mxu0 0
  %263 = vmatmul.mubr.bf16.gmra.mxu0 %v146
  %v264 = vpop.f32.mrf.mxu0
  %v265 = vadd.f32 %v72, %v264
  %v266 = vpop.f32.mrf.mxu0
  %v267 = vpop.f32.mrf.mxu0
  %v268 = vadd.f32 %v72, %v267
  %v269 = vpop.f32.mrf.mxu0
  %270 = vmatprep.mubr.bf16.mxu0 0
  %271 = vmatmul.mubr.bf16.gmra.mxu0 %v147
  %v272 = vpop.f32.mrf.mxu0
  %v273 = vadd.f32 %v72, %v272
  %v274 = vpop.f32.mrf.mxu0
  %v275 = vpop.f32.mrf.mxu0
  %v276 = vadd.f32 %v72, %v275
  %v277 = vpop.f32.mrf.mxu0
  %278 = vmatprep.mubr.bf16.mxu0 0
  %279 = vmatmul.mubr.bf16.gmra.mxu0 %v148
  %v280 = vpop.f32.mrf.mxu0
  %v281 = vadd.f32 %v72, %v280
  %v282 = vpop.f32.mrf.mxu0
  %v283 = vpop.f32.mrf.mxu0
  %v284 = vadd.f32 %v72, %v283
  %v285 = vpop.f32.mrf.mxu0
  %286 = vmatprep.mubr.bf16.mxu0 0
  %287 = vmatmul.mubr.bf16.gmra.mxu0 %v149
  %v288 = vpop.f32.mrf.mxu0
  %v289 = vadd.f32 %v72, %v288
  %v290 = vpop.f32.mrf.mxu0
  %v291 = vpop.f32.mrf.mxu0
  %v292 = vadd.f32 %v72, %v291
  %v293 = vpop.f32.mrf.mxu0
  %294 = vmatprep.mubr.bf16.mxu0 0
  %295 = vmatmul.mubr.bf16.gmra.mxu0 %v150
  %v296 = vpop.f32.mrf.mxu0
  %v297 = vadd.f32 %v72, %v296
  %v298 = vpop.f32.mrf.mxu0
  %v299 = vpop.f32.mrf.mxu0
  %v300 = vadd.f32 %v72, %v299
  %v301 = vpop.f32.mrf.mxu0
  %302 = vmatprep.mubr.bf16.mxu0 0
  %303 = vmatmul.mubr.bf16.gmra.mxu0 %v151
  %v304 = vpop.f32.mrf.mxu0
  %v305 = vadd.f32 %v72, %v304
  %v306 = vpop.f32.mrf.mxu0
  %v307 = vpop.f32.mrf.mxu0
  %v308 = vadd.f32 %v72, %v307
  %v309 = vpop.f32.mrf.mxu0
  %310 = vmatprep.mubr.bf16.mxu0 0
  %311 = vmatmul.mubr.bf16.gmra.mxu0 %v152
  %v312 = vpop.f32.mrf.mxu0
  %v313 = vadd.f32 %v72, %v312
  %v314 = vpop.f32.mrf.mxu0
  %v315 = vpop.f32.mrf.mxu0
  %v316 = vadd.f32 %v72, %v315
  %v317 = vpop.f32.mrf.mxu0
  %318 = vmatprep.mubr.bf16.mxu0 0
  %319 = vmatmul.mubr.bf16.gmra.mxu0 %v153
  %v320 = vpop.f32.mrf.mxu0
  %v321 = vadd.f32 %v72, %v320
  %v322 = vpop.f32.mrf.mxu0
  %v323 = vpop.f32.mrf.mxu0
  %v324 = vadd.f32 %v72, %v323
  %v325 = vpop.f32.mrf.mxu0
  %326 = vmatprep.mubr.bf16.mxu0 0
  %327 = vmatmul.mubr.bf16.gmra.mxu0 %v154
  %v328 = vpop.f32.mrf.mxu0
  %v329 = vadd.f32 %v72, %v328
  %v330 = vpop.f32.mrf.mxu0
  %v331 = vpop.f32.mrf.mxu0
  %v332 = vadd.f32 %v72, %v331
  %v333 = vpop.f32.mrf.mxu0
  %334 = vmatprep.mubr.bf16.mxu0 0
  %335 = vmatmul.mubr.bf16.gmra.mxu0 %v155
  %v336 = vpop.f32.mrf.mxu0
  %v337 = vadd.f32 %v72, %v336
  %v338 = vpop.f32.mrf.mxu0
  %v339 = vpop.f32.mrf.mxu0
  %v340 = vadd.f32 %v72, %v339
  %v341 = vpop.f32.mrf.mxu0
  %342 = vmatprep.mubr.bf16.mxu0 0
  %343 = vmatmul.mubr.bf16.gmra.mxu0 %v156
  %v344 = vpop.f32.mrf.mxu0
  %v345 = vadd.f32 %v72, %v344
  %v346 = vpop.f32.mrf.mxu0
  %v347 = vpop.f32.mrf.mxu0
  %v348 = vadd.f32 %v72, %v347
  %v349 = vpop.f32.mrf.mxu0
  %350 = vmatprep.mubr.bf16.mxu0 0
  %351 = vmatmul.mubr.bf16.gmra.mxu0 %v157
  %v352 = vpop.f32.mrf.mxu0
  %v353 = vadd.f32 %v72, %v352
  %v354 = vpop.f32.mrf.mxu0
  %v355 = vpop.f32.mrf.mxu0
  %v356 = vadd.f32 %v72, %v355
  %v357 = vpop.f32.mrf.mxu0
  %358 = vmatprep.mubr.bf16.mxu0 0
  %359 = vmatmul.mubr.bf16.gmra.mxu0 %v158
  %v360 = vpop.f32.mrf.mxu0
  %v361 = vadd.f32 %v72, %v360
  %v362 = vpop.f32.mrf.mxu0
  %v363 = vpop.f32.mrf.mxu0
  %v364 = vadd.f32 %v72, %v363
  %v365 = vpop.f32.mrf.mxu0
  %366 = vmatprep.mubr.bf16.mxu0 0
  %367 = vmatmul.mubr.bf16.gmra.mxu0 %v159
  %v368 = vpop.f32.mrf.mxu0
  %v369 = vadd.f32 %v72, %v368
  %v370 = vpop.f32.mrf.mxu0
  %v371 = vpop.f32.mrf.mxu0
  %v372 = vadd.f32 %v72, %v371
  %v373 = vpop.f32.mrf.mxu0
  %374 = vmatprep.mubr.bf16.mxu0 0
  %375 = vmatmul.mubr.bf16.gmra.mxu0 %v160
  %v376 = vpop.f32.mrf.mxu0
  %v377 = vadd.f32 %v72, %v376
  %v378 = vpop.f32.mrf.mxu0
  %v379 = vpop.f32.mrf.mxu0
  %v380 = vadd.f32 %v72, %v379
  %v381 = vpop.f32.mrf.mxu0
  %382 = vmatprep.mubr.bf16.mxu0 0
  %383 = vmatmul.mubr.bf16.gmra.mxu0 %v161
  %v384 = vpop.f32.mrf.mxu0
  %v385 = vadd.f32 %v72, %v384
  %v386 = vpop.f32.mrf.mxu0
  %v387 = vpop.f32.mrf.mxu0
  %v388 = vadd.f32 %v72, %v387
  %v389 = vpop.f32.mrf.mxu0
  %390 = vmatprep.mubr.bf16.mxu0 0
  %391 = vmatmul.mubr.bf16.gmra.mxu0 %v162
  %v392 = vpop.f32.mrf.mxu0
  %v393 = vadd.f32 %v72, %v392
  %v394 = vpop.f32.mrf.mxu0
  %v395 = vpop.f32.mrf.mxu0
  %v396 = vadd.f32 %v72, %v395
  %v397 = vpop.f32.mrf.mxu0
  %398 = vmatprep.mubr.bf16.mxu0 0
  %399 = vmatmul.mubr.bf16.gmra.mxu0 %v163
  %v400 = vpop.f32.mrf.mxu0
  %v401 = vadd.f32 %v72, %v400
  %v402 = vpop.f32.mrf.mxu0
  %v403 = vpop.f32.mrf.mxu0
  %v404 = vadd.f32 %v72, %v403
  %v405 = vpop.f32.mrf.mxu0
  %406 = vdwg.mxu0
  %v407 = vmax.f32 %v265, 0.0
  %v408 = vmax.f32 %v268, 0.0
  %v409 = vmax.f32 %v273, 0.0
  %v410 = vmax.f32 %v276, 0.0
  %v411 = vmax.f32 %v281, 0.0
  %v412 = vmax.f32 %v284, 0.0
  %v413 = vmax.f32 %v289, 0.0
  %v414 = vmax.f32 %v292, 0.0
  %v415 = vmax.f32 %v297, 0.0
  %v416 = vmax.f32 %v300, 0.0
  %v417 = vmax.f32 %v305, 0.0
  %v418 = vmax.f32 %v308, 0.0
  %v419 = vmax.f32 %v313, 0.0
  %v420 = vmax.f32 %v316, 0.0
  %v421 = vmax.f32 %v321, 0.0
  %v422 = vmax.f32 %v324, 0.0
  %v423 = vmax.f32 %v329, 0.0
  %v424 = vmax.f32 %v332, 0.0
  %v425 = vmax.f32 %v337, 0.0
  %v426 = vmax.f32 %v340, 0.0
  %v427 = vmax.f32 %v345, 0.0
  %v428 = vmax.f32 %v348, 0.0
  %v429 = vmax.f32 %v353, 0.0
  %v430 = vmax.f32 %v356, 0.0
  %v431 = vmax.f32 %v361, 0.0
  %v432 = vmax.f32 %v364, 0.0
  %v433 = vmax.f32 %v369, 0.0
  %v434 = vmax.f32 %v372, 0.0
  %v435 = vmax.f32 %v377, 0.0
  %v436 = vmax.f32 %v380, 0.0
  %v437 = vmax.f32 %v385, 0.0
  %v438 = vmax.f32 %v388, 0.0
  %v439 = vmax.f32 %v393, 0.0
  %v440 = vmax.f32 %v396, 0.0
  %v441 = vmax.f32 %v401, 0.0
  %v442 = vmax.f32 %v404, 0.0
  %443 = vst [vmem:[%s3] sm:$0xff] %v407
  %444 = vst [vmem:[%s3 + $0x8] sm:$0xff] %v408
  %445 = vst [vmem:[%s3 + $0x10] sm:$0xff] %v409
  %446 = vst [vmem:[%s3 + $0x18] sm:$0xff] %v410
  %447 = vst [vmem:[%s3 + $0x20] sm:$0xff] %v411
  %448 = vst [vmem:[%s3 + $0x28] sm:$0xff] %v412
  %449 = vst [vmem:[%s3 + $0x30] sm:$0xff] %v413
  %450 = vst [vmem:[%s3 + $0x38] sm:$0xff] %v414
  %451 = vst [vmem:[%s3 + $0x40] sm:$0xff] %v415
  %452 = vst [vmem:[%s3 + $0x48] sm:$0xff] %v416
  %453 = vst [vmem:[%s3 + $0x50] sm:$0xff] %v417
  %454 = vst [vmem:[%s3 + $0x58] sm:$0xff] %v418
  %455 = vst [vmem:[%s3 + $0x60] sm:$0xff] %v419
  %456 = vst [vmem:[%s3 + $0x68] sm:$0xff] %v420
  %457 = vst [vmem:[%s3 + $0x70] sm:$0xff] %v421
  %458 = vst [vmem:[%s3 + $0x78] sm:$0xff] %v422
  %459 = vst [vmem:[%s3 + $0x80] sm:$0xff] %v423
  %460 = vst [vmem:[%s3 + $0x88] sm:$0xff] %v424
  %461 = vst [vmem:[%s3 + $0x90] sm:$0xff] %v425
  %462 = vst [vmem:[%s3 + $0x98] sm:$0xff] %v426
  %463 = vst [vmem:[%s3 + $0xa0] sm:$0xff] %v427
  %464 = vst [vmem:[%s3 + $0xa8] sm:$0xff] %v428
  %465 = vst [vmem:[%s3 + $0xb0] sm:$0xff] %v429
  %466 = vst [vmem:[%s3 + $0xb8] sm:$0xff] %v430
  %467 = vst [vmem:[%s3 + $0xc0] sm:$0xff] %v431
  %468 = vst [vmem:[%s3 + $0xc8] sm:$0xff] %v432
  %469 = vst [vmem:[%s3 + $0xd0] sm:$0xff] %v433
  %470 = vst [vmem:[%s3 + $0xd8] sm:$0xff] %v434
  %471 = vst [vmem:[%s3 + $0xe0] sm:$0xff] %v435
  %472 = vst [vmem:[%s3 + $0xe8] sm:$0xff] %v436
  %473 = vst [vmem:[%s3 + $0xf0] sm:$0xff] %v437
  %474 = vst [vmem:[%s3 + $0xf8] sm:$0xff] %v438
  %475 = vst [vmem:[%s3 + $0x100] sm:$0xff] %v439
  %476 = vst [vmem:[%s3 + $0x108] sm:$0xff] %v440
  %477 = vst [vmem:[%s3 + $0x110] sm:$0xff] %v441
  %478 = vst [vmem:[%s3 + $0x118] sm:$0xff] %v442
  // Predicated region
  $region14: #{alphazero_forward.10} parent=0 // pred_check
    _
  $region15: #{alphazero_forward.10} parent=0 // pred_check_branch
    %480 = sbr.rel (0) target = $region17
  $region16: #{alphazero_forward.10} parent=0 // pred_region
    _
  $region17: #{alphazero_forward.10} parent=0 // pred_fallthru
    _
  // Predicated region
  $region18: #{alphazero_forward.10} parent=0 // pred_check
    _
  $region19: #{alphazero_forward.10} parent=0 // pred_check_branch
    %482 = sbr.rel (0) target = $region21
  $region20: #{alphazero_forward.10} parent=0 // pred_region
    _
  $region21: #{alphazero_forward.10} parent=0 // pred_fallthru
    _

// kernel: alphazero_forward.11
$region0: #{alphazero_forward.11}
  #allocation0 [shape = 'u32[]', space=smem, size = 0x4, offset = 0x4, fixed_abs, tag = 'smem constant byte address 0x4 - core index']
  #allocation1 [shape = 'u32[144,128]{1,0:T(1,128)}', space=vmem, size = 0x12000, scoped, tag = 'internal scratch']
  %s0 = inlined_call_operand.vmem [shape: bf16[8,128], index: 0, kind: input, shape index: {}]
  %s1 = inlined_call_operand.vmem [shape: bf16[128,128], index: 1, kind: input, shape index: {}]
  %s2 = inlined_call_operand.vmem [shape: f32[1,128], index: 2, kind: input, shape index: {}]
  %s3 = inlined_call_operand.vmem [shape: f32[8,128], index: 3, kind: output, shape index: {}]
  %s4 = sld [smem:[#allocation0]]
  $region22: #{alphazero_forward.11} parent=0
    _
  %s6 = ssub.s32 1, %s4
  %s7 = scalar_select 0, %s6, %s4
  // Predicated region
  $region2: #{alphazero_forward.11} parent=0 // pred_check
    _
  $region3: #{alphazero_forward.11} parent=0 // pred_check_branch
    %9 = sbr.rel (0) target = $region5
  $region4: #{alphazero_forward.11} parent=0 // pred_region
    _
  $region5: #{alphazero_forward.11} parent=0 // pred_fallthru
    _
  // Predicated region
  $region6: #{alphazero_forward.11} parent=0 // pred_check
    _
  $region7: #{alphazero_forward.11} parent=0 // pred_check_branch
    %11 = sbr.rel (0) target = $region9
  $region8: #{alphazero_forward.11} parent=0 // pred_region
    _
  $region9: #{alphazero_forward.11} parent=0 // pred_fallthru
    _
  // Predicated region
  $region10: #{alphazero_forward.11} parent=0 // pred_check
    _
  $region11: #{alphazero_forward.11} parent=0 // pred_check_branch
    %13 = sbr.rel (0) target = $region13
  $region12: #{alphazero_forward.11} parent=0 // pred_region
    _
  $region13: #{alphazero_forward.11} parent=0 // pred_fallthru
    _
  %v15 = vld [vmem:[%s0] sm:$0xf]
  %v16 = vld [vmem:[%s1] sm:$0xf]
  %v17 = vld [vmem:[%s1 + $0x4] sm:$0xf]
  %v18 = vld [vmem:[%s1 + $0x8] sm:$0xf]
  %v19 = vld [vmem:[%s1 + $0xc] sm:$0xf]
  %v20 = vld [vmem:[%s1 + $0x10] sm:$0xf]
  %v21 = vld [vmem:[%s1 + $0x14] sm:$0xf]
  %v22 = vld [vmem:[%s1 + $0x18] sm:$0xf]
  %v23 = vld [vmem:[%s1 + $0x1c] sm:$0xf]
  %v24 = vld [vmem:[%s1 + $0x20] sm:$0xf]
  %v25 = vld [vmem:[%s1 + $0x24] sm:$0xf]
  %v26 = vld [vmem:[%s1 + $0x28] sm:$0xf]
  %v27 = vld [vmem:[%s1 + $0x2c] sm:$0xf]
  %v28 = vld [vmem:[%s1 + $0x30] sm:$0xf]
  %v29 = vld [vmem:[%s1 + $0x34] sm:$0xf]
  %v30 = vld [vmem:[%s1 + $0x38] sm:$0xf]
  %v31 = vld [vmem:[%s1 + $0x3c] sm:$0xf]
  %v32 = vld [vmem:[%s2] sm:$0x1]
  %v34 = vlaneseq
  %v35 = vshrl.u32 %v34, 7
  %v36 = vsub.s32 0, %v35
  %v37 = vrot.slane %v32, %v36
  %v55 = vunpack.c.l.b16 %v16
  %v56 = vunpack.c.l.b16 %v17
  %v57 = vunpack.c.l.b16 %v18
  %v58 = vunpack.c.l.b16 %v19
  %v59 = vunpack.c.l.b16 %v20
  %v60 = vunpack.c.l.b16 %v21
  %v61 = vunpack.c.l.b16 %v22
  %v62 = vunpack.c.l.b16 %v23
  %v63 = vunpack.c.l.b16 %v24
  %v64 = vunpack.c.l.b16 %v25
  %v65 = vunpack.c.l.b16 %v26
  %v66 = vunpack.c.l.b16 %v27
  %v67 = vunpack.c.l.b16 %v28
  %v68 = vunpack.c.l.b16 %v29
  %v69 = vunpack.c.l.b16 %v30
  %v70 = vunpack.c.l.b16 %v31
  %v71 = vpack.c.b16 %v56, %v55
  %v72 = vpack.c.b16 %v58, %v57
  %v73 = vpack.c.b16 %v60, %v59
  %v74 = vpack.c.b16 %v62, %v61
  %v75 = vpack.c.b16 %v64, %v63
  %v76 = vpack.c.b16 %v66, %v65
  %v77 = vpack.c.b16 %v68, %v67
  %v78 = vpack.c.b16 %v70, %v69
  %87 = vmatprep.subr.bf16.mxu0 0
  %88 = vmatpush1.bf16.msra.mxu0 %v78
  %89 = vmatprep.subr.bf16.mxu0 0
  %90 = vmatpush1.bf16.msra.mxu0 %v77
  %91 = vmatprep.subr.bf16.mxu0 0
  %92 = vmatpush1.bf16.msra.mxu0 %v76
  %93 = vmatprep.subr.bf16.mxu0 0
  %94 = vmatpush1.bf16.msra.mxu0 %v75
  %95 = vmatprep.subr.bf16.mxu0 0
  %96 = vmatpush1.bf16.msra.mxu0 %v74
  %97 = vmatprep.subr.bf16.mxu0 0
  %98 = vmatpush1.bf16.msra.mxu0 %v73
  %99 = vmatprep.subr.bf16.mxu0 0
  %100 = vmatpush1.bf16.msra.mxu0 %v72
  %101 = vmatprep.subr.bf16.mxu0 0
  %102 = vmatpush1.bf16.msra.mxu0 %v71
  %103 = vmatprep.subr.bf16.mxu0 0
  %104 = vmatpush2.bf16.msra.mxu0 0
  %105 = vmatprep.subr.bf16.mxu0 0
  %106 = vmatpush2.bf16.msra.mxu0 0
  %107 = vmatprep.subr.bf16.mxu0 0
  %108 = vmatpush2.bf16.msra.mxu0 0
  %109 = vmatprep.subr.bf16.mxu0 0
  %110 = vmatpush2.bf16.msra.mxu0 0
  %111 = vmatprep.subr.bf16.mxu0 0
  %112 = vmatpush2.bf16.msra.mxu0 0
  %113 = vmatprep.subr.bf16.mxu0 0
  %114 = vmatpush2.bf16.msra.mxu0 0
  %115 = vmatprep.subr.bf16.mxu0 0
  %116 = vmatpush2.bf16.msra.mxu0 0
  %117 = vmatprep.subr.bf16.mxu0 0
  %118 = vmatpush2.bf16.msra.mxu0 0
  %119 = vmatprep.mubr.bf16.mxu0 0
  %120 = vmatmul.mubr.bf16.gmra.mxu0 %v15
  %v121 = vpop.f32.mrf.mxu0
  %v122 = vadd.f32 %v37, %v121
  %v123 = vpop.f32.mrf.mxu0
  %v124 = vpop.f32.mrf.mxu0
  %v125 = vpop.f32.mrf.mxu0
  %126 = vdwg.mxu0
  %v127 = vlaneseq
  %v128 = vand.u32 %v127, 127
  %vm129 = vcmp.lt.s32.totalorder %v128, 7
  %v130 = vsel %vm129, %v122, -inf
  %131 = vmax.xlane.f32.xlu0 %v130
  %v132 = vpop.xlane.xlu0 %131
  %v133 = vsub.f32 %v122, %v132
  %v134 = vmul.f32 %v133, 1.442695
  %v135 = vpow.pop %v134
  %v136 = vsel %vm129, %v135, 0.0
  %137 = vadd.xlane.f32.xlu0 %v136
  %v138 = vpop.xlane.xlu0 %137
  %v139 = vlog2.pop %v138
  %v140 = vmul.f32 %v139, 0.6931472
  %v141 = vadd.f32 %v140, %v132
  %v142 = vsub.f32 %v122, %v141
  %143 = vst [vmem:[%s3] sm:$0xff] %v142
  // Predicated region
  $region14: #{alphazero_forward.11} parent=0 // pred_check
    _
  $region15: #{alphazero_forward.11} parent=0 // pred_check_branch
    %145 = sbr.rel (0) target = $region17
  $region16: #{alphazero_forward.11} parent=0 // pred_region
    _
  $region17: #{alphazero_forward.11} parent=0 // pred_fallthru
    _
  // Predicated region
  $region18: #{alphazero_forward.11} parent=0 // pred_check
    _
  $region19: #{alphazero_forward.11} parent=0 // pred_check_branch
    %147 = sbr.rel (0) target = $region21
  $region20: #{alphazero_forward.11} parent=0 // pred_region
    _
  $region21: #{alphazero_forward.11} parent=0 // pred_fallthru
    _

// kernel: alphazero_forward.12
$region0: #{alphazero_forward.12}
  #allocation0 [shape = 'u32[]', space=smem, size = 0x4, offset = 0x4, fixed_abs, tag = 'smem constant byte address 0x4 - core index']
  #allocation1 [shape = 'u32[144,128]{1,0:T(1,128)}', space=vmem, size = 0x12000, scoped, tag = 'internal scratch']
  %s0 = inlined_call_operand.vmem [shape: bf16[8,128], index: 0, kind: input, shape index: {}]
  %s1 = inlined_call_operand.vmem [shape: bf16[128,128], index: 1, kind: input, shape index: {}]
  %s2 = inlined_call_operand.vmem [shape: f32[1,128], index: 2, kind: input, shape index: {}]
  %s3 = inlined_call_operand.vmem [shape: f32[8,128], index: 3, kind: output, shape index: {}]
  %s4 = sld [smem:[#allocation0]]
  $region22: #{alphazero_forward.12} parent=0
    _
  %s6 = ssub.s32 1, %s4
  %s7 = scalar_select 0, %s6, %s4
  // Predicated region
  $region2: #{alphazero_forward.12} parent=0 // pred_check
    _
  $region3: #{alphazero_forward.12} parent=0 // pred_check_branch
    %9 = sbr.rel (0) target = $region5
  $region4: #{alphazero_forward.12} parent=0 // pred_region
    _
  $region5: #{alphazero_forward.12} parent=0 // pred_fallthru
    _
  // Predicated region
  $region6: #{alphazero_forward.12} parent=0 // pred_check
    _
  $region7: #{alphazero_forward.12} parent=0 // pred_check_branch
    %11 = sbr.rel (0) target = $region9
  $region8: #{alphazero_forward.12} parent=0 // pred_region
    _
  $region9: #{alphazero_forward.12} parent=0 // pred_fallthru
    _
  // Predicated region
  $region10: #{alphazero_forward.12} parent=0 // pred_check
    _
  $region11: #{alphazero_forward.12} parent=0 // pred_check_branch
    %13 = sbr.rel (0) target = $region13
  $region12: #{alphazero_forward.12} parent=0 // pred_region
    _
  $region13: #{alphazero_forward.12} parent=0 // pred_fallthru
    _
  %v15 = vld [vmem:[%s0] sm:$0xf]
  %v16 = vld [vmem:[%s1] sm:$0xf]
  %v17 = vld [vmem:[%s1 + $0x4] sm:$0xf]
  %v18 = vld [vmem:[%s1 + $0x8] sm:$0xf]
  %v19 = vld [vmem:[%s1 + $0xc] sm:$0xf]
  %v20 = vld [vmem:[%s1 + $0x10] sm:$0xf]
  %v21 = vld [vmem:[%s1 + $0x14] sm:$0xf]
  %v22 = vld [vmem:[%s1 + $0x18] sm:$0xf]
  %v23 = vld [vmem:[%s1 + $0x1c] sm:$0xf]
  %v24 = vld [vmem:[%s1 + $0x20] sm:$0xf]
  %v25 = vld [vmem:[%s1 + $0x24] sm:$0xf]
  %v26 = vld [vmem:[%s1 + $0x28] sm:$0xf]
  %v27 = vld [vmem:[%s1 + $0x2c] sm:$0xf]
  %v28 = vld [vmem:[%s1 + $0x30] sm:$0xf]
  %v29 = vld [vmem:[%s1 + $0x34] sm:$0xf]
  %v30 = vld [vmem:[%s1 + $0x38] sm:$0xf]
  %v31 = vld [vmem:[%s1 + $0x3c] sm:$0xf]
  %v32 = vld [vmem:[%s2] sm:$0x1]
  %v34 = vlaneseq
  %v35 = vshrl.u32 %v34, 7
  %v36 = vsub.s32 0, %v35
  %v37 = vrot.slane %v32, %v36
  %v55 = vunpack.c.l.b16 %v16
  %v56 = vunpack.c.l.b16 %v17
  %v57 = vunpack.c.l.b16 %v18
  %v58 = vunpack.c.l.b16 %v19
  %v59 = vunpack.c.l.b16 %v20
  %v60 = vunpack.c.l.b16 %v21
  %v61 = vunpack.c.l.b16 %v22
  %v62 = vunpack.c.l.b16 %v23
  %v63 = vunpack.c.l.b16 %v24
  %v64 = vunpack.c.l.b16 %v25
  %v65 = vunpack.c.l.b16 %v26
  %v66 = vunpack.c.l.b16 %v27
  %v67 = vunpack.c.l.b16 %v28
  %v68 = vunpack.c.l.b16 %v29
  %v69 = vunpack.c.l.b16 %v30
  %v70 = vunpack.c.l.b16 %v31
  %v71 = vpack.c.b16 %v56, %v55
  %v72 = vpack.c.b16 %v58, %v57
  %v73 = vpack.c.b16 %v60, %v59
  %v74 = vpack.c.b16 %v62, %v61
  %v75 = vpack.c.b16 %v64, %v63
  %v76 = vpack.c.b16 %v66, %v65
  %v77 = vpack.c.b16 %v68, %v67
  %v78 = vpack.c.b16 %v70, %v69
  %87 = vmatprep.subr.bf16.mxu0 0
  %88 = vmatpush1.bf16.msra.mxu0 %v78
  %89 = vmatprep.subr.bf16.mxu0 0
  %90 = vmatpush1.bf16.msra.mxu0 %v77
  %91 = vmatprep.subr.bf16.mxu0 0
  %92 = vmatpush1.bf16.msra.mxu0 %v76
  %93 = vmatprep.subr.bf16.mxu0 0
  %94 = vmatpush1.bf16.msra.mxu0 %v75
  %95 = vmatprep.subr.bf16.mxu0 0
  %96 = vmatpush1.bf16.msra.mxu0 %v74
  %97 = vmatprep.subr.bf16.mxu0 0
  %98 = vmatpush1.bf16.msra.mxu0 %v73
  %99 = vmatprep.subr.bf16.mxu0 0
  %100 = vmatpush1.bf16.msra.mxu0 %v72
  %101 = vmatprep.subr.bf16.mxu0 0
  %102 = vmatpush1.bf16.msra.mxu0 %v71
  %103 = vmatprep.subr.bf16.mxu0 0
  %104 = vmatpush2.bf16.msra.mxu0 0
  %105 = vmatprep.subr.bf16.mxu0 0
  %106 = vmatpush2.bf16.msra.mxu0 0
  %107 = vmatprep.subr.bf16.mxu0 0
  %108 = vmatpush2.bf16.msra.mxu0 0
  %109 = vmatprep.subr.bf16.mxu0 0
  %110 = vmatpush2.bf16.msra.mxu0 0
  %111 = vmatprep.subr.bf16.mxu0 0
  %112 = vmatpush2.bf16.msra.mxu0 0
  %113 = vmatprep.subr.bf16.mxu0 0
  %114 = vmatpush2.bf16.msra.mxu0 0
  %115 = vmatprep.subr.bf16.mxu0 0
  %116 = vmatpush2.bf16.msra.mxu0 0
  %117 = vmatprep.subr.bf16.mxu0 0
  %118 = vmatpush2.bf16.msra.mxu0 0
  %119 = vmatprep.mubr.bf16.mxu0 0
  %120 = vmatmul.mubr.bf16.gmra.mxu0 %v15
  %v121 = vpop.f32.mrf.mxu0
  %v122 = vadd.f32 %v37, %v121
  %v123 = vpop.f32.mrf.mxu0
  %v124 = vpop.f32.mrf.mxu0
  %v125 = vpop.f32.mrf.mxu0
  %126 = vdwg.mxu0
  %v127 = vmax.f32 %v122, 0.0
  %128 = vst [vmem:[%s3] sm:$0xff] %v127
  // Predicated region
  $region14: #{alphazero_forward.12} parent=0 // pred_check
    _
  $region15: #{alphazero_forward.12} parent=0 // pred_check_branch
    %130 = sbr.rel (0) target = $region17
  $region16: #{alphazero_forward.12} parent=0 // pred_region
    _
  $region17: #{alphazero_forward.12} parent=0 // pred_fallthru
    _
  // Predicated region
  $region18: #{alphazero_forward.12} parent=0 // pred_check
    _
  $region19: #{alphazero_forward.12} parent=0 // pred_check_branch
    %132 = sbr.rel (0) target = $region21
  $region20: #{alphazero_forward.12} parent=0 // pred_region
    _
  $region21: #{alphazero_forward.12} parent=0 // pred_fallthru
    _

// kernel: alphazero_forward.13
$region0: #{alphazero_forward.13}
  #allocation0 [shape = 'u32[]', space=smem, size = 0x4, offset = 0x4, fixed_abs, tag = 'smem constant byte address 0x4 - core index']
  #allocation1 [shape = 'u32[144,128]{1,0:T(1,128)}', space=vmem, size = 0x12000, scoped, tag = 'internal scratch']
  %s0 = inlined_call_operand.vmem [shape: bf16[8,128], index: 0, kind: input, shape index: {}]
  %s1 = inlined_call_operand.vmem [shape: bf16[128,128], index: 1, kind: input, shape index: {}]
  %s2 = inlined_call_operand.vmem [shape: f32[1,128], index: 2, kind: input, shape index: {}]
  %s3 = inlined_call_operand.vmem [shape: f32[8,128], index: 3, kind: output, shape index: {}]
  %s4 = sld [smem:[#allocation0]]
  $region22: #{alphazero_forward.13} parent=0
    _
  %s6 = ssub.s32 1, %s4
  %s7 = scalar_select 0, %s6, %s4
  // Predicated region
  $region2: #{alphazero_forward.13} parent=0 // pred_check
    _
  $region3: #{alphazero_forward.13} parent=0 // pred_check_branch
    %9 = sbr.rel (0) target = $region5
  $region4: #{alphazero_forward.13} parent=0 // pred_region
    _
  $region5: #{alphazero_forward.13} parent=0 // pred_fallthru
    _
  // Predicated region
  $region6: #{alphazero_forward.13} parent=0 // pred_check
    _
  $region7: #{alphazero_forward.13} parent=0 // pred_check_branch
    %11 = sbr.rel (0) target = $region9
  $region8: #{alphazero_forward.13} parent=0 // pred_region
    _
  $region9: #{alphazero_forward.13} parent=0 // pred_fallthru
    _
  // Predicated region
  $region10: #{alphazero_forward.13} parent=0 // pred_check
    _
  $region11: #{alphazero_forward.13} parent=0 // pred_check_branch
    %13 = sbr.rel (0) target = $region13
  $region12: #{alphazero_forward.13} parent=0 // pred_region
    _
  $region13: #{alphazero_forward.13} parent=0 // pred_fallthru
    _
  %v15 = vld [vmem:[%s0] sm:$0xf]
  %v16 = vld [vmem:[%s1] sm:$0xf]
  %v17 = vld [vmem:[%s1 + $0x4] sm:$0xf]
  %v18 = vld [vmem:[%s1 + $0x8] sm:$0xf]
  %v19 = vld [vmem:[%s1 + $0xc] sm:$0xf]
  %v20 = vld [vmem:[%s1 + $0x10] sm:$0xf]
  %v21 = vld [vmem:[%s1 + $0x14] sm:$0xf]
  %v22 = vld [vmem:[%s1 + $0x18] sm:$0xf]
  %v23 = vld [vmem:[%s1 + $0x1c] sm:$0xf]
  %v24 = vld [vmem:[%s1 + $0x20] sm:$0xf]
  %v25 = vld [vmem:[%s1 + $0x24] sm:$0xf]
  %v26 = vld [vmem:[%s1 + $0x28] sm:$0xf]
  %v27 = vld [vmem:[%s1 + $0x2c] sm:$0xf]
  %v28 = vld [vmem:[%s1 + $0x30] sm:$0xf]
  %v29 = vld [vmem:[%s1 + $0x34] sm:$0xf]
  %v30 = vld [vmem:[%s1 + $0x38] sm:$0xf]
  %v31 = vld [vmem:[%s1 + $0x3c] sm:$0xf]
  %v32 = vld [vmem:[%s2] sm:$0x1]
  %v34 = vlaneseq
  %v35 = vshrl.u32 %v34, 7
  %v36 = vsub.s32 0, %v35
  %v37 = vrot.slane %v32, %v36
  %v55 = vunpack.c.l.b16 %v16
  %v56 = vunpack.c.l.b16 %v17
  %v57 = vunpack.c.l.b16 %v18
  %v58 = vunpack.c.l.b16 %v19
  %v59 = vunpack.c.l.b16 %v20
  %v60 = vunpack.c.l.b16 %v21
  %v61 = vunpack.c.l.b16 %v22
  %v62 = vunpack.c.l.b16 %v23
  %v63 = vunpack.c.l.b16 %v24
  %v64 = vunpack.c.l.b16 %v25
  %v65 = vunpack.c.l.b16 %v26
  %v66 = vunpack.c.l.b16 %v27
  %v67 = vunpack.c.l.b16 %v28
  %v68 = vunpack.c.l.b16 %v29
  %v69 = vunpack.c.l.b16 %v30
  %v70 = vunpack.c.l.b16 %v31
  %v71 = vpack.c.b16 %v56, %v55
  %v72 = vpack.c.b16 %v58, %v57
  %v73 = vpack.c.b16 %v60, %v59
  %v74 = vpack.c.b16 %v62, %v61
  %v75 = vpack.c.b16 %v64, %v63
  %v76 = vpack.c.b16 %v66, %v65
  %v77 = vpack.c.b16 %v68, %v67
  %v78 = vpack.c.b16 %v70, %v69
  %87 = vmatprep.subr.bf16.mxu0 0
  %88 = vmatpush1.bf16.msra.mxu0 %v78
  %89 = vmatprep.subr.bf16.mxu0 0
  %90 = vmatpush1.bf16.msra.mxu0 %v77
  %91 = vmatprep.subr.bf16.mxu0 0
  %92 = vmatpush1.bf16.msra.mxu0 %v76
  %93 = vmatprep.subr.bf16.mxu0 0
  %94 = vmatpush1.bf16.msra.mxu0 %v75
  %95 = vmatprep.subr.bf16.mxu0 0
  %96 = vmatpush1.bf16.msra.mxu0 %v74
  %97 = vmatprep.subr.bf16.mxu0 0
  %98 = vmatpush1.bf16.msra.mxu0 %v73
  %99 = vmatprep.subr.bf16.mxu0 0
  %100 = vmatpush1.bf16.msra.mxu0 %v72
  %101 = vmatprep.subr.bf16.mxu0 0
  %102 = vmatpush1.bf16.msra.mxu0 %v71
  %103 = vmatprep.subr.bf16.mxu0 0
  %104 = vmatpush2.bf16.msra.mxu0 0
  %105 = vmatprep.subr.bf16.mxu0 0
  %106 = vmatpush2.bf16.msra.mxu0 0
  %107 = vmatprep.subr.bf16.mxu0 0
  %108 = vmatpush2.bf16.msra.mxu0 0
  %109 = vmatprep.subr.bf16.mxu0 0
  %110 = vmatpush2.bf16.msra.mxu0 0
  %111 = vmatprep.subr.bf16.mxu0 0
  %112 = vmatpush2.bf16.msra.mxu0 0
  %113 = vmatprep.subr.bf16.mxu0 0
  %114 = vmatpush2.bf16.msra.mxu0 0
  %115 = vmatprep.subr.bf16.mxu0 0
  %116 = vmatpush2.bf16.msra.mxu0 0
  %117 = vmatprep.subr.bf16.mxu0 0
  %118 = vmatpush2.bf16.msra.mxu0 0
  %119 = vmatprep.mubr.bf16.mxu0 0
  %120 = vmatmul.mubr.bf16.gmra.mxu0 %v15
  %v121 = vpop.f32.mrf.mxu0
  %v122 = vadd.f32 %v37, %v121
  %v123 = vpop.f32.mrf.mxu0
  %v124 = vpop.f32.mrf.mxu0
  %v125 = vpop.f32.mrf.mxu0
  %126 = vdwg.mxu0
  %v127 = vtanh.pop %v122
  %128 = vst [vmem:[%s3] sm:$0xff] %v127
  // Predicated region
  $region14: #{alphazero_forward.13} parent=0 // pred_check
    _
  $region15: #{alphazero_forward.13} parent=0 // pred_check_branch
    %130 = sbr.rel (0) target = $region17
  $region16: #{alphazero_forward.13} parent=0 // pred_region
    _
  $region17: #{alphazero_forward.13} parent=0 // pred_fallthru
    _
  // Predicated region
  $region18: #{alphazero_forward.13} parent=0 // pred_check
    _
  $region19: #{alphazero_forward.13} parent=0 // pred_check_branch
    %132 = sbr.rel (0) target = $region21
  $region20: #{alphazero_forward.13} parent=0 // pred_region
    _
  $region21: #{alphazero_forward.13} parent=0 // pred_fallthru
    _

// kernel: alphazero_forward.7
$region0: #{alphazero_forward.7}
  #allocation0 [shape = 'u32[]', space=smem, size = 0x4, offset = 0x4, fixed_abs, tag = 'smem constant byte address 0x4 - core index']
  #allocation1 [shape = 'u32[144,128]{1,0:T(1,128)}', space=vmem, size = 0x12000, scoped, tag = 'internal scratch']
  %s0 = inlined_call_operand.vmem [shape: bf16[288,128], index: 0, kind: input, shape index: {}]
  %s1 = inlined_call_operand.vmem [shape: bf16[9,128,128], index: 1, kind: input, shape index: {}]
  %s2 = inlined_call_operand.vmem [shape: f32[1,128], index: 2, kind: input, shape index: {}]
  %s3 = inlined_call_operand.vmem [shape: f32[288,1], index: 3, kind: input, shape index: {}]
  %s4 = inlined_call_operand.vmem [shape: bf16[288,128], index: 4, kind: output, shape index: {}]
  %s5 = sld [smem:[#allocation0]]
  $region26: #{alphazero_forward.7} parent=0
    _
  %s7 = ssub.s32 1, %s5
  %s8 = scalar_select 0, %s7, %s5
  // Predicated region
  $region2: #{alphazero_forward.7} parent=0 // pred_check
    _
  $region3: #{alphazero_forward.7} parent=0 // pred_check_branch
    %10 = sbr.rel (0) target = $region5
  $region4: #{alphazero_forward.7} parent=0 // pred_region
    _
  $region5: #{alphazero_forward.7} parent=0 // pred_fallthru
    _
  // Predicated region
  $region6: #{alphazero_forward.7} parent=0 // pred_check
    _
  $region7: #{alphazero_forward.7} parent=0 // pred_check_branch
    %12 = sbr.rel (0) target = $region9
  $region8: #{alphazero_forward.7} parent=0 // pred_region
    _
  $region9: #{alphazero_forward.7} parent=0 // pred_fallthru
    _
  // Predicated region
  $region10: #{alphazero_forward.7} parent=0 // pred_check
    _
  $region11: #{alphazero_forward.7} parent=0 // pred_check_branch
    %14 = sbr.rel (0) target = $region13
  $region12: #{alphazero_forward.7} parent=0 // pred_region
    _
  $region13: #{alphazero_forward.7} parent=0 // pred_fallthru
    _
  // Predicated region
  $region14: #{alphazero_forward.7} parent=0 // pred_check
    _
  $region15: #{alphazero_forward.7} parent=0 // pred_check_branch
    %16 = sbr.rel (0) target = $region17
  $region16: #{alphazero_forward.7} parent=0 // pred_region
    _
  $region17: #{alphazero_forward.7} parent=0 // pred_fallthru
    _
  %v18 = vld [vmem:[%s0] sm:$0xf]
  %v19 = vld [vmem:[%s0 + $0x4] sm:$0xf]
  %v20 = vld [vmem:[%s0 + $0x8] sm:$0xf]
  %v21 = vld [vmem:[%s0 + $0xc] sm:$0xf]
  %v22 = vld [vmem:[%s0 + $0x10] sm:$0xf]
  %v23 = vld [vmem:[%s0 + $0x14] sm:$0xf]
  %v24 = vld [vmem:[%s0 + $0x18] sm:$0xf]
  %v25 = vld [vmem:[%s0 + $0x1c] sm:$0xf]
  %v26 = vld [vmem:[%s0 + $0x20] sm:$0xf]
  %v27 = vld [vmem:[%s0 + $0x24] sm:$0xf]
  %v28 = vld [vmem:[%s0 + $0x28] sm:$0xf]
  %v29 = vld [vmem:[%s0 + $0x2c] sm:$0xf]
  %v30 = vld [vmem:[%s0 + $0x30] sm:$0xf]
  %v31 = vld [vmem:[%s0 + $0x34] sm:$0xf]
  %v32 = vld [vmem:[%s0 + $0x38] sm:$0xf]
  %v33 = vld [vmem:[%s0 + $0x3c] sm:$0xf]
  %v34 = vld [vmem:[%s0 + $0x40] sm:$0xf]
  %v35 = vld [vmem:[%s0 + $0x44] sm:$0xf]
  %v36 = vld [vmem:[%s0 + $0x48] sm:$0xf]
  %v37 = vld [vmem:[%s0 + $0x4c] sm:$0xf]
  %v38 = vld [vmem:[%s0 + $0x50] sm:$0xf]
  %v39 = vld [vmem:[%s0 + $0x54] sm:$0xf]
  %v40 = vld [vmem:[%s0 + $0x58] sm:$0xf]
  %v41 = vld [vmem:[%s0 + $0x5c] sm:$0xf]
  %v42 = vld [vmem:[%s0 + $0x60] sm:$0xf]
  %v43 = vld [vmem:[%s0 + $0x64] sm:$0xf]
  %v44 = vld [vmem:[%s0 + $0x68] sm:$0xf]
  %v45 = vld [vmem:[%s0 + $0x6c] sm:$0xf]
  %v46 = vld [vmem:[%s0 + $0x70] sm:$0xf]
  %v47 = vld [vmem:[%s0 + $0x74] sm:$0xf]
  %v48 = vld [vmem:[%s0 + $0x78] sm:$0xf]
  %v49 = vld [vmem:[%s0 + $0x7c] sm:$0xf]
  %v50 = vld [vmem:[%s0 + $0x80] sm:$0xf]
  %v51 = vld [vmem:[%s0 + $0x84] sm:$0xf]
  %v52 = vld [vmem:[%s0 + $0x88] sm:$0xf]
  %v53 = vld [vmem:[%s0 + $0x8c] sm:$0xf]
  %v54 = vunpack.c.l.bf16 %v18
  %v55 = vunpack.c.l.bf16 %v19
  %v56 = vunpack.c.l.bf16 %v20
  %v57 = vunpack.c.l.bf16 %v21
  %v58 = vunpack.c.l.bf16 %v22
  %v59 = vunpack.c.l.bf16 %v23
  %v60 = vunpack.c.l.bf16 %v24
  %v61 = vunpack.c.l.bf16 %v25
  %v62 = vunpack.c.l.bf16 %v26
  %v63 = vunpack.c.l.bf16 %v27
  %v64 = vunpack.c.l.bf16 %v28
  %v65 = vunpack.c.l.bf16 %v29
  %v66 = vunpack.c.l.bf16 %v30
  %v67 = vunpack.c.l.bf16 %v31
  %v68 = vunpack.c.l.bf16 %v32
  %v69 = vunpack.c.l.bf16 %v33
  %v70 = vunpack.c.l.bf16 %v34
  %v71 = vunpack.c.l.bf16 %v35
  %v72 = vunpack.c.l.bf16 %v36
  %v73 = vunpack.c.l.bf16 %v37
  %v74 = vunpack.c.l.bf16 %v38
  %v75 = vunpack.c.l.bf16 %v39
  %v76 = vunpack.c.l.bf16 %v40
  %v77 = vunpack.c.l.bf16 %v41
  %v78 = vunpack.c.l.bf16 %v42
  %v79 = vunpack.c.l.bf16 %v43
  %v80 = vunpack.c.l.bf16 %v44
  %v81 = vunpack.c.l.bf16 %v45
  %v82 = vunpack.c.l.bf16 %v46
  %v83 = vunpack.c.l.bf16 %v47
  %v84 = vunpack.c.l.bf16 %v48
  %v85 = vunpack.c.l.bf16 %v49
  %v86 = vunpack.c.l.bf16 %v50
  %v87 = vunpack.c.l.bf16 %v51
  %v88 = vunpack.c.l.bf16 %v52
  %v89 = vunpack.c.l.bf16 %v53
  %v90 = vrot.slane %v54, 6
  %v91 = vrot.slane %v55, 6
  %v92 = vrot.slane %v56, 6
  %v93 = vrot.slane %v57, 6
  %v94 = vrot.slane %v58, 6
  %v95 = vrot.slane %v59, 6
  %v96 = vrot.slane %v60, 6
  %v97 = vrot.slane %v61, 6
  %v98 = vrot.slane %v62, 6
  %v99 = vrot.slane %v63, 6
  %v100 = vrot.slane %v64, 6
  %v101 = vrot.slane %v65, 6
  %v102 = vrot.slane %v66, 6
  %v103 = vrot.slane %v67, 6
  %v104 = vrot.slane %v68, 6
  %v105 = vrot.slane %v69, 6
  %v106 = vrot.slane %v70, 6
  %v107 = vrot.slane %v71, 6
  %v108 = vrot.slane %v72, 6
  %v109 = vrot.slane %v73, 6
  %v110 = vrot.slane %v74, 6
  %v111 = vrot.slane %v75, 6
  %v112 = vrot.slane %v76, 6
  %v113 = vrot.slane %v77, 6
  %v114 = vrot.slane %v78, 6
  %v115 = vrot.slane %v79, 6
  %v116 = vrot.slane %v80, 6
  %v117 = vrot.slane %v81, 6
  %v118 = vrot.slane %v82, 6
  %v119 = vrot.slane %v83, 6
  %v120 = vrot.slane %v84, 6
  %v121 = vrot.slane %v85, 6
  %v122 = vrot.slane %v86, 6
  %v123 = vrot.slane %v87, 6
  %v124 = vrot.slane %v88, 6
  %v125 = vrot.slane %v89, 6
  %v126 = vlaneseq
  %v127 = vshrl.u32 %v126, 7
  %vm128 = vcmp.lt.s32.totalorder %v127, 2
  %v129 = vsel %vm128, %v124, %v125
  %v130 = vsel %vm128, %v123, %v124
  %v131 = vsel %vm128, %v122, %v123
  %v132 = vsel %vm128, %v121, %v122
  %v133 = vsel %vm128, %v120, %v121
  %v134 = vsel %vm128, %v119, %v120
  %v135 = vsel %vm128, %v118, %v119
  %v136 = vsel %vm128, %v117, %v118
  %v137 = vsel %vm128, %v116, %v117
  %v138 = vsel %vm128, %v115, %v116
  %v139 = vsel %vm128, %v114, %v115
  %v140 = vsel %vm128, %v113, %v114
  %v141 = vsel %vm128, %v112, %v113
  %v142 = vsel %vm128, %v111, %v112
  %v143 = vsel %vm128, %v110, %v111
  %v144 = vsel %vm128, %v109, %v110
  %v145 = vsel %vm128, %v108, %v109
  %v146 = vsel %vm128, %v107, %v108
  %v147 = vsel %vm128, %v106, %v107
  %v148 = vsel %vm128, %v105, %v106
  %v149 = vsel %vm128, %v104, %v105
  %v150 = vsel %vm128, %v103, %v104
  %v151 = vsel %vm128, %v102, %v103
  %v152 = vsel %vm128, %v101, %v102
  %v153 = vsel %vm128, %v100, %v101
  %v154 = vsel %vm128, %v99, %v100
  %v155 = vsel %vm128, %v98, %v99
  %v156 = vsel %vm128, %v97, %v98
  %v157 = vsel %vm128, %v96, %v97
  %v158 = vsel %vm128, %v95, %v96
  %v159 = vsel %vm128, %v94, %v95
  %v160 = vsel %vm128, %v93, %v94
  %v161 = vsel %vm128, %v92, %v93
  %v162 = vsel %vm128, %v91, %v92
  %v163 = vsel %vm128, %v90, %v91
  %v164 = vsel %vm128, %v125, %v90
  %v165 = vpack.c.bf16 %v164, %v129
  %v166 = vpack.c.bf16 %v162, %v163
  %v167 = vpack.c.bf16 %v160, %v161
  %v168 = vpack.c.bf16 %v158, %v159
  %v169 = vpack.c.bf16 %v156, %v157
  %v170 = vpack.c.bf16 %v154, %v155
  %v171 = vpack.c.bf16 %v152, %v153
  %v172 = vpack.c.bf16 %v150, %v151
  %v173 = vpack.c.bf16 %v148, %v149
  %v174 = vpack.c.bf16 %v146, %v147
  %v175 = vpack.c.bf16 %v144, %v145
  %v176 = vpack.c.bf16 %v142, %v143
  %v177 = vpack.c.bf16 %v140, %v141
  %v178 = vpack.c.bf16 %v138, %v139
  %v179 = vpack.c.bf16 %v136, %v137
  %v180 = vpack.c.bf16 %v134, %v135
  %v181 = vpack.c.bf16 %v132, %v133
  %v182 = vpack.c.bf16 %v130, %v131
  %v183 = vld [vmem:[%s1] sm:$0xf]
  %v184 = vld [vmem:[%s1 + $0x4] sm:$0xf]
  %v185 = vld [vmem:[%s1 + $0x8] sm:$0xf]
  %v186 = vld [vmem:[%s1 + $0xc] sm:$0xf]
  %v187 = vld [vmem:[%s1 + $0x10] sm:$0xf]
  %v188 = vld [vmem:[%s1 + $0x14] sm:$0xf]
  %v189 = vld [vmem:[%s1 + $0x18] sm:$0xf]
  %v190 = vld [vmem:[%s1 + $0x1c] sm:$0xf]
  %v191 = vld [vmem:[%s1 + $0x20] sm:$0xf]
  %v192 = vld [vmem:[%s1 + $0x24] sm:$0xf]
  %v193 = vld [vmem:[%s1 + $0x28] sm:$0xf]
  %v194 = vld [vmem:[%s1 + $0x2c] sm:$0xf]
  %v195 = vld [vmem:[%s1 + $0x30] sm:$0xf]
  %v196 = vld [vmem:[%s1 + $0x34] sm:$0xf]
  %v197 = vld [vmem:[%s1 + $0x38] sm:$0xf]
  %v198 = vld [vmem:[%s1 + $0x3c] sm:$0xf]
  %v199 = vrot.slane %v54, 7
  %v200 = vrot.slane %v55, 7
  %v201 = vrot.slane %v56, 7
  %v202 = vrot.slane %v57, 7
  %v203 = vrot.slane %v58, 7
  %v204 = vrot.slane %v59, 7
  %v205 = vrot.slane %v60, 7
  %v206 = vrot.slane %v61, 7
  %v207 = vrot.slane %v62, 7
  %v208 = vrot.slane %v63, 7
  %v209 = vrot.slane %v64, 7
  %v210 = vrot.slane %v65, 7
  %v211 = vrot.slane %v66, 7
  %v212 = vrot.slane %v67, 7
  %v213 = vrot.slane %v68, 7
  %v214 = vrot.slane %v69, 7
  %v215 = vrot.slane %v70, 7
  %v216 = vrot.slane %v71, 7
  %v217 = vrot.slane %v72, 7
  %v218 = vrot.slane %v73, 7
  %v219 = vrot.slane %v74, 7
  %v220 = vrot.slane %v75, 7
  %v221 = vrot.slane %v76, 7
  %v222 = vrot.slane %v77, 7
  %v223 = vrot.slane %v78, 7
  %v224 = vrot.slane %v79, 7
  %v225 = vrot.slane %v80, 7
  %v226 = vrot.slane %v81, 7
  %v227 = vrot.slane %v82, 7
  %v228 = vrot.slane %v83, 7
  %v229 = vrot.slane %v84, 7
  %v230 = vrot.slane %v85, 7
  %v231 = vrot.slane %v86, 7
  %v232 = vrot.slane %v87, 7
  %v233 = vrot.slane %v88, 7
  %v234 = vrot.slane %v89, 7
  %vm235 = vcmp.lt.s32.totalorder %v127, 1
  %v236 = vsel %vm235, %v233, %v234
  %v237 = vsel %vm235, %v232, %v233
  %v238 = vsel %vm235, %v231, %v232
  %v239 = vsel %vm235, %v230, %v231
  %v240 = vsel %vm235, %v229, %v230
  %v241 = vsel %vm235, %v228, %v229
  %v242 = vsel %vm235, %v227, %v228
  %v243 = vsel %vm235, %v226, %v227
  %v244 = vsel %vm235, %v225, %v226
  %v245 = vsel %vm235, %v224, %v225
  %v246 = vsel %vm235, %v223, %v224
  %v247 = vsel %vm235, %v222, %v223
  %v248 = vsel %vm235, %v221, %v222
  %v249 = vsel %vm235, %v220, %v221
  %v250 = vsel %vm235, %v219, %v220
  %v251 = vsel %vm235, %v218, %v219
  %v252 = vsel %vm235, %v217, %v218
  %v253 = vsel %vm235, %v216, %v217
  %v254 = vsel %vm235, %v215, %v216
  %v255 = vsel %vm235, %v214, %v215
  %v256 = vsel %vm235, %v213, %v214
  %v257 = vsel %vm235, %v212, %v213
  %v258 = vsel %vm235, %v211, %v212
  %v259 = vsel %vm235, %v210, %v211
  %v260 = vsel %vm235, %v209, %v210
  %v261 = vsel %vm235, %v208, %v209
  %v262 = vsel %vm235, %v207, %v208
  %v263 = vsel %vm235, %v206, %v207
  %v264 = vsel %vm235, %v205, %v206
  %v265 = vsel %vm235, %v204, %v205
  %v266 = vsel %vm235, %v203, %v204
  %v267 = vsel %vm235, %v202, %v203
  %v268 = vsel %vm235, %v201, %v202
  %v269 = vsel %vm235, %v200, %v201
  %v270 = vsel %vm235, %v199, %v200
  %v271 = vsel %vm235, %v234, %v199
  %v272 = vpack.c.bf16 %v271, %v236
  %v273 = vpack.c.bf16 %v269, %v270
  %v274 = vpack.c.bf16 %v267, %v268
  %v275 = vpack.c.bf16 %v265, %v266
  %v276 = vpack.c.bf16 %v263, %v264
  %v277 = vpack.c.bf16 %v261, %v262
  %v278 = vpack.c.bf16 %v259, %v260
  %v279 = vpack.c.bf16 %v257, %v258
  %v280 = vpack.c.bf16 %v255, %v256
  %v281 = vpack.c.bf16 %v253, %v254
  %v282 = vpack.c.bf16 %v251, %v252
  %v283 = vpack.c.bf16 %v249, %v250
  %v284 = vpack.c.bf16 %v247, %v248
  %v285 = vpack.c.bf16 %v245, %v246
  %v286 = vpack.c.bf16 %v243, %v244
  %v287 = vpack.c.bf16 %v241, %v242
  %v288 = vpack.c.bf16 %v239, %v240
  %v289 = vpack.c.bf16 %v237, %v238
  %s290 = scalar_lea.vmem %s1, 64
  %v291 = vld [vmem:[%s290] sm:$0xf]
  %v292 = vld [vmem:[%s290 + $0x4] sm:$0xf]
  %v293 = vld [vmem:[%s290 + $0x8] sm:$0xf]
  %v294 = vld [vmem:[%s290 + $0xc] sm:$0xf]
  %v295 = vld [vmem:[%s290 + $0x10] sm:$0xf]
  %v296 = vld [vmem:[%s290 + $0x14] sm:$0xf]
  %v297 = vld [vmem:[%s290 + $0x18] sm:$0xf]
  %v298 = vld [vmem:[%s290 + $0x1c] sm:$0xf]
  %v299 = vld [vmem:[%s290 + $0x20] sm:$0xf]
  %v300 = vld [vmem:[%s290 + $0x24] sm:$0xf]
  %v301 = vld [vmem:[%s290 + $0x28] sm:$0xf]
  %v302 = vld [vmem:[%s290 + $0x2c] sm:$0xf]
  %v303 = vld [vmem:[%s290 + $0x30] sm:$0xf]
  %v304 = vld [vmem:[%s290 + $0x34] sm:$0xf]
  %v305 = vld [vmem:[%s290 + $0x38] sm:$0xf]
  %v306 = vld [vmem:[%s290 + $0x3c] sm:$0xf]
  %v323 = vunpack.c.l.b16 %v291
  %v324 = vunpack.c.l.b16 %v292
  %v325 = vunpack.c.l.b16 %v293
  %v326 = vunpack.c.l.b16 %v294
  %v327 = vunpack.c.l.b16 %v295
  %v328 = vunpack.c.l.b16 %v296
  %v329 = vunpack.c.l.b16 %v297
  %v330 = vunpack.c.l.b16 %v298
  %v331 = vunpack.c.l.b16 %v299
  %v332 = vunpack.c.l.b16 %v300
  %v333 = vunpack.c.l.b16 %v301
  %v334 = vunpack.c.l.b16 %v302
  %v335 = vunpack.c.l.b16 %v303
  %v336 = vunpack.c.l.b16 %v304
  %v337 = vunpack.c.l.b16 %v305
  %v338 = vunpack.c.l.b16 %v306
  %v339 = vpack.c.b16 %v324, %v323
  %v340 = vpack.c.b16 %v326, %v325
  %v341 = vpack.c.b16 %v328, %v327
  %v342 = vpack.c.b16 %v330, %v329
  %v343 = vpack.c.b16 %v332, %v331
  %v344 = vpack.c.b16 %v334, %v333
  %v345 = vpack.c.b16 %v336, %v335
  %v346 = vpack.c.b16 %v338, %v337
  %355 = vmatprep.subr.bf16.mxu0 0
  %356 = vmatpush1.bf16.msra.mxu0 %v346
  %357 = vmatprep.subr.bf16.mxu0 0
  %358 = vmatpush1.bf16.msra.mxu0 %v345
  %359 = vmatprep.subr.bf16.mxu0 0
  %360 = vmatpush1.bf16.msra.mxu0 %v344
  %361 = vmatprep.subr.bf16.mxu0 0
  %362 = vmatpush1.bf16.msra.mxu0 %v343
  %363 = vmatprep.subr.bf16.mxu0 0
  %364 = vmatpush1.bf16.msra.mxu0 %v342
  %365 = vmatprep.subr.bf16.mxu0 0
  %366 = vmatpush1.bf16.msra.mxu0 %v341
  %367 = vmatprep.subr.bf16.mxu0 0
  %368 = vmatpush1.bf16.msra.mxu0 %v340
  %369 = vmatprep.subr.bf16.mxu0 0
  %370 = vmatpush1.bf16.msra.mxu0 %v339
  %371 = vmatprep.subr.bf16.mxu0 0
  %372 = vmatpush2.bf16.msra.mxu0 0
  %373 = vmatprep.subr.bf16.mxu0 0
  %374 = vmatpush2.bf16.msra.mxu0 0
  %375 = vmatprep.subr.bf16.mxu0 0
  %376 = vmatpush2.bf16.msra.mxu0 0
  %377 = vmatprep.subr.bf16.mxu0 0
  %378 = vmatpush2.bf16.msra.mxu0 0
  %379 = vmatprep.subr.bf16.mxu0 0
  %380 = vmatpush2.bf16.msra.mxu0 0
  %381 = vmatprep.subr.bf16.mxu0 0
  %382 = vmatpush2.bf16.msra.mxu0 0
  %383 = vmatprep.subr.bf16.mxu0 0
  %384 = vmatpush2.bf16.msra.mxu0 0
  %385 = vmatprep.subr.bf16.mxu0 0
  %386 = vmatpush2.bf16.msra.mxu0 0
  %387 = vmatprep.mubr.bf16.mxu0 0
  %388 = vmatmul.mubr.bf16.gmra.mxu0 %v272
  %v389 = vpop.f32.mrf.mxu0
  %v390 = vadd.f32 0.0, %v389
  %v391 = vpop.f32.mrf.mxu0
  %v392 = vpop.f32.mrf.mxu0
  %v393 = vadd.f32 0.0, %v392
  %v394 = vpop.f32.mrf.mxu0
  %395 = vmatprep.mubr.bf16.mxu0 0
  %396 = vmatmul.mubr.bf16.gmra.mxu0 %v273
  %v397 = vpop.f32.mrf.mxu0
  %v398 = vadd.f32 0.0, %v397
  %v399 = vpop.f32.mrf.mxu0
  %v400 = vpop.f32.mrf.mxu0
  %v401 = vadd.f32 0.0, %v400
  %v402 = vpop.f32.mrf.mxu0
  %403 = vmatprep.mubr.bf16.mxu0 0
  %404 = vmatmul.mubr.bf16.gmra.mxu0 %v274
  %v405 = vpop.f32.mrf.mxu0
  %v406 = vadd.f32 0.0, %v405
  %v407 = vpop.f32.mrf.mxu0
  %v408 = vpop.f32.mrf.mxu0
  %v409 = vadd.f32 0.0, %v408
  %v410 = vpop.f32.mrf.mxu0
  %411 = vmatprep.mubr.bf16.mxu0 0
  %412 = vmatmul.mubr.bf16.gmra.mxu0 %v275
  %v413 = vpop.f32.mrf.mxu0
  %v414 = vadd.f32 0.0, %v413
  %v415 = vpop.f32.mrf.mxu0
  %v416 = vpop.f32.mrf.mxu0
  %v417 = vadd.f32 0.0, %v416
  %v418 = vpop.f32.mrf.mxu0
  %419 = vmatprep.mubr.bf16.mxu0 0
  %420 = vmatmul.mubr.bf16.gmra.mxu0 %v276
  %v421 = vpop.f32.mrf.mxu0
  %v422 = vadd.f32 0.0, %v421
  %v423 = vpop.f32.mrf.mxu0
  %v424 = vpop.f32.mrf.mxu0
  %v425 = vadd.f32 0.0, %v424
  %v426 = vpop.f32.mrf.mxu0
  %427 = vmatprep.mubr.bf16.mxu0 0
  %428 = vmatmul.mubr.bf16.gmra.mxu0 %v277
  %v429 = vpop.f32.mrf.mxu0
  %v430 = vadd.f32 0.0, %v429
  %v431 = vpop.f32.mrf.mxu0
  %v432 = vpop.f32.mrf.mxu0
  %v433 = vadd.f32 0.0, %v432
  %v434 = vpop.f32.mrf.mxu0
  %435 = vmatprep.mubr.bf16.mxu0 0
  %436 = vmatmul.mubr.bf16.gmra.mxu0 %v278
  %v437 = vpop.f32.mrf.mxu0
  %v438 = vadd.f32 0.0, %v437
  %v439 = vpop.f32.mrf.mxu0
  %v440 = vpop.f32.mrf.mxu0
  %v441 = vadd.f32 0.0, %v440
  %v442 = vpop.f32.mrf.mxu0
  %443 = vmatprep.mubr.bf16.mxu0 0
  %444 = vmatmul.mubr.bf16.gmra.mxu0 %v279
  %v445 = vpop.f32.mrf.mxu0
  %v446 = vadd.f32 0.0, %v445
  %v447 = vpop.f32.mrf.mxu0
  %v448 = vpop.f32.mrf.mxu0
  %v449 = vadd.f32 0.0, %v448
  %v450 = vpop.f32.mrf.mxu0
  %451 = vmatprep.mubr.bf16.mxu0 0
  %452 = vmatmul.mubr.bf16.gmra.mxu0 %v280
  %v453 = vpop.f32.mrf.mxu0
  %v454 = vadd.f32 0.0, %v453
  %v455 = vpop.f32.mrf.mxu0
  %v456 = vpop.f32.mrf.mxu0
  %v457 = vadd.f32 0.0, %v456
  %v458 = vpop.f32.mrf.mxu0
  %459 = vmatprep.mubr.bf16.mxu0 0
  %460 = vmatmul.mubr.bf16.gmra.mxu0 %v281
  %v461 = vpop.f32.mrf.mxu0
  %v462 = vadd.f32 0.0, %v461
  %v463 = vpop.f32.mrf.mxu0
  %v464 = vpop.f32.mrf.mxu0
  %v465 = vadd.f32 0.0, %v464
  %v466 = vpop.f32.mrf.mxu0
  %467 = vmatprep.mubr.bf16.mxu0 0
  %468 = vmatmul.mubr.bf16.gmra.mxu0 %v282
  %v469 = vpop.f32.mrf.mxu0
  %v470 = vadd.f32 0.0, %v469
  %v471 = vpop.f32.mrf.mxu0
  %v472 = vpop.f32.mrf.mxu0
  %v473 = vadd.f32 0.0, %v472
  %v474 = vpop.f32.mrf.mxu0
  %475 = vmatprep.mubr.bf16.mxu0 0
  %476 = vmatmul.mubr.bf16.gmra.mxu0 %v283
  %v477 = vpop.f32.mrf.mxu0
  %v478 = vadd.f32 0.0, %v477
  %v479 = vpop.f32.mrf.mxu0
  %v480 = vpop.f32.mrf.mxu0
  %v481 = vadd.f32 0.0, %v480
  %v482 = vpop.f32.mrf.mxu0
  %483 = vmatprep.mubr.bf16.mxu0 0
  %484 = vmatmul.mubr.bf16.gmra.mxu0 %v284
  %v485 = vpop.f32.mrf.mxu0
  %v486 = vadd.f32 0.0, %v485
  %v487 = vpop.f32.mrf.mxu0
  %v488 = vpop.f32.mrf.mxu0
  %v489 = vadd.f32 0.0, %v488
  %v490 = vpop.f32.mrf.mxu0
  %491 = vmatprep.mubr.bf16.mxu0 0
  %492 = vmatmul.mubr.bf16.gmra.mxu0 %v285
  %v493 = vpop.f32.mrf.mxu0
  %v494 = vadd.f32 0.0, %v493
  %v495 = vpop.f32.mrf.mxu0
  %v496 = vpop.f32.mrf.mxu0
  %v497 = vadd.f32 0.0, %v496
  %v498 = vpop.f32.mrf.mxu0
  %499 = vmatprep.mubr.bf16.mxu0 0
  %500 = vmatmul.mubr.bf16.gmra.mxu0 %v286
  %v501 = vpop.f32.mrf.mxu0
  %v502 = vadd.f32 0.0, %v501
  %v503 = vpop.f32.mrf.mxu0
  %v504 = vpop.f32.mrf.mxu0
  %v505 = vadd.f32 0.0, %v504
  %v506 = vpop.f32.mrf.mxu0
  %507 = vmatprep.mubr.bf16.mxu0 0
  %508 = vmatmul.mubr.bf16.gmra.mxu0 %v287
  %v509 = vpop.f32.mrf.mxu0
  %v510 = vadd.f32 0.0, %v509
  %v511 = vpop.f32.mrf.mxu0
  %v512 = vpop.f32.mrf.mxu0
  %v513 = vadd.f32 0.0, %v512
  %v514 = vpop.f32.mrf.mxu0
  %515 = vmatprep.mubr.bf16.mxu0 0
  %516 = vmatmul.mubr.bf16.gmra.mxu0 %v288
  %v517 = vpop.f32.mrf.mxu0
  %v518 = vadd.f32 0.0, %v517
  %v519 = vpop.f32.mrf.mxu0
  %v520 = vpop.f32.mrf.mxu0
  %v521 = vadd.f32 0.0, %v520
  %v522 = vpop.f32.mrf.mxu0
  %523 = vmatprep.mubr.bf16.mxu0 0
  %524 = vmatmul.mubr.bf16.gmra.mxu0 %v289
  %v525 = vpop.f32.mrf.mxu0
  %v526 = vadd.f32 0.0, %v525
  %v527 = vpop.f32.mrf.mxu0
  %v528 = vpop.f32.mrf.mxu0
  %v529 = vadd.f32 0.0, %v528
  %v530 = vpop.f32.mrf.mxu0
  %531 = vdwg.mxu0
  %v548 = vunpack.c.l.b16 %v183
  %v549 = vunpack.c.l.b16 %v184
  %v550 = vunpack.c.l.b16 %v185
  %v551 = vunpack.c.l.b16 %v186
  %v552 = vunpack.c.l.b16 %v187
  %v553 = vunpack.c.l.b16 %v188
  %v554 = vunpack.c.l.b16 %v189
  %v555 = vunpack.c.l.b16 %v190
  %v556 = vunpack.c.l.b16 %v191
  %v557 = vunpack.c.l.b16 %v192
  %v558 = vunpack.c.l.b16 %v193
  %v559 = vunpack.c.l.b16 %v194
  %v560 = vunpack.c.l.b16 %v195
  %v561 = vunpack.c.l.b16 %v196
  %v562 = vunpack.c.l.b16 %v197
  %v563 = vunpack.c.l.b16 %v198
  %v564 = vpack.c.b16 %v549, %v548
  %v565 = vpack.c.b16 %v551, %v550
  %v566 = vpack.c.b16 %v553, %v552
  %v567 = vpack.c.b16 %v555, %v554
  %v568 = vpack.c.b16 %v557, %v556
  %v569 = vpack.c.b16 %v559, %v558
  %v570 = vpack.c.b16 %v561, %v560
  %v571 = vpack.c.b16 %v563, %v562
  %580 = vmatprep.subr.bf16.mxu0 0
  %581 = vmatpush1.bf16.msra.mxu0 %v571
  %582 = vmatprep.subr.bf16.mxu0 0
  %583 = vmatpush1.bf16.msra.mxu0 %v570
  %584 = vmatprep.subr.bf16.mxu0 0
  %585 = vmatpush1.bf16.msra.mxu0 %v569
  %586 = vmatprep.subr.bf16.mxu0 0
  %587 = vmatpush1.bf16.msra.mxu0 %v568
  %588 = vmatprep.subr.bf16.mxu0 0
  %589 = vmatpush1.bf16.msra.mxu0 %v567
  %590 = vmatprep.subr.bf16.mxu0 0
  %591 = vmatpush1.bf16.msra.mxu0 %v566
  %592 = vmatprep.subr.bf16.mxu0 0
  %593 = vmatpush1.bf16.msra.mxu0 %v565
  %594 = vmatprep.subr.bf16.mxu0 0
  %595 = vmatpush1.bf16.msra.mxu0 %v564
  %596 = vmatprep.subr.bf16.mxu0 0
  %597 = vmatpush2.bf16.msra.mxu0 0
  %598 = vmatprep.subr.bf16.mxu0 0
  %599 = vmatpush2.bf16.msra.mxu0 0
  %600 = vmatprep.subr.bf16.mxu0 0
  %601 = vmatpush2.bf16.msra.mxu0 0
  %602 = vmatprep.subr.bf16.mxu0 0
  %603 = vmatpush2.bf16.msra.mxu0 0
  %604 = vmatprep.subr.bf16.mxu0 0
  %605 = vmatpush2.bf16.msra.mxu0 0
  %606 = vmatprep.subr.bf16.mxu0 0
  %607 = vmatpush2.bf16.msra.mxu0 0
  %608 = vmatprep.subr.bf16.mxu0 0
  %609 = vmatpush2.bf16.msra.mxu0 0
  %610 = vmatprep.subr.bf16.mxu0 0
  %611 = vmatpush2.bf16.msra.mxu0 0
  %612 = vmatprep.mubr.bf16.mxu0 0
  %613 = vmatmul.mubr.bf16.gmra.mxu0 %v165
  %v614 = vpop.f32.mrf.mxu0
  %v615 = vadd.f32 %v390, %v614
  %v616 = vpop.f32.mrf.mxu0
  %v617 = vpop.f32.mrf.mxu0
  %v618 = vadd.f32 %v393, %v617
  %v619 = vpop.f32.mrf.mxu0
  %620 = vmatprep.mubr.bf16.mxu0 0
  %621 = vmatmul.mubr.bf16.gmra.mxu0 %v166
  %v622 = vpop.f32.mrf.mxu0
  %v623 = vadd.f32 %v398, %v622
  %v624 = vpop.f32.mrf.mxu0
  %v625 = vpop.f32.mrf.mxu0
  %v626 = vadd.f32 %v401, %v625
  %v627 = vpop.f32.mrf.mxu0
  %628 = vmatprep.mubr.bf16.mxu0 0
  %629 = vmatmul.mubr.bf16.gmra.mxu0 %v167
  %v630 = vpop.f32.mrf.mxu0
  %v631 = vadd.f32 %v406, %v630
  %v632 = vpop.f32.mrf.mxu0
  %v633 = vpop.f32.mrf.mxu0
  %v634 = vadd.f32 %v409, %v633
  %v635 = vpop.f32.mrf.mxu0
  %636 = vmatprep.mubr.bf16.mxu0 0
  %637 = vmatmul.mubr.bf16.gmra.mxu0 %v168
  %v638 = vpop.f32.mrf.mxu0
  %v639 = vadd.f32 %v414, %v638
  %v640 = vpop.f32.mrf.mxu0
  %v641 = vpop.f32.mrf.mxu0
  %v642 = vadd.f32 %v417, %v641
  %v643 = vpop.f32.mrf.mxu0
  %644 = vmatprep.mubr.bf16.mxu0 0
  %645 = vmatmul.mubr.bf16.gmra.mxu0 %v169
  %v646 = vpop.f32.mrf.mxu0
  %v647 = vadd.f32 %v422, %v646
  %v648 = vpop.f32.mrf.mxu0
  %v649 = vpop.f32.mrf.mxu0
  %v650 = vadd.f32 %v425, %v649
  %v651 = vpop.f32.mrf.mxu0
  %652 = vmatprep.mubr.bf16.mxu0 0
  %653 = vmatmul.mubr.bf16.gmra.mxu0 %v170
  %v654 = vpop.f32.mrf.mxu0
  %v655 = vadd.f32 %v430, %v654
  %v656 = vpop.f32.mrf.mxu0
  %v657 = vpop.f32.mrf.mxu0
  %v658 = vadd.f32 %v433, %v657
  %v659 = vpop.f32.mrf.mxu0
  %660 = vmatprep.mubr.bf16.mxu0 0
  %661 = vmatmul.mubr.bf16.gmra.mxu0 %v171
  %v662 = vpop.f32.mrf.mxu0
  %v663 = vadd.f32 %v438, %v662
  %v664 = vpop.f32.mrf.mxu0
  %v665 = vpop.f32.mrf.mxu0
  %v666 = vadd.f32 %v441, %v665
  %v667 = vpop.f32.mrf.mxu0
  %668 = vmatprep.mubr.bf16.mxu0 0
  %669 = vmatmul.mubr.bf16.gmra.mxu0 %v172
  %v670 = vpop.f32.mrf.mxu0
  %v671 = vadd.f32 %v446, %v670
  %v672 = vpop.f32.mrf.mxu0
  %v673 = vpop.f32.mrf.mxu0
  %v674 = vadd.f32 %v449, %v673
  %v675 = vpop.f32.mrf.mxu0
  %676 = vmatprep.mubr.bf16.mxu0 0
  %677 = vmatmul.mubr.bf16.gmra.mxu0 %v173
  %v678 = vpop.f32.mrf.mxu0
  %v679 = vadd.f32 %v454, %v678
  %v680 = vpop.f32.mrf.mxu0
  %v681 = vpop.f32.mrf.mxu0
  %v682 = vadd.f32 %v457, %v681
  %v683 = vpop.f32.mrf.mxu0
  %684 = vmatprep.mubr.bf16.mxu0 0
  %685 = vmatmul.mubr.bf16.gmra.mxu0 %v174
  %v686 = vpop.f32.mrf.mxu0
  %v687 = vadd.f32 %v462, %v686
  %v688 = vpop.f32.mrf.mxu0
  %v689 = vpop.f32.mrf.mxu0
  %v690 = vadd.f32 %v465, %v689
  %v691 = vpop.f32.mrf.mxu0
  %692 = vmatprep.mubr.bf16.mxu0 0
  %693 = vmatmul.mubr.bf16.gmra.mxu0 %v175
  %v694 = vpop.f32.mrf.mxu0
  %v695 = vadd.f32 %v470, %v694
  %v696 = vpop.f32.mrf.mxu0
  %v697 = vpop.f32.mrf.mxu0
  %v698 = vadd.f32 %v473, %v697
  %v699 = vpop.f32.mrf.mxu0
  %700 = vmatprep.mubr.bf16.mxu0 0
  %701 = vmatmul.mubr.bf16.gmra.mxu0 %v176
  %v702 = vpop.f32.mrf.mxu0
  %v703 = vadd.f32 %v478, %v702
  %v704 = vpop.f32.mrf.mxu0
  %v705 = vpop.f32.mrf.mxu0
  %v706 = vadd.f32 %v481, %v705
  %v707 = vpop.f32.mrf.mxu0
  %708 = vmatprep.mubr.bf16.mxu0 0
  %709 = vmatmul.mubr.bf16.gmra.mxu0 %v177
  %v710 = vpop.f32.mrf.mxu0
  %v711 = vadd.f32 %v486, %v710
  %v712 = vpop.f32.mrf.mxu0
  %v713 = vpop.f32.mrf.mxu0
  %v714 = vadd.f32 %v489, %v713
  %v715 = vpop.f32.mrf.mxu0
  %716 = vmatprep.mubr.bf16.mxu0 0
  %717 = vmatmul.mubr.bf16.gmra.mxu0 %v178
  %v718 = vpop.f32.mrf.mxu0
  %v719 = vadd.f32 %v494, %v718
  %v720 = vpop.f32.mrf.mxu0
  %v721 = vpop.f32.mrf.mxu0
  %v722 = vadd.f32 %v497, %v721
  %v723 = vpop.f32.mrf.mxu0
  %724 = vmatprep.mubr.bf16.mxu0 0
  %725 = vmatmul.mubr.bf16.gmra.mxu0 %v179
  %v726 = vpop.f32.mrf.mxu0
  %v727 = vadd.f32 %v502, %v726
  %v728 = vpop.f32.mrf.mxu0
  %v729 = vpop.f32.mrf.mxu0
  %v730 = vadd.f32 %v505, %v729
  %v731 = vpop.f32.mrf.mxu0
  %732 = vmatprep.mubr.bf16.mxu0 0
  %733 = vmatmul.mubr.bf16.gmra.mxu0 %v180
  %v734 = vpop.f32.mrf.mxu0
  %v735 = vadd.f32 %v510, %v734
  %v736 = vpop.f32.mrf.mxu0
  %v737 = vpop.f32.mrf.mxu0
  %v738 = vadd.f32 %v513, %v737
  %v739 = vpop.f32.mrf.mxu0
  %740 = vmatprep.mubr.bf16.mxu0 0
  %741 = vmatmul.mubr.bf16.gmra.mxu0 %v181
  %v742 = vpop.f32.mrf.mxu0
  %v743 = vadd.f32 %v518, %v742
  %v744 = vpop.f32.mrf.mxu0
  %v745 = vpop.f32.mrf.mxu0
  %v746 = vadd.f32 %v521, %v745
  %v747 = vpop.f32.mrf.mxu0
  %748 = vmatprep.mubr.bf16.mxu0 0
  %749 = vmatmul.mubr.bf16.gmra.mxu0 %v182
  %v750 = vpop.f32.mrf.mxu0
  %v751 = vadd.f32 %v526, %v750
  %v752 = vpop.f32.mrf.mxu0
  %v753 = vpop.f32.mrf.mxu0
  %v754 = vadd.f32 %v529, %v753
  %v755 = vpop.f32.mrf.mxu0
  %756 = vdwg.mxu0
  %v757 = vpack.c.bf16 %v54, %v89
  %v758 = vpack.c.bf16 %v56, %v55
  %v759 = vpack.c.bf16 %v58, %v57
  %v760 = vpack.c.bf16 %v60, %v59
  %v761 = vpack.c.bf16 %v62, %v61
  %v762 = vpack.c.bf16 %v64, %v63
  %v763 = vpack.c.bf16 %v66, %v65
  %v764 = vpack.c.bf16 %v68, %v67
  %v765 = vpack.c.bf16 %v70, %v69
  %v766 = vpack.c.bf16 %v72, %v71
  %v767 = vpack.c.bf16 %v74, %v73
  %v768 = vpack.c.bf16 %v76, %v75
  %v769 = vpack.c.bf16 %v78, %v77
  %v770 = vpack.c.bf16 %v80, %v79
  %v771 = vpack.c.bf16 %v82, %v81
  %v772 = vpack.c.bf16 %v84, %v83
  %v773 = vpack.c.bf16 %v86, %v85
  %v774 = vpack.c.bf16 %v88, %v87
  %s775 = scalar_lea.vmem %s1, 128
  %v776 = vld [vmem:[%s775] sm:$0xf]
  %v777 = vld [vmem:[%s775 + $0x4] sm:$0xf]
  %v778 = vld [vmem:[%s775 + $0x8] sm:$0xf]
  %v779 = vld [vmem:[%s775 + $0xc] sm:$0xf]
  %v780 = vld [vmem:[%s775 + $0x10] sm:$0xf]
  %v781 = vld [vmem:[%s775 + $0x14] sm:$0xf]
  %v782 = vld [vmem:[%s775 + $0x18] sm:$0xf]
  %v783 = vld [vmem:[%s775 + $0x1c] sm:$0xf]
  %v784 = vld [vmem:[%s775 + $0x20] sm:$0xf]
  %v785 = vld [vmem:[%s775 + $0x24] sm:$0xf]
  %v786 = vld [vmem:[%s775 + $0x28] sm:$0xf]
  %v787 = vld [vmem:[%s775 + $0x2c] sm:$0xf]
  %v788 = vld [vmem:[%s775 + $0x30] sm:$0xf]
  %v789 = vld [vmem:[%s775 + $0x34] sm:$0xf]
  %v790 = vld [vmem:[%s775 + $0x38] sm:$0xf]
  %v791 = vld [vmem:[%s775 + $0x3c] sm:$0xf]
  %v808 = vunpack.c.l.b16 %v776
  %v809 = vunpack.c.l.b16 %v777
  %v810 = vunpack.c.l.b16 %v778
  %v811 = vunpack.c.l.b16 %v779
  %v812 = vunpack.c.l.b16 %v780
  %v813 = vunpack.c.l.b16 %v781
  %v814 = vunpack.c.l.b16 %v782
  %v815 = vunpack.c.l.b16 %v783
  %v816 = vunpack.c.l.b16 %v784
  %v817 = vunpack.c.l.b16 %v785
  %v818 = vunpack.c.l.b16 %v786
  %v819 = vunpack.c.l.b16 %v787
  %v820 = vunpack.c.l.b16 %v788
  %v821 = vunpack.c.l.b16 %v789
  %v822 = vunpack.c.l.b16 %v790
  %v823 = vunpack.c.l.b16 %v791
  %v824 = vpack.c.b16 %v809, %v808
  %v825 = vpack.c.b16 %v811, %v810
  %v826 = vpack.c.b16 %v813, %v812
  %v827 = vpack.c.b16 %v815, %v814
  %v828 = vpack.c.b16 %v817, %v816
  %v829 = vpack.c.b16 %v819, %v818
  %v830 = vpack.c.b16 %v821, %v820
  %v831 = vpack.c.b16 %v823, %v822
  %840 = vmatprep.subr.bf16.mxu0 0
  %841 = vmatpush1.bf16.msra.mxu0 %v831
  %842 = vmatprep.subr.bf16.mxu0 0
  %843 = vmatpush1.bf16.msra.mxu0 %v830
  %844 = vmatprep.subr.bf16.mxu0 0
  %845 = vmatpush1.bf16.msra.mxu0 %v829
  %846 = vmatprep.subr.bf16.mxu0 0
  %847 = vmatpush1.bf16.msra.mxu0 %v828
  %848 = vmatprep.subr.bf16.mxu0 0
  %849 = vmatpush1.bf16.msra.mxu0 %v827
  %850 = vmatprep.subr.bf16.mxu0 0
  %851 = vmatpush1.bf16.msra.mxu0 %v826
  %852 = vmatprep.subr.bf16.mxu0 0
  %853 = vmatpush1.bf16.msra.mxu0 %v825
  %854 = vmatprep.subr.bf16.mxu0 0
  %855 = vmatpush1.bf16.msra.mxu0 %v824
  %856 = vmatprep.subr.bf16.mxu0 0
  %857 = vmatpush2.bf16.msra.mxu0 0
  %858 = vmatprep.subr.bf16.mxu0 0
  %859 = vmatpush2.bf16.msra.mxu0 0
  %860 = vmatprep.subr.bf16.mxu0 0
  %861 = vmatpush2.bf16.msra.mxu0 0
  %862 = vmatprep.subr.bf16.mxu0 0
  %863 = vmatpush2.bf16.msra.mxu0 0
  %864 = vmatprep.subr.bf16.mxu0 0
  %865 = vmatpush2.bf16.msra.mxu0 0
  %866 = vmatprep.subr.bf16.mxu0 0
  %867 = vmatpush2.bf16.msra.mxu0 0
  %868 = vmatprep.subr.bf16.mxu0 0
  %869 = vmatpush2.bf16.msra.mxu0 0
  %870 = vmatprep.subr.bf16.mxu0 0
  %871 = vmatpush2.bf16.msra.mxu0 0
  %872 = vmatprep.mubr.bf16.mxu0 0
  %873 = vmatmul.mubr.bf16.gmra.mxu0 %v757
  %v874 = vpop.f32.mrf.mxu0
  %v875 = vadd.f32 0.0, %v874
  %v876 = vpop.f32.mrf.mxu0
  %v877 = vpop.f32.mrf.mxu0
  %v878 = vadd.f32 0.0, %v877
  %v879 = vpop.f32.mrf.mxu0
  %880 = vmatprep.mubr.bf16.mxu0 0
  %881 = vmatmul.mubr.bf16.gmra.mxu0 %v758
  %v882 = vpop.f32.mrf.mxu0
  %v883 = vadd.f32 0.0, %v882
  %v884 = vpop.f32.mrf.mxu0
  %v885 = vpop.f32.mrf.mxu0
  %v886 = vadd.f32 0.0, %v885
  %v887 = vpop.f32.mrf.mxu0
  %888 = vmatprep.mubr.bf16.mxu0 0
  %889 = vmatmul.mubr.bf16.gmra.mxu0 %v759
  %v890 = vpop.f32.mrf.mxu0
  %v891 = vadd.f32 0.0, %v890
  %v892 = vpop.f32.mrf.mxu0
  %v893 = vpop.f32.mrf.mxu0
  %v894 = vadd.f32 0.0, %v893
  %v895 = vpop.f32.mrf.mxu0
  %896 = vmatprep.mubr.bf16.mxu0 0
  %897 = vmatmul.mubr.bf16.gmra.mxu0 %v760
  %v898 = vpop.f32.mrf.mxu0
  %v899 = vadd.f32 0.0, %v898
  %v900 = vpop.f32.mrf.mxu0
  %v901 = vpop.f32.mrf.mxu0
  %v902 = vadd.f32 0.0, %v901
  %v903 = vpop.f32.mrf.mxu0
  %904 = vmatprep.mubr.bf16.mxu0 0
  %905 = vmatmul.mubr.bf16.gmra.mxu0 %v761
  %v906 = vpop.f32.mrf.mxu0
  %v907 = vadd.f32 0.0, %v906
  %v908 = vpop.f32.mrf.mxu0
  %v909 = vpop.f32.mrf.mxu0
  %v910 = vadd.f32 0.0, %v909
  %v911 = vpop.f32.mrf.mxu0
  %912 = vmatprep.mubr.bf16.mxu0 0
  %913 = vmatmul.mubr.bf16.gmra.mxu0 %v762
  %v914 = vpop.f32.mrf.mxu0
  %v915 = vadd.f32 0.0, %v914
  %v916 = vpop.f32.mrf.mxu0
  %v917 = vpop.f32.mrf.mxu0
  %v918 = vadd.f32 0.0, %v917
  %v919 = vpop.f32.mrf.mxu0
  %920 = vmatprep.mubr.bf16.mxu0 0
  %921 = vmatmul.mubr.bf16.gmra.mxu0 %v763
  %v922 = vpop.f32.mrf.mxu0
  %v923 = vadd.f32 0.0, %v922
  %v924 = vpop.f32.mrf.mxu0
  %v925 = vpop.f32.mrf.mxu0
  %v926 = vadd.f32 0.0, %v925
  %v927 = vpop.f32.mrf.mxu0
  %928 = vmatprep.mubr.bf16.mxu0 0
  %929 = vmatmul.mubr.bf16.gmra.mxu0 %v764
  %v930 = vpop.f32.mrf.mxu0
  %v931 = vadd.f32 0.0, %v930
  %v932 = vpop.f32.mrf.mxu0
  %v933 = vpop.f32.mrf.mxu0
  %v934 = vadd.f32 0.0, %v933
  %v935 = vpop.f32.mrf.mxu0
  %936 = vmatprep.mubr.bf16.mxu0 0
  %937 = vmatmul.mubr.bf16.gmra.mxu0 %v765
  %v938 = vpop.f32.mrf.mxu0
  %v939 = vadd.f32 0.0, %v938
  %v940 = vpop.f32.mrf.mxu0
  %v941 = vpop.f32.mrf.mxu0
  %v942 = vadd.f32 0.0, %v941
  %v943 = vpop.f32.mrf.mxu0
  %944 = vmatprep.mubr.bf16.mxu0 0
  %945 = vmatmul.mubr.bf16.gmra.mxu0 %v766
  %v946 = vpop.f32.mrf.mxu0
  %v947 = vadd.f32 0.0, %v946
  %v948 = vpop.f32.mrf.mxu0
  %v949 = vpop.f32.mrf.mxu0
  %v950 = vadd.f32 0.0, %v949
  %v951 = vpop.f32.mrf.mxu0
  %952 = vmatprep.mubr.bf16.mxu0 0
  %953 = vmatmul.mubr.bf16.gmra.mxu0 %v767
  %v954 = vpop.f32.mrf.mxu0
  %v955 = vadd.f32 0.0, %v954
  %v956 = vpop.f32.mrf.mxu0
  %v957 = vpop.f32.mrf.mxu0
  %v958 = vadd.f32 0.0, %v957
  %v959 = vpop.f32.mrf.mxu0
  %960 = vmatprep.mubr.bf16.mxu0 0
  %961 = vmatmul.mubr.bf16.gmra.mxu0 %v768
  %v962 = vpop.f32.mrf.mxu0
  %v963 = vadd.f32 0.0, %v962
  %v964 = vpop.f32.mrf.mxu0
  %v965 = vpop.f32.mrf.mxu0
  %v966 = vadd.f32 0.0, %v965
  %v967 = vpop.f32.mrf.mxu0
  %968 = vmatprep.mubr.bf16.mxu0 0
  %969 = vmatmul.mubr.bf16.gmra.mxu0 %v769
  %v970 = vpop.f32.mrf.mxu0
  %v971 = vadd.f32 0.0, %v970
  %v972 = vpop.f32.mrf.mxu0
  %v973 = vpop.f32.mrf.mxu0
  %v974 = vadd.f32 0.0, %v973
  %v975 = vpop.f32.mrf.mxu0
  %976 = vmatprep.mubr.bf16.mxu0 0
  %977 = vmatmul.mubr.bf16.gmra.mxu0 %v770
  %v978 = vpop.f32.mrf.mxu0
  %v979 = vadd.f32 0.0, %v978
  %v980 = vpop.f32.mrf.mxu0
  %v981 = vpop.f32.mrf.mxu0
  %v982 = vadd.f32 0.0, %v981
  %v983 = vpop.f32.mrf.mxu0
  %984 = vmatprep.mubr.bf16.mxu0 0
  %985 = vmatmul.mubr.bf16.gmra.mxu0 %v771
  %v986 = vpop.f32.mrf.mxu0
  %v987 = vadd.f32 0.0, %v986
  %v988 = vpop.f32.mrf.mxu0
  %v989 = vpop.f32.mrf.mxu0
  %v990 = vadd.f32 0.0, %v989
  %v991 = vpop.f32.mrf.mxu0
  %992 = vmatprep.mubr.bf16.mxu0 0
  %993 = vmatmul.mubr.bf16.gmra.mxu0 %v772
  %v994 = vpop.f32.mrf.mxu0
  %v995 = vadd.f32 0.0, %v994
  %v996 = vpop.f32.mrf.mxu0
  %v997 = vpop.f32.mrf.mxu0
  %v998 = vadd.f32 0.0, %v997
  %v999 = vpop.f32.mrf.mxu0
  %1000 = vmatprep.mubr.bf16.mxu0 0
  %1001 = vmatmul.mubr.bf16.gmra.mxu0 %v773
  %v1002 = vpop.f32.mrf.mxu0
  %v1003 = vadd.f32 0.0, %v1002
  %v1004 = vpop.f32.mrf.mxu0
  %v1005 = vpop.f32.mrf.mxu0
  %v1006 = vadd.f32 0.0, %v1005
  %v1007 = vpop.f32.mrf.mxu0
  %1008 = vmatprep.mubr.bf16.mxu0 0
  %1009 = vmatmul.mubr.bf16.gmra.mxu0 %v774
  %v1010 = vpop.f32.mrf.mxu0
  %v1011 = vadd.f32 0.0, %v1010
  %v1012 = vpop.f32.mrf.mxu0
  %v1013 = vpop.f32.mrf.mxu0
  %v1014 = vadd.f32 0.0, %v1013
  %v1015 = vpop.f32.mrf.mxu0
  %1016 = vdwg.mxu0
  %v1017 = vadd.f32 %v615, %v875
  %v1018 = vadd.f32 %v618, %v878
  %v1019 = vadd.f32 %v623, %v883
  %v1020 = vadd.f32 %v626, %v886
  %v1021 = vadd.f32 %v631, %v891
  %v1022 = vadd.f32 %v634, %v894
  %v1023 = vadd.f32 %v639, %v899
  %v1024 = vadd.f32 %v642, %v902
  %v1025 = vadd.f32 %v647, %v907
  %v1026 = vadd.f32 %v650, %v910
  %v1027 = vadd.f32 %v655, %v915
  %v1028 = vadd.f32 %v658, %v918
  %v1029 = vadd.f32 %v663, %v923
  %v1030 = vadd.f32 %v666, %v926
  %v1031 = vadd.f32 %v671, %v931
  %v1032 = vadd.f32 %v674, %v934
  %v1033 = vadd.f32 %v679, %v939
  %v1034 = vadd.f32 %v682, %v942
  %v1035 = vadd.f32 %v687, %v947
  %v1036 = vadd.f32 %v690, %v950
  %v1037 = vadd.f32 %v695, %v955
  %v1038 = vadd.f32 %v698, %v958
  %v1039 = vadd.f32 %v703, %v963
  %v1040 = vadd.f32 %v706, %v966
  %v1041 = vadd.f32 %v711, %v971
  %v1042 = vadd.f32 %v714, %v974
  %v1043 = vadd.f32 %v719, %v979
  %v1044 = vadd.f32 %v722, %v982
  %v1045 = vadd.f32 %v727, %v987
  %v1046 = vadd.f32 %v730, %v990
  %v1047 = vadd.f32 %v735, %v995
  %v1048 = vadd.f32 %v738, %v998
  %v1049 = vadd.f32 %v743, %v1003
  %v1050 = vadd.f32 %v746, %v1006
  %v1051 = vadd.f32 %v751, %v1011
  %v1052 = vadd.f32 %v754, %v1014
  %v1053 = vpack.c.bf16 %v270, %v271
  %v1054 = vpack.c.bf16 %v268, %v269
  %v1055 = vpack.c.bf16 %v266, %v267
  %v1056 = vpack.c.bf16 %v264, %v265
  %v1057 = vpack.c.bf16 %v262, %v263
  %v1058 = vpack.c.bf16 %v260, %v261
  %v1059 = vpack.c.bf16 %v258, %v259
  %v1060 = vpack.c.bf16 %v256, %v257
  %v1061 = vpack.c.bf16 %v254, %v255
  %v1062 = vpack.c.bf16 %v252, %v253
  %v1063 = vpack.c.bf16 %v250, %v251
  %v1064 = vpack.c.bf16 %v248, %v249
  %v1065 = vpack.c.bf16 %v246, %v247
  %v1066 = vpack.c.bf16 %v244, %v245
  %v1067 = vpack.c.bf16 %v242, %v243
  %v1068 = vpack.c.bf16 %v240, %v241
  %v1069 = vpack.c.bf16 %v238, %v239
  %v1070 = vpack.c.bf16 %v236, %v237
  %s1071 = scalar_lea.vmem %s1, 192
  %v1072 = vld [vmem:[%s1071] sm:$0xf]
  %v1073 = vld [vmem:[%s1071 + $0x4] sm:$0xf]
  %v1074 = vld [vmem:[%s1071 + $0x8] sm:$0xf]
  %v1075 = vld [vmem:[%s1071 + $0xc] sm:$0xf]
  %v1076 = vld [vmem:[%s1071 + $0x10] sm:$0xf]
  %v1077 = vld [vmem:[%s1071 + $0x14] sm:$0xf]
  %v1078 = vld [vmem:[%s1071 + $0x18] sm:$0xf]
  %v1079 = vld [vmem:[%s1071 + $0x1c] sm:$0xf]
  %v1080 = vld [vmem:[%s1071 + $0x20] sm:$0xf]
  %v1081 = vld [vmem:[%s1071 + $0x24] sm:$0xf]
  %v1082 = vld [vmem:[%s1071 + $0x28] sm:$0xf]
  %v1083 = vld [vmem:[%s1071 + $0x2c] sm:$0xf]
  %v1084 = vld [vmem:[%s1071 + $0x30] sm:$0xf]
  %v1085 = vld [vmem:[%s1071 + $0x34] sm:$0xf]
  %v1086 = vld [vmem:[%s1071 + $0x38] sm:$0xf]
  %v1087 = vld [vmem:[%s1071 + $0x3c] sm:$0xf]
  %v1104 = vunpack.c.l.b16 %v1072
  %v1105 = vunpack.c.l.b16 %v1073
  %v1106 = vunpack.c.l.b16 %v1074
  %v1107 = vunpack.c.l.b16 %v1075
  %v1108 = vunpack.c.l.b16 %v1076
  %v1109 = vunpack.c.l.b16 %v1077
  %v1110 = vunpack.c.l.b16 %v1078
  %v1111 = vunpack.c.l.b16 %v1079
  %v1112 = vunpack.c.l.b16 %v1080
  %v1113 = vunpack.c.l.b16 %v1081
  %v1114 = vunpack.c.l.b16 %v1082
  %v1115 = vunpack.c.l.b16 %v1083
  %v1116 = vunpack.c.l.b16 %v1084
  %v1117 = vunpack.c.l.b16 %v1085
  %v1118 = vunpack.c.l.b16 %v1086
  %v1119 = vunpack.c.l.b16 %v1087
  %v1120 = vpack.c.b16 %v1105, %v1104
  %v1121 = vpack.c.b16 %v1107, %v1106
  %v1122 = vpack.c.b16 %v1109, %v1108
  %v1123 = vpack.c.b16 %v1111, %v1110
  %v1124 = vpack.c.b16 %v1113, %v1112
  %v1125 = vpack.c.b16 %v1115, %v1114
  %v1126 = vpack.c.b16 %v1117, %v1116
  %v1127 = vpack.c.b16 %v1119, %v1118
  %1136 = vmatprep.subr.bf16.mxu0 0
  %1137 = vmatpush1.bf16.msra.mxu0 %v1127
  %1138 = vmatprep.subr.bf16.mxu0 0
  %1139 = vmatpush1.bf16.msra.mxu0 %v1126
  %1140 = vmatprep.subr.bf16.mxu0 0
  %1141 = vmatpush1.bf16.msra.mxu0 %v1125
  %1142 = vmatprep.subr.bf16.mxu0 0
  %1143 = vmatpush1.bf16.msra.mxu0 %v1124
  %1144 = vmatprep.subr.bf16.mxu0 0
  %1145 = vmatpush1.bf16.msra.mxu0 %v1123
  %1146 = vmatprep.subr.bf16.mxu0 0
  %1147 = vmatpush1.bf16.msra.mxu0 %v1122
  %1148 = vmatprep.subr.bf16.mxu0 0
  %1149 = vmatpush1.bf16.msra.mxu0 %v1121
  %1150 = vmatprep.subr.bf16.mxu0 0
  %1151 = vmatpush1.bf16.msra.mxu0 %v1120
  %1152 = vmatprep.subr.bf16.mxu0 0
  %1153 = vmatpush2.bf16.msra.mxu0 0
  %1154 = vmatprep.subr.bf16.mxu0 0
  %1155 = vmatpush2.bf16.msra.mxu0 0
  %1156 = vmatprep.subr.bf16.mxu0 0
  %1157 = vmatpush2.bf16.msra.mxu0 0
  %1158 = vmatprep.subr.bf16.mxu0 0
  %1159 = vmatpush2.bf16.msra.mxu0 0
  %1160 = vmatprep.subr.bf16.mxu0 0
  %1161 = vmatpush2.bf16.msra.mxu0 0
  %1162 = vmatprep.subr.bf16.mxu0 0
  %1163 = vmatpush2.bf16.msra.mxu0 0
  %1164 = vmatprep.subr.bf16.mxu0 0
  %1165 = vmatpush2.bf16.msra.mxu0 0
  %1166 = vmatprep.subr.bf16.mxu0 0
  %1167 = vmatpush2.bf16.msra.mxu0 0
  %1168 = vmatprep.mubr.bf16.mxu0 0
  %1169 = vmatmul.mubr.bf16.gmra.mxu0 %v1053
  %v1170 = vpop.f32.mrf.mxu0
  %v1171 = vadd.f32 0.0, %v1170
  %v1172 = vpop.f32.mrf.mxu0
  %v1173 = vpop.f32.mrf.mxu0
  %v1174 = vadd.f32 0.0, %v1173
  %v1175 = vpop.f32.mrf.mxu0
  %1176 = vmatprep.mubr.bf16.mxu0 0
  %1177 = vmatmul.mubr.bf16.gmra.mxu0 %v1054
  %v1178 = vpop.f32.mrf.mxu0
  %v1179 = vadd.f32 0.0, %v1178
  %v1180 = vpop.f32.mrf.mxu0
  %v1181 = vpop.f32.mrf.mxu0
  %v1182 = vadd.f32 0.0, %v1181
  %v1183 = vpop.f32.mrf.mxu0
  %1184 = vmatprep.mubr.bf16.mxu0 0
  %1185 = vmatmul.mubr.bf16.gmra.mxu0 %v1055
  %v1186 = vpop.f32.mrf.mxu0
  %v1187 = vadd.f32 0.0, %v1186
  %v1188 = vpop.f32.mrf.mxu0
  %v1189 = vpop.f32.mrf.mxu0
  %v1190 = vadd.f32 0.0, %v1189
  %v1191 = vpop.f32.mrf.mxu0
  %1192 = vmatprep.mubr.bf16.mxu0 0
  %1193 = vmatmul.mubr.bf16.gmra.mxu0 %v1056
  %v1194 = vpop.f32.mrf.mxu0
  %v1195 = vadd.f32 0.0, %v1194
  %v1196 = vpop.f32.mrf.mxu0
  %v1197 = vpop.f32.mrf.mxu0
  %v1198 = vadd.f32 0.0, %v1197
  %v1199 = vpop.f32.mrf.mxu0
  %1200 = vmatprep.mubr.bf16.mxu0 0
  %1201 = vmatmul.mubr.bf16.gmra.mxu0 %v1057
  %v1202 = vpop.f32.mrf.mxu0
  %v1203 = vadd.f32 0.0, %v1202
  %v1204 = vpop.f32.mrf.mxu0
  %v1205 = vpop.f32.mrf.mxu0
  %v1206 = vadd.f32 0.0, %v1205
  %v1207 = vpop.f32.mrf.mxu0
  %1208 = vmatprep.mubr.bf16.mxu0 0
  %1209 = vmatmul.mubr.bf16.gmra.mxu0 %v1058
  %v1210 = vpop.f32.mrf.mxu0
  %v1211 = vadd.f32 0.0, %v1210
  %v1212 = vpop.f32.mrf.mxu0
  %v1213 = vpop.f32.mrf.mxu0
  %v1214 = vadd.f32 0.0, %v1213
  %v1215 = vpop.f32.mrf.mxu0
  %1216 = vmatprep.mubr.bf16.mxu0 0
  %1217 = vmatmul.mubr.bf16.gmra.mxu0 %v1059
  %v1218 = vpop.f32.mrf.mxu0
  %v1219 = vadd.f32 0.0, %v1218
  %v1220 = vpop.f32.mrf.mxu0
  %v1221 = vpop.f32.mrf.mxu0
  %v1222 = vadd.f32 0.0, %v1221
  %v1223 = vpop.f32.mrf.mxu0
  %1224 = vmatprep.mubr.bf16.mxu0 0
  %1225 = vmatmul.mubr.bf16.gmra.mxu0 %v1060
  %v1226 = vpop.f32.mrf.mxu0
  %v1227 = vadd.f32 0.0, %v1226
  %v1228 = vpop.f32.mrf.mxu0
  %v1229 = vpop.f32.mrf.mxu0
  %v1230 = vadd.f32 0.0, %v1229
  %v1231 = vpop.f32.mrf.mxu0
  %1232 = vmatprep.mubr.bf16.mxu0 0
  %1233 = vmatmul.mubr.bf16.gmra.mxu0 %v1061
  %v1234 = vpop.f32.mrf.mxu0
  %v1235 = vadd.f32 0.0, %v1234
  %v1236 = vpop.f32.mrf.mxu0
  %v1237 = vpop.f32.mrf.mxu0
  %v1238 = vadd.f32 0.0, %v1237
  %v1239 = vpop.f32.mrf.mxu0
  %1240 = vmatprep.mubr.bf16.mxu0 0
  %1241 = vmatmul.mubr.bf16.gmra.mxu0 %v1062
  %v1242 = vpop.f32.mrf.mxu0
  %v1243 = vadd.f32 0.0, %v1242
  %v1244 = vpop.f32.mrf.mxu0
  %v1245 = vpop.f32.mrf.mxu0
  %v1246 = vadd.f32 0.0, %v1245
  %v1247 = vpop.f32.mrf.mxu0
  %1248 = vmatprep.mubr.bf16.mxu0 0
  %1249 = vmatmul.mubr.bf16.gmra.mxu0 %v1063
  %v1250 = vpop.f32.mrf.mxu0
  %v1251 = vadd.f32 0.0, %v1250
  %v1252 = vpop.f32.mrf.mxu0
  %v1253 = vpop.f32.mrf.mxu0
  %v1254 = vadd.f32 0.0, %v1253
  %v1255 = vpop.f32.mrf.mxu0
  %1256 = vmatprep.mubr.bf16.mxu0 0
  %1257 = vmatmul.mubr.bf16.gmra.mxu0 %v1064
  %v1258 = vpop.f32.mrf.mxu0
  %v1259 = vadd.f32 0.0, %v1258
  %v1260 = vpop.f32.mrf.mxu0
  %v1261 = vpop.f32.mrf.mxu0
  %v1262 = vadd.f32 0.0, %v1261
  %v1263 = vpop.f32.mrf.mxu0
  %1264 = vmatprep.mubr.bf16.mxu0 0
  %1265 = vmatmul.mubr.bf16.gmra.mxu0 %v1065
  %v1266 = vpop.f32.mrf.mxu0
  %v1267 = vadd.f32 0.0, %v1266
  %v1268 = vpop.f32.mrf.mxu0
  %v1269 = vpop.f32.mrf.mxu0
  %v1270 = vadd.f32 0.0, %v1269
  %v1271 = vpop.f32.mrf.mxu0
  %1272 = vmatprep.mubr.bf16.mxu0 0
  %1273 = vmatmul.mubr.bf16.gmra.mxu0 %v1066
  %v1274 = vpop.f32.mrf.mxu0
  %v1275 = vadd.f32 0.0, %v1274
  %v1276 = vpop.f32.mrf.mxu0
  %v1277 = vpop.f32.mrf.mxu0
  %v1278 = vadd.f32 0.0, %v1277
  %v1279 = vpop.f32.mrf.mxu0
  %1280 = vmatprep.mubr.bf16.mxu0 0
  %1281 = vmatmul.mubr.bf16.gmra.mxu0 %v1067
  %v1282 = vpop.f32.mrf.mxu0
  %v1283 = vadd.f32 0.0, %v1282
  %v1284 = vpop.f32.mrf.mxu0
  %v1285 = vpop.f32.mrf.mxu0
  %v1286 = vadd.f32 0.0, %v1285
  %v1287 = vpop.f32.mrf.mxu0
  %1288 = vmatprep.mubr.bf16.mxu0 0
  %1289 = vmatmul.mubr.bf16.gmra.mxu0 %v1068
  %v1290 = vpop.f32.mrf.mxu0
  %v1291 = vadd.f32 0.0, %v1290
  %v1292 = vpop.f32.mrf.mxu0
  %v1293 = vpop.f32.mrf.mxu0
  %v1294 = vadd.f32 0.0, %v1293
  %v1295 = vpop.f32.mrf.mxu0
  %1296 = vmatprep.mubr.bf16.mxu0 0
  %1297 = vmatmul.mubr.bf16.gmra.mxu0 %v1069
  %v1298 = vpop.f32.mrf.mxu0
  %v1299 = vadd.f32 0.0, %v1298
  %v1300 = vpop.f32.mrf.mxu0
  %v1301 = vpop.f32.mrf.mxu0
  %v1302 = vadd.f32 0.0, %v1301
  %v1303 = vpop.f32.mrf.mxu0
  %1304 = vmatprep.mubr.bf16.mxu0 0
  %1305 = vmatmul.mubr.bf16.gmra.mxu0 %v1070
  %v1306 = vpop.f32.mrf.mxu0
  %v1307 = vadd.f32 0.0, %v1306
  %v1308 = vpop.f32.mrf.mxu0
  %v1309 = vpop.f32.mrf.mxu0
  %v1310 = vadd.f32 0.0, %v1309
  %v1311 = vpop.f32.mrf.mxu0
  %1312 = vdwg.mxu0
  %v1313 = vadd.f32 %v1017, %v1171
  %v1314 = vadd.f32 %v1018, %v1174
  %v1315 = vadd.f32 %v1019, %v1179
  %v1316 = vadd.f32 %v1020, %v1182
  %v1317 = vadd.f32 %v1021, %v1187
  %v1318 = vadd.f32 %v1022, %v1190
  %v1319 = vadd.f32 %v1023, %v1195
  %v1320 = vadd.f32 %v1024, %v1198
  %v1321 = vadd.f32 %v1025, %v1203
  %v1322 = vadd.f32 %v1026, %v1206
  %v1323 = vadd.f32 %v1027, %v1211
  %v1324 = vadd.f32 %v1028, %v1214
  %v1325 = vadd.f32 %v1029, %v1219
  %v1326 = vadd.f32 %v1030, %v1222
  %v1327 = vadd.f32 %v1031, %v1227
  %v1328 = vadd.f32 %v1032, %v1230
  %v1329 = vadd.f32 %v1033, %v1235
  %v1330 = vadd.f32 %v1034, %v1238
  %v1331 = vadd.f32 %v1035, %v1243
  %v1332 = vadd.f32 %v1036, %v1246
  %v1333 = vadd.f32 %v1037, %v1251
  %v1334 = vadd.f32 %v1038, %v1254
  %v1335 = vadd.f32 %v1039, %v1259
  %v1336 = vadd.f32 %v1040, %v1262
  %v1337 = vadd.f32 %v1041, %v1267
  %v1338 = vadd.f32 %v1042, %v1270
  %v1339 = vadd.f32 %v1043, %v1275
  %v1340 = vadd.f32 %v1044, %v1278
  %v1341 = vadd.f32 %v1045, %v1283
  %v1342 = vadd.f32 %v1046, %v1286
  %v1343 = vadd.f32 %v1047, %v1291
  %v1344 = vadd.f32 %v1048, %v1294
  %v1345 = vadd.f32 %v1049, %v1299
  %v1346 = vadd.f32 %v1050, %v1302
  %v1347 = vadd.f32 %v1051, %v1307
  %v1348 = vadd.f32 %v1052, %v1310
  %s1349 = scalar_lea.vmem %s1, 256
  %v1350 = vld [vmem:[%s1349] sm:$0xf]
  %v1351 = vld [vmem:[%s1349 + $0x4] sm:$0xf]
  %v1352 = vld [vmem:[%s1349 + $0x8] sm:$0xf]
  %v1353 = vld [vmem:[%s1349 + $0xc] sm:$0xf]
  %v1354 = vld [vmem:[%s1349 + $0x10] sm:$0xf]
  %v1355 = vld [vmem:[%s1349 + $0x14] sm:$0xf]
  %v1356 = vld [vmem:[%s1349 + $0x18] sm:$0xf]
  %v1357 = vld [vmem:[%s1349 + $0x1c] sm:$0xf]
  %v1358 = vld [vmem:[%s1349 + $0x20] sm:$0xf]
  %v1359 = vld [vmem:[%s1349 + $0x24] sm:$0xf]
  %v1360 = vld [vmem:[%s1349 + $0x28] sm:$0xf]
  %v1361 = vld [vmem:[%s1349 + $0x2c] sm:$0xf]
  %v1362 = vld [vmem:[%s1349 + $0x30] sm:$0xf]
  %v1363 = vld [vmem:[%s1349 + $0x34] sm:$0xf]
  %v1364 = vld [vmem:[%s1349 + $0x38] sm:$0xf]
  %v1365 = vld [vmem:[%s1349 + $0x3c] sm:$0xf]
  %v1402 = vunpack.c.l.b16 %v18
  %v1403 = vunpack.c.l.b16 %v19
  %v1404 = vunpack.c.l.b16 %v20
  %v1405 = vunpack.c.l.b16 %v21
  %v1406 = vunpack.c.l.b16 %v22
  %v1407 = vunpack.c.l.b16 %v23
  %v1408 = vunpack.c.l.b16 %v24
  %v1409 = vunpack.c.l.b16 %v25
  %v1410 = vunpack.c.l.b16 %v26
  %v1411 = vunpack.c.l.b16 %v27
  %v1412 = vunpack.c.l.b16 %v28
  %v1413 = vunpack.c.l.b16 %v29
  %v1414 = vunpack.c.l.b16 %v30
  %v1415 = vunpack.c.l.b16 %v31
  %v1416 = vunpack.c.l.b16 %v32
  %v1417 = vunpack.c.l.b16 %v33
  %v1418 = vunpack.c.l.b16 %v34
  %v1419 = vunpack.c.l.b16 %v35
  %v1420 = vunpack.c.l.b16 %v36
  %v1421 = vunpack.c.l.b16 %v37
  %v1422 = vunpack.c.l.b16 %v38
  %v1423 = vunpack.c.l.b16 %v39
  %v1424 = vunpack.c.l.b16 %v40
  %v1425 = vunpack.c.l.b16 %v41
  %v1426 = vunpack.c.l.b16 %v42
  %v1427 = vunpack.c.l.b16 %v43
  %v1428 = vunpack.c.l.b16 %v44
  %v1429 = vunpack.c.l.b16 %v45
  %v1430 = vunpack.c.l.b16 %v46
  %v1431 = vunpack.c.l.b16 %v47
  %v1432 = vunpack.c.l.b16 %v48
  %v1433 = vunpack.c.l.b16 %v49
  %v1434 = vunpack.c.l.b16 %v50
  %v1435 = vunpack.c.l.b16 %v51
  %v1436 = vunpack.c.l.b16 %v52
  %v1437 = vunpack.c.l.b16 %v53
  %v1438 = vpack.c.b16 %v1403, %v1402
  %v1439 = vpack.c.b16 %v1405, %v1404
  %v1440 = vpack.c.b16 %v1407, %v1406
  %v1441 = vpack.c.b16 %v1409, %v1408
  %v1442 = vpack.c.b16 %v1411, %v1410
  %v1443 = vpack.c.b16 %v1413, %v1412
  %v1444 = vpack.c.b16 %v1415, %v1414
  %v1445 = vpack.c.b16 %v1417, %v1416
  %v1446 = vpack.c.b16 %v1419, %v1418
  %v1447 = vpack.c.b16 %v1421, %v1420
  %v1448 = vpack.c.b16 %v1423, %v1422
  %v1449 = vpack.c.b16 %v1425, %v1424
  %v1450 = vpack.c.b16 %v1427, %v1426
  %v1451 = vpack.c.b16 %v1429, %v1428
  %v1452 = vpack.c.b16 %v1431, %v1430
  %v1453 = vpack.c.b16 %v1433, %v1432
  %v1454 = vpack.c.b16 %v1435, %v1434
  %v1455 = vpack.c.b16 %v1437, %v1436
  %v1490 = vunpack.c.l.b16 %v1350
  %v1491 = vunpack.c.l.b16 %v1351
  %v1492 = vunpack.c.l.b16 %v1352
  %v1493 = vunpack.c.l.b16 %v1353
  %v1494 = vunpack.c.l.b16 %v1354
  %v1495 = vunpack.c.l.b16 %v1355
  %v1496 = vunpack.c.l.b16 %v1356
  %v1497 = vunpack.c.l.b16 %v1357
  %v1498 = vunpack.c.l.b16 %v1358
  %v1499 = vunpack.c.l.b16 %v1359
  %v1500 = vunpack.c.l.b16 %v1360
  %v1501 = vunpack.c.l.b16 %v1361
  %v1502 = vunpack.c.l.b16 %v1362
  %v1503 = vunpack.c.l.b16 %v1363
  %v1504 = vunpack.c.l.b16 %v1364
  %v1505 = vunpack.c.l.b16 %v1365
  %v1506 = vpack.c.b16 %v1491, %v1490
  %v1507 = vpack.c.b16 %v1493, %v1492
  %v1508 = vpack.c.b16 %v1495, %v1494
  %v1509 = vpack.c.b16 %v1497, %v1496
  %v1510 = vpack.c.b16 %v1499, %v1498
  %v1511 = vpack.c.b16 %v1501, %v1500
  %v1512 = vpack.c.b16 %v1503, %v1502
  %v1513 = vpack.c.b16 %v1505, %v1504
  %1522 = vmatprep.subr.bf16.mxu0 0
  %1523 = vmatpush1.bf16.msra.mxu0 %v1513
  %1524 = vmatprep.subr.bf16.mxu0 0
  %1525 = vmatpush1.bf16.msra.mxu0 %v1512
  %1526 = vmatprep.subr.bf16.mxu0 0
  %1527 = vmatpush1.bf16.msra.mxu0 %v1511
  %1528 = vmatprep.subr.bf16.mxu0 0
  %1529 = vmatpush1.bf16.msra.mxu0 %v1510
  %1530 = vmatprep.subr.bf16.mxu0 0
  %1531 = vmatpush1.bf16.msra.mxu0 %v1509
  %1532 = vmatprep.subr.bf16.mxu0 0
  %1533 = vmatpush1.bf16.msra.mxu0 %v1508
  %1534 = vmatprep.subr.bf16.mxu0 0
  %1535 = vmatpush1.bf16.msra.mxu0 %v1507
  %1536 = vmatprep.subr.bf16.mxu0 0
  %1537 = vmatpush1.bf16.msra.mxu0 %v1506
  %1538 = vmatprep.subr.bf16.mxu0 0
  %1539 = vmatpush2.bf16.msra.mxu0 0
  %1540 = vmatprep.subr.bf16.mxu0 0
  %1541 = vmatpush2.bf16.msra.mxu0 0
  %1542 = vmatprep.subr.bf16.mxu0 0
  %1543 = vmatpush2.bf16.msra.mxu0 0
  %1544 = vmatprep.subr.bf16.mxu0 0
  %1545 = vmatpush2.bf16.msra.mxu0 0
  %1546 = vmatprep.subr.bf16.mxu0 0
  %1547 = vmatpush2.bf16.msra.mxu0 0
  %1548 = vmatprep.subr.bf16.mxu0 0
  %1549 = vmatpush2.bf16.msra.mxu0 0
  %1550 = vmatprep.subr.bf16.mxu0 0
  %1551 = vmatpush2.bf16.msra.mxu0 0
  %1552 = vmatprep.subr.bf16.mxu0 0
  %1553 = vmatpush2.bf16.msra.mxu0 0
  %1554 = vmatprep.mubr.bf16.mxu0 0
  %1555 = vmatmul.mubr.bf16.gmra.mxu0 %v1438
  %v1556 = vpop.f32.mrf.mxu0
  %v1557 = vadd.f32 0.0, %v1556
  %v1558 = vpop.f32.mrf.mxu0
  %v1559 = vpop.f32.mrf.mxu0
  %v1560 = vadd.f32 0.0, %v1559
  %v1561 = vpop.f32.mrf.mxu0
  %1562 = vmatprep.mubr.bf16.mxu0 0
  %1563 = vmatmul.mubr.bf16.gmra.mxu0 %v1439
  %v1564 = vpop.f32.mrf.mxu0
  %v1565 = vadd.f32 0.0, %v1564
  %v1566 = vpop.f32.mrf.mxu0
  %v1567 = vpop.f32.mrf.mxu0
  %v1568 = vadd.f32 0.0, %v1567
  %v1569 = vpop.f32.mrf.mxu0
  %1570 = vmatprep.mubr.bf16.mxu0 0
  %1571 = vmatmul.mubr.bf16.gmra.mxu0 %v1440
  %v1572 = vpop.f32.mrf.mxu0
  %v1573 = vadd.f32 0.0, %v1572
  %v1574 = vpop.f32.mrf.mxu0
  %v1575 = vpop.f32.mrf.mxu0
  %v1576 = vadd.f32 0.0, %v1575
  %v1577 = vpop.f32.mrf.mxu0
  %1578 = vmatprep.mubr.bf16.mxu0 0
  %1579 = vmatmul.mubr.bf16.gmra.mxu0 %v1441
  %v1580 = vpop.f32.mrf.mxu0
  %v1581 = vadd.f32 0.0, %v1580
  %v1582 = vpop.f32.mrf.mxu0
  %v1583 = vpop.f32.mrf.mxu0
  %v1584 = vadd.f32 0.0, %v1583
  %v1585 = vpop.f32.mrf.mxu0
  %1586 = vmatprep.mubr.bf16.mxu0 0
  %1587 = vmatmul.mubr.bf16.gmra.mxu0 %v1442
  %v1588 = vpop.f32.mrf.mxu0
  %v1589 = vadd.f32 0.0, %v1588
  %v1590 = vpop.f32.mrf.mxu0
  %v1591 = vpop.f32.mrf.mxu0
  %v1592 = vadd.f32 0.0, %v1591
  %v1593 = vpop.f32.mrf.mxu0
  %1594 = vmatprep.mubr.bf16.mxu0 0
  %1595 = vmatmul.mubr.bf16.gmra.mxu0 %v1443
  %v1596 = vpop.f32.mrf.mxu0
  %v1597 = vadd.f32 0.0, %v1596
  %v1598 = vpop.f32.mrf.mxu0
  %v1599 = vpop.f32.mrf.mxu0
  %v1600 = vadd.f32 0.0, %v1599
  %v1601 = vpop.f32.mrf.mxu0
  %1602 = vmatprep.mubr.bf16.mxu0 0
  %1603 = vmatmul.mubr.bf16.gmra.mxu0 %v1444
  %v1604 = vpop.f32.mrf.mxu0
  %v1605 = vadd.f32 0.0, %v1604
  %v1606 = vpop.f32.mrf.mxu0
  %v1607 = vpop.f32.mrf.mxu0
  %v1608 = vadd.f32 0.0, %v1607
  %v1609 = vpop.f32.mrf.mxu0
  %1610 = vmatprep.mubr.bf16.mxu0 0
  %1611 = vmatmul.mubr.bf16.gmra.mxu0 %v1445
  %v1612 = vpop.f32.mrf.mxu0
  %v1613 = vadd.f32 0.0, %v1612
  %v1614 = vpop.f32.mrf.mxu0
  %v1615 = vpop.f32.mrf.mxu0
  %v1616 = vadd.f32 0.0, %v1615
  %v1617 = vpop.f32.mrf.mxu0
  %1618 = vmatprep.mubr.bf16.mxu0 0
  %1619 = vmatmul.mubr.bf16.gmra.mxu0 %v1446
  %v1620 = vpop.f32.mrf.mxu0
  %v1621 = vadd.f32 0.0, %v1620
  %v1622 = vpop.f32.mrf.mxu0
  %v1623 = vpop.f32.mrf.mxu0
  %v1624 = vadd.f32 0.0, %v1623
  %v1625 = vpop.f32.mrf.mxu0
  %1626 = vmatprep.mubr.bf16.mxu0 0
  %1627 = vmatmul.mubr.bf16.gmra.mxu0 %v1447
  %v1628 = vpop.f32.mrf.mxu0
  %v1629 = vadd.f32 0.0, %v1628
  %v1630 = vpop.f32.mrf.mxu0
  %v1631 = vpop.f32.mrf.mxu0
  %v1632 = vadd.f32 0.0, %v1631
  %v1633 = vpop.f32.mrf.mxu0
  %1634 = vmatprep.mubr.bf16.mxu0 0
  %1635 = vmatmul.mubr.bf16.gmra.mxu0 %v1448
  %v1636 = vpop.f32.mrf.mxu0
  %v1637 = vadd.f32 0.0, %v1636
  %v1638 = vpop.f32.mrf.mxu0
  %v1639 = vpop.f32.mrf.mxu0
  %v1640 = vadd.f32 0.0, %v1639
  %v1641 = vpop.f32.mrf.mxu0
  %1642 = vmatprep.mubr.bf16.mxu0 0
  %1643 = vmatmul.mubr.bf16.gmra.mxu0 %v1449
  %v1644 = vpop.f32.mrf.mxu0
  %v1645 = vadd.f32 0.0, %v1644
  %v1646 = vpop.f32.mrf.mxu0
  %v1647 = vpop.f32.mrf.mxu0
  %v1648 = vadd.f32 0.0, %v1647
  %v1649 = vpop.f32.mrf.mxu0
  %1650 = vmatprep.mubr.bf16.mxu0 0
  %1651 = vmatmul.mubr.bf16.gmra.mxu0 %v1450
  %v1652 = vpop.f32.mrf.mxu0
  %v1653 = vadd.f32 0.0, %v1652
  %v1654 = vpop.f32.mrf.mxu0
  %v1655 = vpop.f32.mrf.mxu0
  %v1656 = vadd.f32 0.0, %v1655
  %v1657 = vpop.f32.mrf.mxu0
  %1658 = vmatprep.mubr.bf16.mxu0 0
  %1659 = vmatmul.mubr.bf16.gmra.mxu0 %v1451
  %v1660 = vpop.f32.mrf.mxu0
  %v1661 = vadd.f32 0.0, %v1660
  %v1662 = vpop.f32.mrf.mxu0
  %v1663 = vpop.f32.mrf.mxu0
  %v1664 = vadd.f32 0.0, %v1663
  %v1665 = vpop.f32.mrf.mxu0
  %1666 = vmatprep.mubr.bf16.mxu0 0
  %1667 = vmatmul.mubr.bf16.gmra.mxu0 %v1452
  %v1668 = vpop.f32.mrf.mxu0
  %v1669 = vadd.f32 0.0, %v1668
  %v1670 = vpop.f32.mrf.mxu0
  %v1671 = vpop.f32.mrf.mxu0
  %v1672 = vadd.f32 0.0, %v1671
  %v1673 = vpop.f32.mrf.mxu0
  %1674 = vmatprep.mubr.bf16.mxu0 0
  %1675 = vmatmul.mubr.bf16.gmra.mxu0 %v1453
  %v1676 = vpop.f32.mrf.mxu0
  %v1677 = vadd.f32 0.0, %v1676
  %v1678 = vpop.f32.mrf.mxu0
  %v1679 = vpop.f32.mrf.mxu0
  %v1680 = vadd.f32 0.0, %v1679
  %v1681 = vpop.f32.mrf.mxu0
  %1682 = vmatprep.mubr.bf16.mxu0 0
  %1683 = vmatmul.mubr.bf16.gmra.mxu0 %v1454
  %v1684 = vpop.f32.mrf.mxu0
  %v1685 = vadd.f32 0.0, %v1684
  %v1686 = vpop.f32.mrf.mxu0
  %v1687 = vpop.f32.mrf.mxu0
  %v1688 = vadd.f32 0.0, %v1687
  %v1689 = vpop.f32.mrf.mxu0
  %1690 = vmatprep.mubr.bf16.mxu0 0
  %1691 = vmatmul.mubr.bf16.gmra.mxu0 %v1455
  %v1692 = vpop.f32.mrf.mxu0
  %v1693 = vadd.f32 0.0, %v1692
  %v1694 = vpop.f32.mrf.mxu0
  %v1695 = vpop.f32.mrf.mxu0
  %v1696 = vadd.f32 0.0, %v1695
  %v1697 = vpop.f32.mrf.mxu0
  %1698 = vdwg.mxu0
  %v1699 = vadd.f32 %v1313, %v1557
  %v1700 = vadd.f32 %v1314, %v1560
  %v1701 = vadd.f32 %v1315, %v1565
  %v1702 = vadd.f32 %v1316, %v1568
  %v1703 = vadd.f32 %v1317, %v1573
  %v1704 = vadd.f32 %v1318, %v1576
  %v1705 = vadd.f32 %v1319, %v1581
  %v1706 = vadd.f32 %v1320, %v1584
  %v1707 = vadd.f32 %v1321, %v1589
  %v1708 = vadd.f32 %v1322, %v1592
  %v1709 = vadd.f32 %v1323, %v1597
  %v1710 = vadd.f32 %v1324, %v1600
  %v1711 = vadd.f32 %v1325, %v1605
  %v1712 = vadd.f32 %v1326, %v1608
  %v1713 = vadd.f32 %v1327, %v1613
  %v1714 = vadd.f32 %v1328, %v1616
  %v1715 = vadd.f32 %v1329, %v1621
  %v1716 = vadd.f32 %v1330, %v1624
  %v1717 = vadd.f32 %v1331, %v1629
  %v1718 = vadd.f32 %v1332, %v1632
  %v1719 = vadd.f32 %v1333, %v1637
  %v1720 = vadd.f32 %v1334, %v1640
  %v1721 = vadd.f32 %v1335, %v1645
  %v1722 = vadd.f32 %v1336, %v1648
  %v1723 = vadd.f32 %v1337, %v1653
  %v1724 = vadd.f32 %v1338, %v1656
  %v1725 = vadd.f32 %v1339, %v1661
  %v1726 = vadd.f32 %v1340, %v1664
  %v1727 = vadd.f32 %v1341, %v1669
  %v1728 = vadd.f32 %v1342, %v1672
  %v1729 = vadd.f32 %v1343, %v1677
  %v1730 = vadd.f32 %v1344, %v1680
  %v1731 = vadd.f32 %v1345, %v1685
  %v1732 = vadd.f32 %v1346, %v1688
  %v1733 = vadd.f32 %v1347, %v1693
  %v1734 = vadd.f32 %v1348, %v1696
  %v1735 = vrot.slane %v54, 1
  %v1736 = vrot.slane %v55, 1
  %v1737 = vrot.slane %v56, 1
  %v1738 = vrot.slane %v57, 1
  %v1739 = vrot.slane %v58, 1
  %v1740 = vrot.slane %v59, 1
  %v1741 = vrot.slane %v60, 1
  %v1742 = vrot.slane %v61, 1
  %v1743 = vrot.slane %v62, 1
  %v1744 = vrot.slane %v63, 1
  %v1745 = vrot.slane %v64, 1
  %v1746 = vrot.slane %v65, 1
  %v1747 = vrot.slane %v66, 1
  %v1748 = vrot.slane %v67, 1
  %v1749 = vrot.slane %v68, 1
  %v1750 = vrot.slane %v69, 1
  %v1751 = vrot.slane %v70, 1
  %v1752 = vrot.slane %v71, 1
  %v1753 = vrot.slane %v72, 1
  %v1754 = vrot.slane %v73, 1
  %v1755 = vrot.slane %v74, 1
  %v1756 = vrot.slane %v75, 1
  %v1757 = vrot.slane %v76, 1
  %v1758 = vrot.slane %v77, 1
  %v1759 = vrot.slane %v78, 1
  %v1760 = vrot.slane %v79, 1
  %v1761 = vrot.slane %v80, 1
  %v1762 = vrot.slane %v81, 1
  %v1763 = vrot.slane %v82, 1
  %v1764 = vrot.slane %v83, 1
  %v1765 = vrot.slane %v84, 1
  %v1766 = vrot.slane %v85, 1
  %v1767 = vrot.slane %v86, 1
  %v1768 = vrot.slane %v87, 1
  %v1769 = vrot.slane %v88, 1
  %v1770 = vrot.slane %v89, 1
  %vm1771 = vcmp.lt.s32.totalorder %v127, 7
  %v1772 = vsel %vm1771, %v1769, %v1770
  %v1773 = vsel %vm1771, %v1768, %v1769
  %v1774 = vsel %vm1771, %v1767, %v1768
  %v1775 = vsel %vm1771, %v1766, %v1767
  %v1776 = vsel %vm1771, %v1765, %v1766
  %v1777 = vsel %vm1771, %v1764, %v1765
  %v1778 = vsel %vm1771, %v1763, %v1764
  %v1779 = vsel %vm1771, %v1762, %v1763
  %v1780 = vsel %vm1771, %v1761, %v1762
  %v1781 = vsel %vm1771, %v1760, %v1761
  %v1782 = vsel %vm1771, %v1759, %v1760
  %v1783 = vsel %vm1771, %v1758, %v1759
  %v1784 = vsel %vm1771, %v1757, %v1758
  %v1785 = vsel %vm1771, %v1756, %v1757
  %v1786 = vsel %vm1771, %v1755, %v1756
  %v1787 = vsel %vm1771, %v1754, %v1755
  %v1788 = vsel %vm1771, %v1753, %v1754
  %v1789 = vsel %vm1771, %v1752, %v1753
  %v1790 = vsel %vm1771, %v1751, %v1752
  %v1791 = vsel %vm1771, %v1750, %v1751
  %v1792 = vsel %vm1771, %v1749, %v1750
  %v1793 = vsel %vm1771, %v1748, %v1749
  %v1794 = vsel %vm1771, %v1747, %v1748
  %v1795 = vsel %vm1771, %v1746, %v1747
  %v1796 = vsel %vm1771, %v1745, %v1746
  %v1797 = vsel %vm1771, %v1744, %v1745
  %v1798 = vsel %vm1771, %v1743, %v1744
  %v1799 = vsel %vm1771, %v1742, %v1743
  %v1800 = vsel %vm1771, %v1741, %v1742
  %v1801 = vsel %vm1771, %v1740, %v1741
  %v1802 = vsel %vm1771, %v1739, %v1740
  %v1803 = vsel %vm1771, %v1738, %v1739
  %v1804 = vsel %vm1771, %v1737, %v1738
  %v1805 = vsel %vm1771, %v1736, %v1737
  %v1806 = vsel %vm1771, %v1735, %v1736
  %v1807 = vsel %vm1771, %v1770, %v1735
  %v1808 = vpack.c.bf16 %v1805, %v1806
  %v1809 = vpack.c.bf16 %v1803, %v1804
  %v1810 = vpack.c.bf16 %v1801, %v1802
  %v1811 = vpack.c.bf16 %v1799, %v1800
  %v1812 = vpack.c.bf16 %v1797, %v1798
  %v1813 = vpack.c.bf16 %v1795, %v1796
  %v1814 = vpack.c.bf16 %v1793, %v1794
  %v1815 = vpack.c.bf16 %v1791, %v1792
  %v1816 = vpack.c.bf16 %v1789, %v1790
  %v1817 = vpack.c.bf16 %v1787, %v1788
  %v1818 = vpack.c.bf16 %v1785, %v1786
  %v1819 = vpack.c.bf16 %v1783, %v1784
  %v1820 = vpack.c.bf16 %v1781, %v1782
  %v1821 = vpack.c.bf16 %v1779, %v1780
  %v1822 = vpack.c.bf16 %v1777, %v1778
  %v1823 = vpack.c.bf16 %v1775, %v1776
  %v1824 = vpack.c.bf16 %v1773, %v1774
  %v1825 = vpack.c.bf16 %v1807, %v1772
  %s1826 = scalar_lea.vmem %s1, 320
  %v1827 = vld [vmem:[%s1826] sm:$0xf]
  %v1828 = vld [vmem:[%s1826 + $0x4] sm:$0xf]
  %v1829 = vld [vmem:[%s1826 + $0x8] sm:$0xf]
  %v1830 = vld [vmem:[%s1826 + $0xc] sm:$0xf]
  %v1831 = vld [vmem:[%s1826 + $0x10] sm:$0xf]
  %v1832 = vld [vmem:[%s1826 + $0x14] sm:$0xf]
  %v1833 = vld [vmem:[%s1826 + $0x18] sm:$0xf]
  %v1834 = vld [vmem:[%s1826 + $0x1c] sm:$0xf]
  %v1835 = vld [vmem:[%s1826 + $0x20] sm:$0xf]
  %v1836 = vld [vmem:[%s1826 + $0x24] sm:$0xf]
  %v1837 = vld [vmem:[%s1826 + $0x28] sm:$0xf]
  %v1838 = vld [vmem:[%s1826 + $0x2c] sm:$0xf]
  %v1839 = vld [vmem:[%s1826 + $0x30] sm:$0xf]
  %v1840 = vld [vmem:[%s1826 + $0x34] sm:$0xf]
  %v1841 = vld [vmem:[%s1826 + $0x38] sm:$0xf]
  %v1842 = vld [vmem:[%s1826 + $0x3c] sm:$0xf]
  %v1859 = vunpack.c.l.b16 %v1827
  %v1860 = vunpack.c.l.b16 %v1828
  %v1861 = vunpack.c.l.b16 %v1829
  %v1862 = vunpack.c.l.b16 %v1830
  %v1863 = vunpack.c.l.b16 %v1831
  %v1864 = vunpack.c.l.b16 %v1832
  %v1865 = vunpack.c.l.b16 %v1833
  %v1866 = vunpack.c.l.b16 %v1834
  %v1867 = vunpack.c.l.b16 %v1835
  %v1868 = vunpack.c.l.b16 %v1836
  %v1869 = vunpack.c.l.b16 %v1837
  %v1870 = vunpack.c.l.b16 %v1838
  %v1871 = vunpack.c.l.b16 %v1839
  %v1872 = vunpack.c.l.b16 %v1840
  %v1873 = vunpack.c.l.b16 %v1841
  %v1874 = vunpack.c.l.b16 %v1842
  %v1875 = vpack.c.b16 %v1860, %v1859
  %v1876 = vpack.c.b16 %v1862, %v1861
  %v1877 = vpack.c.b16 %v1864, %v1863
  %v1878 = vpack.c.b16 %v1866, %v1865
  %v1879 = vpack.c.b16 %v1868, %v1867
  %v1880 = vpack.c.b16 %v1870, %v1869
  %v1881 = vpack.c.b16 %v1872, %v1871
  %v1882 = vpack.c.b16 %v1874, %v1873
  %1891 = vmatprep.subr.bf16.mxu0 0
  %1892 = vmatpush1.bf16.msra.mxu0 %v1882
  %1893 = vmatprep.subr.bf16.mxu0 0
  %1894 = vmatpush1.bf16.msra.mxu0 %v1881
  %1895 = vmatprep.subr.bf16.mxu0 0
  %1896 = vmatpush1.bf16.msra.mxu0 %v1880
  %1897 = vmatprep.subr.bf16.mxu0 0
  %1898 = vmatpush1.bf16.msra.mxu0 %v1879
  %1899 = vmatprep.subr.bf16.mxu0 0
  %1900 = vmatpush1.bf16.msra.mxu0 %v1878
  %1901 = vmatprep.subr.bf16.mxu0 0
  %1902 = vmatpush1.bf16.msra.mxu0 %v1877
  %1903 = vmatprep.subr.bf16.mxu0 0
  %1904 = vmatpush1.bf16.msra.mxu0 %v1876
  %1905 = vmatprep.subr.bf16.mxu0 0
  %1906 = vmatpush1.bf16.msra.mxu0 %v1875
  %1907 = vmatprep.subr.bf16.mxu0 0
  %1908 = vmatpush2.bf16.msra.mxu0 0
  %1909 = vmatprep.subr.bf16.mxu0 0
  %1910 = vmatpush2.bf16.msra.mxu0 0
  %1911 = vmatprep.subr.bf16.mxu0 0
  %1912 = vmatpush2.bf16.msra.mxu0 0
  %1913 = vmatprep.subr.bf16.mxu0 0
  %1914 = vmatpush2.bf16.msra.mxu0 0
  %1915 = vmatprep.subr.bf16.mxu0 0
  %1916 = vmatpush2.bf16.msra.mxu0 0
  %1917 = vmatprep.subr.bf16.mxu0 0
  %1918 = vmatpush2.bf16.msra.mxu0 0
  %1919 = vmatprep.subr.bf16.mxu0 0
  %1920 = vmatpush2.bf16.msra.mxu0 0
  %1921 = vmatprep.subr.bf16.mxu0 0
  %1922 = vmatpush2.bf16.msra.mxu0 0
  %1923 = vmatprep.mubr.bf16.mxu0 0
  %1924 = vmatmul.mubr.bf16.gmra.mxu0 %v1808
  %v1925 = vpop.f32.mrf.mxu0
  %v1926 = vadd.f32 0.0, %v1925
  %v1927 = vpop.f32.mrf.mxu0
  %v1928 = vpop.f32.mrf.mxu0
  %v1929 = vadd.f32 0.0, %v1928
  %v1930 = vpop.f32.mrf.mxu0
  %1931 = vmatprep.mubr.bf16.mxu0 0
  %1932 = vmatmul.mubr.bf16.gmra.mxu0 %v1809
  %v1933 = vpop.f32.mrf.mxu0
  %v1934 = vadd.f32 0.0, %v1933
  %v1935 = vpop.f32.mrf.mxu0
  %v1936 = vpop.f32.mrf.mxu0
  %v1937 = vadd.f32 0.0, %v1936
  %v1938 = vpop.f32.mrf.mxu0
  %1939 = vmatprep.mubr.bf16.mxu0 0
  %1940 = vmatmul.mubr.bf16.gmra.mxu0 %v1810
  %v1941 = vpop.f32.mrf.mxu0
  %v1942 = vadd.f32 0.0, %v1941
  %v1943 = vpop.f32.mrf.mxu0
  %v1944 = vpop.f32.mrf.mxu0
  %v1945 = vadd.f32 0.0, %v1944
  %v1946 = vpop.f32.mrf.mxu0
  %1947 = vmatprep.mubr.bf16.mxu0 0
  %1948 = vmatmul.mubr.bf16.gmra.mxu0 %v1811
  %v1949 = vpop.f32.mrf.mxu0
  %v1950 = vadd.f32 0.0, %v1949
  %v1951 = vpop.f32.mrf.mxu0
  %v1952 = vpop.f32.mrf.mxu0
  %v1953 = vadd.f32 0.0, %v1952
  %v1954 = vpop.f32.mrf.mxu0
  %1955 = vmatprep.mubr.bf16.mxu0 0
  %1956 = vmatmul.mubr.bf16.gmra.mxu0 %v1812
  %v1957 = vpop.f32.mrf.mxu0
  %v1958 = vadd.f32 0.0, %v1957
  %v1959 = vpop.f32.mrf.mxu0
  %v1960 = vpop.f32.mrf.mxu0
  %v1961 = vadd.f32 0.0, %v1960
  %v1962 = vpop.f32.mrf.mxu0
  %1963 = vmatprep.mubr.bf16.mxu0 0
  %1964 = vmatmul.mubr.bf16.gmra.mxu0 %v1813
  %v1965 = vpop.f32.mrf.mxu0
  %v1966 = vadd.f32 0.0, %v1965
  %v1967 = vpop.f32.mrf.mxu0
  %v1968 = vpop.f32.mrf.mxu0
  %v1969 = vadd.f32 0.0, %v1968
  %v1970 = vpop.f32.mrf.mxu0
  %1971 = vmatprep.mubr.bf16.mxu0 0
  %1972 = vmatmul.mubr.bf16.gmra.mxu0 %v1814
  %v1973 = vpop.f32.mrf.mxu0
  %v1974 = vadd.f32 0.0, %v1973
  %v1975 = vpop.f32.mrf.mxu0
  %v1976 = vpop.f32.mrf.mxu0
  %v1977 = vadd.f32 0.0, %v1976
  %v1978 = vpop.f32.mrf.mxu0
  %1979 = vmatprep.mubr.bf16.mxu0 0
  %1980 = vmatmul.mubr.bf16.gmra.mxu0 %v1815
  %v1981 = vpop.f32.mrf.mxu0
  %v1982 = vadd.f32 0.0, %v1981
  %v1983 = vpop.f32.mrf.mxu0
  %v1984 = vpop.f32.mrf.mxu0
  %v1985 = vadd.f32 0.0, %v1984
  %v1986 = vpop.f32.mrf.mxu0
  %1987 = vmatprep.mubr.bf16.mxu0 0
  %1988 = vmatmul.mubr.bf16.gmra.mxu0 %v1816
  %v1989 = vpop.f32.mrf.mxu0
  %v1990 = vadd.f32 0.0, %v1989
  %v1991 = vpop.f32.mrf.mxu0
  %v1992 = vpop.f32.mrf.mxu0
  %v1993 = vadd.f32 0.0, %v1992
  %v1994 = vpop.f32.mrf.mxu0
  %1995 = vmatprep.mubr.bf16.mxu0 0
  %1996 = vmatmul.mubr.bf16.gmra.mxu0 %v1817
  %v1997 = vpop.f32.mrf.mxu0
  %v1998 = vadd.f32 0.0, %v1997
  %v1999 = vpop.f32.mrf.mxu0
  %v2000 = vpop.f32.mrf.mxu0
  %v2001 = vadd.f32 0.0, %v2000
  %v2002 = vpop.f32.mrf.mxu0
  %2003 = vmatprep.mubr.bf16.mxu0 0
  %2004 = vmatmul.mubr.bf16.gmra.mxu0 %v1818
  %v2005 = vpop.f32.mrf.mxu0
  %v2006 = vadd.f32 0.0, %v2005
  %v2007 = vpop.f32.mrf.mxu0
  %v2008 = vpop.f32.mrf.mxu0
  %v2009 = vadd.f32 0.0, %v2008
  %v2010 = vpop.f32.mrf.mxu0
  %2011 = vmatprep.mubr.bf16.mxu0 0
  %2012 = vmatmul.mubr.bf16.gmra.mxu0 %v1819
  %v2013 = vpop.f32.mrf.mxu0
  %v2014 = vadd.f32 0.0, %v2013
  %v2015 = vpop.f32.mrf.mxu0
  %v2016 = vpop.f32.mrf.mxu0
  %v2017 = vadd.f32 0.0, %v2016
  %v2018 = vpop.f32.mrf.mxu0
  %2019 = vmatprep.mubr.bf16.mxu0 0
  %2020 = vmatmul.mubr.bf16.gmra.mxu0 %v1820
  %v2021 = vpop.f32.mrf.mxu0
  %v2022 = vadd.f32 0.0, %v2021
  %v2023 = vpop.f32.mrf.mxu0
  %v2024 = vpop.f32.mrf.mxu0
  %v2025 = vadd.f32 0.0, %v2024
  %v2026 = vpop.f32.mrf.mxu0
  %2027 = vmatprep.mubr.bf16.mxu0 0
  %2028 = vmatmul.mubr.bf16.gmra.mxu0 %v1821
  %v2029 = vpop.f32.mrf.mxu0
  %v2030 = vadd.f32 0.0, %v2029
  %v2031 = vpop.f32.mrf.mxu0
  %v2032 = vpop.f32.mrf.mxu0
  %v2033 = vadd.f32 0.0, %v2032
  %v2034 = vpop.f32.mrf.mxu0
  %2035 = vmatprep.mubr.bf16.mxu0 0
  %2036 = vmatmul.mubr.bf16.gmra.mxu0 %v1822
  %v2037 = vpop.f32.mrf.mxu0
  %v2038 = vadd.f32 0.0, %v2037
  %v2039 = vpop.f32.mrf.mxu0
  %v2040 = vpop.f32.mrf.mxu0
  %v2041 = vadd.f32 0.0, %v2040
  %v2042 = vpop.f32.mrf.mxu0
  %2043 = vmatprep.mubr.bf16.mxu0 0
  %2044 = vmatmul.mubr.bf16.gmra.mxu0 %v1823
  %v2045 = vpop.f32.mrf.mxu0
  %v2046 = vadd.f32 0.0, %v2045
  %v2047 = vpop.f32.mrf.mxu0
  %v2048 = vpop.f32.mrf.mxu0
  %v2049 = vadd.f32 0.0, %v2048
  %v2050 = vpop.f32.mrf.mxu0
  %2051 = vmatprep.mubr.bf16.mxu0 0
  %2052 = vmatmul.mubr.bf16.gmra.mxu0 %v1824
  %v2053 = vpop.f32.mrf.mxu0
  %v2054 = vadd.f32 0.0, %v2053
  %v2055 = vpop.f32.mrf.mxu0
  %v2056 = vpop.f32.mrf.mxu0
  %v2057 = vadd.f32 0.0, %v2056
  %v2058 = vpop.f32.mrf.mxu0
  %2059 = vmatprep.mubr.bf16.mxu0 0
  %2060 = vmatmul.mubr.bf16.gmra.mxu0 %v1825
  %v2061 = vpop.f32.mrf.mxu0
  %v2062 = vadd.f32 0.0, %v2061
  %v2063 = vpop.f32.mrf.mxu0
  %v2064 = vpop.f32.mrf.mxu0
  %v2065 = vadd.f32 0.0, %v2064
  %v2066 = vpop.f32.mrf.mxu0
  %2067 = vdwg.mxu0
  %v2068 = vadd.f32 %v1699, %v1926
  %v2069 = vadd.f32 %v1700, %v1929
  %v2070 = vadd.f32 %v1701, %v1934
  %v2071 = vadd.f32 %v1702, %v1937
  %v2072 = vadd.f32 %v1703, %v1942
  %v2073 = vadd.f32 %v1704, %v1945
  %v2074 = vadd.f32 %v1705, %v1950
  %v2075 = vadd.f32 %v1706, %v1953
  %v2076 = vadd.f32 %v1707, %v1958
  %v2077 = vadd.f32 %v1708, %v1961
  %v2078 = vadd.f32 %v1709, %v1966
  %v2079 = vadd.f32 %v1710, %v1969
  %v2080 = vadd.f32 %v1711, %v1974
  %v2081 = vadd.f32 %v1712, %v1977
  %v2082 = vadd.f32 %v1713, %v1982
  %v2083 = vadd.f32 %v1714, %v1985
  %v2084 = vadd.f32 %v1715, %v1990
  %v2085 = vadd.f32 %v1716, %v1993
  %v2086 = vadd.f32 %v1717, %v1998
  %v2087 = vadd.f32 %v1718, %v2001
  %v2088 = vadd.f32 %v1719, %v2006
  %v2089 = vadd.f32 %v1720, %v2009
  %v2090 = vadd.f32 %v1721, %v2014
  %v2091 = vadd.f32 %v1722, %v2017
  %v2092 = vadd.f32 %v1723, %v2022
  %v2093 = vadd.f32 %v1724, %v2025
  %v2094 = vadd.f32 %v1725, %v2030
  %v2095 = vadd.f32 %v1726, %v2033
  %v2096 = vadd.f32 %v1727, %v2038
  %v2097 = vadd.f32 %v1728, %v2041
  %v2098 = vadd.f32 %v1729, %v2046
  %v2099 = vadd.f32 %v1730, %v2049
  %v2100 = vadd.f32 %v1731, %v2054
  %v2101 = vadd.f32 %v1732, %v2057
  %v2102 = vadd.f32 %v1733, %v2062
  %v2103 = vadd.f32 %v1734, %v2065
  %s2104 = scalar_lea.vmem %s1, 384
  %v2105 = vld [vmem:[%s2104] sm:$0xf]
  %v2106 = vld [vmem:[%s2104 + $0x4] sm:$0xf]
  %v2107 = vld [vmem:[%s2104 + $0x8] sm:$0xf]
  %v2108 = vld [vmem:[%s2104 + $0xc] sm:$0xf]
  %v2109 = vld [vmem:[%s2104 + $0x10] sm:$0xf]
  %v2110 = vld [vmem:[%s2104 + $0x14] sm:$0xf]
  %v2111 = vld [vmem:[%s2104 + $0x18] sm:$0xf]
  %v2112 = vld [vmem:[%s2104 + $0x1c] sm:$0xf]
  %v2113 = vld [vmem:[%s2104 + $0x20] sm:$0xf]
  %v2114 = vld [vmem:[%s2104 + $0x24] sm:$0xf]
  %v2115 = vld [vmem:[%s2104 + $0x28] sm:$0xf]
  %v2116 = vld [vmem:[%s2104 + $0x2c] sm:$0xf]
  %v2117 = vld [vmem:[%s2104 + $0x30] sm:$0xf]
  %v2118 = vld [vmem:[%s2104 + $0x34] sm:$0xf]
  %v2119 = vld [vmem:[%s2104 + $0x38] sm:$0xf]
  %v2120 = vld [vmem:[%s2104 + $0x3c] sm:$0xf]
  %v2137 = vunpack.c.l.b16 %v2105
  %v2138 = vunpack.c.l.b16 %v2106
  %v2139 = vunpack.c.l.b16 %v2107
  %v2140 = vunpack.c.l.b16 %v2108
  %v2141 = vunpack.c.l.b16 %v2109
  %v2142 = vunpack.c.l.b16 %v2110
  %v2143 = vunpack.c.l.b16 %v2111
  %v2144 = vunpack.c.l.b16 %v2112
  %v2145 = vunpack.c.l.b16 %v2113
  %v2146 = vunpack.c.l.b16 %v2114
  %v2147 = vunpack.c.l.b16 %v2115
  %v2148 = vunpack.c.l.b16 %v2116
  %v2149 = vunpack.c.l.b16 %v2117
  %v2150 = vunpack.c.l.b16 %v2118
  %v2151 = vunpack.c.l.b16 %v2119
  %v2152 = vunpack.c.l.b16 %v2120
  %v2153 = vpack.c.b16 %v2138, %v2137
  %v2154 = vpack.c.b16 %v2140, %v2139
  %v2155 = vpack.c.b16 %v2142, %v2141
  %v2156 = vpack.c.b16 %v2144, %v2143
  %v2157 = vpack.c.b16 %v2146, %v2145
  %v2158 = vpack.c.b16 %v2148, %v2147
  %v2159 = vpack.c.b16 %v2150, %v2149
  %v2160 = vpack.c.b16 %v2152, %v2151
  %2169 = vmatprep.subr.bf16.mxu0 0
  %2170 = vmatpush1.bf16.msra.mxu0 %v2160
  %2171 = vmatprep.subr.bf16.mxu0 0
  %2172 = vmatpush1.bf16.msra.mxu0 %v2159
  %2173 = vmatprep.subr.bf16.mxu0 0
  %2174 = vmatpush1.bf16.msra.mxu0 %v2158
  %2175 = vmatprep.subr.bf16.mxu0 0
  %2176 = vmatpush1.bf16.msra.mxu0 %v2157
  %2177 = vmatprep.subr.bf16.mxu0 0
  %2178 = vmatpush1.bf16.msra.mxu0 %v2156
  %2179 = vmatprep.subr.bf16.mxu0 0
  %2180 = vmatpush1.bf16.msra.mxu0 %v2155
  %2181 = vmatprep.subr.bf16.mxu0 0
  %2182 = vmatpush1.bf16.msra.mxu0 %v2154
  %2183 = vmatprep.subr.bf16.mxu0 0
  %2184 = vmatpush1.bf16.msra.mxu0 %v2153
  %2185 = vmatprep.subr.bf16.mxu0 0
  %2186 = vmatpush2.bf16.msra.mxu0 0
  %2187 = vmatprep.subr.bf16.mxu0 0
  %2188 = vmatpush2.bf16.msra.mxu0 0
  %2189 = vmatprep.subr.bf16.mxu0 0
  %2190 = vmatpush2.bf16.msra.mxu0 0
  %2191 = vmatprep.subr.bf16.mxu0 0
  %2192 = vmatpush2.bf16.msra.mxu0 0
  %2193 = vmatprep.subr.bf16.mxu0 0
  %2194 = vmatpush2.bf16.msra.mxu0 0
  %2195 = vmatprep.subr.bf16.mxu0 0
  %2196 = vmatpush2.bf16.msra.mxu0 0
  %2197 = vmatprep.subr.bf16.mxu0 0
  %2198 = vmatpush2.bf16.msra.mxu0 0
  %2199 = vmatprep.subr.bf16.mxu0 0
  %2200 = vmatpush2.bf16.msra.mxu0 0
  %2201 = vmatprep.mubr.bf16.mxu0 0
  %2202 = vmatmul.mubr.bf16.gmra.mxu0 %v758
  %v2203 = vpop.f32.mrf.mxu0
  %v2204 = vadd.f32 0.0, %v2203
  %v2205 = vpop.f32.mrf.mxu0
  %v2206 = vpop.f32.mrf.mxu0
  %v2207 = vadd.f32 0.0, %v2206
  %v2208 = vpop.f32.mrf.mxu0
  %2209 = vmatprep.mubr.bf16.mxu0 0
  %2210 = vmatmul.mubr.bf16.gmra.mxu0 %v759
  %v2211 = vpop.f32.mrf.mxu0
  %v2212 = vadd.f32 0.0, %v2211
  %v2213 = vpop.f32.mrf.mxu0
  %v2214 = vpop.f32.mrf.mxu0
  %v2215 = vadd.f32 0.0, %v2214
  %v2216 = vpop.f32.mrf.mxu0
  %2217 = vmatprep.mubr.bf16.mxu0 0
  %2218 = vmatmul.mubr.bf16.gmra.mxu0 %v760
  %v2219 = vpop.f32.mrf.mxu0
  %v2220 = vadd.f32 0.0, %v2219
  %v2221 = vpop.f32.mrf.mxu0
  %v2222 = vpop.f32.mrf.mxu0
  %v2223 = vadd.f32 0.0, %v2222
  %v2224 = vpop.f32.mrf.mxu0
  %2225 = vmatprep.mubr.bf16.mxu0 0
  %2226 = vmatmul.mubr.bf16.gmra.mxu0 %v761
  %v2227 = vpop.f32.mrf.mxu0
  %v2228 = vadd.f32 0.0, %v2227
  %v2229 = vpop.f32.mrf.mxu0
  %v2230 = vpop.f32.mrf.mxu0
  %v2231 = vadd.f32 0.0, %v2230
  %v2232 = vpop.f32.mrf.mxu0
  %2233 = vmatprep.mubr.bf16.mxu0 0
  %2234 = vmatmul.mubr.bf16.gmra.mxu0 %v762
  %v2235 = vpop.f32.mrf.mxu0
  %v2236 = vadd.f32 0.0, %v2235
  %v2237 = vpop.f32.mrf.mxu0
  %v2238 = vpop.f32.mrf.mxu0
  %v2239 = vadd.f32 0.0, %v2238
  %v2240 = vpop.f32.mrf.mxu0
  %2241 = vmatprep.mubr.bf16.mxu0 0
  %2242 = vmatmul.mubr.bf16.gmra.mxu0 %v763
  %v2243 = vpop.f32.mrf.mxu0
  %v2244 = vadd.f32 0.0, %v2243
  %v2245 = vpop.f32.mrf.mxu0
  %v2246 = vpop.f32.mrf.mxu0
  %v2247 = vadd.f32 0.0, %v2246
  %v2248 = vpop.f32.mrf.mxu0
  %2249 = vmatprep.mubr.bf16.mxu0 0
  %2250 = vmatmul.mubr.bf16.gmra.mxu0 %v764
  %v2251 = vpop.f32.mrf.mxu0
  %v2252 = vadd.f32 0.0, %v2251
  %v2253 = vpop.f32.mrf.mxu0
  %v2254 = vpop.f32.mrf.mxu0
  %v2255 = vadd.f32 0.0, %v2254
  %v2256 = vpop.f32.mrf.mxu0
  %2257 = vmatprep.mubr.bf16.mxu0 0
  %2258 = vmatmul.mubr.bf16.gmra.mxu0 %v765
  %v2259 = vpop.f32.mrf.mxu0
  %v2260 = vadd.f32 0.0, %v2259
  %v2261 = vpop.f32.mrf.mxu0
  %v2262 = vpop.f32.mrf.mxu0
  %v2263 = vadd.f32 0.0, %v2262
  %v2264 = vpop.f32.mrf.mxu0
  %2265 = vmatprep.mubr.bf16.mxu0 0
  %2266 = vmatmul.mubr.bf16.gmra.mxu0 %v766
  %v2267 = vpop.f32.mrf.mxu0
  %v2268 = vadd.f32 0.0, %v2267
  %v2269 = vpop.f32.mrf.mxu0
  %v2270 = vpop.f32.mrf.mxu0
  %v2271 = vadd.f32 0.0, %v2270
  %v2272 = vpop.f32.mrf.mxu0
  %2273 = vmatprep.mubr.bf16.mxu0 0
  %2274 = vmatmul.mubr.bf16.gmra.mxu0 %v767
  %v2275 = vpop.f32.mrf.mxu0
  %v2276 = vadd.f32 0.0, %v2275
  %v2277 = vpop.f32.mrf.mxu0
  %v2278 = vpop.f32.mrf.mxu0
  %v2279 = vadd.f32 0.0, %v2278
  %v2280 = vpop.f32.mrf.mxu0
  %2281 = vmatprep.mubr.bf16.mxu0 0
  %2282 = vmatmul.mubr.bf16.gmra.mxu0 %v768
  %v2283 = vpop.f32.mrf.mxu0
  %v2284 = vadd.f32 0.0, %v2283
  %v2285 = vpop.f32.mrf.mxu0
  %v2286 = vpop.f32.mrf.mxu0
  %v2287 = vadd.f32 0.0, %v2286
  %v2288 = vpop.f32.mrf.mxu0
  %2289 = vmatprep.mubr.bf16.mxu0 0
  %2290 = vmatmul.mubr.bf16.gmra.mxu0 %v769
  %v2291 = vpop.f32.mrf.mxu0
  %v2292 = vadd.f32 0.0, %v2291
  %v2293 = vpop.f32.mrf.mxu0
  %v2294 = vpop.f32.mrf.mxu0
  %v2295 = vadd.f32 0.0, %v2294
  %v2296 = vpop.f32.mrf.mxu0
  %2297 = vmatprep.mubr.bf16.mxu0 0
  %2298 = vmatmul.mubr.bf16.gmra.mxu0 %v770
  %v2299 = vpop.f32.mrf.mxu0
  %v2300 = vadd.f32 0.0, %v2299
  %v2301 = vpop.f32.mrf.mxu0
  %v2302 = vpop.f32.mrf.mxu0
  %v2303 = vadd.f32 0.0, %v2302
  %v2304 = vpop.f32.mrf.mxu0
  %2305 = vmatprep.mubr.bf16.mxu0 0
  %2306 = vmatmul.mubr.bf16.gmra.mxu0 %v771
  %v2307 = vpop.f32.mrf.mxu0
  %v2308 = vadd.f32 0.0, %v2307
  %v2309 = vpop.f32.mrf.mxu0
  %v2310 = vpop.f32.mrf.mxu0
  %v2311 = vadd.f32 0.0, %v2310
  %v2312 = vpop.f32.mrf.mxu0
  %2313 = vmatprep.mubr.bf16.mxu0 0
  %2314 = vmatmul.mubr.bf16.gmra.mxu0 %v772
  %v2315 = vpop.f32.mrf.mxu0
  %v2316 = vadd.f32 0.0, %v2315
  %v2317 = vpop.f32.mrf.mxu0
  %v2318 = vpop.f32.mrf.mxu0
  %v2319 = vadd.f32 0.0, %v2318
  %v2320 = vpop.f32.mrf.mxu0
  %2321 = vmatprep.mubr.bf16.mxu0 0
  %2322 = vmatmul.mubr.bf16.gmra.mxu0 %v773
  %v2323 = vpop.f32.mrf.mxu0
  %v2324 = vadd.f32 0.0, %v2323
  %v2325 = vpop.f32.mrf.mxu0
  %v2326 = vpop.f32.mrf.mxu0
  %v2327 = vadd.f32 0.0, %v2326
  %v2328 = vpop.f32.mrf.mxu0
  %2329 = vmatprep.mubr.bf16.mxu0 0
  %2330 = vmatmul.mubr.bf16.gmra.mxu0 %v774
  %v2331 = vpop.f32.mrf.mxu0
  %v2332 = vadd.f32 0.0, %v2331
  %v2333 = vpop.f32.mrf.mxu0
  %v2334 = vpop.f32.mrf.mxu0
  %v2335 = vadd.f32 0.0, %v2334
  %v2336 = vpop.f32.mrf.mxu0
  %2337 = vmatprep.mubr.bf16.mxu0 0
  %2338 = vmatmul.mubr.bf16.gmra.mxu0 %v757
  %v2339 = vpop.f32.mrf.mxu0
  %v2340 = vadd.f32 0.0, %v2339
  %v2341 = vpop.f32.mrf.mxu0
  %v2342 = vpop.f32.mrf.mxu0
  %v2343 = vadd.f32 0.0, %v2342
  %v2344 = vpop.f32.mrf.mxu0
  %2345 = vdwg.mxu0
  %v2346 = vadd.f32 %v2068, %v2204
  %v2347 = vadd.f32 %v2069, %v2207
  %v2348 = vadd.f32 %v2070, %v2212
  %v2349 = vadd.f32 %v2071, %v2215
  %v2350 = vadd.f32 %v2072, %v2220
  %v2351 = vadd.f32 %v2073, %v2223
  %v2352 = vadd.f32 %v2074, %v2228
  %v2353 = vadd.f32 %v2075, %v2231
  %v2354 = vadd.f32 %v2076, %v2236
  %v2355 = vadd.f32 %v2077, %v2239
  %v2356 = vadd.f32 %v2078, %v2244
  %v2357 = vadd.f32 %v2079, %v2247
  %v2358 = vadd.f32 %v2080, %v2252
  %v2359 = vadd.f32 %v2081, %v2255
  %v2360 = vadd.f32 %v2082, %v2260
  %v2361 = vadd.f32 %v2083, %v2263
  %v2362 = vadd.f32 %v2084, %v2268
  %v2363 = vadd.f32 %v2085, %v2271
  %v2364 = vadd.f32 %v2086, %v2276
  %v2365 = vadd.f32 %v2087, %v2279
  %v2366 = vadd.f32 %v2088, %v2284
  %v2367 = vadd.f32 %v2089, %v2287
  %v2368 = vadd.f32 %v2090, %v2292
  %v2369 = vadd.f32 %v2091, %v2295
  %v2370 = vadd.f32 %v2092, %v2300
  %v2371 = vadd.f32 %v2093, %v2303
  %v2372 = vadd.f32 %v2094, %v2308
  %v2373 = vadd.f32 %v2095, %v2311
  %v2374 = vadd.f32 %v2096, %v2316
  %v2375 = vadd.f32 %v2097, %v2319
  %v2376 = vadd.f32 %v2098, %v2324
  %v2377 = vadd.f32 %v2099, %v2327
  %v2378 = vadd.f32 %v2100, %v2332
  %v2379 = vadd.f32 %v2101, %v2335
  %v2380 = vadd.f32 %v2102, %v2340
  %v2381 = vadd.f32 %v2103, %v2343
  %v2382 = vpack.c.bf16 %v1804, %v1805
  %v2383 = vpack.c.bf16 %v1802, %v1803
  %v2384 = vpack.c.bf16 %v1800, %v1801
  %v2385 = vpack.c.bf16 %v1798, %v1799
  %v2386 = vpack.c.bf16 %v1796, %v1797
  %v2387 = vpack.c.bf16 %v1794, %v1795
  %v2388 = vpack.c.bf16 %v1792, %v1793
  %v2389 = vpack.c.bf16 %v1790, %v1791
  %v2390 = vpack.c.bf16 %v1788, %v1789
  %v2391 = vpack.c.bf16 %v1786, %v1787
  %v2392 = vpack.c.bf16 %v1784, %v1785
  %v2393 = vpack.c.bf16 %v1782, %v1783
  %v2394 = vpack.c.bf16 %v1780, %v1781
  %v2395 = vpack.c.bf16 %v1778, %v1779
  %v2396 = vpack.c.bf16 %v1776, %v1777
  %v2397 = vpack.c.bf16 %v1774, %v1775
  %v2398 = vpack.c.bf16 %v1772, %v1773
  %v2399 = vpack.c.bf16 %v1806, %v1807
  %s2400 = scalar_lea.vmem %s1, 448
  %v2401 = vld [vmem:[%s2400] sm:$0xf]
  %v2402 = vld [vmem:[%s2400 + $0x4] sm:$0xf]
  %v2403 = vld [vmem:[%s2400 + $0x8] sm:$0xf]
  %v2404 = vld [vmem:[%s2400 + $0xc] sm:$0xf]
  %v2405 = vld [vmem:[%s2400 + $0x10] sm:$0xf]
  %v2406 = vld [vmem:[%s2400 + $0x14] sm:$0xf]
  %v2407 = vld [vmem:[%s2400 + $0x18] sm:$0xf]
  %v2408 = vld [vmem:[%s2400 + $0x1c] sm:$0xf]
  %v2409 = vld [vmem:[%s2400 + $0x20] sm:$0xf]
  %v2410 = vld [vmem:[%s2400 + $0x24] sm:$0xf]
  %v2411 = vld [vmem:[%s2400 + $0x28] sm:$0xf]
  %v2412 = vld [vmem:[%s2400 + $0x2c] sm:$0xf]
  %v2413 = vld [vmem:[%s2400 + $0x30] sm:$0xf]
  %v2414 = vld [vmem:[%s2400 + $0x34] sm:$0xf]
  %v2415 = vld [vmem:[%s2400 + $0x38] sm:$0xf]
  %v2416 = vld [vmem:[%s2400 + $0x3c] sm:$0xf]
  %v2433 = vunpack.c.l.b16 %v2401
  %v2434 = vunpack.c.l.b16 %v2402
  %v2435 = vunpack.c.l.b16 %v2403
  %v2436 = vunpack.c.l.b16 %v2404
  %v2437 = vunpack.c.l.b16 %v2405
  %v2438 = vunpack.c.l.b16 %v2406
  %v2439 = vunpack.c.l.b16 %v2407
  %v2440 = vunpack.c.l.b16 %v2408
  %v2441 = vunpack.c.l.b16 %v2409
  %v2442 = vunpack.c.l.b16 %v2410
  %v2443 = vunpack.c.l.b16 %v2411
  %v2444 = vunpack.c.l.b16 %v2412
  %v2445 = vunpack.c.l.b16 %v2413
  %v2446 = vunpack.c.l.b16 %v2414
  %v2447 = vunpack.c.l.b16 %v2415
  %v2448 = vunpack.c.l.b16 %v2416
  %v2449 = vpack.c.b16 %v2434, %v2433
  %v2450 = vpack.c.b16 %v2436, %v2435
  %v2451 = vpack.c.b16 %v2438, %v2437
  %v2452 = vpack.c.b16 %v2440, %v2439
  %v2453 = vpack.c.b16 %v2442, %v2441
  %v2454 = vpack.c.b16 %v2444, %v2443
  %v2455 = vpack.c.b16 %v2446, %v2445
  %v2456 = vpack.c.b16 %v2448, %v2447
  %2465 = vmatprep.subr.bf16.mxu0 0
  %2466 = vmatpush1.bf16.msra.mxu0 %v2456
  %2467 = vmatprep.subr.bf16.mxu0 0
  %2468 = vmatpush1.bf16.msra.mxu0 %v2455
  %2469 = vmatprep.subr.bf16.mxu0 0
  %2470 = vmatpush1.bf16.msra.mxu0 %v2454
  %2471 = vmatprep.subr.bf16.mxu0 0
  %2472 = vmatpush1.bf16.msra.mxu0 %v2453
  %2473 = vmatprep.subr.bf16.mxu0 0
  %2474 = vmatpush1.bf16.msra.mxu0 %v2452
  %2475 = vmatprep.subr.bf16.mxu0 0
  %2476 = vmatpush1.bf16.msra.mxu0 %v2451
  %2477 = vmatprep.subr.bf16.mxu0 0
  %2478 = vmatpush1.bf16.msra.mxu0 %v2450
  %2479 = vmatprep.subr.bf16.mxu0 0
  %2480 = vmatpush1.bf16.msra.mxu0 %v2449
  %2481 = vmatprep.subr.bf16.mxu0 0
  %2482 = vmatpush2.bf16.msra.mxu0 0
  %2483 = vmatprep.subr.bf16.mxu0 0
  %2484 = vmatpush2.bf16.msra.mxu0 0
  %2485 = vmatprep.subr.bf16.mxu0 0
  %2486 = vmatpush2.bf16.msra.mxu0 0
  %2487 = vmatprep.subr.bf16.mxu0 0
  %2488 = vmatpush2.bf16.msra.mxu0 0
  %2489 = vmatprep.subr.bf16.mxu0 0
  %2490 = vmatpush2.bf16.msra.mxu0 0
  %2491 = vmatprep.subr.bf16.mxu0 0
  %2492 = vmatpush2.bf16.msra.mxu0 0
  %2493 = vmatprep.subr.bf16.mxu0 0
  %2494 = vmatpush2.bf16.msra.mxu0 0
  %2495 = vmatprep.subr.bf16.mxu0 0
  %2496 = vmatpush2.bf16.msra.mxu0 0
  %2497 = vmatprep.mubr.bf16.mxu0 0
  %2498 = vmatmul.mubr.bf16.gmra.mxu0 %v2382
  %v2499 = vpop.f32.mrf.mxu0
  %v2500 = vadd.f32 0.0, %v2499
  %v2501 = vpop.f32.mrf.mxu0
  %v2502 = vpop.f32.mrf.mxu0
  %v2503 = vadd.f32 0.0, %v2502
  %v2504 = vpop.f32.mrf.mxu0
  %2505 = vmatprep.mubr.bf16.mxu0 0
  %2506 = vmatmul.mubr.bf16.gmra.mxu0 %v2383
  %v2507 = vpop.f32.mrf.mxu0
  %v2508 = vadd.f32 0.0, %v2507
  %v2509 = vpop.f32.mrf.mxu0
  %v2510 = vpop.f32.mrf.mxu0
  %v2511 = vadd.f32 0.0, %v2510
  %v2512 = vpop.f32.mrf.mxu0
  %2513 = vmatprep.mubr.bf16.mxu0 0
  %2514 = vmatmul.mubr.bf16.gmra.mxu0 %v2384
  %v2515 = vpop.f32.mrf.mxu0
  %v2516 = vadd.f32 0.0, %v2515
  %v2517 = vpop.f32.mrf.mxu0
  %v2518 = vpop.f32.mrf.mxu0
  %v2519 = vadd.f32 0.0, %v2518
  %v2520 = vpop.f32.mrf.mxu0
  %2521 = vmatprep.mubr.bf16.mxu0 0
  %2522 = vmatmul.mubr.bf16.gmra.mxu0 %v2385
  %v2523 = vpop.f32.mrf.mxu0
  %v2524 = vadd.f32 0.0, %v2523
  %v2525 = vpop.f32.mrf.mxu0
  %v2526 = vpop.f32.mrf.mxu0
  %v2527 = vadd.f32 0.0, %v2526
  %v2528 = vpop.f32.mrf.mxu0
  %2529 = vmatprep.mubr.bf16.mxu0 0
  %2530 = vmatmul.mubr.bf16.gmra.mxu0 %v2386
  %v2531 = vpop.f32.mrf.mxu0
  %v2532 = vadd.f32 0.0, %v2531
  %v2533 = vpop.f32.mrf.mxu0
  %v2534 = vpop.f32.mrf.mxu0
  %v2535 = vadd.f32 0.0, %v2534
  %v2536 = vpop.f32.mrf.mxu0
  %2537 = vmatprep.mubr.bf16.mxu0 0
  %2538 = vmatmul.mubr.bf16.gmra.mxu0 %v2387
  %v2539 = vpop.f32.mrf.mxu0
  %v2540 = vadd.f32 0.0, %v2539
  %v2541 = vpop.f32.mrf.mxu0
  %v2542 = vpop.f32.mrf.mxu0
  %v2543 = vadd.f32 0.0, %v2542
  %v2544 = vpop.f32.mrf.mxu0
  %2545 = vmatprep.mubr.bf16.mxu0 0
  %2546 = vmatmul.mubr.bf16.gmra.mxu0 %v2388
  %v2547 = vpop.f32.mrf.mxu0
  %v2548 = vadd.f32 0.0, %v2547
  %v2549 = vpop.f32.mrf.mxu0
  %v2550 = vpop.f32.mrf.mxu0
  %v2551 = vadd.f32 0.0, %v2550
  %v2552 = vpop.f32.mrf.mxu0
  %2553 = vmatprep.mubr.bf16.mxu0 0
  %2554 = vmatmul.mubr.bf16.gmra.mxu0 %v2389
  %v2555 = vpop.f32.mrf.mxu0
  %v2556 = vadd.f32 0.0, %v2555
  %v2557 = vpop.f32.mrf.mxu0
  %v2558 = vpop.f32.mrf.mxu0
  %v2559 = vadd.f32 0.0, %v2558
  %v2560 = vpop.f32.mrf.mxu0
  %2561 = vmatprep.mubr.bf16.mxu0 0
  %2562 = vmatmul.mubr.bf16.gmra.mxu0 %v2390
  %v2563 = vpop.f32.mrf.mxu0
  %v2564 = vadd.f32 0.0, %v2563
  %v2565 = vpop.f32.mrf.mxu0
  %v2566 = vpop.f32.mrf.mxu0
  %v2567 = vadd.f32 0.0, %v2566
  %v2568 = vpop.f32.mrf.mxu0
  %2569 = vmatprep.mubr.bf16.mxu0 0
  %2570 = vmatmul.mubr.bf16.gmra.mxu0 %v2391
  %v2571 = vpop.f32.mrf.mxu0
  %v2572 = vadd.f32 0.0, %v2571
  %v2573 = vpop.f32.mrf.mxu0
  %v2574 = vpop.f32.mrf.mxu0
  %v2575 = vadd.f32 0.0, %v2574
  %v2576 = vpop.f32.mrf.mxu0
  %2577 = vmatprep.mubr.bf16.mxu0 0
  %2578 = vmatmul.mubr.bf16.gmra.mxu0 %v2392
  %v2579 = vpop.f32.mrf.mxu0
  %v2580 = vadd.f32 0.0, %v2579
  %v2581 = vpop.f32.mrf.mxu0
  %v2582 = vpop.f32.mrf.mxu0
  %v2583 = vadd.f32 0.0, %v2582
  %v2584 = vpop.f32.mrf.mxu0
  %2585 = vmatprep.mubr.bf16.mxu0 0
  %2586 = vmatmul.mubr.bf16.gmra.mxu0 %v2393
  %v2587 = vpop.f32.mrf.mxu0
  %v2588 = vadd.f32 0.0, %v2587
  %v2589 = vpop.f32.mrf.mxu0
  %v2590 = vpop.f32.mrf.mxu0
  %v2591 = vadd.f32 0.0, %v2590
  %v2592 = vpop.f32.mrf.mxu0
  %2593 = vmatprep.mubr.bf16.mxu0 0
  %2594 = vmatmul.mubr.bf16.gmra.mxu0 %v2394
  %v2595 = vpop.f32.mrf.mxu0
  %v2596 = vadd.f32 0.0, %v2595
  %v2597 = vpop.f32.mrf.mxu0
  %v2598 = vpop.f32.mrf.mxu0
  %v2599 = vadd.f32 0.0, %v2598
  %v2600 = vpop.f32.mrf.mxu0
  %2601 = vmatprep.mubr.bf16.mxu0 0
  %2602 = vmatmul.mubr.bf16.gmra.mxu0 %v2395
  %v2603 = vpop.f32.mrf.mxu0
  %v2604 = vadd.f32 0.0, %v2603
  %v2605 = vpop.f32.mrf.mxu0
  %v2606 = vpop.f32.mrf.mxu0
  %v2607 = vadd.f32 0.0, %v2606
  %v2608 = vpop.f32.mrf.mxu0
  %2609 = vmatprep.mubr.bf16.mxu0 0
  %2610 = vmatmul.mubr.bf16.gmra.mxu0 %v2396
  %v2611 = vpop.f32.mrf.mxu0
  %v2612 = vadd.f32 0.0, %v2611
  %v2613 = vpop.f32.mrf.mxu0
  %v2614 = vpop.f32.mrf.mxu0
  %v2615 = vadd.f32 0.0, %v2614
  %v2616 = vpop.f32.mrf.mxu0
  %2617 = vmatprep.mubr.bf16.mxu0 0
  %2618 = vmatmul.mubr.bf16.gmra.mxu0 %v2397
  %v2619 = vpop.f32.mrf.mxu0
  %v2620 = vadd.f32 0.0, %v2619
  %v2621 = vpop.f32.mrf.mxu0
  %v2622 = vpop.f32.mrf.mxu0
  %v2623 = vadd.f32 0.0, %v2622
  %v2624 = vpop.f32.mrf.mxu0
  %2625 = vmatprep.mubr.bf16.mxu0 0
  %2626 = vmatmul.mubr.bf16.gmra.mxu0 %v2398
  %v2627 = vpop.f32.mrf.mxu0
  %v2628 = vadd.f32 0.0, %v2627
  %v2629 = vpop.f32.mrf.mxu0
  %v2630 = vpop.f32.mrf.mxu0
  %v2631 = vadd.f32 0.0, %v2630
  %v2632 = vpop.f32.mrf.mxu0
  %2633 = vmatprep.mubr.bf16.mxu0 0
  %2634 = vmatmul.mubr.bf16.gmra.mxu0 %v2399
  %v2635 = vpop.f32.mrf.mxu0
  %v2636 = vadd.f32 0.0, %v2635
  %v2637 = vpop.f32.mrf.mxu0
  %v2638 = vpop.f32.mrf.mxu0
  %v2639 = vadd.f32 0.0, %v2638
  %v2640 = vpop.f32.mrf.mxu0
  %2641 = vdwg.mxu0
  %v2642 = vadd.f32 %v2346, %v2500
  %v2643 = vadd.f32 %v2347, %v2503
  %v2644 = vadd.f32 %v2348, %v2508
  %v2645 = vadd.f32 %v2349, %v2511
  %v2646 = vadd.f32 %v2350, %v2516
  %v2647 = vadd.f32 %v2351, %v2519
  %v2648 = vadd.f32 %v2352, %v2524
  %v2649 = vadd.f32 %v2353, %v2527
  %v2650 = vadd.f32 %v2354, %v2532
  %v2651 = vadd.f32 %v2355, %v2535
  %v2652 = vadd.f32 %v2356, %v2540
  %v2653 = vadd.f32 %v2357, %v2543
  %v2654 = vadd.f32 %v2358, %v2548
  %v2655 = vadd.f32 %v2359, %v2551
  %v2656 = vadd.f32 %v2360, %v2556
  %v2657 = vadd.f32 %v2361, %v2559
  %v2658 = vadd.f32 %v2362, %v2564
  %v2659 = vadd.f32 %v2363, %v2567
  %v2660 = vadd.f32 %v2364, %v2572
  %v2661 = vadd.f32 %v2365, %v2575
  %v2662 = vadd.f32 %v2366, %v2580
  %v2663 = vadd.f32 %v2367, %v2583
  %v2664 = vadd.f32 %v2368, %v2588
  %v2665 = vadd.f32 %v2369, %v2591
  %v2666 = vadd.f32 %v2370, %v2596
  %v2667 = vadd.f32 %v2371, %v2599
  %v2668 = vadd.f32 %v2372, %v2604
  %v2669 = vadd.f32 %v2373, %v2607
  %v2670 = vadd.f32 %v2374, %v2612
  %v2671 = vadd.f32 %v2375, %v2615
  %v2672 = vadd.f32 %v2376, %v2620
  %v2673 = vadd.f32 %v2377, %v2623
  %v2674 = vadd.f32 %v2378, %v2628
  %v2675 = vadd.f32 %v2379, %v2631
  %v2676 = vadd.f32 %v2380, %v2636
  %v2677 = vadd.f32 %v2381, %v2639
  %v2678 = vrot.slane %v54, 2
  %v2679 = vrot.slane %v55, 2
  %v2680 = vrot.slane %v56, 2
  %v2681 = vrot.slane %v57, 2
  %v2682 = vrot.slane %v58, 2
  %v2683 = vrot.slane %v59, 2
  %v2684 = vrot.slane %v60, 2
  %v2685 = vrot.slane %v61, 2
  %v2686 = vrot.slane %v62, 2
  %v2687 = vrot.slane %v63, 2
  %v2688 = vrot.slane %v64, 2
  %v2689 = vrot.slane %v65, 2
  %v2690 = vrot.slane %v66, 2
  %v2691 = vrot.slane %v67, 2
  %v2692 = vrot.slane %v68, 2
  %v2693 = vrot.slane %v69, 2
  %v2694 = vrot.slane %v70, 2
  %v2695 = vrot.slane %v71, 2
  %v2696 = vrot.slane %v72, 2
  %v2697 = vrot.slane %v73, 2
  %v2698 = vrot.slane %v74, 2
  %v2699 = vrot.slane %v75, 2
  %v2700 = vrot.slane %v76, 2
  %v2701 = vrot.slane %v77, 2
  %v2702 = vrot.slane %v78, 2
  %v2703 = vrot.slane %v79, 2
  %v2704 = vrot.slane %v80, 2
  %v2705 = vrot.slane %v81, 2
  %v2706 = vrot.slane %v82, 2
  %v2707 = vrot.slane %v83, 2
  %v2708 = vrot.slane %v84, 2
  %v2709 = vrot.slane %v85, 2
  %v2710 = vrot.slane %v86, 2
  %v2711 = vrot.slane %v87, 2
  %v2712 = vrot.slane %v88, 2
  %v2713 = vrot.slane %v89, 2
  %vm2714 = vcmp.lt.s32.totalorder %v127, 6
  %v2715 = vsel %vm2714, %v2712, %v2713
  %v2716 = vsel %vm2714, %v2711, %v2712
  %v2717 = vsel %vm2714, %v2710, %v2711
  %v2718 = vsel %vm2714, %v2709, %v2710
  %v2719 = vsel %vm2714, %v2708, %v2709
  %v2720 = vsel %vm2714, %v2707, %v2708
  %v2721 = vsel %vm2714, %v2706, %v2707
  %v2722 = vsel %vm2714, %v2705, %v2706
  %v2723 = vsel %vm2714, %v2704, %v2705
  %v2724 = vsel %vm2714, %v2703, %v2704
  %v2725 = vsel %vm2714, %v2702, %v2703
  %v2726 = vsel %vm2714, %v2701, %v2702
  %v2727 = vsel %vm2714, %v2700, %v2701
  %v2728 = vsel %vm2714, %v2699, %v2700
  %v2729 = vsel %vm2714, %v2698, %v2699
  %v2730 = vsel %vm2714, %v2697, %v2698
  %v2731 = vsel %vm2714, %v2696, %v2697
  %v2732 = vsel %vm2714, %v2695, %v2696
  %v2733 = vsel %vm2714, %v2694, %v2695
  %v2734 = vsel %vm2714, %v2693, %v2694
  %v2735 = vsel %vm2714, %v2692, %v2693
  %v2736 = vsel %vm2714, %v2691, %v2692
  %v2737 = vsel %vm2714, %v2690, %v2691
  %v2738 = vsel %vm2714, %v2689, %v2690
  %v2739 = vsel %vm2714, %v2688, %v2689
  %v2740 = vsel %vm2714, %v2687, %v2688
  %v2741 = vsel %vm2714, %v2686, %v2687
  %v2742 = vsel %vm2714, %v2685, %v2686
  %v2743 = vsel %vm2714, %v2684, %v2685
  %v2744 = vsel %vm2714, %v2683, %v2684
  %v2745 = vsel %vm2714, %v2682, %v2683
  %v2746 = vsel %vm2714, %v2681, %v2682
  %v2747 = vsel %vm2714, %v2680, %v2681
  %v2748 = vsel %vm2714, %v2679, %v2680
  %v2749 = vsel %vm2714, %v2678, %v2679
  %v2750 = vsel %vm2714, %v2713, %v2678
  %v2751 = vpack.c.bf16 %v2747, %v2748
  %v2752 = vpack.c.bf16 %v2745, %v2746
  %v2753 = vpack.c.bf16 %v2743, %v2744
  %v2754 = vpack.c.bf16 %v2741, %v2742
  %v2755 = vpack.c.bf16 %v2739, %v2740
  %v2756 = vpack.c.bf16 %v2737, %v2738
  %v2757 = vpack.c.bf16 %v2735, %v2736
  %v2758 = vpack.c.bf16 %v2733, %v2734
  %v2759 = vpack.c.bf16 %v2731, %v2732
  %v2760 = vpack.c.bf16 %v2729, %v2730
  %v2761 = vpack.c.bf16 %v2727, %v2728
  %v2762 = vpack.c.bf16 %v2725, %v2726
  %v2763 = vpack.c.bf16 %v2723, %v2724
  %v2764 = vpack.c.bf16 %v2721, %v2722
  %v2765 = vpack.c.bf16 %v2719, %v2720
  %v2766 = vpack.c.bf16 %v2717, %v2718
  %v2767 = vpack.c.bf16 %v2715, %v2716
  %v2768 = vpack.c.bf16 %v2749, %v2750
  %s2769 = scalar_lea.vmem %s1, 512
  %v2770 = vld [vmem:[%s2769] sm:$0xf]
  %v2771 = vld [vmem:[%s2769 + $0x4] sm:$0xf]
  %v2772 = vld [vmem:[%s2769 + $0x8] sm:$0xf]
  %v2773 = vld [vmem:[%s2769 + $0xc] sm:$0xf]
  %v2774 = vld [vmem:[%s2769 + $0x10] sm:$0xf]
  %v2775 = vld [vmem:[%s2769 + $0x14] sm:$0xf]
  %v2776 = vld [vmem:[%s2769 + $0x18] sm:$0xf]
  %v2777 = vld [vmem:[%s2769 + $0x1c] sm:$0xf]
  %v2778 = vld [vmem:[%s2769 + $0x20] sm:$0xf]
  %v2779 = vld [vmem:[%s2769 + $0x24] sm:$0xf]
  %v2780 = vld [vmem:[%s2769 + $0x28] sm:$0xf]
  %v2781 = vld [vmem:[%s2769 + $0x2c] sm:$0xf]
  %v2782 = vld [vmem:[%s2769 + $0x30] sm:$0xf]
  %v2783 = vld [vmem:[%s2769 + $0x34] sm:$0xf]
  %v2784 = vld [vmem:[%s2769 + $0x38] sm:$0xf]
  %v2785 = vld [vmem:[%s2769 + $0x3c] sm:$0xf]
  %v2802 = vunpack.c.l.b16 %v2770
  %v2803 = vunpack.c.l.b16 %v2771
  %v2804 = vunpack.c.l.b16 %v2772
  %v2805 = vunpack.c.l.b16 %v2773
  %v2806 = vunpack.c.l.b16 %v2774
  %v2807 = vunpack.c.l.b16 %v2775
  %v2808 = vunpack.c.l.b16 %v2776
  %v2809 = vunpack.c.l.b16 %v2777
  %v2810 = vunpack.c.l.b16 %v2778
  %v2811 = vunpack.c.l.b16 %v2779
  %v2812 = vunpack.c.l.b16 %v2780
  %v2813 = vunpack.c.l.b16 %v2781
  %v2814 = vunpack.c.l.b16 %v2782
  %v2815 = vunpack.c.l.b16 %v2783
  %v2816 = vunpack.c.l.b16 %v2784
  %v2817 = vunpack.c.l.b16 %v2785
  %v2818 = vpack.c.b16 %v2803, %v2802
  %v2819 = vpack.c.b16 %v2805, %v2804
  %v2820 = vpack.c.b16 %v2807, %v2806
  %v2821 = vpack.c.b16 %v2809, %v2808
  %v2822 = vpack.c.b16 %v2811, %v2810
  %v2823 = vpack.c.b16 %v2813, %v2812
  %v2824 = vpack.c.b16 %v2815, %v2814
  %v2825 = vpack.c.b16 %v2817, %v2816
  %2834 = vmatprep.subr.bf16.mxu0 0
  %2835 = vmatpush1.bf16.msra.mxu0 %v2825
  %2836 = vmatprep.subr.bf16.mxu0 0
  %2837 = vmatpush1.bf16.msra.mxu0 %v2824
  %2838 = vmatprep.subr.bf16.mxu0 0
  %2839 = vmatpush1.bf16.msra.mxu0 %v2823
  %2840 = vmatprep.subr.bf16.mxu0 0
  %2841 = vmatpush1.bf16.msra.mxu0 %v2822
  %2842 = vmatprep.subr.bf16.mxu0 0
  %2843 = vmatpush1.bf16.msra.mxu0 %v2821
  %2844 = vmatprep.subr.bf16.mxu0 0
  %2845 = vmatpush1.bf16.msra.mxu0 %v2820
  %2846 = vmatprep.subr.bf16.mxu0 0
  %2847 = vmatpush1.bf16.msra.mxu0 %v2819
  %2848 = vmatprep.subr.bf16.mxu0 0
  %2849 = vmatpush1.bf16.msra.mxu0 %v2818
  %2850 = vmatprep.subr.bf16.mxu0 0
  %2851 = vmatpush2.bf16.msra.mxu0 0
  %2852 = vmatprep.subr.bf16.mxu0 0
  %2853 = vmatpush2.bf16.msra.mxu0 0
  %2854 = vmatprep.subr.bf16.mxu0 0
  %2855 = vmatpush2.bf16.msra.mxu0 0
  %2856 = vmatprep.subr.bf16.mxu0 0
  %2857 = vmatpush2.bf16.msra.mxu0 0
  %2858 = vmatprep.subr.bf16.mxu0 0
  %2859 = vmatpush2.bf16.msra.mxu0 0
  %2860 = vmatprep.subr.bf16.mxu0 0
  %2861 = vmatpush2.bf16.msra.mxu0 0
  %2862 = vmatprep.subr.bf16.mxu0 0
  %2863 = vmatpush2.bf16.msra.mxu0 0
  %2864 = vmatprep.subr.bf16.mxu0 0
  %2865 = vmatpush2.bf16.msra.mxu0 0
  %2866 = vmatprep.mubr.bf16.mxu0 0
  %2867 = vmatmul.mubr.bf16.gmra.mxu0 %v2751
  %v2868 = vpop.f32.mrf.mxu0
  %v2869 = vadd.f32 0.0, %v2868
  %v2870 = vpop.f32.mrf.mxu0
  %v2871 = vpop.f32.mrf.mxu0
  %v2872 = vadd.f32 0.0, %v2871
  %v2873 = vpop.f32.mrf.mxu0
  %2874 = vmatprep.mubr.bf16.mxu0 0
  %2875 = vmatmul.mubr.bf16.gmra.mxu0 %v2752
  %v2876 = vpop.f32.mrf.mxu0
  %v2877 = vadd.f32 0.0, %v2876
  %v2878 = vpop.f32.mrf.mxu0
  %v2879 = vpop.f32.mrf.mxu0
  %v2880 = vadd.f32 0.0, %v2879
  %v2881 = vpop.f32.mrf.mxu0
  %2882 = vmatprep.mubr.bf16.mxu0 0
  %2883 = vmatmul.mubr.bf16.gmra.mxu0 %v2753
  %v2884 = vpop.f32.mrf.mxu0
  %v2885 = vadd.f32 0.0, %v2884
  %v2886 = vpop.f32.mrf.mxu0
  %v2887 = vpop.f32.mrf.mxu0
  %v2888 = vadd.f32 0.0, %v2887
  %v2889 = vpop.f32.mrf.mxu0
  %2890 = vmatprep.mubr.bf16.mxu0 0
  %2891 = vmatmul.mubr.bf16.gmra.mxu0 %v2754
  %v2892 = vpop.f32.mrf.mxu0
  %v2893 = vadd.f32 0.0, %v2892
  %v2894 = vpop.f32.mrf.mxu0
  %v2895 = vpop.f32.mrf.mxu0
  %v2896 = vadd.f32 0.0, %v2895
  %v2897 = vpop.f32.mrf.mxu0
  %2898 = vmatprep.mubr.bf16.mxu0 0
  %2899 = vmatmul.mubr.bf16.gmra.mxu0 %v2755
  %v2900 = vpop.f32.mrf.mxu0
  %v2901 = vadd.f32 0.0, %v2900
  %v2902 = vpop.f32.mrf.mxu0
  %v2903 = vpop.f32.mrf.mxu0
  %v2904 = vadd.f32 0.0, %v2903
  %v2905 = vpop.f32.mrf.mxu0
  %2906 = vmatprep.mubr.bf16.mxu0 0
  %2907 = vmatmul.mubr.bf16.gmra.mxu0 %v2756
  %v2908 = vpop.f32.mrf.mxu0
  %v2909 = vadd.f32 0.0, %v2908
  %v2910 = vpop.f32.mrf.mxu0
  %v2911 = vpop.f32.mrf.mxu0
  %v2912 = vadd.f32 0.0, %v2911
  %v2913 = vpop.f32.mrf.mxu0
  %2914 = vmatprep.mubr.bf16.mxu0 0
  %2915 = vmatmul.mubr.bf16.gmra.mxu0 %v2757
  %v2916 = vpop.f32.mrf.mxu0
  %v2917 = vadd.f32 0.0, %v2916
  %v2918 = vpop.f32.mrf.mxu0
  %v2919 = vpop.f32.mrf.mxu0
  %v2920 = vadd.f32 0.0, %v2919
  %v2921 = vpop.f32.mrf.mxu0
  %2922 = vmatprep.mubr.bf16.mxu0 0
  %2923 = vmatmul.mubr.bf16.gmra.mxu0 %v2758
  %v2924 = vpop.f32.mrf.mxu0
  %v2925 = vadd.f32 0.0, %v2924
  %v2926 = vpop.f32.mrf.mxu0
  %v2927 = vpop.f32.mrf.mxu0
  %v2928 = vadd.f32 0.0, %v2927
  %v2929 = vpop.f32.mrf.mxu0
  %2930 = vmatprep.mubr.bf16.mxu0 0
  %2931 = vmatmul.mubr.bf16.gmra.mxu0 %v2759
  %v2932 = vpop.f32.mrf.mxu0
  %v2933 = vadd.f32 0.0, %v2932
  %v2934 = vpop.f32.mrf.mxu0
  %v2935 = vpop.f32.mrf.mxu0
  %v2936 = vadd.f32 0.0, %v2935
  %v2937 = vpop.f32.mrf.mxu0
  %2938 = vmatprep.mubr.bf16.mxu0 0
  %2939 = vmatmul.mubr.bf16.gmra.mxu0 %v2760
  %v2940 = vpop.f32.mrf.mxu0
  %v2941 = vadd.f32 0.0, %v2940
  %v2942 = vpop.f32.mrf.mxu0
  %v2943 = vpop.f32.mrf.mxu0
  %v2944 = vadd.f32 0.0, %v2943
  %v2945 = vpop.f32.mrf.mxu0
  %2946 = vmatprep.mubr.bf16.mxu0 0
  %2947 = vmatmul.mubr.bf16.gmra.mxu0 %v2761
  %v2948 = vpop.f32.mrf.mxu0
  %v2949 = vadd.f32 0.0, %v2948
  %v2950 = vpop.f32.mrf.mxu0
  %v2951 = vpop.f32.mrf.mxu0
  %v2952 = vadd.f32 0.0, %v2951
  %v2953 = vpop.f32.mrf.mxu0
  %2954 = vmatprep.mubr.bf16.mxu0 0
  %2955 = vmatmul.mubr.bf16.gmra.mxu0 %v2762
  %v2956 = vpop.f32.mrf.mxu0
  %v2957 = vadd.f32 0.0, %v2956
  %v2958 = vpop.f32.mrf.mxu0
  %v2959 = vpop.f32.mrf.mxu0
  %v2960 = vadd.f32 0.0, %v2959
  %v2961 = vpop.f32.mrf.mxu0
  %2962 = vmatprep.mubr.bf16.mxu0 0
  %2963 = vmatmul.mubr.bf16.gmra.mxu0 %v2763
  %v2964 = vpop.f32.mrf.mxu0
  %v2965 = vadd.f32 0.0, %v2964
  %v2966 = vpop.f32.mrf.mxu0
  %v2967 = vpop.f32.mrf.mxu0
  %v2968 = vadd.f32 0.0, %v2967
  %v2969 = vpop.f32.mrf.mxu0
  %2970 = vmatprep.mubr.bf16.mxu0 0
  %2971 = vmatmul.mubr.bf16.gmra.mxu0 %v2764
  %v2972 = vpop.f32.mrf.mxu0
  %v2973 = vadd.f32 0.0, %v2972
  %v2974 = vpop.f32.mrf.mxu0
  %v2975 = vpop.f32.mrf.mxu0
  %v2976 = vadd.f32 0.0, %v2975
  %v2977 = vpop.f32.mrf.mxu0
  %2978 = vmatprep.mubr.bf16.mxu0 0
  %2979 = vmatmul.mubr.bf16.gmra.mxu0 %v2765
  %v2980 = vpop.f32.mrf.mxu0
  %v2981 = vadd.f32 0.0, %v2980
  %v2982 = vpop.f32.mrf.mxu0
  %v2983 = vpop.f32.mrf.mxu0
  %v2984 = vadd.f32 0.0, %v2983
  %v2985 = vpop.f32.mrf.mxu0
  %2986 = vmatprep.mubr.bf16.mxu0 0
  %2987 = vmatmul.mubr.bf16.gmra.mxu0 %v2766
  %v2988 = vpop.f32.mrf.mxu0
  %v2989 = vadd.f32 0.0, %v2988
  %v2990 = vpop.f32.mrf.mxu0
  %v2991 = vpop.f32.mrf.mxu0
  %v2992 = vadd.f32 0.0, %v2991
  %v2993 = vpop.f32.mrf.mxu0
  %2994 = vmatprep.mubr.bf16.mxu0 0
  %2995 = vmatmul.mubr.bf16.gmra.mxu0 %v2767
  %v2996 = vpop.f32.mrf.mxu0
  %v2997 = vadd.f32 0.0, %v2996
  %v2998 = vpop.f32.mrf.mxu0
  %v2999 = vpop.f32.mrf.mxu0
  %v3000 = vadd.f32 0.0, %v2999
  %v3001 = vpop.f32.mrf.mxu0
  %3002 = vmatprep.mubr.bf16.mxu0 0
  %3003 = vmatmul.mubr.bf16.gmra.mxu0 %v2768
  %v3004 = vpop.f32.mrf.mxu0
  %v3005 = vadd.f32 0.0, %v3004
  %v3006 = vpop.f32.mrf.mxu0
  %v3007 = vpop.f32.mrf.mxu0
  %v3008 = vadd.f32 0.0, %v3007
  %v3009 = vpop.f32.mrf.mxu0
  %3010 = vdwg.mxu0
  %v3011 = vadd.f32 %v2642, %v2869
  %v3012 = vadd.f32 %v2643, %v2872
  %v3013 = vadd.f32 %v2644, %v2877
  %v3014 = vadd.f32 %v2645, %v2880
  %v3015 = vadd.f32 %v2646, %v2885
  %v3016 = vadd.f32 %v2647, %v2888
  %v3017 = vadd.f32 %v2648, %v2893
  %v3018 = vadd.f32 %v2649, %v2896
  %v3019 = vadd.f32 %v2650, %v2901
  %v3020 = vadd.f32 %v2651, %v2904
  %v3021 = vadd.f32 %v2652, %v2909
  %v3022 = vadd.f32 %v2653, %v2912
  %v3023 = vadd.f32 %v2654, %v2917
  %v3024 = vadd.f32 %v2655, %v2920
  %v3025 = vadd.f32 %v2656, %v2925
  %v3026 = vadd.f32 %v2657, %v2928
  %v3027 = vadd.f32 %v2658, %v2933
  %v3028 = vadd.f32 %v2659, %v2936
  %v3029 = vadd.f32 %v2660, %v2941
  %v3030 = vadd.f32 %v2661, %v2944
  %v3031 = vadd.f32 %v2662, %v2949
  %v3032 = vadd.f32 %v2663, %v2952
  %v3033 = vadd.f32 %v2664, %v2957
  %v3034 = vadd.f32 %v2665, %v2960
  %v3035 = vadd.f32 %v2666, %v2965
  %v3036 = vadd.f32 %v2667, %v2968
  %v3037 = vadd.f32 %v2668, %v2973
  %v3038 = vadd.f32 %v2669, %v2976
  %v3039 = vadd.f32 %v2670, %v2981
  %v3040 = vadd.f32 %v2671, %v2984
  %v3041 = vadd.f32 %v2672, %v2989
  %v3042 = vadd.f32 %v2673, %v2992
  %v3043 = vadd.f32 %v2674, %v2997
  %v3044 = vadd.f32 %v2675, %v3000
  %v3045 = vadd.f32 %v2676, %v3005
  %v3046 = vadd.f32 %v2677, %v3008
  %v3047 = vld [vmem:[%s2] sm:$0x1]
  %v3049 = vlaneseq
  %v3050 = vshrl.u32 %v3049, 7
  %v3051 = vsub.s32 0, %v3050
  %v3052 = vrot.slane %v3047, %v3051
  %v3054 = vadd.f32 %v3011, %v3052
  %v3055 = vadd.f32 %v3012, %v3052
  %v3056 = vadd.f32 %v3013, %v3052
  %v3057 = vadd.f32 %v3014, %v3052
  %v3058 = vadd.f32 %v3015, %v3052
  %v3059 = vadd.f32 %v3016, %v3052
  %v3060 = vadd.f32 %v3017, %v3052
  %v3061 = vadd.f32 %v3018, %v3052
  %v3062 = vadd.f32 %v3019, %v3052
  %v3063 = vadd.f32 %v3020, %v3052
  %v3064 = vadd.f32 %v3021, %v3052
  %v3065 = vadd.f32 %v3022, %v3052
  %v3066 = vadd.f32 %v3023, %v3052
  %v3067 = vadd.f32 %v3024, %v3052
  %v3068 = vadd.f32 %v3025, %v3052
  %v3069 = vadd.f32 %v3026, %v3052
  %v3070 = vadd.f32 %v3027, %v3052
  %v3071 = vadd.f32 %v3028, %v3052
  %v3072 = vadd.f32 %v3029, %v3052
  %v3073 = vadd.f32 %v3030, %v3052
  %v3074 = vadd.f32 %v3031, %v3052
  %v3075 = vadd.f32 %v3032, %v3052
  %v3076 = vadd.f32 %v3033, %v3052
  %v3077 = vadd.f32 %v3034, %v3052
  %v3078 = vadd.f32 %v3035, %v3052
  %v3079 = vadd.f32 %v3036, %v3052
  %v3080 = vadd.f32 %v3037, %v3052
  %v3081 = vadd.f32 %v3038, %v3052
  %v3082 = vadd.f32 %v3039, %v3052
  %v3083 = vadd.f32 %v3040, %v3052
  %v3084 = vadd.f32 %v3041, %v3052
  %v3085 = vadd.f32 %v3042, %v3052
  %v3086 = vadd.f32 %v3043, %v3052
  %v3087 = vadd.f32 %v3044, %v3052
  %v3088 = vadd.f32 %v3045, %v3052
  %v3089 = vadd.f32 %v3046, %v3052
  %v3090 = vmax.f32 %v3054, 0.0
  %v3091 = vmax.f32 %v3055, 0.0
  %v3092 = vmax.f32 %v3056, 0.0
  %v3093 = vmax.f32 %v3057, 0.0
  %v3094 = vmax.f32 %v3058, 0.0
  %v3095 = vmax.f32 %v3059, 0.0
  %v3096 = vmax.f32 %v3060, 0.0
  %v3097 = vmax.f32 %v3061, 0.0
  %v3098 = vmax.f32 %v3062, 0.0
  %v3099 = vmax.f32 %v3063, 0.0
  %v3100 = vmax.f32 %v3064, 0.0
  %v3101 = vmax.f32 %v3065, 0.0
  %v3102 = vmax.f32 %v3066, 0.0
  %v3103 = vmax.f32 %v3067, 0.0
  %v3104 = vmax.f32 %v3068, 0.0
  %v3105 = vmax.f32 %v3069, 0.0
  %v3106 = vmax.f32 %v3070, 0.0
  %v3107 = vmax.f32 %v3071, 0.0
  %v3108 = vmax.f32 %v3072, 0.0
  %v3109 = vmax.f32 %v3073, 0.0
  %v3110 = vmax.f32 %v3074, 0.0
  %v3111 = vmax.f32 %v3075, 0.0
  %v3112 = vmax.f32 %v3076, 0.0
  %v3113 = vmax.f32 %v3077, 0.0
  %v3114 = vmax.f32 %v3078, 0.0
  %v3115 = vmax.f32 %v3079, 0.0
  %v3116 = vmax.f32 %v3080, 0.0
  %v3117 = vmax.f32 %v3081, 0.0
  %v3118 = vmax.f32 %v3082, 0.0
  %v3119 = vmax.f32 %v3083, 0.0
  %v3120 = vmax.f32 %v3084, 0.0
  %v3121 = vmax.f32 %v3085, 0.0
  %v3122 = vmax.f32 %v3086, 0.0
  %v3123 = vmax.f32 %v3087, 0.0
  %v3124 = vmax.f32 %v3088, 0.0
  %v3125 = vmax.f32 %v3089, 0.0
  %v3126 = vld [vmem:[%s3] sm:$0xff]
  %v3127 = vld [vmem:[%s3 + $0x8] sm:$0xff]
  %v3128 = vld [vmem:[%s3 + $0x10] sm:$0xff]
  %v3129 = vld [vmem:[%s3 + $0x18] sm:$0xff]
  %v3130 = vld [vmem:[%s3 + $0x20] sm:$0xff]
  %v3131 = vld [vmem:[%s3 + $0x28] sm:$0xff]
  %v3132 = vld [vmem:[%s3 + $0x30] sm:$0xff]
  %v3133 = vld [vmem:[%s3 + $0x38] sm:$0xff]
  %v3134 = vld [vmem:[%s3 + $0x40] sm:$0xff]
  %v3135 = vld [vmem:[%s3 + $0x48] sm:$0xff]
  %v3136 = vld [vmem:[%s3 + $0x50] sm:$0xff]
  %v3137 = vld [vmem:[%s3 + $0x58] sm:$0xff]
  %v3138 = vld [vmem:[%s3 + $0x60] sm:$0xff]
  %v3139 = vld [vmem:[%s3 + $0x68] sm:$0xff]
  %v3140 = vld [vmem:[%s3 + $0x70] sm:$0xff]
  %v3141 = vld [vmem:[%s3 + $0x78] sm:$0xff]
  %v3142 = vld [vmem:[%s3 + $0x80] sm:$0xff]
  %v3143 = vld [vmem:[%s3 + $0x88] sm:$0xff]
  %v3144 = vld [vmem:[%s3 + $0x90] sm:$0xff]
  %v3145 = vld [vmem:[%s3 + $0x98] sm:$0xff]
  %v3146 = vld [vmem:[%s3 + $0xa0] sm:$0xff]
  %v3147 = vld [vmem:[%s3 + $0xa8] sm:$0xff]
  %v3148 = vld [vmem:[%s3 + $0xb0] sm:$0xff]
  %v3149 = vld [vmem:[%s3 + $0xb8] sm:$0xff]
  %v3150 = vld [vmem:[%s3 + $0xc0] sm:$0xff]
  %v3151 = vld [vmem:[%s3 + $0xc8] sm:$0xff]
  %v3152 = vld [vmem:[%s3 + $0xd0] sm:$0xff]
  %v3153 = vld [vmem:[%s3 + $0xd8] sm:$0xff]
  %v3154 = vld [vmem:[%s3 + $0xe0] sm:$0xff]
  %v3155 = vld [vmem:[%s3 + $0xe8] sm:$0xff]
  %v3156 = vld [vmem:[%s3 + $0xf0] sm:$0xff]
  %v3157 = vld [vmem:[%s3 + $0xf8] sm:$0xff]
  %v3158 = vld [vmem:[%s3 + $0x100] sm:$0xff]
  %v3159 = vld [vmem:[%s3 + $0x108] sm:$0xff]
  %v3160 = vld [vmem:[%s3 + $0x110] sm:$0xff]
  %v3161 = vld [vmem:[%s3 + $0x118] sm:$0xff]
  %3163 = vset.pattern.permute.xlu0 0
  %3164 = vperm.xlu0 %3163, %v3126
  %v3165 = vpop.permute.xlu0 %3164
  %3168 = vset.pattern.permute.xlu0 0
  %3169 = vperm.xlu0 %3168, %v3127
  %v3170 = vpop.permute.xlu0 %3169
  %3173 = vset.pattern.permute.xlu0 0
  %3174 = vperm.xlu0 %3173, %v3128
  %v3175 = vpop.permute.xlu0 %3174
  %3178 = vset.pattern.permute.xlu0 0
  %3179 = vperm.xlu0 %3178, %v3129
  %v3180 = vpop.permute.xlu0 %3179
  %3183 = vset.pattern.permute.xlu0 0
  %3184 = vperm.xlu0 %3183, %v3130
  %v3185 = vpop.permute.xlu0 %3184
  %3188 = vset.pattern.permute.xlu0 0
  %3189 = vperm.xlu0 %3188, %v3131
  %v3190 = vpop.permute.xlu0 %3189
  %3193 = vset.pattern.permute.xlu0 0
  %3194 = vperm.xlu0 %3193, %v3132
  %v3195 = vpop.permute.xlu0 %3194
  %3198 = vset.pattern.permute.xlu0 0
  %3199 = vperm.xlu0 %3198, %v3133
  %v3200 = vpop.permute.xlu0 %3199
  %3203 = vset.pattern.permute.xlu0 0
  %3204 = vperm.xlu0 %3203, %v3134
  %v3205 = vpop.permute.xlu0 %3204
  %3208 = vset.pattern.permute.xlu0 0
  %3209 = vperm.xlu0 %3208, %v3135
  %v3210 = vpop.permute.xlu0 %3209
  %3213 = vset.pattern.permute.xlu0 0
  %3214 = vperm.xlu0 %3213, %v3136
  %v3215 = vpop.permute.xlu0 %3214
  %3218 = vset.pattern.permute.xlu0 0
  %3219 = vperm.xlu0 %3218, %v3137
  %v3220 = vpop.permute.xlu0 %3219
  %3223 = vset.pattern.permute.xlu0 0
  %3224 = vperm.xlu0 %3223, %v3138
  %v3225 = vpop.permute.xlu0 %3224
  %3228 = vset.pattern.permute.xlu0 0
  %3229 = vperm.xlu0 %3228, %v3139
  %v3230 = vpop.permute.xlu0 %3229
  %3233 = vset.pattern.permute.xlu0 0
  %3234 = vperm.xlu0 %3233, %v3140
  %v3235 = vpop.permute.xlu0 %3234
  %3238 = vset.pattern.permute.xlu0 0
  %3239 = vperm.xlu0 %3238, %v3141
  %v3240 = vpop.permute.xlu0 %3239
  %3243 = vset.pattern.permute.xlu0 0
  %3244 = vperm.xlu0 %3243, %v3142
  %v3245 = vpop.permute.xlu0 %3244
  %3248 = vset.pattern.permute.xlu0 0
  %3249 = vperm.xlu0 %3248, %v3143
  %v3250 = vpop.permute.xlu0 %3249
  %3253 = vset.pattern.permute.xlu0 0
  %3254 = vperm.xlu0 %3253, %v3144
  %v3255 = vpop.permute.xlu0 %3254
  %3258 = vset.pattern.permute.xlu0 0
  %3259 = vperm.xlu0 %3258, %v3145
  %v3260 = vpop.permute.xlu0 %3259
  %3263 = vset.pattern.permute.xlu0 0
  %3264 = vperm.xlu0 %3263, %v3146
  %v3265 = vpop.permute.xlu0 %3264
  %3268 = vset.pattern.permute.xlu0 0
  %3269 = vperm.xlu0 %3268, %v3147
  %v3270 = vpop.permute.xlu0 %3269
  %3273 = vset.pattern.permute.xlu0 0
  %3274 = vperm.xlu0 %3273, %v3148
  %v3275 = vpop.permute.xlu0 %3274
  %3278 = vset.pattern.permute.xlu0 0
  %3279 = vperm.xlu0 %3278, %v3149
  %v3280 = vpop.permute.xlu0 %3279
  %3283 = vset.pattern.permute.xlu0 0
  %3284 = vperm.xlu0 %3283, %v3150
  %v3285 = vpop.permute.xlu0 %3284
  %3288 = vset.pattern.permute.xlu0 0
  %3289 = vperm.xlu0 %3288, %v3151
  %v3290 = vpop.permute.xlu0 %3289
  %3293 = vset.pattern.permute.xlu0 0
  %3294 = vperm.xlu0 %3293, %v3152
  %v3295 = vpop.permute.xlu0 %3294
  %3298 = vset.pattern.permute.xlu0 0
  %3299 = vperm.xlu0 %3298, %v3153
  %v3300 = vpop.permute.xlu0 %3299
  %3303 = vset.pattern.permute.xlu0 0
  %3304 = vperm.xlu0 %3303, %v3154
  %v3305 = vpop.permute.xlu0 %3304
  %3308 = vset.pattern.permute.xlu0 0
  %3309 = vperm.xlu0 %3308, %v3155
  %v3310 = vpop.permute.xlu0 %3309
  %3313 = vset.pattern.permute.xlu0 0
  %3314 = vperm.xlu0 %3313, %v3156
  %v3315 = vpop.permute.xlu0 %3314
  %3318 = vset.pattern.permute.xlu0 0
  %3319 = vperm.xlu0 %3318, %v3157
  %v3320 = vpop.permute.xlu0 %3319
  %3323 = vset.pattern.permute.xlu0 0
  %3324 = vperm.xlu0 %3323, %v3158
  %v3325 = vpop.permute.xlu0 %3324
  %3328 = vset.pattern.permute.xlu0 0
  %3329 = vperm.xlu0 %3328, %v3159
  %v3330 = vpop.permute.xlu0 %3329
  %3333 = vset.pattern.permute.xlu0 0
  %3334 = vperm.xlu0 %3333, %v3160
  %v3335 = vpop.permute.xlu0 %3334
  %3338 = vset.pattern.permute.xlu0 0
  %3339 = vperm.xlu0 %3338, %v3161
  %v3340 = vpop.permute.xlu0 %3339
  %v3342 = vmul.f32 %v3090, %v3165
  %v3343 = vmul.f32 %v3091, %v3170
  %v3344 = vmul.f32 %v3092, %v3175
  %v3345 = vmul.f32 %v3093, %v3180
  %v3346 = vmul.f32 %v3094, %v3185
  %v3347 = vmul.f32 %v3095, %v3190
  %v3348 = vmul.f32 %v3096, %v3195
  %v3349 = vmul.f32 %v3097, %v3200
  %v3350 = vmul.f32 %v3098, %v3205
  %v3351 = vmul.f32 %v3099, %v3210
  %v3352 = vmul.f32 %v3100, %v3215
  %v3353 = vmul.f32 %v3101, %v3220
  %v3354 = vmul.f32 %v3102, %v3225
  %v3355 = vmul.f32 %v3103, %v3230
  %v3356 = vmul.f32 %v3104, %v3235
  %v3357 = vmul.f32 %v3105, %v3240
  %v3358 = vmul.f32 %v3106, %v3245
  %v3359 = vmul.f32 %v3107, %v3250
  %v3360 = vmul.f32 %v3108, %v3255
  %v3361 = vmul.f32 %v3109, %v3260
  %v3362 = vmul.f32 %v3110, %v3265
  %v3363 = vmul.f32 %v3111, %v3270
  %v3364 = vmul.f32 %v3112, %v3275
  %v3365 = vmul.f32 %v3113, %v3280
  %v3366 = vmul.f32 %v3114, %v3285
  %v3367 = vmul.f32 %v3115, %v3290
  %v3368 = vmul.f32 %v3116, %v3295
  %v3369 = vmul.f32 %v3117, %v3300
  %v3370 = vmul.f32 %v3118, %v3305
  %v3371 = vmul.f32 %v3119, %v3310
  %v3372 = vmul.f32 %v3120, %v3315
  %v3373 = vmul.f32 %v3121, %v3320
  %v3374 = vmul.f32 %v3122, %v3325
  %v3375 = vmul.f32 %v3123, %v3330
  %v3376 = vmul.f32 %v3124, %v3335
  %v3377 = vmul.f32 %v3125, %v3340
  %v3378 = vpack.c.bf16 %v3343, %v3342
  %v3379 = vpack.c.bf16 %v3345, %v3344
  %v3380 = vpack.c.bf16 %v3347, %v3346
  %v3381 = vpack.c.bf16 %v3349, %v3348
  %v3382 = vpack.c.bf16 %v3351, %v3350
  %v3383 = vpack.c.bf16 %v3353, %v3352
  %v3384 = vpack.c.bf16 %v3355, %v3354
  %v3385 = vpack.c.bf16 %v3357, %v3356
  %v3386 = vpack.c.bf16 %v3359, %v3358
  %v3387 = vpack.c.bf16 %v3361, %v3360
  %v3388 = vpack.c.bf16 %v3363, %v3362
  %v3389 = vpack.c.bf16 %v3365, %v3364
  %v3390 = vpack.c.bf16 %v3367, %v3366
  %v3391 = vpack.c.bf16 %v3369, %v3368
  %v3392 = vpack.c.bf16 %v3371, %v3370
  %v3393 = vpack.c.bf16 %v3373, %v3372
  %v3394 = vpack.c.bf16 %v3375, %v3374
  %v3395 = vpack.c.bf16 %v3377, %v3376
  %v3414 = vunpack.c.l.b16 %v3378
  %v3415 = vunpack.c.h.b16 %v3378
  %v3416 = vunpack.c.l.b16 %v3379
  %v3417 = vunpack.c.h.b16 %v3379
  %v3418 = vunpack.c.l.b16 %v3380
  %v3419 = vunpack.c.h.b16 %v3380
  %v3420 = vunpack.c.l.b16 %v3381
  %v3421 = vunpack.c.h.b16 %v3381
  %v3422 = vunpack.c.l.b16 %v3382
  %v3423 = vunpack.c.h.b16 %v3382
  %v3424 = vunpack.c.l.b16 %v3383
  %v3425 = vunpack.c.h.b16 %v3383
  %v3426 = vunpack.c.l.b16 %v3384
  %v3427 = vunpack.c.h.b16 %v3384
  %v3428 = vunpack.c.l.b16 %v3385
  %v3429 = vunpack.c.h.b16 %v3385
  %v3430 = vunpack.c.l.b16 %v3386
  %v3431 = vunpack.c.h.b16 %v3386
  %v3432 = vunpack.c.l.b16 %v3387
  %v3433 = vunpack.c.h.b16 %v3387
  %v3434 = vunpack.c.l.b16 %v3388
  %v3435 = vunpack.c.h.b16 %v3388
  %v3436 = vunpack.c.l.b16 %v3389
  %v3437 = vunpack.c.h.b16 %v3389
  %v3438 = vunpack.c.l.b16 %v3390
  %v3439 = vunpack.c.h.b16 %v3390
  %v3440 = vunpack.c.l.b16 %v3391
  %v3441 = vunpack.c.h.b16 %v3391
  %v3442 = vunpack.c.l.b16 %v3392
  %v3443 = vunpack.c.h.b16 %v3392
  %v3444 = vunpack.c.l.b16 %v3393
  %v3445 = vunpack.c.h.b16 %v3393
  %v3446 = vunpack.c.l.b16 %v3394
  %v3447 = vunpack.c.h.b16 %v3394
  %v3448 = vunpack.c.l.b16 %v3395
  %v3449 = vunpack.c.h.b16 %v3395
  %v3450 = vpack.c.b16 %v3414, %v3414
  %v3451 = vpack.c.b16 %v3415, %v3415
  %v3452 = vpack.c.b16 %v3416, %v3416
  %v3453 = vpack.c.b16 %v3417, %v3417
  %v3454 = vpack.c.b16 %v3418, %v3418
  %v3455 = vpack.c.b16 %v3419, %v3419
  %v3456 = vpack.c.b16 %v3420, %v3420
  %v3457 = vpack.c.b16 %v3421, %v3421
  %v3458 = vpack.c.b16 %v3422, %v3422
  %v3459 = vpack.c.b16 %v3423, %v3423
  %v3460 = vpack.c.b16 %v3424, %v3424
  %v3461 = vpack.c.b16 %v3425, %v3425
  %v3462 = vpack.c.b16 %v3426, %v3426
  %v3463 = vpack.c.b16 %v3427, %v3427
  %v3464 = vpack.c.b16 %v3428, %v3428
  %v3465 = vpack.c.b16 %v3429, %v3429
  %v3466 = vpack.c.b16 %v3430, %v3430
  %v3467 = vpack.c.b16 %v3431, %v3431
  %v3468 = vpack.c.b16 %v3432, %v3432
  %v3469 = vpack.c.b16 %v3433, %v3433
  %v3470 = vpack.c.b16 %v3434, %v3434
  %v3471 = vpack.c.b16 %v3435, %v3435
  %v3472 = vpack.c.b16 %v3436, %v3436
  %v3473 = vpack.c.b16 %v3437, %v3437
  %v3474 = vpack.c.b16 %v3438, %v3438
  %v3475 = vpack.c.b16 %v3439, %v3439
  %v3476 = vpack.c.b16 %v3440, %v3440
  %v3477 = vpack.c.b16 %v3441, %v3441
  %v3478 = vpack.c.b16 %v3442, %v3442
  %v3479 = vpack.c.b16 %v3443, %v3443
  %v3480 = vpack.c.b16 %v3444, %v3444
  %v3481 = vpack.c.b16 %v3445, %v3445
  %v3482 = vpack.c.b16 %v3446, %v3446
  %v3483 = vpack.c.b16 %v3447, %v3447
  %v3484 = vpack.c.b16 %v3448, %v3448
  %v3485 = vpack.c.b16 %v3449, %v3449
  %3522 = vst [vmem:[%s4] sm:$0xf] %v3450
  %3523 = vst [vmem:[%s4 + $0x4] sm:$0xf] %v3451
  %3524 = vst [vmem:[%s4 + $0x8] sm:$0xf] %v3452
  %3525 = vst [vmem:[%s4 + $0xc] sm:$0xf] %v3453
  %3526 = vst [vmem:[%s4 + $0x10] sm:$0xf] %v3454
  %3527 = vst [vmem:[%s4 + $0x14] sm:$0xf] %v3455
  %3528 = vst [vmem:[%s4 + $0x18] sm:$0xf] %v3456
  %3529 = vst [vmem:[%s4 + $0x1c] sm:$0xf] %v3457
  %3530 = vst [vmem:[%s4 + $0x20] sm:$0xf] %v3458
  %3531 = vst [vmem:[%s4 + $0x24] sm:$0xf] %v3459
  %3532 = vst [vmem:[%s4 + $0x28] sm:$0xf] %v3460
  %3533 = vst [vmem:[%s4 + $0x2c] sm:$0xf] %v3461
  %3534 = vst [vmem:[%s4 + $0x30] sm:$0xf] %v3462
  %3535 = vst [vmem:[%s4 + $0x34] sm:$0xf] %v3463
  %3536 = vst [vmem:[%s4 + $0x38] sm:$0xf] %v3464
  %3537 = vst [vmem:[%s4 + $0x3c] sm:$0xf] %v3465
  %3538 = vst [vmem:[%s4 + $0x40] sm:$0xf] %v3466
  %3539 = vst [vmem:[%s4 + $0x44] sm:$0xf] %v3467
  %3540 = vst [vmem:[%s4 + $0x48] sm:$0xf] %v3468
  %3541 = vst [vmem:[%s4 + $0x4c] sm:$0xf] %v3469
  %3542 = vst [vmem:[%s4 + $0x50] sm:$0xf] %v3470
  %3543 = vst [vmem:[%s4 + $0x54] sm:$0xf] %v3471
  %3544 = vst [vmem:[%s4 + $0x58] sm:$0xf] %v3472
  %3545 = vst [vmem:[%s4 + $0x5c] sm:$0xf] %v3473
  %3546 = vst [vmem:[%s4 + $0x60] sm:$0xf] %v3474
  %3547 = vst [vmem:[%s4 + $0x64] sm:$0xf] %v3475
  %3548 = vst [vmem:[%s4 + $0x68] sm:$0xf] %v3476
  %3549 = vst [vmem:[%s4 + $0x6c] sm:$0xf] %v3477
  %3550 = vst [vmem:[%s4 + $0x70] sm:$0xf] %v3478
  %3551 = vst [vmem:[%s4 + $0x74] sm:$0xf] %v3479
  %3552 = vst [vmem:[%s4 + $0x78] sm:$0xf] %v3480
  %3553 = vst [vmem:[%s4 + $0x7c] sm:$0xf] %v3481
  %3554 = vst [vmem:[%s4 + $0x80] sm:$0xf] %v3482
  %3555 = vst [vmem:[%s4 + $0x84] sm:$0xf] %v3483
  %3556 = vst [vmem:[%s4 + $0x88] sm:$0xf] %v3484
  %3557 = vst [vmem:[%s4 + $0x8c] sm:$0xf] %v3485
  // Predicated region
  $region18: #{alphazero_forward.7} parent=0 // pred_check
    _
  $region19: #{alphazero_forward.7} parent=0 // pred_check_branch
    %3559 = sbr.rel (0) target = $region21
  $region20: #{alphazero_forward.7} parent=0 // pred_region
    _
  $region21: #{alphazero_forward.7} parent=0 // pred_fallthru
    _
  // Predicated region
  $region22: #{alphazero_forward.7} parent=0 // pred_check
    _
  $region23: #{alphazero_forward.7} parent=0 // pred_check_branch
    %3561 = sbr.rel (0) target = $region25
  $region24: #{alphazero_forward.7} parent=0 // pred_region
    _
  $region25: #{alphazero_forward.7} parent=0 // pred_fallthru
    _

// kernel: alphazero_forward.8
$region0: #{alphazero_forward.8}
  #allocation0 [shape = 'u32[]', space=smem, size = 0x4, offset = 0x4, fixed_abs, tag = 'smem constant byte address 0x4 - core index']
  #allocation1 [shape = 'u32[144,128]{1,0:T(1,128)}', space=vmem, size = 0x12000, scoped, tag = 'internal scratch']
  %s0 = inlined_call_operand.vmem [shape: bf16[288,128], index: 0, kind: input, shape index: {}]
  %s1 = inlined_call_operand.vmem [shape: bf16[9,128,128], index: 1, kind: input, shape index: {}]
  %s2 = inlined_call_operand.vmem [shape: f32[1,128], index: 2, kind: input, shape index: {}]
  %s3 = inlined_call_operand.vmem [shape: bf16[9,128,128], index: 3, kind: input, shape index: {}]
  %s4 = inlined_call_operand.vmem [shape: f32[1,128], index: 4, kind: input, shape index: {}]
  %s5 = inlined_call_operand.vmem [shape: f32[288,1], index: 5, kind: input, shape index: {}]
  %s6 = inlined_call_operand.vmem [shape: bf16[288,128], index: 6, kind: output, shape index: {}]
  %s7 = sld [smem:[#allocation0]]
  $region34: #{alphazero_forward.8} parent=0
    _
  %s9 = ssub.s32 1, %s7
  %s10 = scalar_select 0, %s9, %s7
  // Predicated region
  $region2: #{alphazero_forward.8} parent=0 // pred_check
    _
  $region3: #{alphazero_forward.8} parent=0 // pred_check_branch
    %12 = sbr.rel (0) target = $region5
  $region4: #{alphazero_forward.8} parent=0 // pred_region
    _
  $region5: #{alphazero_forward.8} parent=0 // pred_fallthru
    _
  // Predicated region
  $region6: #{alphazero_forward.8} parent=0 // pred_check
    _
  $region7: #{alphazero_forward.8} parent=0 // pred_check_branch
    %14 = sbr.rel (0) target = $region9
  $region8: #{alphazero_forward.8} parent=0 // pred_region
    _
  $region9: #{alphazero_forward.8} parent=0 // pred_fallthru
    _
  // Predicated region
  $region10: #{alphazero_forward.8} parent=0 // pred_check
    _
  $region11: #{alphazero_forward.8} parent=0 // pred_check_branch
    %16 = sbr.rel (0) target = $region13
  $region12: #{alphazero_forward.8} parent=0 // pred_region
    _
  $region13: #{alphazero_forward.8} parent=0 // pred_fallthru
    _
  // Predicated region
  $region14: #{alphazero_forward.8} parent=0 // pred_check
    _
  $region15: #{alphazero_forward.8} parent=0 // pred_check_branch
    %18 = sbr.rel (0) target = $region17
  $region16: #{alphazero_forward.8} parent=0 // pred_region
    _
  $region17: #{alphazero_forward.8} parent=0 // pred_fallthru
    _
  // Predicated region
  $region18: #{alphazero_forward.8} parent=0 // pred_check
    _
  $region19: #{alphazero_forward.8} parent=0 // pred_check_branch
    %20 = sbr.rel (0) target = $region21
  $region20: #{alphazero_forward.8} parent=0 // pred_region
    _
  $region21: #{alphazero_forward.8} parent=0 // pred_fallthru
    _
  // Predicated region
  $region22: #{alphazero_forward.8} parent=0 // pred_check
    _
  $region23: #{alphazero_forward.8} parent=0 // pred_check_branch
    %22 = sbr.rel (0) target = $region25
  $region24: #{alphazero_forward.8} parent=0 // pred_region
    _
  $region25: #{alphazero_forward.8} parent=0 // pred_fallthru
    _
  %v24 = vld [vmem:[%s0] sm:$0xf]
  %v25 = vld [vmem:[%s0 + $0x4] sm:$0xf]
  %v26 = vld [vmem:[%s0 + $0x8] sm:$0xf]
  %v27 = vld [vmem:[%s0 + $0xc] sm:$0xf]
  %v28 = vld [vmem:[%s0 + $0x10] sm:$0xf]
  %v29 = vld [vmem:[%s0 + $0x14] sm:$0xf]
  %v30 = vld [vmem:[%s0 + $0x18] sm:$0xf]
  %v31 = vld [vmem:[%s0 + $0x1c] sm:$0xf]
  %v32 = vld [vmem:[%s0 + $0x20] sm:$0xf]
  %v33 = vld [vmem:[%s0 + $0x24] sm:$0xf]
  %v34 = vld [vmem:[%s0 + $0x28] sm:$0xf]
  %v35 = vld [vmem:[%s0 + $0x2c] sm:$0xf]
  %v36 = vld [vmem:[%s0 + $0x30] sm:$0xf]
  %v37 = vld [vmem:[%s0 + $0x34] sm:$0xf]
  %v38 = vld [vmem:[%s0 + $0x38] sm:$0xf]
  %v39 = vld [vmem:[%s0 + $0x3c] sm:$0xf]
  %v40 = vld [vmem:[%s0 + $0x40] sm:$0xf]
  %v41 = vld [vmem:[%s0 + $0x44] sm:$0xf]
  %v42 = vld [vmem:[%s0 + $0x48] sm:$0xf]
  %v43 = vld [vmem:[%s0 + $0x4c] sm:$0xf]
  %v44 = vld [vmem:[%s0 + $0x50] sm:$0xf]
  %v45 = vld [vmem:[%s0 + $0x54] sm:$0xf]
  %v46 = vld [vmem:[%s0 + $0x58] sm:$0xf]
  %v47 = vld [vmem:[%s0 + $0x5c] sm:$0xf]
  %v48 = vld [vmem:[%s0 + $0x60] sm:$0xf]
  %v49 = vld [vmem:[%s0 + $0x64] sm:$0xf]
  %v50 = vld [vmem:[%s0 + $0x68] sm:$0xf]
  %v51 = vld [vmem:[%s0 + $0x6c] sm:$0xf]
  %v52 = vld [vmem:[%s0 + $0x70] sm:$0xf]
  %v53 = vld [vmem:[%s0 + $0x74] sm:$0xf]
  %v54 = vld [vmem:[%s0 + $0x78] sm:$0xf]
  %v55 = vld [vmem:[%s0 + $0x7c] sm:$0xf]
  %v56 = vld [vmem:[%s0 + $0x80] sm:$0xf]
  %v57 = vld [vmem:[%s0 + $0x84] sm:$0xf]
  %v58 = vld [vmem:[%s0 + $0x88] sm:$0xf]
  %v59 = vld [vmem:[%s0 + $0x8c] sm:$0xf]
  %v60 = vunpack.c.l.bf16 %v24
  %v61 = vunpack.c.l.bf16 %v25
  %v62 = vunpack.c.l.bf16 %v26
  %v63 = vunpack.c.l.bf16 %v27
  %v64 = vunpack.c.l.bf16 %v28
  %v65 = vunpack.c.l.bf16 %v29
  %v66 = vunpack.c.l.bf16 %v30
  %v67 = vunpack.c.l.bf16 %v31
  %v68 = vunpack.c.l.bf16 %v32
  %v69 = vunpack.c.l.bf16 %v33
  %v70 = vunpack.c.l.bf16 %v34
  %v71 = vunpack.c.l.bf16 %v35
  %v72 = vunpack.c.l.bf16 %v36
  %v73 = vunpack.c.l.bf16 %v37
  %v74 = vunpack.c.l.bf16 %v38
  %v75 = vunpack.c.l.bf16 %v39
  %v76 = vunpack.c.l.bf16 %v40
  %v77 = vunpack.c.l.bf16 %v41
  %v78 = vunpack.c.l.bf16 %v42
  %v79 = vunpack.c.l.bf16 %v43
  %v80 = vunpack.c.l.bf16 %v44
  %v81 = vunpack.c.l.bf16 %v45
  %v82 = vunpack.c.l.bf16 %v46
  %v83 = vunpack.c.l.bf16 %v47
  %v84 = vunpack.c.l.bf16 %v48
  %v85 = vunpack.c.l.bf16 %v49
  %v86 = vunpack.c.l.bf16 %v50
  %v87 = vunpack.c.l.bf16 %v51
  %v88 = vunpack.c.l.bf16 %v52
  %v89 = vunpack.c.l.bf16 %v53
  %v90 = vunpack.c.l.bf16 %v54
  %v91 = vunpack.c.l.bf16 %v55
  %v92 = vunpack.c.l.bf16 %v56
  %v93 = vunpack.c.l.bf16 %v57
  %v94 = vunpack.c.l.bf16 %v58
  %v95 = vunpack.c.l.bf16 %v59
  %v96 = vld [vmem:[%s5] sm:$0xff]
  %v97 = vld [vmem:[%s5 + $0x8] sm:$0xff]
  %v98 = vld [vmem:[%s5 + $0x10] sm:$0xff]
  %v99 = vld [vmem:[%s5 + $0x18] sm:$0xff]
  %v100 = vld [vmem:[%s5 + $0x20] sm:$0xff]
  %v101 = vld [vmem:[%s5 + $0x28] sm:$0xff]
  %v102 = vld [vmem:[%s5 + $0x30] sm:$0xff]
  %v103 = vld [vmem:[%s5 + $0x38] sm:$0xff]
  %v104 = vld [vmem:[%s5 + $0x40] sm:$0xff]
  %v105 = vld [vmem:[%s5 + $0x48] sm:$0xff]
  %v106 = vld [vmem:[%s5 + $0x50] sm:$0xff]
  %v107 = vld [vmem:[%s5 + $0x58] sm:$0xff]
  %v108 = vld [vmem:[%s5 + $0x60] sm:$0xff]
  %v109 = vld [vmem:[%s5 + $0x68] sm:$0xff]
  %v110 = vld [vmem:[%s5 + $0x70] sm:$0xff]
  %v111 = vld [vmem:[%s5 + $0x78] sm:$0xff]
  %v112 = vld [vmem:[%s5 + $0x80] sm:$0xff]
  %v113 = vld [vmem:[%s5 + $0x88] sm:$0xff]
  %v114 = vld [vmem:[%s5 + $0x90] sm:$0xff]
  %v115 = vld [vmem:[%s5 + $0x98] sm:$0xff]
  %v116 = vld [vmem:[%s5 + $0xa0] sm:$0xff]
  %v117 = vld [vmem:[%s5 + $0xa8] sm:$0xff]
  %v118 = vld [vmem:[%s5 + $0xb0] sm:$0xff]
  %v119 = vld [vmem:[%s5 + $0xb8] sm:$0xff]
  %v120 = vld [vmem:[%s5 + $0xc0] sm:$0xff]
  %v121 = vld [vmem:[%s5 + $0xc8] sm:$0xff]
  %v122 = vld [vmem:[%s5 + $0xd0] sm:$0xff]
  %v123 = vld [vmem:[%s5 + $0xd8] sm:$0xff]
  %v124 = vld [vmem:[%s5 + $0xe0] sm:$0xff]
  %v125 = vld [vmem:[%s5 + $0xe8] sm:$0xff]
  %v126 = vld [vmem:[%s5 + $0xf0] sm:$0xff]
  %v127 = vld [vmem:[%s5 + $0xf8] sm:$0xff]
  %v128 = vld [vmem:[%s5 + $0x100] sm:$0xff]
  %v129 = vld [vmem:[%s5 + $0x108] sm:$0xff]
  %v130 = vld [vmem:[%s5 + $0x110] sm:$0xff]
  %v131 = vld [vmem:[%s5 + $0x118] sm:$0xff]
  %v132 = vrot.slane %v60, 6
  %v133 = vrot.slane %v61, 6
  %v134 = vrot.slane %v62, 6
  %v135 = vrot.slane %v63, 6
  %v136 = vrot.slane %v64, 6
  %v137 = vrot.slane %v65, 6
  %v138 = vrot.slane %v66, 6
  %v139 = vrot.slane %v67, 6
  %v140 = vrot.slane %v68, 6
  %v141 = vrot.slane %v69, 6
  %v142 = vrot.slane %v70, 6
  %v143 = vrot.slane %v71, 6
  %v144 = vrot.slane %v72, 6
  %v145 = vrot.slane %v73, 6
  %v146 = vrot.slane %v74, 6
  %v147 = vrot.slane %v75, 6
  %v148 = vrot.slane %v76, 6
  %v149 = vrot.slane %v77, 6
  %v150 = vrot.slane %v78, 6
  %v151 = vrot.slane %v79, 6
  %v152 = vrot.slane %v80, 6
  %v153 = vrot.slane %v81, 6
  %v154 = vrot.slane %v82, 6
  %v155 = vrot.slane %v83, 6
  %v156 = vrot.slane %v84, 6
  %v157 = vrot.slane %v85, 6
  %v158 = vrot.slane %v86, 6
  %v159 = vrot.slane %v87, 6
  %v160 = vrot.slane %v88, 6
  %v161 = vrot.slane %v89, 6
  %v162 = vrot.slane %v90, 6
  %v163 = vrot.slane %v91, 6
  %v164 = vrot.slane %v92, 6
  %v165 = vrot.slane %v93, 6
  %v166 = vrot.slane %v94, 6
  %v167 = vrot.slane %v95, 6
  %v168 = vlaneseq
  %v169 = vshrl.u32 %v168, 7
  %vm170 = vcmp.lt.s32.totalorder %v169, 2
  %v171 = vsel %vm170, %v166, %v167
  %v172 = vsel %vm170, %v165, %v166
  %v173 = vsel %vm170, %v164, %v165
  %v174 = vsel %vm170, %v163, %v164
  %v175 = vsel %vm170, %v162, %v163
  %v176 = vsel %vm170, %v161, %v162
  %v177 = vsel %vm170, %v160, %v161
  %v178 = vsel %vm170, %v159, %v160
  %v179 = vsel %vm170, %v158, %v159
  %v180 = vsel %vm170, %v157, %v158
  %v181 = vsel %vm170, %v156, %v157
  %v182 = vsel %vm170, %v155, %v156
  %v183 = vsel %vm170, %v154, %v155
  %v184 = vsel %vm170, %v153, %v154
  %v185 = vsel %vm170, %v152, %v153
  %v186 = vsel %vm170, %v151, %v152
  %v187 = vsel %vm170, %v150, %v151
  %v188 = vsel %vm170, %v149, %v150
  %v189 = vsel %vm170, %v148, %v149
  %v190 = vsel %vm170, %v147, %v148
  %v191 = vsel %vm170, %v146, %v147
  %v192 = vsel %vm170, %v145, %v146
  %v193 = vsel %vm170, %v144, %v145
  %v194 = vsel %vm170, %v143, %v144
  %v195 = vsel %vm170, %v142, %v143
  %v196 = vsel %vm170, %v141, %v142
  %v197 = vsel %vm170, %v140, %v141
  %v198 = vsel %vm170, %v139, %v140
  %v199 = vsel %vm170, %v138, %v139
  %v200 = vsel %vm170, %v137, %v138
  %v201 = vsel %vm170, %v136, %v137
  %v202 = vsel %vm170, %v135, %v136
  %v203 = vsel %vm170, %v134, %v135
  %v204 = vsel %vm170, %v133, %v134
  %v205 = vsel %vm170, %v132, %v133
  %v206 = vsel %vm170, %v167, %v132
  %v207 = vpack.c.bf16 %v206, %v171
  %v208 = vpack.c.bf16 %v204, %v205
  %v209 = vpack.c.bf16 %v202, %v203
  %v210 = vpack.c.bf16 %v200, %v201
  %v211 = vpack.c.bf16 %v198, %v199
  %v212 = vpack.c.bf16 %v196, %v197
  %v213 = vpack.c.bf16 %v194, %v195
  %v214 = vpack.c.bf16 %v192, %v193
  %v215 = vpack.c.bf16 %v190, %v191
  %v216 = vpack.c.bf16 %v188, %v189
  %v217 = vpack.c.bf16 %v186, %v187
  %v218 = vpack.c.bf16 %v184, %v185
  %v219 = vpack.c.bf16 %v182, %v183
  %v220 = vpack.c.bf16 %v180, %v181
  %v221 = vpack.c.bf16 %v178, %v179
  %v222 = vpack.c.bf16 %v176, %v177
  %v223 = vpack.c.bf16 %v174, %v175
  %v224 = vpack.c.bf16 %v172, %v173
  %v225 = vld [vmem:[%s1] sm:$0xf]
  %v226 = vld [vmem:[%s1 + $0x4] sm:$0xf]
  %v227 = vld [vmem:[%s1 + $0x8] sm:$0xf]
  %v228 = vld [vmem:[%s1 + $0xc] sm:$0xf]
  %v229 = vld [vmem:[%s1 + $0x10] sm:$0xf]
  %v230 = vld [vmem:[%s1 + $0x14] sm:$0xf]
  %v231 = vld [vmem:[%s1 + $0x18] sm:$0xf]
  %v232 = vld [vmem:[%s1 + $0x1c] sm:$0xf]
  %v233 = vld [vmem:[%s1 + $0x20] sm:$0xf]
  %v234 = vld [vmem:[%s1 + $0x24] sm:$0xf]
  %v235 = vld [vmem:[%s1 + $0x28] sm:$0xf]
  %v236 = vld [vmem:[%s1 + $0x2c] sm:$0xf]
  %v237 = vld [vmem:[%s1 + $0x30] sm:$0xf]
  %v238 = vld [vmem:[%s1 + $0x34] sm:$0xf]
  %v239 = vld [vmem:[%s1 + $0x38] sm:$0xf]
  %v240 = vld [vmem:[%s1 + $0x3c] sm:$0xf]
  %v241 = vrot.slane %v60, 7
  %v242 = vrot.slane %v61, 7
  %v243 = vrot.slane %v62, 7
  %v244 = vrot.slane %v63, 7
  %v245 = vrot.slane %v64, 7
  %v246 = vrot.slane %v65, 7
  %v247 = vrot.slane %v66, 7
  %v248 = vrot.slane %v67, 7
  %v249 = vrot.slane %v68, 7
  %v250 = vrot.slane %v69, 7
  %v251 = vrot.slane %v70, 7
  %v252 = vrot.slane %v71, 7
  %v253 = vrot.slane %v72, 7
  %v254 = vrot.slane %v73, 7
  %v255 = vrot.slane %v74, 7
  %v256 = vrot.slane %v75, 7
  %v257 = vrot.slane %v76, 7
  %v258 = vrot.slane %v77, 7
  %v259 = vrot.slane %v78, 7
  %v260 = vrot.slane %v79, 7
  %v261 = vrot.slane %v80, 7
  %v262 = vrot.slane %v81, 7
  %v263 = vrot.slane %v82, 7
  %v264 = vrot.slane %v83, 7
  %v265 = vrot.slane %v84, 7
  %v266 = vrot.slane %v85, 7
  %v267 = vrot.slane %v86, 7
  %v268 = vrot.slane %v87, 7
  %v269 = vrot.slane %v88, 7
  %v270 = vrot.slane %v89, 7
  %v271 = vrot.slane %v90, 7
  %v272 = vrot.slane %v91, 7
  %v273 = vrot.slane %v92, 7
  %v274 = vrot.slane %v93, 7
  %v275 = vrot.slane %v94, 7
  %v276 = vrot.slane %v95, 7
  %vm277 = vcmp.lt.s32.totalorder %v169, 1
  %v278 = vsel %vm277, %v275, %v276
  %v279 = vsel %vm277, %v274, %v275
  %v280 = vsel %vm277, %v273, %v274
  %v281 = vsel %vm277, %v272, %v273
  %v282 = vsel %vm277, %v271, %v272
  %v283 = vsel %vm277, %v270, %v271
  %v284 = vsel %vm277, %v269, %v270
  %v285 = vsel %vm277, %v268, %v269
  %v286 = vsel %vm277, %v267, %v268
  %v287 = vsel %vm277, %v266, %v267
  %v288 = vsel %vm277, %v265, %v266
  %v289 = vsel %vm277, %v264, %v265
  %v290 = vsel %vm277, %v263, %v264
  %v291 = vsel %vm277, %v262, %v263
  %v292 = vsel %vm277, %v261, %v262
  %v293 = vsel %vm277, %v260, %v261
  %v294 = vsel %vm277, %v259, %v260
  %v295 = vsel %vm277, %v258, %v259
  %v296 = vsel %vm277, %v257, %v258
  %v297 = vsel %vm277, %v256, %v257
  %v298 = vsel %vm277, %v255, %v256
  %v299 = vsel %vm277, %v254, %v255
  %v300 = vsel %vm277, %v253, %v254
  %v301 = vsel %vm277, %v252, %v253
  %v302 = vsel %vm277, %v251, %v252
  %v303 = vsel %vm277, %v250, %v251
  %v304 = vsel %vm277, %v249, %v250
  %v305 = vsel %vm277, %v248, %v249
  %v306 = vsel %vm277, %v247, %v248
  %v307 = vsel %vm277, %v246, %v247
  %v308 = vsel %vm277, %v245, %v246
  %v309 = vsel %vm277, %v244, %v245
  %v310 = vsel %vm277, %v243, %v244
  %v311 = vsel %vm277, %v242, %v243
  %v312 = vsel %vm277, %v241, %v242
  %v313 = vsel %vm277, %v276, %v241
  %v314 = vpack.c.bf16 %v313, %v278
  %v315 = vpack.c.bf16 %v311, %v312
  %v316 = vpack.c.bf16 %v309, %v310
  %v317 = vpack.c.bf16 %v307, %v308
  %v318 = vpack.c.bf16 %v305, %v306
  %v319 = vpack.c.bf16 %v303, %v304
  %v320 = vpack.c.bf16 %v301, %v302
  %v321 = vpack.c.bf16 %v299, %v300
  %v322 = vpack.c.bf16 %v297, %v298
  %v323 = vpack.c.bf16 %v295, %v296
  %v324 = vpack.c.bf16 %v293, %v294
  %v325 = vpack.c.bf16 %v291, %v292
  %v326 = vpack.c.bf16 %v289, %v290
  %v327 = vpack.c.bf16 %v287, %v288
  %v328 = vpack.c.bf16 %v285, %v286
  %v329 = vpack.c.bf16 %v283, %v284
  %v330 = vpack.c.bf16 %v281, %v282
  %v331 = vpack.c.bf16 %v279, %v280
  %s332 = scalar_lea.vmem %s1, 64
  %v333 = vld [vmem:[%s332] sm:$0xf]
  %v334 = vld [vmem:[%s332 + $0x4] sm:$0xf]
  %v335 = vld [vmem:[%s332 + $0x8] sm:$0xf]
  %v336 = vld [vmem:[%s332 + $0xc] sm:$0xf]
  %v337 = vld [vmem:[%s332 + $0x10] sm:$0xf]
  %v338 = vld [vmem:[%s332 + $0x14] sm:$0xf]
  %v339 = vld [vmem:[%s332 + $0x18] sm:$0xf]
  %v340 = vld [vmem:[%s332 + $0x1c] sm:$0xf]
  %v341 = vld [vmem:[%s332 + $0x20] sm:$0xf]
  %v342 = vld [vmem:[%s332 + $0x24] sm:$0xf]
  %v343 = vld [vmem:[%s332 + $0x28] sm:$0xf]
  %v344 = vld [vmem:[%s332 + $0x2c] sm:$0xf]
  %v345 = vld [vmem:[%s332 + $0x30] sm:$0xf]
  %v346 = vld [vmem:[%s332 + $0x34] sm:$0xf]
  %v347 = vld [vmem:[%s332 + $0x38] sm:$0xf]
  %v348 = vld [vmem:[%s332 + $0x3c] sm:$0xf]
  %v365 = vunpack.c.l.b16 %v333
  %v366 = vunpack.c.l.b16 %v334
  %v367 = vunpack.c.l.b16 %v335
  %v368 = vunpack.c.l.b16 %v336
  %v369 = vunpack.c.l.b16 %v337
  %v370 = vunpack.c.l.b16 %v338
  %v371 = vunpack.c.l.b16 %v339
  %v372 = vunpack.c.l.b16 %v340
  %v373 = vunpack.c.l.b16 %v341
  %v374 = vunpack.c.l.b16 %v342
  %v375 = vunpack.c.l.b16 %v343
  %v376 = vunpack.c.l.b16 %v344
  %v377 = vunpack.c.l.b16 %v345
  %v378 = vunpack.c.l.b16 %v346
  %v379 = vunpack.c.l.b16 %v347
  %v380 = vunpack.c.l.b16 %v348
  %v381 = vpack.c.b16 %v366, %v365
  %v382 = vpack.c.b16 %v368, %v367
  %v383 = vpack.c.b16 %v370, %v369
  %v384 = vpack.c.b16 %v372, %v371
  %v385 = vpack.c.b16 %v374, %v373
  %v386 = vpack.c.b16 %v376, %v375
  %v387 = vpack.c.b16 %v378, %v377
  %v388 = vpack.c.b16 %v380, %v379
  %397 = vmatprep.subr.bf16.mxu0 0
  %398 = vmatpush1.bf16.msra.mxu0 %v388
  %399 = vmatprep.subr.bf16.mxu0 0
  %400 = vmatpush1.bf16.msra.mxu0 %v387
  %401 = vmatprep.subr.bf16.mxu0 0
  %402 = vmatpush1.bf16.msra.mxu0 %v386
  %403 = vmatprep.subr.bf16.mxu0 0
  %404 = vmatpush1.bf16.msra.mxu0 %v385
  %405 = vmatprep.subr.bf16.mxu0 0
  %406 = vmatpush1.bf16.msra.mxu0 %v384
  %407 = vmatprep.subr.bf16.mxu0 0
  %408 = vmatpush1.bf16.msra.mxu0 %v383
  %409 = vmatprep.subr.bf16.mxu0 0
  %410 = vmatpush1.bf16.msra.mxu0 %v382
  %411 = vmatprep.subr.bf16.mxu0 0
  %412 = vmatpush1.bf16.msra.mxu0 %v381
  %413 = vmatprep.subr.bf16.mxu0 0
  %414 = vmatpush2.bf16.msra.mxu0 0
  %415 = vmatprep.subr.bf16.mxu0 0
  %416 = vmatpush2.bf16.msra.mxu0 0
  %417 = vmatprep.subr.bf16.mxu0 0
  %418 = vmatpush2.bf16.msra.mxu0 0
  %419 = vmatprep.subr.bf16.mxu0 0
  %420 = vmatpush2.bf16.msra.mxu0 0
  %421 = vmatprep.subr.bf16.mxu0 0
  %422 = vmatpush2.bf16.msra.mxu0 0
  %423 = vmatprep.subr.bf16.mxu0 0
  %424 = vmatpush2.bf16.msra.mxu0 0
  %425 = vmatprep.subr.bf16.mxu0 0
  %426 = vmatpush2.bf16.msra.mxu0 0
  %427 = vmatprep.subr.bf16.mxu0 0
  %428 = vmatpush2.bf16.msra.mxu0 0
  %429 = vmatprep.mubr.bf16.mxu0 0
  %430 = vmatmul.mubr.bf16.gmra.mxu0 %v314
  %v431 = vpop.f32.mrf.mxu0
  %v432 = vadd.f32 0.0, %v431
  %v433 = vpop.f32.mrf.mxu0
  %v434 = vpop.f32.mrf.mxu0
  %v435 = vadd.f32 0.0, %v434
  %v436 = vpop.f32.mrf.mxu0
  %437 = vmatprep.mubr.bf16.mxu0 0
  %438 = vmatmul.mubr.bf16.gmra.mxu0 %v315
  %v439 = vpop.f32.mrf.mxu0
  %v440 = vadd.f32 0.0, %v439
  %v441 = vpop.f32.mrf.mxu0
  %v442 = vpop.f32.mrf.mxu0
  %v443 = vadd.f32 0.0, %v442
  %v444 = vpop.f32.mrf.mxu0
  %445 = vmatprep.mubr.bf16.mxu0 0
  %446 = vmatmul.mubr.bf16.gmra.mxu0 %v316
  %v447 = vpop.f32.mrf.mxu0
  %v448 = vadd.f32 0.0, %v447
  %v449 = vpop.f32.mrf.mxu0
  %v450 = vpop.f32.mrf.mxu0
  %v451 = vadd.f32 0.0, %v450
  %v452 = vpop.f32.mrf.mxu0
  %453 = vmatprep.mubr.bf16.mxu0 0
  %454 = vmatmul.mubr.bf16.gmra.mxu0 %v317
  %v455 = vpop.f32.mrf.mxu0
  %v456 = vadd.f32 0.0, %v455
  %v457 = vpop.f32.mrf.mxu0
  %v458 = vpop.f32.mrf.mxu0
  %v459 = vadd.f32 0.0, %v458
  %v460 = vpop.f32.mrf.mxu0
  %461 = vmatprep.mubr.bf16.mxu0 0
  %462 = vmatmul.mubr.bf16.gmra.mxu0 %v318
  %v463 = vpop.f32.mrf.mxu0
  %v464 = vadd.f32 0.0, %v463
  %v465 = vpop.f32.mrf.mxu0
  %v466 = vpop.f32.mrf.mxu0
  %v467 = vadd.f32 0.0, %v466
  %v468 = vpop.f32.mrf.mxu0
  %469 = vmatprep.mubr.bf16.mxu0 0
  %470 = vmatmul.mubr.bf16.gmra.mxu0 %v319
  %v471 = vpop.f32.mrf.mxu0
  %v472 = vadd.f32 0.0, %v471
  %v473 = vpop.f32.mrf.mxu0
  %v474 = vpop.f32.mrf.mxu0
  %v475 = vadd.f32 0.0, %v474
  %v476 = vpop.f32.mrf.mxu0
  %477 = vmatprep.mubr.bf16.mxu0 0
  %478 = vmatmul.mubr.bf16.gmra.mxu0 %v320
  %v479 = vpop.f32.mrf.mxu0
  %v480 = vadd.f32 0.0, %v479
  %v481 = vpop.f32.mrf.mxu0
  %v482 = vpop.f32.mrf.mxu0
  %v483 = vadd.f32 0.0, %v482
  %v484 = vpop.f32.mrf.mxu0
  %485 = vmatprep.mubr.bf16.mxu0 0
  %486 = vmatmul.mubr.bf16.gmra.mxu0 %v321
  %v487 = vpop.f32.mrf.mxu0
  %v488 = vadd.f32 0.0, %v487
  %v489 = vpop.f32.mrf.mxu0
  %v490 = vpop.f32.mrf.mxu0
  %v491 = vadd.f32 0.0, %v490
  %v492 = vpop.f32.mrf.mxu0
  %493 = vmatprep.mubr.bf16.mxu0 0
  %494 = vmatmul.mubr.bf16.gmra.mxu0 %v322
  %v495 = vpop.f32.mrf.mxu0
  %v496 = vadd.f32 0.0, %v495
  %v497 = vpop.f32.mrf.mxu0
  %v498 = vpop.f32.mrf.mxu0
  %v499 = vadd.f32 0.0, %v498
  %v500 = vpop.f32.mrf.mxu0
  %501 = vmatprep.mubr.bf16.mxu0 0
  %502 = vmatmul.mubr.bf16.gmra.mxu0 %v323
  %v503 = vpop.f32.mrf.mxu0
  %v504 = vadd.f32 0.0, %v503
  %v505 = vpop.f32.mrf.mxu0
  %v506 = vpop.f32.mrf.mxu0
  %v507 = vadd.f32 0.0, %v506
  %v508 = vpop.f32.mrf.mxu0
  %509 = vmatprep.mubr.bf16.mxu0 0
  %510 = vmatmul.mubr.bf16.gmra.mxu0 %v324
  %v511 = vpop.f32.mrf.mxu0
  %v512 = vadd.f32 0.0, %v511
  %v513 = vpop.f32.mrf.mxu0
  %v514 = vpop.f32.mrf.mxu0
  %v515 = vadd.f32 0.0, %v514
  %v516 = vpop.f32.mrf.mxu0
  %517 = vmatprep.mubr.bf16.mxu0 0
  %518 = vmatmul.mubr.bf16.gmra.mxu0 %v325
  %v519 = vpop.f32.mrf.mxu0
  %v520 = vadd.f32 0.0, %v519
  %v521 = vpop.f32.mrf.mxu0
  %v522 = vpop.f32.mrf.mxu0
  %v523 = vadd.f32 0.0, %v522
  %v524 = vpop.f32.mrf.mxu0
  %525 = vmatprep.mubr.bf16.mxu0 0
  %526 = vmatmul.mubr.bf16.gmra.mxu0 %v326
  %v527 = vpop.f32.mrf.mxu0
  %v528 = vadd.f32 0.0, %v527
  %v529 = vpop.f32.mrf.mxu0
  %v530 = vpop.f32.mrf.mxu0
  %v531 = vadd.f32 0.0, %v530
  %v532 = vpop.f32.mrf.mxu0
  %533 = vmatprep.mubr.bf16.mxu0 0
  %534 = vmatmul.mubr.bf16.gmra.mxu0 %v327
  %v535 = vpop.f32.mrf.mxu0
  %v536 = vadd.f32 0.0, %v535
  %v537 = vpop.f32.mrf.mxu0
  %v538 = vpop.f32.mrf.mxu0
  %v539 = vadd.f32 0.0, %v538
  %v540 = vpop.f32.mrf.mxu0
  %541 = vmatprep.mubr.bf16.mxu0 0
  %542 = vmatmul.mubr.bf16.gmra.mxu0 %v328
  %v543 = vpop.f32.mrf.mxu0
  %v544 = vadd.f32 0.0, %v543
  %v545 = vpop.f32.mrf.mxu0
  %v546 = vpop.f32.mrf.mxu0
  %v547 = vadd.f32 0.0, %v546
  %v548 = vpop.f32.mrf.mxu0
  %549 = vmatprep.mubr.bf16.mxu0 0
  %550 = vmatmul.mubr.bf16.gmra.mxu0 %v329
  %v551 = vpop.f32.mrf.mxu0
  %v552 = vadd.f32 0.0, %v551
  %v553 = vpop.f32.mrf.mxu0
  %v554 = vpop.f32.mrf.mxu0
  %v555 = vadd.f32 0.0, %v554
  %v556 = vpop.f32.mrf.mxu0
  %557 = vmatprep.mubr.bf16.mxu0 0
  %558 = vmatmul.mubr.bf16.gmra.mxu0 %v330
  %v559 = vpop.f32.mrf.mxu0
  %v560 = vadd.f32 0.0, %v559
  %v561 = vpop.f32.mrf.mxu0
  %v562 = vpop.f32.mrf.mxu0
  %v563 = vadd.f32 0.0, %v562
  %v564 = vpop.f32.mrf.mxu0
  %565 = vmatprep.mubr.bf16.mxu0 0
  %566 = vmatmul.mubr.bf16.gmra.mxu0 %v331
  %v567 = vpop.f32.mrf.mxu0
  %v568 = vadd.f32 0.0, %v567
  %v569 = vpop.f32.mrf.mxu0
  %v570 = vpop.f32.mrf.mxu0
  %v571 = vadd.f32 0.0, %v570
  %v572 = vpop.f32.mrf.mxu0
  %573 = vdwg.mxu0
  %v590 = vunpack.c.l.b16 %v225
  %v591 = vunpack.c.l.b16 %v226
  %v592 = vunpack.c.l.b16 %v227
  %v593 = vunpack.c.l.b16 %v228
  %v594 = vunpack.c.l.b16 %v229
  %v595 = vunpack.c.l.b16 %v230
  %v596 = vunpack.c.l.b16 %v231
  %v597 = vunpack.c.l.b16 %v232
  %v598 = vunpack.c.l.b16 %v233
  %v599 = vunpack.c.l.b16 %v234
  %v600 = vunpack.c.l.b16 %v235
  %v601 = vunpack.c.l.b16 %v236
  %v602 = vunpack.c.l.b16 %v237
  %v603 = vunpack.c.l.b16 %v238
  %v604 = vunpack.c.l.b16 %v239
  %v605 = vunpack.c.l.b16 %v240
  %v606 = vpack.c.b16 %v591, %v590
  %v607 = vpack.c.b16 %v593, %v592
  %v608 = vpack.c.b16 %v595, %v594
  %v609 = vpack.c.b16 %v597, %v596
  %v610 = vpack.c.b16 %v599, %v598
  %v611 = vpack.c.b16 %v601, %v600
  %v612 = vpack.c.b16 %v603, %v602
  %v613 = vpack.c.b16 %v605, %v604
  %622 = vmatprep.subr.bf16.mxu0 0
  %623 = vmatpush1.bf16.msra.mxu0 %v613
  %624 = vmatprep.subr.bf16.mxu0 0
  %625 = vmatpush1.bf16.msra.mxu0 %v612
  %626 = vmatprep.subr.bf16.mxu0 0
  %627 = vmatpush1.bf16.msra.mxu0 %v611
  %628 = vmatprep.subr.bf16.mxu0 0
  %629 = vmatpush1.bf16.msra.mxu0 %v610
  %630 = vmatprep.subr.bf16.mxu0 0
  %631 = vmatpush1.bf16.msra.mxu0 %v609
  %632 = vmatprep.subr.bf16.mxu0 0
  %633 = vmatpush1.bf16.msra.mxu0 %v608
  %634 = vmatprep.subr.bf16.mxu0 0
  %635 = vmatpush1.bf16.msra.mxu0 %v607
  %636 = vmatprep.subr.bf16.mxu0 0
  %637 = vmatpush1.bf16.msra.mxu0 %v606
  %638 = vmatprep.subr.bf16.mxu0 0
  %639 = vmatpush2.bf16.msra.mxu0 0
  %640 = vmatprep.subr.bf16.mxu0 0
  %641 = vmatpush2.bf16.msra.mxu0 0
  %642 = vmatprep.subr.bf16.mxu0 0
  %643 = vmatpush2.bf16.msra.mxu0 0
  %644 = vmatprep.subr.bf16.mxu0 0
  %645 = vmatpush2.bf16.msra.mxu0 0
  %646 = vmatprep.subr.bf16.mxu0 0
  %647 = vmatpush2.bf16.msra.mxu0 0
  %648 = vmatprep.subr.bf16.mxu0 0
  %649 = vmatpush2.bf16.msra.mxu0 0
  %650 = vmatprep.subr.bf16.mxu0 0
  %651 = vmatpush2.bf16.msra.mxu0 0
  %652 = vmatprep.subr.bf16.mxu0 0
  %653 = vmatpush2.bf16.msra.mxu0 0
  %654 = vmatprep.mubr.bf16.mxu0 0
  %655 = vmatmul.mubr.bf16.gmra.mxu0 %v207
  %v656 = vpop.f32.mrf.mxu0
  %v657 = vadd.f32 %v432, %v656
  %v658 = vpop.f32.mrf.mxu0
  %v659 = vpop.f32.mrf.mxu0
  %v660 = vadd.f32 %v435, %v659
  %v661 = vpop.f32.mrf.mxu0
  %662 = vmatprep.mubr.bf16.mxu0 0
  %663 = vmatmul.mubr.bf16.gmra.mxu0 %v208
  %v664 = vpop.f32.mrf.mxu0
  %v665 = vadd.f32 %v440, %v664
  %v666 = vpop.f32.mrf.mxu0
  %v667 = vpop.f32.mrf.mxu0
  %v668 = vadd.f32 %v443, %v667
  %v669 = vpop.f32.mrf.mxu0
  %670 = vmatprep.mubr.bf16.mxu0 0
  %671 = vmatmul.mubr.bf16.gmra.mxu0 %v209
  %v672 = vpop.f32.mrf.mxu0
  %v673 = vadd.f32 %v448, %v672
  %v674 = vpop.f32.mrf.mxu0
  %v675 = vpop.f32.mrf.mxu0
  %v676 = vadd.f32 %v451, %v675
  %v677 = vpop.f32.mrf.mxu0
  %678 = vmatprep.mubr.bf16.mxu0 0
  %679 = vmatmul.mubr.bf16.gmra.mxu0 %v210
  %v680 = vpop.f32.mrf.mxu0
  %v681 = vadd.f32 %v456, %v680
  %v682 = vpop.f32.mrf.mxu0
  %v683 = vpop.f32.mrf.mxu0
  %v684 = vadd.f32 %v459, %v683
  %v685 = vpop.f32.mrf.mxu0
  %686 = vmatprep.mubr.bf16.mxu0 0
  %687 = vmatmul.mubr.bf16.gmra.mxu0 %v211
  %v688 = vpop.f32.mrf.mxu0
  %v689 = vadd.f32 %v464, %v688
  %v690 = vpop.f32.mrf.mxu0
  %v691 = vpop.f32.mrf.mxu0
  %v692 = vadd.f32 %v467, %v691
  %v693 = vpop.f32.mrf.mxu0
  %694 = vmatprep.mubr.bf16.mxu0 0
  %695 = vmatmul.mubr.bf16.gmra.mxu0 %v212
  %v696 = vpop.f32.mrf.mxu0
  %v697 = vadd.f32 %v472, %v696
  %v698 = vpop.f32.mrf.mxu0
  %v699 = vpop.f32.mrf.mxu0
  %v700 = vadd.f32 %v475, %v699
  %v701 = vpop.f32.mrf.mxu0
  %702 = vmatprep.mubr.bf16.mxu0 0
  %703 = vmatmul.mubr.bf16.gmra.mxu0 %v213
  %v704 = vpop.f32.mrf.mxu0
  %v705 = vadd.f32 %v480, %v704
  %v706 = vpop.f32.mrf.mxu0
  %v707 = vpop.f32.mrf.mxu0
  %v708 = vadd.f32 %v483, %v707
  %v709 = vpop.f32.mrf.mxu0
  %710 = vmatprep.mubr.bf16.mxu0 0
  %711 = vmatmul.mubr.bf16.gmra.mxu0 %v214
  %v712 = vpop.f32.mrf.mxu0
  %v713 = vadd.f32 %v488, %v712
  %v714 = vpop.f32.mrf.mxu0
  %v715 = vpop.f32.mrf.mxu0
  %v716 = vadd.f32 %v491, %v715
  %v717 = vpop.f32.mrf.mxu0
  %718 = vmatprep.mubr.bf16.mxu0 0
  %719 = vmatmul.mubr.bf16.gmra.mxu0 %v215
  %v720 = vpop.f32.mrf.mxu0
  %v721 = vadd.f32 %v496, %v720
  %v722 = vpop.f32.mrf.mxu0
  %v723 = vpop.f32.mrf.mxu0
  %v724 = vadd.f32 %v499, %v723
  %v725 = vpop.f32.mrf.mxu0
  %726 = vmatprep.mubr.bf16.mxu0 0
  %727 = vmatmul.mubr.bf16.gmra.mxu0 %v216
  %v728 = vpop.f32.mrf.mxu0
  %v729 = vadd.f32 %v504, %v728
  %v730 = vpop.f32.mrf.mxu0
  %v731 = vpop.f32.mrf.mxu0
  %v732 = vadd.f32 %v507, %v731
  %v733 = vpop.f32.mrf.mxu0
  %734 = vmatprep.mubr.bf16.mxu0 0
  %735 = vmatmul.mubr.bf16.gmra.mxu0 %v217
  %v736 = vpop.f32.mrf.mxu0
  %v737 = vadd.f32 %v512, %v736
  %v738 = vpop.f32.mrf.mxu0
  %v739 = vpop.f32.mrf.mxu0
  %v740 = vadd.f32 %v515, %v739
  %v741 = vpop.f32.mrf.mxu0
  %742 = vmatprep.mubr.bf16.mxu0 0
  %743 = vmatmul.mubr.bf16.gmra.mxu0 %v218
  %v744 = vpop.f32.mrf.mxu0
  %v745 = vadd.f32 %v520, %v744
  %v746 = vpop.f32.mrf.mxu0
  %v747 = vpop.f32.mrf.mxu0
  %v748 = vadd.f32 %v523, %v747
  %v749 = vpop.f32.mrf.mxu0
  %750 = vmatprep.mubr.bf16.mxu0 0
  %751 = vmatmul.mubr.bf16.gmra.mxu0 %v219
  %v752 = vpop.f32.mrf.mxu0
  %v753 = vadd.f32 %v528, %v752
  %v754 = vpop.f32.mrf.mxu0
  %v755 = vpop.f32.mrf.mxu0
  %v756 = vadd.f32 %v531, %v755
  %v757 = vpop.f32.mrf.mxu0
  %758 = vmatprep.mubr.bf16.mxu0 0
  %759 = vmatmul.mubr.bf16.gmra.mxu0 %v220
  %v760 = vpop.f32.mrf.mxu0
  %v761 = vadd.f32 %v536, %v760
  %v762 = vpop.f32.mrf.mxu0
  %v763 = vpop.f32.mrf.mxu0
  %v764 = vadd.f32 %v539, %v763
  %v765 = vpop.f32.mrf.mxu0
  %766 = vmatprep.mubr.bf16.mxu0 0
  %767 = vmatmul.mubr.bf16.gmra.mxu0 %v221
  %v768 = vpop.f32.mrf.mxu0
  %v769 = vadd.f32 %v544, %v768
  %v770 = vpop.f32.mrf.mxu0
  %v771 = vpop.f32.mrf.mxu0
  %v772 = vadd.f32 %v547, %v771
  %v773 = vpop.f32.mrf.mxu0
  %774 = vmatprep.mubr.bf16.mxu0 0
  %775 = vmatmul.mubr.bf16.gmra.mxu0 %v222
  %v776 = vpop.f32.mrf.mxu0
  %v777 = vadd.f32 %v552, %v776
  %v778 = vpop.f32.mrf.mxu0
  %v779 = vpop.f32.mrf.mxu0
  %v780 = vadd.f32 %v555, %v779
  %v781 = vpop.f32.mrf.mxu0
  %782 = vmatprep.mubr.bf16.mxu0 0
  %783 = vmatmul.mubr.bf16.gmra.mxu0 %v223
  %v784 = vpop.f32.mrf.mxu0
  %v785 = vadd.f32 %v560, %v784
  %v786 = vpop.f32.mrf.mxu0
  %v787 = vpop.f32.mrf.mxu0
  %v788 = vadd.f32 %v563, %v787
  %v789 = vpop.f32.mrf.mxu0
  %790 = vmatprep.mubr.bf16.mxu0 0
  %791 = vmatmul.mubr.bf16.gmra.mxu0 %v224
  %v792 = vpop.f32.mrf.mxu0
  %v793 = vadd.f32 %v568, %v792
  %v794 = vpop.f32.mrf.mxu0
  %v795 = vpop.f32.mrf.mxu0
  %v796 = vadd.f32 %v571, %v795
  %v797 = vpop.f32.mrf.mxu0
  %798 = vdwg.mxu0
  %v799 = vpack.c.bf16 %v60, %v95
  %v800 = vpack.c.bf16 %v62, %v61
  %v801 = vpack.c.bf16 %v64, %v63
  %v802 = vpack.c.bf16 %v66, %v65
  %v803 = vpack.c.bf16 %v68, %v67
  %v804 = vpack.c.bf16 %v70, %v69
  %v805 = vpack.c.bf16 %v72, %v71
  %v806 = vpack.c.bf16 %v74, %v73
  %v807 = vpack.c.bf16 %v76, %v75
  %v808 = vpack.c.bf16 %v78, %v77
  %v809 = vpack.c.bf16 %v80, %v79
  %v810 = vpack.c.bf16 %v82, %v81
  %v811 = vpack.c.bf16 %v84, %v83
  %v812 = vpack.c.bf16 %v86, %v85
  %v813 = vpack.c.bf16 %v88, %v87
  %v814 = vpack.c.bf16 %v90, %v89
  %v815 = vpack.c.bf16 %v92, %v91
  %v816 = vpack.c.bf16 %v94, %v93
  %s817 = scalar_lea.vmem %s1, 128
  %v818 = vld [vmem:[%s817] sm:$0xf]
  %v819 = vld [vmem:[%s817 + $0x4] sm:$0xf]
  %v820 = vld [vmem:[%s817 + $0x8] sm:$0xf]
  %v821 = vld [vmem:[%s817 + $0xc] sm:$0xf]
  %v822 = vld [vmem:[%s817 + $0x10] sm:$0xf]
  %v823 = vld [vmem:[%s817 + $0x14] sm:$0xf]
  %v824 = vld [vmem:[%s817 + $0x18] sm:$0xf]
  %v825 = vld [vmem:[%s817 + $0x1c] sm:$0xf]
  %v826 = vld [vmem:[%s817 + $0x20] sm:$0xf]
  %v827 = vld [vmem:[%s817 + $0x24] sm:$0xf]
  %v828 = vld [vmem:[%s817 + $0x28] sm:$0xf]
  %v829 = vld [vmem:[%s817 + $0x2c] sm:$0xf]
  %v830 = vld [vmem:[%s817 + $0x30] sm:$0xf]
  %v831 = vld [vmem:[%s817 + $0x34] sm:$0xf]
  %v832 = vld [vmem:[%s817 + $0x38] sm:$0xf]
  %v833 = vld [vmem:[%s817 + $0x3c] sm:$0xf]
  %v850 = vunpack.c.l.b16 %v818
  %v851 = vunpack.c.l.b16 %v819
  %v852 = vunpack.c.l.b16 %v820
  %v853 = vunpack.c.l.b16 %v821
  %v854 = vunpack.c.l.b16 %v822
  %v855 = vunpack.c.l.b16 %v823
  %v856 = vunpack.c.l.b16 %v824
  %v857 = vunpack.c.l.b16 %v825
  %v858 = vunpack.c.l.b16 %v826
  %v859 = vunpack.c.l.b16 %v827
  %v860 = vunpack.c.l.b16 %v828
  %v861 = vunpack.c.l.b16 %v829
  %v862 = vunpack.c.l.b16 %v830
  %v863 = vunpack.c.l.b16 %v831
  %v864 = vunpack.c.l.b16 %v832
  %v865 = vunpack.c.l.b16 %v833
  %v866 = vpack.c.b16 %v851, %v850
  %v867 = vpack.c.b16 %v853, %v852
  %v868 = vpack.c.b16 %v855, %v854
  %v869 = vpack.c.b16 %v857, %v856
  %v870 = vpack.c.b16 %v859, %v858
  %v871 = vpack.c.b16 %v861, %v860
  %v872 = vpack.c.b16 %v863, %v862
  %v873 = vpack.c.b16 %v865, %v864
  %882 = vmatprep.subr.bf16.mxu0 0
  %883 = vmatpush1.bf16.msra.mxu0 %v873
  %884 = vmatprep.subr.bf16.mxu0 0
  %885 = vmatpush1.bf16.msra.mxu0 %v872
  %886 = vmatprep.subr.bf16.mxu0 0
  %887 = vmatpush1.bf16.msra.mxu0 %v871
  %888 = vmatprep.subr.bf16.mxu0 0
  %889 = vmatpush1.bf16.msra.mxu0 %v870
  %890 = vmatprep.subr.bf16.mxu0 0
  %891 = vmatpush1.bf16.msra.mxu0 %v869
  %892 = vmatprep.subr.bf16.mxu0 0
  %893 = vmatpush1.bf16.msra.mxu0 %v868
  %894 = vmatprep.subr.bf16.mxu0 0
  %895 = vmatpush1.bf16.msra.mxu0 %v867
  %896 = vmatprep.subr.bf16.mxu0 0
  %897 = vmatpush1.bf16.msra.mxu0 %v866
  %898 = vmatprep.subr.bf16.mxu0 0
  %899 = vmatpush2.bf16.msra.mxu0 0
  %900 = vmatprep.subr.bf16.mxu0 0
  %901 = vmatpush2.bf16.msra.mxu0 0
  %902 = vmatprep.subr.bf16.mxu0 0
  %903 = vmatpush2.bf16.msra.mxu0 0
  %904 = vmatprep.subr.bf16.mxu0 0
  %905 = vmatpush2.bf16.msra.mxu0 0
  %906 = vmatprep.subr.bf16.mxu0 0
  %907 = vmatpush2.bf16.msra.mxu0 0
  %908 = vmatprep.subr.bf16.mxu0 0
  %909 = vmatpush2.bf16.msra.mxu0 0
  %910 = vmatprep.subr.bf16.mxu0 0
  %911 = vmatpush2.bf16.msra.mxu0 0
  %912 = vmatprep.subr.bf16.mxu0 0
  %913 = vmatpush2.bf16.msra.mxu0 0
  %914 = vmatprep.mubr.bf16.mxu0 0
  %915 = vmatmul.mubr.bf16.gmra.mxu0 %v799
  %v916 = vpop.f32.mrf.mxu0
  %v917 = vadd.f32 0.0, %v916
  %v918 = vpop.f32.mrf.mxu0
  %v919 = vpop.f32.mrf.mxu0
  %v920 = vadd.f32 0.0, %v919
  %v921 = vpop.f32.mrf.mxu0
  %922 = vmatprep.mubr.bf16.mxu0 0
  %923 = vmatmul.mubr.bf16.gmra.mxu0 %v800
  %v924 = vpop.f32.mrf.mxu0
  %v925 = vadd.f32 0.0, %v924
  %v926 = vpop.f32.mrf.mxu0
  %v927 = vpop.f32.mrf.mxu0
  %v928 = vadd.f32 0.0, %v927
  %v929 = vpop.f32.mrf.mxu0
  %930 = vmatprep.mubr.bf16.mxu0 0
  %931 = vmatmul.mubr.bf16.gmra.mxu0 %v801
  %v932 = vpop.f32.mrf.mxu0
  %v933 = vadd.f32 0.0, %v932
  %v934 = vpop.f32.mrf.mxu0
  %v935 = vpop.f32.mrf.mxu0
  %v936 = vadd.f32 0.0, %v935
  %v937 = vpop.f32.mrf.mxu0
  %938 = vmatprep.mubr.bf16.mxu0 0
  %939 = vmatmul.mubr.bf16.gmra.mxu0 %v802
  %v940 = vpop.f32.mrf.mxu0
  %v941 = vadd.f32 0.0, %v940
  %v942 = vpop.f32.mrf.mxu0
  %v943 = vpop.f32.mrf.mxu0
  %v944 = vadd.f32 0.0, %v943
  %v945 = vpop.f32.mrf.mxu0
  %946 = vmatprep.mubr.bf16.mxu0 0
  %947 = vmatmul.mubr.bf16.gmra.mxu0 %v803
  %v948 = vpop.f32.mrf.mxu0
  %v949 = vadd.f32 0.0, %v948
  %v950 = vpop.f32.mrf.mxu0
  %v951 = vpop.f32.mrf.mxu0
  %v952 = vadd.f32 0.0, %v951
  %v953 = vpop.f32.mrf.mxu0
  %954 = vmatprep.mubr.bf16.mxu0 0
  %955 = vmatmul.mubr.bf16.gmra.mxu0 %v804
  %v956 = vpop.f32.mrf.mxu0
  %v957 = vadd.f32 0.0, %v956
  %v958 = vpop.f32.mrf.mxu0
  %v959 = vpop.f32.mrf.mxu0
  %v960 = vadd.f32 0.0, %v959
  %v961 = vpop.f32.mrf.mxu0
  %962 = vmatprep.mubr.bf16.mxu0 0
  %963 = vmatmul.mubr.bf16.gmra.mxu0 %v805
  %v964 = vpop.f32.mrf.mxu0
  %v965 = vadd.f32 0.0, %v964
  %v966 = vpop.f32.mrf.mxu0
  %v967 = vpop.f32.mrf.mxu0
  %v968 = vadd.f32 0.0, %v967
  %v969 = vpop.f32.mrf.mxu0
  %970 = vmatprep.mubr.bf16.mxu0 0
  %971 = vmatmul.mubr.bf16.gmra.mxu0 %v806
  %v972 = vpop.f32.mrf.mxu0
  %v973 = vadd.f32 0.0, %v972
  %v974 = vpop.f32.mrf.mxu0
  %v975 = vpop.f32.mrf.mxu0
  %v976 = vadd.f32 0.0, %v975
  %v977 = vpop.f32.mrf.mxu0
  %978 = vmatprep.mubr.bf16.mxu0 0
  %979 = vmatmul.mubr.bf16.gmra.mxu0 %v807
  %v980 = vpop.f32.mrf.mxu0
  %v981 = vadd.f32 0.0, %v980
  %v982 = vpop.f32.mrf.mxu0
  %v983 = vpop.f32.mrf.mxu0
  %v984 = vadd.f32 0.0, %v983
  %v985 = vpop.f32.mrf.mxu0
  %986 = vmatprep.mubr.bf16.mxu0 0
  %987 = vmatmul.mubr.bf16.gmra.mxu0 %v808
  %v988 = vpop.f32.mrf.mxu0
  %v989 = vadd.f32 0.0, %v988
  %v990 = vpop.f32.mrf.mxu0
  %v991 = vpop.f32.mrf.mxu0
  %v992 = vadd.f32 0.0, %v991
  %v993 = vpop.f32.mrf.mxu0
  %994 = vmatprep.mubr.bf16.mxu0 0
  %995 = vmatmul.mubr.bf16.gmra.mxu0 %v809
  %v996 = vpop.f32.mrf.mxu0
  %v997 = vadd.f32 0.0, %v996
  %v998 = vpop.f32.mrf.mxu0
  %v999 = vpop.f32.mrf.mxu0
  %v1000 = vadd.f32 0.0, %v999
  %v1001 = vpop.f32.mrf.mxu0
  %1002 = vmatprep.mubr.bf16.mxu0 0
  %1003 = vmatmul.mubr.bf16.gmra.mxu0 %v810
  %v1004 = vpop.f32.mrf.mxu0
  %v1005 = vadd.f32 0.0, %v1004
  %v1006 = vpop.f32.mrf.mxu0
  %v1007 = vpop.f32.mrf.mxu0
  %v1008 = vadd.f32 0.0, %v1007
  %v1009 = vpop.f32.mrf.mxu0
  %1010 = vmatprep.mubr.bf16.mxu0 0
  %1011 = vmatmul.mubr.bf16.gmra.mxu0 %v811
  %v1012 = vpop.f32.mrf.mxu0
  %v1013 = vadd.f32 0.0, %v1012
  %v1014 = vpop.f32.mrf.mxu0
  %v1015 = vpop.f32.mrf.mxu0
  %v1016 = vadd.f32 0.0, %v1015
  %v1017 = vpop.f32.mrf.mxu0
  %1018 = vmatprep.mubr.bf16.mxu0 0
  %1019 = vmatmul.mubr.bf16.gmra.mxu0 %v812
  %v1020 = vpop.f32.mrf.mxu0
  %v1021 = vadd.f32 0.0, %v1020
  %v1022 = vpop.f32.mrf.mxu0
  %v1023 = vpop.f32.mrf.mxu0
  %v1024 = vadd.f32 0.0, %v1023
  %v1025 = vpop.f32.mrf.mxu0
  %1026 = vmatprep.mubr.bf16.mxu0 0
  %1027 = vmatmul.mubr.bf16.gmra.mxu0 %v813
  %v1028 = vpop.f32.mrf.mxu0
  %v1029 = vadd.f32 0.0, %v1028
  %v1030 = vpop.f32.mrf.mxu0
  %v1031 = vpop.f32.mrf.mxu0
  %v1032 = vadd.f32 0.0, %v1031
  %v1033 = vpop.f32.mrf.mxu0
  %1034 = vmatprep.mubr.bf16.mxu0 0
  %1035 = vmatmul.mubr.bf16.gmra.mxu0 %v814
  %v1036 = vpop.f32.mrf.mxu0
  %v1037 = vadd.f32 0.0, %v1036
  %v1038 = vpop.f32.mrf.mxu0
  %v1039 = vpop.f32.mrf.mxu0
  %v1040 = vadd.f32 0.0, %v1039
  %v1041 = vpop.f32.mrf.mxu0
  %1042 = vmatprep.mubr.bf16.mxu0 0
  %1043 = vmatmul.mubr.bf16.gmra.mxu0 %v815
  %v1044 = vpop.f32.mrf.mxu0
  %v1045 = vadd.f32 0.0, %v1044
  %v1046 = vpop.f32.mrf.mxu0
  %v1047 = vpop.f32.mrf.mxu0
  %v1048 = vadd.f32 0.0, %v1047
  %v1049 = vpop.f32.mrf.mxu0
  %1050 = vmatprep.mubr.bf16.mxu0 0
  %1051 = vmatmul.mubr.bf16.gmra.mxu0 %v816
  %v1052 = vpop.f32.mrf.mxu0
  %v1053 = vadd.f32 0.0, %v1052
  %v1054 = vpop.f32.mrf.mxu0
  %v1055 = vpop.f32.mrf.mxu0
  %v1056 = vadd.f32 0.0, %v1055
  %v1057 = vpop.f32.mrf.mxu0
  %1058 = vdwg.mxu0
  %v1059 = vadd.f32 %v657, %v917
  %v1060 = vadd.f32 %v660, %v920
  %v1061 = vadd.f32 %v665, %v925
  %v1062 = vadd.f32 %v668, %v928
  %v1063 = vadd.f32 %v673, %v933
  %v1064 = vadd.f32 %v676, %v936
  %v1065 = vadd.f32 %v681, %v941
  %v1066 = vadd.f32 %v684, %v944
  %v1067 = vadd.f32 %v689, %v949
  %v1068 = vadd.f32 %v692, %v952
  %v1069 = vadd.f32 %v697, %v957
  %v1070 = vadd.f32 %v700, %v960
  %v1071 = vadd.f32 %v705, %v965
  %v1072 = vadd.f32 %v708, %v968
  %v1073 = vadd.f32 %v713, %v973
  %v1074 = vadd.f32 %v716, %v976
  %v1075 = vadd.f32 %v721, %v981
  %v1076 = vadd.f32 %v724, %v984
  %v1077 = vadd.f32 %v729, %v989
  %v1078 = vadd.f32 %v732, %v992
  %v1079 = vadd.f32 %v737, %v997
  %v1080 = vadd.f32 %v740, %v1000
  %v1081 = vadd.f32 %v745, %v1005
  %v1082 = vadd.f32 %v748, %v1008
  %v1083 = vadd.f32 %v753, %v1013
  %v1084 = vadd.f32 %v756, %v1016
  %v1085 = vadd.f32 %v761, %v1021
  %v1086 = vadd.f32 %v764, %v1024
  %v1087 = vadd.f32 %v769, %v1029
  %v1088 = vadd.f32 %v772, %v1032
  %v1089 = vadd.f32 %v777, %v1037
  %v1090 = vadd.f32 %v780, %v1040
  %v1091 = vadd.f32 %v785, %v1045
  %v1092 = vadd.f32 %v788, %v1048
  %v1093 = vadd.f32 %v793, %v1053
  %v1094 = vadd.f32 %v796, %v1056
  %v1095 = vpack.c.bf16 %v312, %v313
  %v1096 = vpack.c.bf16 %v310, %v311
  %v1097 = vpack.c.bf16 %v308, %v309
  %v1098 = vpack.c.bf16 %v306, %v307
  %v1099 = vpack.c.bf16 %v304, %v305
  %v1100 = vpack.c.bf16 %v302, %v303
  %v1101 = vpack.c.bf16 %v300, %v301
  %v1102 = vpack.c.bf16 %v298, %v299
  %v1103 = vpack.c.bf16 %v296, %v297
  %v1104 = vpack.c.bf16 %v294, %v295
  %v1105 = vpack.c.bf16 %v292, %v293
  %v1106 = vpack.c.bf16 %v290, %v291
  %v1107 = vpack.c.bf16 %v288, %v289
  %v1108 = vpack.c.bf16 %v286, %v287
  %v1109 = vpack.c.bf16 %v284, %v285
  %v1110 = vpack.c.bf16 %v282, %v283
  %v1111 = vpack.c.bf16 %v280, %v281
  %v1112 = vpack.c.bf16 %v278, %v279
  %s1113 = scalar_lea.vmem %s1, 192
  %v1114 = vld [vmem:[%s1113] sm:$0xf]
  %v1115 = vld [vmem:[%s1113 + $0x4] sm:$0xf]
  %v1116 = vld [vmem:[%s1113 + $0x8] sm:$0xf]
  %v1117 = vld [vmem:[%s1113 + $0xc] sm:$0xf]
  %v1118 = vld [vmem:[%s1113 + $0x10] sm:$0xf]
  %v1119 = vld [vmem:[%s1113 + $0x14] sm:$0xf]
  %v1120 = vld [vmem:[%s1113 + $0x18] sm:$0xf]
  %v1121 = vld [vmem:[%s1113 + $0x1c] sm:$0xf]
  %v1122 = vld [vmem:[%s1113 + $0x20] sm:$0xf]
  %v1123 = vld [vmem:[%s1113 + $0x24] sm:$0xf]
  %v1124 = vld [vmem:[%s1113 + $0x28] sm:$0xf]
  %v1125 = vld [vmem:[%s1113 + $0x2c] sm:$0xf]
  %v1126 = vld [vmem:[%s1113 + $0x30] sm:$0xf]
  %v1127 = vld [vmem:[%s1113 + $0x34] sm:$0xf]
  %v1128 = vld [vmem:[%s1113 + $0x38] sm:$0xf]
  %v1129 = vld [vmem:[%s1113 + $0x3c] sm:$0xf]
  %v1146 = vunpack.c.l.b16 %v1114
  %v1147 = vunpack.c.l.b16 %v1115
  %v1148 = vunpack.c.l.b16 %v1116
  %v1149 = vunpack.c.l.b16 %v1117
  %v1150 = vunpack.c.l.b16 %v1118
  %v1151 = vunpack.c.l.b16 %v1119
  %v1152 = vunpack.c.l.b16 %v1120
  %v1153 = vunpack.c.l.b16 %v1121
  %v1154 = vunpack.c.l.b16 %v1122
  %v1155 = vunpack.c.l.b16 %v1123
  %v1156 = vunpack.c.l.b16 %v1124
  %v1157 = vunpack.c.l.b16 %v1125
  %v1158 = vunpack.c.l.b16 %v1126
  %v1159 = vunpack.c.l.b16 %v1127
  %v1160 = vunpack.c.l.b16 %v1128
  %v1161 = vunpack.c.l.b16 %v1129
  %v1162 = vpack.c.b16 %v1147, %v1146
  %v1163 = vpack.c.b16 %v1149, %v1148
  %v1164 = vpack.c.b16 %v1151, %v1150
  %v1165 = vpack.c.b16 %v1153, %v1152
  %v1166 = vpack.c.b16 %v1155, %v1154
  %v1167 = vpack.c.b16 %v1157, %v1156
  %v1168 = vpack.c.b16 %v1159, %v1158
  %v1169 = vpack.c.b16 %v1161, %v1160
  %1178 = vmatprep.subr.bf16.mxu0 0
  %1179 = vmatpush1.bf16.msra.mxu0 %v1169
  %1180 = vmatprep.subr.bf16.mxu0 0
  %1181 = vmatpush1.bf16.msra.mxu0 %v1168
  %1182 = vmatprep.subr.bf16.mxu0 0
  %1183 = vmatpush1.bf16.msra.mxu0 %v1167
  %1184 = vmatprep.subr.bf16.mxu0 0
  %1185 = vmatpush1.bf16.msra.mxu0 %v1166
  %1186 = vmatprep.subr.bf16.mxu0 0
  %1187 = vmatpush1.bf16.msra.mxu0 %v1165
  %1188 = vmatprep.subr.bf16.mxu0 0
  %1189 = vmatpush1.bf16.msra.mxu0 %v1164
  %1190 = vmatprep.subr.bf16.mxu0 0
  %1191 = vmatpush1.bf16.msra.mxu0 %v1163
  %1192 = vmatprep.subr.bf16.mxu0 0
  %1193 = vmatpush1.bf16.msra.mxu0 %v1162
  %1194 = vmatprep.subr.bf16.mxu0 0
  %1195 = vmatpush2.bf16.msra.mxu0 0
  %1196 = vmatprep.subr.bf16.mxu0 0
  %1197 = vmatpush2.bf16.msra.mxu0 0
  %1198 = vmatprep.subr.bf16.mxu0 0
  %1199 = vmatpush2.bf16.msra.mxu0 0
  %1200 = vmatprep.subr.bf16.mxu0 0
  %1201 = vmatpush2.bf16.msra.mxu0 0
  %1202 = vmatprep.subr.bf16.mxu0 0
  %1203 = vmatpush2.bf16.msra.mxu0 0
  %1204 = vmatprep.subr.bf16.mxu0 0
  %1205 = vmatpush2.bf16.msra.mxu0 0
  %1206 = vmatprep.subr.bf16.mxu0 0
  %1207 = vmatpush2.bf16.msra.mxu0 0
  %1208 = vmatprep.subr.bf16.mxu0 0
  %1209 = vmatpush2.bf16.msra.mxu0 0
  %1210 = vmatprep.mubr.bf16.mxu0 0
  %1211 = vmatmul.mubr.bf16.gmra.mxu0 %v1095
  %v1212 = vpop.f32.mrf.mxu0
  %v1213 = vadd.f32 0.0, %v1212
  %v1214 = vpop.f32.mrf.mxu0
  %v1215 = vpop.f32.mrf.mxu0
  %v1216 = vadd.f32 0.0, %v1215
  %v1217 = vpop.f32.mrf.mxu0
  %1218 = vmatprep.mubr.bf16.mxu0 0
  %1219 = vmatmul.mubr.bf16.gmra.mxu0 %v1096
  %v1220 = vpop.f32.mrf.mxu0
  %v1221 = vadd.f32 0.0, %v1220
  %v1222 = vpop.f32.mrf.mxu0
  %v1223 = vpop.f32.mrf.mxu0
  %v1224 = vadd.f32 0.0, %v1223
  %v1225 = vpop.f32.mrf.mxu0
  %1226 = vmatprep.mubr.bf16.mxu0 0
  %1227 = vmatmul.mubr.bf16.gmra.mxu0 %v1097
  %v1228 = vpop.f32.mrf.mxu0
  %v1229 = vadd.f32 0.0, %v1228
  %v1230 = vpop.f32.mrf.mxu0
  %v1231 = vpop.f32.mrf.mxu0
  %v1232 = vadd.f32 0.0, %v1231
  %v1233 = vpop.f32.mrf.mxu0
  %1234 = vmatprep.mubr.bf16.mxu0 0
  %1235 = vmatmul.mubr.bf16.gmra.mxu0 %v1098
  %v1236 = vpop.f32.mrf.mxu0
  %v1237 = vadd.f32 0.0, %v1236
  %v1238 = vpop.f32.mrf.mxu0
  %v1239 = vpop.f32.mrf.mxu0
  %v1240 = vadd.f32 0.0, %v1239
  %v1241 = vpop.f32.mrf.mxu0
  %1242 = vmatprep.mubr.bf16.mxu0 0
  %1243 = vmatmul.mubr.bf16.gmra.mxu0 %v1099
  %v1244 = vpop.f32.mrf.mxu0
  %v1245 = vadd.f32 0.0, %v1244
  %v1246 = vpop.f32.mrf.mxu0
  %v1247 = vpop.f32.mrf.mxu0
  %v1248 = vadd.f32 0.0, %v1247
  %v1249 = vpop.f32.mrf.mxu0
  %1250 = vmatprep.mubr.bf16.mxu0 0
  %1251 = vmatmul.mubr.bf16.gmra.mxu0 %v1100
  %v1252 = vpop.f32.mrf.mxu0
  %v1253 = vadd.f32 0.0, %v1252
  %v1254 = vpop.f32.mrf.mxu0
  %v1255 = vpop.f32.mrf.mxu0
  %v1256 = vadd.f32 0.0, %v1255
  %v1257 = vpop.f32.mrf.mxu0
  %1258 = vmatprep.mubr.bf16.mxu0 0
  %1259 = vmatmul.mubr.bf16.gmra.mxu0 %v1101
  %v1260 = vpop.f32.mrf.mxu0
  %v1261 = vadd.f32 0.0, %v1260
  %v1262 = vpop.f32.mrf.mxu0
  %v1263 = vpop.f32.mrf.mxu0
  %v1264 = vadd.f32 0.0, %v1263
  %v1265 = vpop.f32.mrf.mxu0
  %1266 = vmatprep.mubr.bf16.mxu0 0
  %1267 = vmatmul.mubr.bf16.gmra.mxu0 %v1102
  %v1268 = vpop.f32.mrf.mxu0
  %v1269 = vadd.f32 0.0, %v1268
  %v1270 = vpop.f32.mrf.mxu0
  %v1271 = vpop.f32.mrf.mxu0
  %v1272 = vadd.f32 0.0, %v1271
  %v1273 = vpop.f32.mrf.mxu0
  %1274 = vmatprep.mubr.bf16.mxu0 0
  %1275 = vmatmul.mubr.bf16.gmra.mxu0 %v1103
  %v1276 = vpop.f32.mrf.mxu0
  %v1277 = vadd.f32 0.0, %v1276
  %v1278 = vpop.f32.mrf.mxu0
  %v1279 = vpop.f32.mrf.mxu0
  %v1280 = vadd.f32 0.0, %v1279
  %v1281 = vpop.f32.mrf.mxu0
  %1282 = vmatprep.mubr.bf16.mxu0 0
  %1283 = vmatmul.mubr.bf16.gmra.mxu0 %v1104
  %v1284 = vpop.f32.mrf.mxu0
  %v1285 = vadd.f32 0.0, %v1284
  %v1286 = vpop.f32.mrf.mxu0
  %v1287 = vpop.f32.mrf.mxu0
  %v1288 = vadd.f32 0.0, %v1287
  %v1289 = vpop.f32.mrf.mxu0
  %1290 = vmatprep.mubr.bf16.mxu0 0
  %1291 = vmatmul.mubr.bf16.gmra.mxu0 %v1105
  %v1292 = vpop.f32.mrf.mxu0
  %v1293 = vadd.f32 0.0, %v1292
  %v1294 = vpop.f32.mrf.mxu0
  %v1295 = vpop.f32.mrf.mxu0
  %v1296 = vadd.f32 0.0, %v1295
  %v1297 = vpop.f32.mrf.mxu0
  %1298 = vmatprep.mubr.bf16.mxu0 0
  %1299 = vmatmul.mubr.bf16.gmra.mxu0 %v1106
  %v1300 = vpop.f32.mrf.mxu0
  %v1301 = vadd.f32 0.0, %v1300
  %v1302 = vpop.f32.mrf.mxu0
  %v1303 = vpop.f32.mrf.mxu0
  %v1304 = vadd.f32 0.0, %v1303
  %v1305 = vpop.f32.mrf.mxu0
  %1306 = vmatprep.mubr.bf16.mxu0 0
  %1307 = vmatmul.mubr.bf16.gmra.mxu0 %v1107
  %v1308 = vpop.f32.mrf.mxu0
  %v1309 = vadd.f32 0.0, %v1308
  %v1310 = vpop.f32.mrf.mxu0
  %v1311 = vpop.f32.mrf.mxu0
  %v1312 = vadd.f32 0.0, %v1311
  %v1313 = vpop.f32.mrf.mxu0
  %1314 = vmatprep.mubr.bf16.mxu0 0
  %1315 = vmatmul.mubr.bf16.gmra.mxu0 %v1108
  %v1316 = vpop.f32.mrf.mxu0
  %v1317 = vadd.f32 0.0, %v1316
  %v1318 = vpop.f32.mrf.mxu0
  %v1319 = vpop.f32.mrf.mxu0
  %v1320 = vadd.f32 0.0, %v1319
  %v1321 = vpop.f32.mrf.mxu0
  %1322 = vmatprep.mubr.bf16.mxu0 0
  %1323 = vmatmul.mubr.bf16.gmra.mxu0 %v1109
  %v1324 = vpop.f32.mrf.mxu0
  %v1325 = vadd.f32 0.0, %v1324
  %v1326 = vpop.f32.mrf.mxu0
  %v1327 = vpop.f32.mrf.mxu0
  %v1328 = vadd.f32 0.0, %v1327
  %v1329 = vpop.f32.mrf.mxu0
  %1330 = vmatprep.mubr.bf16.mxu0 0
  %1331 = vmatmul.mubr.bf16.gmra.mxu0 %v1110
  %v1332 = vpop.f32.mrf.mxu0
  %v1333 = vadd.f32 0.0, %v1332
  %v1334 = vpop.f32.mrf.mxu0
  %v1335 = vpop.f32.mrf.mxu0
  %v1336 = vadd.f32 0.0, %v1335
  %v1337 = vpop.f32.mrf.mxu0
  %1338 = vmatprep.mubr.bf16.mxu0 0
  %1339 = vmatmul.mubr.bf16.gmra.mxu0 %v1111
  %v1340 = vpop.f32.mrf.mxu0
  %v1341 = vadd.f32 0.0, %v1340
  %v1342 = vpop.f32.mrf.mxu0
  %v1343 = vpop.f32.mrf.mxu0
  %v1344 = vadd.f32 0.0, %v1343
  %v1345 = vpop.f32.mrf.mxu0
  %1346 = vmatprep.mubr.bf16.mxu0 0
  %1347 = vmatmul.mubr.bf16.gmra.mxu0 %v1112
  %v1348 = vpop.f32.mrf.mxu0
  %v1349 = vadd.f32 0.0, %v1348
  %v1350 = vpop.f32.mrf.mxu0
  %v1351 = vpop.f32.mrf.mxu0
  %v1352 = vadd.f32 0.0, %v1351
  %v1353 = vpop.f32.mrf.mxu0
  %1354 = vdwg.mxu0
  %v1355 = vadd.f32 %v1059, %v1213
  %v1356 = vadd.f32 %v1060, %v1216
  %v1357 = vadd.f32 %v1061, %v1221
  %v1358 = vadd.f32 %v1062, %v1224
  %v1359 = vadd.f32 %v1063, %v1229
  %v1360 = vadd.f32 %v1064, %v1232
  %v1361 = vadd.f32 %v1065, %v1237
  %v1362 = vadd.f32 %v1066, %v1240
  %v1363 = vadd.f32 %v1067, %v1245
  %v1364 = vadd.f32 %v1068, %v1248
  %v1365 = vadd.f32 %v1069, %v1253
  %v1366 = vadd.f32 %v1070, %v1256
  %v1367 = vadd.f32 %v1071, %v1261
  %v1368 = vadd.f32 %v1072, %v1264
  %v1369 = vadd.f32 %v1073, %v1269
  %v1370 = vadd.f32 %v1074, %v1272
  %v1371 = vadd.f32 %v1075, %v1277
  %v1372 = vadd.f32 %v1076, %v1280
  %v1373 = vadd.f32 %v1077, %v1285
  %v1374 = vadd.f32 %v1078, %v1288
  %v1375 = vadd.f32 %v1079, %v1293
  %v1376 = vadd.f32 %v1080, %v1296
  %v1377 = vadd.f32 %v1081, %v1301
  %v1378 = vadd.f32 %v1082, %v1304
  %v1379 = vadd.f32 %v1083, %v1309
  %v1380 = vadd.f32 %v1084, %v1312
  %v1381 = vadd.f32 %v1085, %v1317
  %v1382 = vadd.f32 %v1086, %v1320
  %v1383 = vadd.f32 %v1087, %v1325
  %v1384 = vadd.f32 %v1088, %v1328
  %v1385 = vadd.f32 %v1089, %v1333
  %v1386 = vadd.f32 %v1090, %v1336
  %v1387 = vadd.f32 %v1091, %v1341
  %v1388 = vadd.f32 %v1092, %v1344
  %v1389 = vadd.f32 %v1093, %v1349
  %v1390 = vadd.f32 %v1094, %v1352
  %s1391 = scalar_lea.vmem %s1, 256
  %v1392 = vld [vmem:[%s1391] sm:$0xf]
  %v1393 = vld [vmem:[%s1391 + $0x4] sm:$0xf]
  %v1394 = vld [vmem:[%s1391 + $0x8] sm:$0xf]
  %v1395 = vld [vmem:[%s1391 + $0xc] sm:$0xf]
  %v1396 = vld [vmem:[%s1391 + $0x10] sm:$0xf]
  %v1397 = vld [vmem:[%s1391 + $0x14] sm:$0xf]
  %v1398 = vld [vmem:[%s1391 + $0x18] sm:$0xf]
  %v1399 = vld [vmem:[%s1391 + $0x1c] sm:$0xf]
  %v1400 = vld [vmem:[%s1391 + $0x20] sm:$0xf]
  %v1401 = vld [vmem:[%s1391 + $0x24] sm:$0xf]
  %v1402 = vld [vmem:[%s1391 + $0x28] sm:$0xf]
  %v1403 = vld [vmem:[%s1391 + $0x2c] sm:$0xf]
  %v1404 = vld [vmem:[%s1391 + $0x30] sm:$0xf]
  %v1405 = vld [vmem:[%s1391 + $0x34] sm:$0xf]
  %v1406 = vld [vmem:[%s1391 + $0x38] sm:$0xf]
  %v1407 = vld [vmem:[%s1391 + $0x3c] sm:$0xf]
  %v1444 = vunpack.c.l.b16 %v24
  %v1445 = vunpack.c.l.b16 %v25
  %v1446 = vunpack.c.l.b16 %v26
  %v1447 = vunpack.c.l.b16 %v27
  %v1448 = vunpack.c.l.b16 %v28
  %v1449 = vunpack.c.l.b16 %v29
  %v1450 = vunpack.c.l.b16 %v30
  %v1451 = vunpack.c.l.b16 %v31
  %v1452 = vunpack.c.l.b16 %v32
  %v1453 = vunpack.c.l.b16 %v33
  %v1454 = vunpack.c.l.b16 %v34
  %v1455 = vunpack.c.l.b16 %v35
  %v1456 = vunpack.c.l.b16 %v36
  %v1457 = vunpack.c.l.b16 %v37
  %v1458 = vunpack.c.l.b16 %v38
  %v1459 = vunpack.c.l.b16 %v39
  %v1460 = vunpack.c.l.b16 %v40
  %v1461 = vunpack.c.l.b16 %v41
  %v1462 = vunpack.c.l.b16 %v42
  %v1463 = vunpack.c.l.b16 %v43
  %v1464 = vunpack.c.l.b16 %v44
  %v1465 = vunpack.c.l.b16 %v45
  %v1466 = vunpack.c.l.b16 %v46
  %v1467 = vunpack.c.l.b16 %v47
  %v1468 = vunpack.c.l.b16 %v48
  %v1469 = vunpack.c.l.b16 %v49
  %v1470 = vunpack.c.l.b16 %v50
  %v1471 = vunpack.c.l.b16 %v51
  %v1472 = vunpack.c.l.b16 %v52
  %v1473 = vunpack.c.l.b16 %v53
  %v1474 = vunpack.c.l.b16 %v54
  %v1475 = vunpack.c.l.b16 %v55
  %v1476 = vunpack.c.l.b16 %v56
  %v1477 = vunpack.c.l.b16 %v57
  %v1478 = vunpack.c.l.b16 %v58
  %v1479 = vunpack.c.l.b16 %v59
  %v1480 = vpack.c.b16 %v1445, %v1444
  %v1481 = vpack.c.b16 %v1447, %v1446
  %v1482 = vpack.c.b16 %v1449, %v1448
  %v1483 = vpack.c.b16 %v1451, %v1450
  %v1484 = vpack.c.b16 %v1453, %v1452
  %v1485 = vpack.c.b16 %v1455, %v1454
  %v1486 = vpack.c.b16 %v1457, %v1456
  %v1487 = vpack.c.b16 %v1459, %v1458
  %v1488 = vpack.c.b16 %v1461, %v1460
  %v1489 = vpack.c.b16 %v1463, %v1462
  %v1490 = vpack.c.b16 %v1465, %v1464
  %v1491 = vpack.c.b16 %v1467, %v1466
  %v1492 = vpack.c.b16 %v1469, %v1468
  %v1493 = vpack.c.b16 %v1471, %v1470
  %v1494 = vpack.c.b16 %v1473, %v1472
  %v1495 = vpack.c.b16 %v1475, %v1474
  %v1496 = vpack.c.b16 %v1477, %v1476
  %v1497 = vpack.c.b16 %v1479, %v1478
  %v1532 = vunpack.c.l.b16 %v1392
  %v1533 = vunpack.c.l.b16 %v1393
  %v1534 = vunpack.c.l.b16 %v1394
  %v1535 = vunpack.c.l.b16 %v1395
  %v1536 = vunpack.c.l.b16 %v1396
  %v1537 = vunpack.c.l.b16 %v1397
  %v1538 = vunpack.c.l.b16 %v1398
  %v1539 = vunpack.c.l.b16 %v1399
  %v1540 = vunpack.c.l.b16 %v1400
  %v1541 = vunpack.c.l.b16 %v1401
  %v1542 = vunpack.c.l.b16 %v1402
  %v1543 = vunpack.c.l.b16 %v1403
  %v1544 = vunpack.c.l.b16 %v1404
  %v1545 = vunpack.c.l.b16 %v1405
  %v1546 = vunpack.c.l.b16 %v1406
  %v1547 = vunpack.c.l.b16 %v1407
  %v1548 = vpack.c.b16 %v1533, %v1532
  %v1549 = vpack.c.b16 %v1535, %v1534
  %v1550 = vpack.c.b16 %v1537, %v1536
  %v1551 = vpack.c.b16 %v1539, %v1538
  %v1552 = vpack.c.b16 %v1541, %v1540
  %v1553 = vpack.c.b16 %v1543, %v1542
  %v1554 = vpack.c.b16 %v1545, %v1544
  %v1555 = vpack.c.b16 %v1547, %v1546
  %1564 = vmatprep.subr.bf16.mxu0 0
  %1565 = vmatpush1.bf16.msra.mxu0 %v1555
  %1566 = vmatprep.subr.bf16.mxu0 0
  %1567 = vmatpush1.bf16.msra.mxu0 %v1554
  %1568 = vmatprep.subr.bf16.mxu0 0
  %1569 = vmatpush1.bf16.msra.mxu0 %v1553
  %1570 = vmatprep.subr.bf16.mxu0 0
  %1571 = vmatpush1.bf16.msra.mxu0 %v1552
  %1572 = vmatprep.subr.bf16.mxu0 0
  %1573 = vmatpush1.bf16.msra.mxu0 %v1551
  %1574 = vmatprep.subr.bf16.mxu0 0
  %1575 = vmatpush1.bf16.msra.mxu0 %v1550
  %1576 = vmatprep.subr.bf16.mxu0 0
  %1577 = vmatpush1.bf16.msra.mxu0 %v1549
  %1578 = vmatprep.subr.bf16.mxu0 0
  %1579 = vmatpush1.bf16.msra.mxu0 %v1548
  %1580 = vmatprep.subr.bf16.mxu0 0
  %1581 = vmatpush2.bf16.msra.mxu0 0
  %1582 = vmatprep.subr.bf16.mxu0 0
  %1583 = vmatpush2.bf16.msra.mxu0 0
  %1584 = vmatprep.subr.bf16.mxu0 0
  %1585 = vmatpush2.bf16.msra.mxu0 0
  %1586 = vmatprep.subr.bf16.mxu0 0
  %1587 = vmatpush2.bf16.msra.mxu0 0
  %1588 = vmatprep.subr.bf16.mxu0 0
  %1589 = vmatpush2.bf16.msra.mxu0 0
  %1590 = vmatprep.subr.bf16.mxu0 0
  %1591 = vmatpush2.bf16.msra.mxu0 0
  %1592 = vmatprep.subr.bf16.mxu0 0
  %1593 = vmatpush2.bf16.msra.mxu0 0
  %1594 = vmatprep.subr.bf16.mxu0 0
  %1595 = vmatpush2.bf16.msra.mxu0 0
  %1596 = vmatprep.mubr.bf16.mxu0 0
  %1597 = vmatmul.mubr.bf16.gmra.mxu0 %v1480
  %v1598 = vpop.f32.mrf.mxu0
  %v1599 = vadd.f32 0.0, %v1598
  %v1600 = vpop.f32.mrf.mxu0
  %v1601 = vpop.f32.mrf.mxu0
  %v1602 = vadd.f32 0.0, %v1601
  %v1603 = vpop.f32.mrf.mxu0
  %1604 = vmatprep.mubr.bf16.mxu0 0
  %1605 = vmatmul.mubr.bf16.gmra.mxu0 %v1481
  %v1606 = vpop.f32.mrf.mxu0
  %v1607 = vadd.f32 0.0, %v1606
  %v1608 = vpop.f32.mrf.mxu0
  %v1609 = vpop.f32.mrf.mxu0
  %v1610 = vadd.f32 0.0, %v1609
  %v1611 = vpop.f32.mrf.mxu0
  %1612 = vmatprep.mubr.bf16.mxu0 0
  %1613 = vmatmul.mubr.bf16.gmra.mxu0 %v1482
  %v1614 = vpop.f32.mrf.mxu0
  %v1615 = vadd.f32 0.0, %v1614
  %v1616 = vpop.f32.mrf.mxu0
  %v1617 = vpop.f32.mrf.mxu0
  %v1618 = vadd.f32 0.0, %v1617
  %v1619 = vpop.f32.mrf.mxu0
  %1620 = vmatprep.mubr.bf16.mxu0 0
  %1621 = vmatmul.mubr.bf16.gmra.mxu0 %v1483
  %v1622 = vpop.f32.mrf.mxu0
  %v1623 = vadd.f32 0.0, %v1622
  %v1624 = vpop.f32.mrf.mxu0
  %v1625 = vpop.f32.mrf.mxu0
  %v1626 = vadd.f32 0.0, %v1625
  %v1627 = vpop.f32.mrf.mxu0
  %1628 = vmatprep.mubr.bf16.mxu0 0
  %1629 = vmatmul.mubr.bf16.gmra.mxu0 %v1484
  %v1630 = vpop.f32.mrf.mxu0
  %v1631 = vadd.f32 0.0, %v1630
  %v1632 = vpop.f32.mrf.mxu0
  %v1633 = vpop.f32.mrf.mxu0
  %v1634 = vadd.f32 0.0, %v1633
  %v1635 = vpop.f32.mrf.mxu0
  %1636 = vmatprep.mubr.bf16.mxu0 0
  %1637 = vmatmul.mubr.bf16.gmra.mxu0 %v1485
  %v1638 = vpop.f32.mrf.mxu0
  %v1639 = vadd.f32 0.0, %v1638
  %v1640 = vpop.f32.mrf.mxu0
  %v1641 = vpop.f32.mrf.mxu0
  %v1642 = vadd.f32 0.0, %v1641
  %v1643 = vpop.f32.mrf.mxu0
  %1644 = vmatprep.mubr.bf16.mxu0 0
  %1645 = vmatmul.mubr.bf16.gmra.mxu0 %v1486
  %v1646 = vpop.f32.mrf.mxu0
  %v1647 = vadd.f32 0.0, %v1646
  %v1648 = vpop.f32.mrf.mxu0
  %v1649 = vpop.f32.mrf.mxu0
  %v1650 = vadd.f32 0.0, %v1649
  %v1651 = vpop.f32.mrf.mxu0
  %1652 = vmatprep.mubr.bf16.mxu0 0
  %1653 = vmatmul.mubr.bf16.gmra.mxu0 %v1487
  %v1654 = vpop.f32.mrf.mxu0
  %v1655 = vadd.f32 0.0, %v1654
  %v1656 = vpop.f32.mrf.mxu0
  %v1657 = vpop.f32.mrf.mxu0
  %v1658 = vadd.f32 0.0, %v1657
  %v1659 = vpop.f32.mrf.mxu0
  %1660 = vmatprep.mubr.bf16.mxu0 0
  %1661 = vmatmul.mubr.bf16.gmra.mxu0 %v1488
  %v1662 = vpop.f32.mrf.mxu0
  %v1663 = vadd.f32 0.0, %v1662
  %v1664 = vpop.f32.mrf.mxu0
  %v1665 = vpop.f32.mrf.mxu0
  %v1666 = vadd.f32 0.0, %v1665
  %v1667 = vpop.f32.mrf.mxu0
  %1668 = vmatprep.mubr.bf16.mxu0 0
  %1669 = vmatmul.mubr.bf16.gmra.mxu0 %v1489
  %v1670 = vpop.f32.mrf.mxu0
  %v1671 = vadd.f32 0.0, %v1670
  %v1672 = vpop.f32.mrf.mxu0
  %v1673 = vpop.f32.mrf.mxu0
  %v1674 = vadd.f32 0.0, %v1673
  %v1675 = vpop.f32.mrf.mxu0
  %1676 = vmatprep.mubr.bf16.mxu0 0
  %1677 = vmatmul.mubr.bf16.gmra.mxu0 %v1490
  %v1678 = vpop.f32.mrf.mxu0
  %v1679 = vadd.f32 0.0, %v1678
  %v1680 = vpop.f32.mrf.mxu0
  %v1681 = vpop.f32.mrf.mxu0
  %v1682 = vadd.f32 0.0, %v1681
  %v1683 = vpop.f32.mrf.mxu0
  %1684 = vmatprep.mubr.bf16.mxu0 0
  %1685 = vmatmul.mubr.bf16.gmra.mxu0 %v1491
  %v1686 = vpop.f32.mrf.mxu0
  %v1687 = vadd.f32 0.0, %v1686
  %v1688 = vpop.f32.mrf.mxu0
  %v1689 = vpop.f32.mrf.mxu0
  %v1690 = vadd.f32 0.0, %v1689
  %v1691 = vpop.f32.mrf.mxu0
  %1692 = vmatprep.mubr.bf16.mxu0 0
  %1693 = vmatmul.mubr.bf16.gmra.mxu0 %v1492
  %v1694 = vpop.f32.mrf.mxu0
  %v1695 = vadd.f32 0.0, %v1694
  %v1696 = vpop.f32.mrf.mxu0
  %v1697 = vpop.f32.mrf.mxu0
  %v1698 = vadd.f32 0.0, %v1697
  %v1699 = vpop.f32.mrf.mxu0
  %1700 = vmatprep.mubr.bf16.mxu0 0
  %1701 = vmatmul.mubr.bf16.gmra.mxu0 %v1493
  %v1702 = vpop.f32.mrf.mxu0
  %v1703 = vadd.f32 0.0, %v1702
  %v1704 = vpop.f32.mrf.mxu0
  %v1705 = vpop.f32.mrf.mxu0
  %v1706 = vadd.f32 0.0, %v1705
  %v1707 = vpop.f32.mrf.mxu0
  %1708 = vmatprep.mubr.bf16.mxu0 0
  %1709 = vmatmul.mubr.bf16.gmra.mxu0 %v1494
  %v1710 = vpop.f32.mrf.mxu0
  %v1711 = vadd.f32 0.0, %v1710
  %v1712 = vpop.f32.mrf.mxu0
  %v1713 = vpop.f32.mrf.mxu0
  %v1714 = vadd.f32 0.0, %v1713
  %v1715 = vpop.f32.mrf.mxu0
  %1716 = vmatprep.mubr.bf16.mxu0 0
  %1717 = vmatmul.mubr.bf16.gmra.mxu0 %v1495
  %v1718 = vpop.f32.mrf.mxu0
  %v1719 = vadd.f32 0.0, %v1718
  %v1720 = vpop.f32.mrf.mxu0
  %v1721 = vpop.f32.mrf.mxu0
  %v1722 = vadd.f32 0.0, %v1721
  %v1723 = vpop.f32.mrf.mxu0
  %1724 = vmatprep.mubr.bf16.mxu0 0
  %1725 = vmatmul.mubr.bf16.gmra.mxu0 %v1496
  %v1726 = vpop.f32.mrf.mxu0
  %v1727 = vadd.f32 0.0, %v1726
  %v1728 = vpop.f32.mrf.mxu0
  %v1729 = vpop.f32.mrf.mxu0
  %v1730 = vadd.f32 0.0, %v1729
  %v1731 = vpop.f32.mrf.mxu0
  %1732 = vmatprep.mubr.bf16.mxu0 0
  %1733 = vmatmul.mubr.bf16.gmra.mxu0 %v1497
  %v1734 = vpop.f32.mrf.mxu0
  %v1735 = vadd.f32 0.0, %v1734
  %v1736 = vpop.f32.mrf.mxu0
  %v1737 = vpop.f32.mrf.mxu0
  %v1738 = vadd.f32 0.0, %v1737
  %v1739 = vpop.f32.mrf.mxu0
  %1740 = vdwg.mxu0
  %v1741 = vadd.f32 %v1355, %v1599
  %v1742 = vadd.f32 %v1356, %v1602
  %v1743 = vadd.f32 %v1357, %v1607
  %v1744 = vadd.f32 %v1358, %v1610
  %v1745 = vadd.f32 %v1359, %v1615
  %v1746 = vadd.f32 %v1360, %v1618
  %v1747 = vadd.f32 %v1361, %v1623
  %v1748 = vadd.f32 %v1362, %v1626
  %v1749 = vadd.f32 %v1363, %v1631
  %v1750 = vadd.f32 %v1364, %v1634
  %v1751 = vadd.f32 %v1365, %v1639
  %v1752 = vadd.f32 %v1366, %v1642
  %v1753 = vadd.f32 %v1367, %v1647
  %v1754 = vadd.f32 %v1368, %v1650
  %v1755 = vadd.f32 %v1369, %v1655
  %v1756 = vadd.f32 %v1370, %v1658
  %v1757 = vadd.f32 %v1371, %v1663
  %v1758 = vadd.f32 %v1372, %v1666
  %v1759 = vadd.f32 %v1373, %v1671
  %v1760 = vadd.f32 %v1374, %v1674
  %v1761 = vadd.f32 %v1375, %v1679
  %v1762 = vadd.f32 %v1376, %v1682
  %v1763 = vadd.f32 %v1377, %v1687
  %v1764 = vadd.f32 %v1378, %v1690
  %v1765 = vadd.f32 %v1379, %v1695
  %v1766 = vadd.f32 %v1380, %v1698
  %v1767 = vadd.f32 %v1381, %v1703
  %v1768 = vadd.f32 %v1382, %v1706
  %v1769 = vadd.f32 %v1383, %v1711
  %v1770 = vadd.f32 %v1384, %v1714
  %v1771 = vadd.f32 %v1385, %v1719
  %v1772 = vadd.f32 %v1386, %v1722
  %v1773 = vadd.f32 %v1387, %v1727
  %v1774 = vadd.f32 %v1388, %v1730
  %v1775 = vadd.f32 %v1389, %v1735
  %v1776 = vadd.f32 %v1390, %v1738
  %v1777 = vrot.slane %v60, 1
  %v1778 = vrot.slane %v61, 1
  %v1779 = vrot.slane %v62, 1
  %v1780 = vrot.slane %v63, 1
  %v1781 = vrot.slane %v64, 1
  %v1782 = vrot.slane %v65, 1
  %v1783 = vrot.slane %v66, 1
  %v1784 = vrot.slane %v67, 1
  %v1785 = vrot.slane %v68, 1
  %v1786 = vrot.slane %v69, 1
  %v1787 = vrot.slane %v70, 1
  %v1788 = vrot.slane %v71, 1
  %v1789 = vrot.slane %v72, 1
  %v1790 = vrot.slane %v73, 1
  %v1791 = vrot.slane %v74, 1
  %v1792 = vrot.slane %v75, 1
  %v1793 = vrot.slane %v76, 1
  %v1794 = vrot.slane %v77, 1
  %v1795 = vrot.slane %v78, 1
  %v1796 = vrot.slane %v79, 1
  %v1797 = vrot.slane %v80, 1
  %v1798 = vrot.slane %v81, 1
  %v1799 = vrot.slane %v82, 1
  %v1800 = vrot.slane %v83, 1
  %v1801 = vrot.slane %v84, 1
  %v1802 = vrot.slane %v85, 1
  %v1803 = vrot.slane %v86, 1
  %v1804 = vrot.slane %v87, 1
  %v1805 = vrot.slane %v88, 1
  %v1806 = vrot.slane %v89, 1
  %v1807 = vrot.slane %v90, 1
  %v1808 = vrot.slane %v91, 1
  %v1809 = vrot.slane %v92, 1
  %v1810 = vrot.slane %v93, 1
  %v1811 = vrot.slane %v94, 1
  %v1812 = vrot.slane %v95, 1
  %vm1813 = vcmp.lt.s32.totalorder %v169, 7
  %v1814 = vsel %vm1813, %v1811, %v1812
  %v1815 = vsel %vm1813, %v1810, %v1811
  %v1816 = vsel %vm1813, %v1809, %v1810
  %v1817 = vsel %vm1813, %v1808, %v1809
  %v1818 = vsel %vm1813, %v1807, %v1808
  %v1819 = vsel %vm1813, %v1806, %v1807
  %v1820 = vsel %vm1813, %v1805, %v1806
  %v1821 = vsel %vm1813, %v1804, %v1805
  %v1822 = vsel %vm1813, %v1803, %v1804
  %v1823 = vsel %vm1813, %v1802, %v1803
  %v1824 = vsel %vm1813, %v1801, %v1802
  %v1825 = vsel %vm1813, %v1800, %v1801
  %v1826 = vsel %vm1813, %v1799, %v1800
  %v1827 = vsel %vm1813, %v1798, %v1799
  %v1828 = vsel %vm1813, %v1797, %v1798
  %v1829 = vsel %vm1813, %v1796, %v1797
  %v1830 = vsel %vm1813, %v1795, %v1796
  %v1831 = vsel %vm1813, %v1794, %v1795
  %v1832 = vsel %vm1813, %v1793, %v1794
  %v1833 = vsel %vm1813, %v1792, %v1793
  %v1834 = vsel %vm1813, %v1791, %v1792
  %v1835 = vsel %vm1813, %v1790, %v1791
  %v1836 = vsel %vm1813, %v1789, %v1790
  %v1837 = vsel %vm1813, %v1788, %v1789
  %v1838 = vsel %vm1813, %v1787, %v1788
  %v1839 = vsel %vm1813, %v1786, %v1787
  %v1840 = vsel %vm1813, %v1785, %v1786
  %v1841 = vsel %vm1813, %v1784, %v1785
  %v1842 = vsel %vm1813, %v1783, %v1784
  %v1843 = vsel %vm1813, %v1782, %v1783
  %v1844 = vsel %vm1813, %v1781, %v1782
  %v1845 = vsel %vm1813, %v1780, %v1781
  %v1846 = vsel %vm1813, %v1779, %v1780
  %v1847 = vsel %vm1813, %v1778, %v1779
  %v1848 = vsel %vm1813, %v1777, %v1778
  %v1849 = vsel %vm1813, %v1812, %v1777
  %v1850 = vpack.c.bf16 %v1847, %v1848
  %v1851 = vpack.c.bf16 %v1845, %v1846
  %v1852 = vpack.c.bf16 %v1843, %v1844
  %v1853 = vpack.c.bf16 %v1841, %v1842
  %v1854 = vpack.c.bf16 %v1839, %v1840
  %v1855 = vpack.c.bf16 %v1837, %v1838
  %v1856 = vpack.c.bf16 %v1835, %v1836
  %v1857 = vpack.c.bf16 %v1833, %v1834
  %v1858 = vpack.c.bf16 %v1831, %v1832
  %v1859 = vpack.c.bf16 %v1829, %v1830
  %v1860 = vpack.c.bf16 %v1827, %v1828
  %v1861 = vpack.c.bf16 %v1825, %v1826
  %v1862 = vpack.c.bf16 %v1823, %v1824
  %v1863 = vpack.c.bf16 %v1821, %v1822
  %v1864 = vpack.c.bf16 %v1819, %v1820
  %v1865 = vpack.c.bf16 %v1817, %v1818
  %v1866 = vpack.c.bf16 %v1815, %v1816
  %v1867 = vpack.c.bf16 %v1849, %v1814
  %s1868 = scalar_lea.vmem %s1, 320
  %v1869 = vld [vmem:[%s1868] sm:$0xf]
  %v1870 = vld [vmem:[%s1868 + $0x4] sm:$0xf]
  %v1871 = vld [vmem:[%s1868 + $0x8] sm:$0xf]
  %v1872 = vld [vmem:[%s1868 + $0xc] sm:$0xf]
  %v1873 = vld [vmem:[%s1868 + $0x10] sm:$0xf]
  %v1874 = vld [vmem:[%s1868 + $0x14] sm:$0xf]
  %v1875 = vld [vmem:[%s1868 + $0x18] sm:$0xf]
  %v1876 = vld [vmem:[%s1868 + $0x1c] sm:$0xf]
  %v1877 = vld [vmem:[%s1868 + $0x20] sm:$0xf]
  %v1878 = vld [vmem:[%s1868 + $0x24] sm:$0xf]
  %v1879 = vld [vmem:[%s1868 + $0x28] sm:$0xf]
  %v1880 = vld [vmem:[%s1868 + $0x2c] sm:$0xf]
  %v1881 = vld [vmem:[%s1868 + $0x30] sm:$0xf]
  %v1882 = vld [vmem:[%s1868 + $0x34] sm:$0xf]
  %v1883 = vld [vmem:[%s1868 + $0x38] sm:$0xf]
  %v1884 = vld [vmem:[%s1868 + $0x3c] sm:$0xf]
  %v1901 = vunpack.c.l.b16 %v1869
  %v1902 = vunpack.c.l.b16 %v1870
  %v1903 = vunpack.c.l.b16 %v1871
  %v1904 = vunpack.c.l.b16 %v1872
  %v1905 = vunpack.c.l.b16 %v1873
  %v1906 = vunpack.c.l.b16 %v1874
  %v1907 = vunpack.c.l.b16 %v1875
  %v1908 = vunpack.c.l.b16 %v1876
  %v1909 = vunpack.c.l.b16 %v1877
  %v1910 = vunpack.c.l.b16 %v1878
  %v1911 = vunpack.c.l.b16 %v1879
  %v1912 = vunpack.c.l.b16 %v1880
  %v1913 = vunpack.c.l.b16 %v1881
  %v1914 = vunpack.c.l.b16 %v1882
  %v1915 = vunpack.c.l.b16 %v1883
  %v1916 = vunpack.c.l.b16 %v1884
  %v1917 = vpack.c.b16 %v1902, %v1901
  %v1918 = vpack.c.b16 %v1904, %v1903
  %v1919 = vpack.c.b16 %v1906, %v1905
  %v1920 = vpack.c.b16 %v1908, %v1907
  %v1921 = vpack.c.b16 %v1910, %v1909
  %v1922 = vpack.c.b16 %v1912, %v1911
  %v1923 = vpack.c.b16 %v1914, %v1913
  %v1924 = vpack.c.b16 %v1916, %v1915
  %1933 = vmatprep.subr.bf16.mxu0 0
  %1934 = vmatpush1.bf16.msra.mxu0 %v1924
  %1935 = vmatprep.subr.bf16.mxu0 0
  %1936 = vmatpush1.bf16.msra.mxu0 %v1923
  %1937 = vmatprep.subr.bf16.mxu0 0
  %1938 = vmatpush1.bf16.msra.mxu0 %v1922
  %1939 = vmatprep.subr.bf16.mxu0 0
  %1940 = vmatpush1.bf16.msra.mxu0 %v1921
  %1941 = vmatprep.subr.bf16.mxu0 0
  %1942 = vmatpush1.bf16.msra.mxu0 %v1920
  %1943 = vmatprep.subr.bf16.mxu0 0
  %1944 = vmatpush1.bf16.msra.mxu0 %v1919
  %1945 = vmatprep.subr.bf16.mxu0 0
  %1946 = vmatpush1.bf16.msra.mxu0 %v1918
  %1947 = vmatprep.subr.bf16.mxu0 0
  %1948 = vmatpush1.bf16.msra.mxu0 %v1917
  %1949 = vmatprep.subr.bf16.mxu0 0
  %1950 = vmatpush2.bf16.msra.mxu0 0
  %1951 = vmatprep.subr.bf16.mxu0 0
  %1952 = vmatpush2.bf16.msra.mxu0 0
  %1953 = vmatprep.subr.bf16.mxu0 0
  %1954 = vmatpush2.bf16.msra.mxu0 0
  %1955 = vmatprep.subr.bf16.mxu0 0
  %1956 = vmatpush2.bf16.msra.mxu0 0
  %1957 = vmatprep.subr.bf16.mxu0 0
  %1958 = vmatpush2.bf16.msra.mxu0 0
  %1959 = vmatprep.subr.bf16.mxu0 0
  %1960 = vmatpush2.bf16.msra.mxu0 0
  %1961 = vmatprep.subr.bf16.mxu0 0
  %1962 = vmatpush2.bf16.msra.mxu0 0
  %1963 = vmatprep.subr.bf16.mxu0 0
  %1964 = vmatpush2.bf16.msra.mxu0 0
  %1965 = vmatprep.mubr.bf16.mxu0 0
  %1966 = vmatmul.mubr.bf16.gmra.mxu0 %v1850
  %v1967 = vpop.f32.mrf.mxu0
  %v1968 = vadd.f32 0.0, %v1967
  %v1969 = vpop.f32.mrf.mxu0
  %v1970 = vpop.f32.mrf.mxu0
  %v1971 = vadd.f32 0.0, %v1970
  %v1972 = vpop.f32.mrf.mxu0
  %1973 = vmatprep.mubr.bf16.mxu0 0
  %1974 = vmatmul.mubr.bf16.gmra.mxu0 %v1851
  %v1975 = vpop.f32.mrf.mxu0
  %v1976 = vadd.f32 0.0, %v1975
  %v1977 = vpop.f32.mrf.mxu0
  %v1978 = vpop.f32.mrf.mxu0
  %v1979 = vadd.f32 0.0, %v1978
  %v1980 = vpop.f32.mrf.mxu0
  %1981 = vmatprep.mubr.bf16.mxu0 0
  %1982 = vmatmul.mubr.bf16.gmra.mxu0 %v1852
  %v1983 = vpop.f32.mrf.mxu0
  %v1984 = vadd.f32 0.0, %v1983
  %v1985 = vpop.f32.mrf.mxu0
  %v1986 = vpop.f32.mrf.mxu0
  %v1987 = vadd.f32 0.0, %v1986
  %v1988 = vpop.f32.mrf.mxu0
  %1989 = vmatprep.mubr.bf16.mxu0 0
  %1990 = vmatmul.mubr.bf16.gmra.mxu0 %v1853
  %v1991 = vpop.f32.mrf.mxu0
  %v1992 = vadd.f32 0.0, %v1991
  %v1993 = vpop.f32.mrf.mxu0
  %v1994 = vpop.f32.mrf.mxu0
  %v1995 = vadd.f32 0.0, %v1994
  %v1996 = vpop.f32.mrf.mxu0
  %1997 = vmatprep.mubr.bf16.mxu0 0
  %1998 = vmatmul.mubr.bf16.gmra.mxu0 %v1854
  %v1999 = vpop.f32.mrf.mxu0
  %v2000 = vadd.f32 0.0, %v1999
  %v2001 = vpop.f32.mrf.mxu0
  %v2002 = vpop.f32.mrf.mxu0
  %v2003 = vadd.f32 0.0, %v2002
  %v2004 = vpop.f32.mrf.mxu0
  %2005 = vmatprep.mubr.bf16.mxu0 0
  %2006 = vmatmul.mubr.bf16.gmra.mxu0 %v1855
  %v2007 = vpop.f32.mrf.mxu0
  %v2008 = vadd.f32 0.0, %v2007
  %v2009 = vpop.f32.mrf.mxu0
  %v2010 = vpop.f32.mrf.mxu0
  %v2011 = vadd.f32 0.0, %v2010
  %v2012 = vpop.f32.mrf.mxu0
  %2013 = vmatprep.mubr.bf16.mxu0 0
  %2014 = vmatmul.mubr.bf16.gmra.mxu0 %v1856
  %v2015 = vpop.f32.mrf.mxu0
  %v2016 = vadd.f32 0.0, %v2015
  %v2017 = vpop.f32.mrf.mxu0
  %v2018 = vpop.f32.mrf.mxu0
  %v2019 = vadd.f32 0.0, %v2018
  %v2020 = vpop.f32.mrf.mxu0
  %2021 = vmatprep.mubr.bf16.mxu0 0
  %2022 = vmatmul.mubr.bf16.gmra.mxu0 %v1857
  %v2023 = vpop.f32.mrf.mxu0
  %v2024 = vadd.f32 0.0, %v2023
  %v2025 = vpop.f32.mrf.mxu0
  %v2026 = vpop.f32.mrf.mxu0
  %v2027 = vadd.f32 0.0, %v2026
  %v2028 = vpop.f32.mrf.mxu0
  %2029 = vmatprep.mubr.bf16.mxu0 0
  %2030 = vmatmul.mubr.bf16.gmra.mxu0 %v1858
  %v2031 = vpop.f32.mrf.mxu0
  %v2032 = vadd.f32 0.0, %v2031
  %v2033 = vpop.f32.mrf.mxu0
  %v2034 = vpop.f32.mrf.mxu0
  %v2035 = vadd.f32 0.0, %v2034
  %v2036 = vpop.f32.mrf.mxu0
  %2037 = vmatprep.mubr.bf16.mxu0 0
  %2038 = vmatmul.mubr.bf16.gmra.mxu0 %v1859
  %v2039 = vpop.f32.mrf.mxu0
  %v2040 = vadd.f32 0.0, %v2039
  %v2041 = vpop.f32.mrf.mxu0
  %v2042 = vpop.f32.mrf.mxu0
  %v2043 = vadd.f32 0.0, %v2042
  %v2044 = vpop.f32.mrf.mxu0
  %2045 = vmatprep.mubr.bf16.mxu0 0
  %2046 = vmatmul.mubr.bf16.gmra.mxu0 %v1860
  %v2047 = vpop.f32.mrf.mxu0
  %v2048 = vadd.f32 0.0, %v2047
  %v2049 = vpop.f32.mrf.mxu0
  %v2050 = vpop.f32.mrf.mxu0
  %v2051 = vadd.f32 0.0, %v2050
  %v2052 = vpop.f32.mrf.mxu0
  %2053 = vmatprep.mubr.bf16.mxu0 0
  %2054 = vmatmul.mubr.bf16.gmra.mxu0 %v1861
  %v2055 = vpop.f32.mrf.mxu0
  %v2056 = vadd.f32 0.0, %v2055
  %v2057 = vpop.f32.mrf.mxu0
  %v2058 = vpop.f32.mrf.mxu0
  %v2059 = vadd.f32 0.0, %v2058
  %v2060 = vpop.f32.mrf.mxu0
  %2061 = vmatprep.mubr.bf16.mxu0 0
  %2062 = vmatmul.mubr.bf16.gmra.mxu0 %v1862
  %v2063 = vpop.f32.mrf.mxu0
  %v2064 = vadd.f32 0.0, %v2063
  %v2065 = vpop.f32.mrf.mxu0
  %v2066 = vpop.f32.mrf.mxu0
  %v2067 = vadd.f32 0.0, %v2066
  %v2068 = vpop.f32.mrf.mxu0
  %2069 = vmatprep.mubr.bf16.mxu0 0
  %2070 = vmatmul.mubr.bf16.gmra.mxu0 %v1863
  %v2071 = vpop.f32.mrf.mxu0
  %v2072 = vadd.f32 0.0, %v2071
  %v2073 = vpop.f32.mrf.mxu0
  %v2074 = vpop.f32.mrf.mxu0
  %v2075 = vadd.f32 0.0, %v2074
  %v2076 = vpop.f32.mrf.mxu0
  %2077 = vmatprep.mubr.bf16.mxu0 0
  %2078 = vmatmul.mubr.bf16.gmra.mxu0 %v1864
  %v2079 = vpop.f32.mrf.mxu0
  %v2080 = vadd.f32 0.0, %v2079
  %v2081 = vpop.f32.mrf.mxu0
  %v2082 = vpop.f32.mrf.mxu0
  %v2083 = vadd.f32 0.0, %v2082
  %v2084 = vpop.f32.mrf.mxu0
  %2085 = vmatprep.mubr.bf16.mxu0 0
  %2086 = vmatmul.mubr.bf16.gmra.mxu0 %v1865
  %v2087 = vpop.f32.mrf.mxu0
  %v2088 = vadd.f32 0.0, %v2087
  %v2089 = vpop.f32.mrf.mxu0
  %v2090 = vpop.f32.mrf.mxu0
  %v2091 = vadd.f32 0.0, %v2090
  %v2092 = vpop.f32.mrf.mxu0
  %2093 = vmatprep.mubr.bf16.mxu0 0
  %2094 = vmatmul.mubr.bf16.gmra.mxu0 %v1866
  %v2095 = vpop.f32.mrf.mxu0
  %v2096 = vadd.f32 0.0, %v2095
  %v2097 = vpop.f32.mrf.mxu0
  %v2098 = vpop.f32.mrf.mxu0
  %v2099 = vadd.f32 0.0, %v2098
  %v2100 = vpop.f32.mrf.mxu0
  %2101 = vmatprep.mubr.bf16.mxu0 0
  %2102 = vmatmul.mubr.bf16.gmra.mxu0 %v1867
  %v2103 = vpop.f32.mrf.mxu0
  %v2104 = vadd.f32 0.0, %v2103
  %v2105 = vpop.f32.mrf.mxu0
  %v2106 = vpop.f32.mrf.mxu0
  %v2107 = vadd.f32 0.0, %v2106
  %v2108 = vpop.f32.mrf.mxu0
  %2109 = vdwg.mxu0
  %v2110 = vadd.f32 %v1741, %v1968
  %v2111 = vadd.f32 %v1742, %v1971
  %v2112 = vadd.f32 %v1743, %v1976
  %v2113 = vadd.f32 %v1744, %v1979
  %v2114 = vadd.f32 %v1745, %v1984
  %v2115 = vadd.f32 %v1746, %v1987
  %v2116 = vadd.f32 %v1747, %v1992
  %v2117 = vadd.f32 %v1748, %v1995
  %v2118 = vadd.f32 %v1749, %v2000
  %v2119 = vadd.f32 %v1750, %v2003
  %v2120 = vadd.f32 %v1751, %v2008
  %v2121 = vadd.f32 %v1752, %v2011
  %v2122 = vadd.f32 %v1753, %v2016
  %v2123 = vadd.f32 %v1754, %v2019
  %v2124 = vadd.f32 %v1755, %v2024
  %v2125 = vadd.f32 %v1756, %v2027
  %v2126 = vadd.f32 %v1757, %v2032
  %v2127 = vadd.f32 %v1758, %v2035
  %v2128 = vadd.f32 %v1759, %v2040
  %v2129 = vadd.f32 %v1760, %v2043
  %v2130 = vadd.f32 %v1761, %v2048
  %v2131 = vadd.f32 %v1762, %v2051
  %v2132 = vadd.f32 %v1763, %v2056
  %v2133 = vadd.f32 %v1764, %v2059
  %v2134 = vadd.f32 %v1765, %v2064
  %v2135 = vadd.f32 %v1766, %v2067
  %v2136 = vadd.f32 %v1767, %v2072
  %v2137 = vadd.f32 %v1768, %v2075
  %v2138 = vadd.f32 %v1769, %v2080
  %v2139 = vadd.f32 %v1770, %v2083
  %v2140 = vadd.f32 %v1771, %v2088
  %v2141 = vadd.f32 %v1772, %v2091
  %v2142 = vadd.f32 %v1773, %v2096
  %v2143 = vadd.f32 %v1774, %v2099
  %v2144 = vadd.f32 %v1775, %v2104
  %v2145 = vadd.f32 %v1776, %v2107
  %s2146 = scalar_lea.vmem %s1, 384
  %v2147 = vld [vmem:[%s2146] sm:$0xf]
  %v2148 = vld [vmem:[%s2146 + $0x4] sm:$0xf]
  %v2149 = vld [vmem:[%s2146 + $0x8] sm:$0xf]
  %v2150 = vld [vmem:[%s2146 + $0xc] sm:$0xf]
  %v2151 = vld [vmem:[%s2146 + $0x10] sm:$0xf]
  %v2152 = vld [vmem:[%s2146 + $0x14] sm:$0xf]
  %v2153 = vld [vmem:[%s2146 + $0x18] sm:$0xf]
  %v2154 = vld [vmem:[%s2146 + $0x1c] sm:$0xf]
  %v2155 = vld [vmem:[%s2146 + $0x20] sm:$0xf]
  %v2156 = vld [vmem:[%s2146 + $0x24] sm:$0xf]
  %v2157 = vld [vmem:[%s2146 + $0x28] sm:$0xf]
  %v2158 = vld [vmem:[%s2146 + $0x2c] sm:$0xf]
  %v2159 = vld [vmem:[%s2146 + $0x30] sm:$0xf]
  %v2160 = vld [vmem:[%s2146 + $0x34] sm:$0xf]
  %v2161 = vld [vmem:[%s2146 + $0x38] sm:$0xf]
  %v2162 = vld [vmem:[%s2146 + $0x3c] sm:$0xf]
  %v2179 = vunpack.c.l.b16 %v2147
  %v2180 = vunpack.c.l.b16 %v2148
  %v2181 = vunpack.c.l.b16 %v2149
  %v2182 = vunpack.c.l.b16 %v2150
  %v2183 = vunpack.c.l.b16 %v2151
  %v2184 = vunpack.c.l.b16 %v2152
  %v2185 = vunpack.c.l.b16 %v2153
  %v2186 = vunpack.c.l.b16 %v2154
  %v2187 = vunpack.c.l.b16 %v2155
  %v2188 = vunpack.c.l.b16 %v2156
  %v2189 = vunpack.c.l.b16 %v2157
  %v2190 = vunpack.c.l.b16 %v2158
  %v2191 = vunpack.c.l.b16 %v2159
  %v2192 = vunpack.c.l.b16 %v2160
  %v2193 = vunpack.c.l.b16 %v2161
  %v2194 = vunpack.c.l.b16 %v2162
  %v2195 = vpack.c.b16 %v2180, %v2179
  %v2196 = vpack.c.b16 %v2182, %v2181
  %v2197 = vpack.c.b16 %v2184, %v2183
  %v2198 = vpack.c.b16 %v2186, %v2185
  %v2199 = vpack.c.b16 %v2188, %v2187
  %v2200 = vpack.c.b16 %v2190, %v2189
  %v2201 = vpack.c.b16 %v2192, %v2191
  %v2202 = vpack.c.b16 %v2194, %v2193
  %2211 = vmatprep.subr.bf16.mxu0 0
  %2212 = vmatpush1.bf16.msra.mxu0 %v2202
  %2213 = vmatprep.subr.bf16.mxu0 0
  %2214 = vmatpush1.bf16.msra.mxu0 %v2201
  %2215 = vmatprep.subr.bf16.mxu0 0
  %2216 = vmatpush1.bf16.msra.mxu0 %v2200
  %2217 = vmatprep.subr.bf16.mxu0 0
  %2218 = vmatpush1.bf16.msra.mxu0 %v2199
  %2219 = vmatprep.subr.bf16.mxu0 0
  %2220 = vmatpush1.bf16.msra.mxu0 %v2198
  %2221 = vmatprep.subr.bf16.mxu0 0
  %2222 = vmatpush1.bf16.msra.mxu0 %v2197
  %2223 = vmatprep.subr.bf16.mxu0 0
  %2224 = vmatpush1.bf16.msra.mxu0 %v2196
  %2225 = vmatprep.subr.bf16.mxu0 0
  %2226 = vmatpush1.bf16.msra.mxu0 %v2195
  %2227 = vmatprep.subr.bf16.mxu0 0
  %2228 = vmatpush2.bf16.msra.mxu0 0
  %2229 = vmatprep.subr.bf16.mxu0 0
  %2230 = vmatpush2.bf16.msra.mxu0 0
  %2231 = vmatprep.subr.bf16.mxu0 0
  %2232 = vmatpush2.bf16.msra.mxu0 0
  %2233 = vmatprep.subr.bf16.mxu0 0
  %2234 = vmatpush2.bf16.msra.mxu0 0
  %2235 = vmatprep.subr.bf16.mxu0 0
  %2236 = vmatpush2.bf16.msra.mxu0 0
  %2237 = vmatprep.subr.bf16.mxu0 0
  %2238 = vmatpush2.bf16.msra.mxu0 0
  %2239 = vmatprep.subr.bf16.mxu0 0
  %2240 = vmatpush2.bf16.msra.mxu0 0
  %2241 = vmatprep.subr.bf16.mxu0 0
  %2242 = vmatpush2.bf16.msra.mxu0 0
  %2243 = vmatprep.mubr.bf16.mxu0 0
  %2244 = vmatmul.mubr.bf16.gmra.mxu0 %v800
  %v2245 = vpop.f32.mrf.mxu0
  %v2246 = vadd.f32 0.0, %v2245
  %v2247 = vpop.f32.mrf.mxu0
  %v2248 = vpop.f32.mrf.mxu0
  %v2249 = vadd.f32 0.0, %v2248
  %v2250 = vpop.f32.mrf.mxu0
  %2251 = vmatprep.mubr.bf16.mxu0 0
  %2252 = vmatmul.mubr.bf16.gmra.mxu0 %v801
  %v2253 = vpop.f32.mrf.mxu0
  %v2254 = vadd.f32 0.0, %v2253
  %v2255 = vpop.f32.mrf.mxu0
  %v2256 = vpop.f32.mrf.mxu0
  %v2257 = vadd.f32 0.0, %v2256
  %v2258 = vpop.f32.mrf.mxu0
  %2259 = vmatprep.mubr.bf16.mxu0 0
  %2260 = vmatmul.mubr.bf16.gmra.mxu0 %v802
  %v2261 = vpop.f32.mrf.mxu0
  %v2262 = vadd.f32 0.0, %v2261
  %v2263 = vpop.f32.mrf.mxu0
  %v2264 = vpop.f32.mrf.mxu0
  %v2265 = vadd.f32 0.0, %v2264
  %v2266 = vpop.f32.mrf.mxu0
  %2267 = vmatprep.mubr.bf16.mxu0 0
  %2268 = vmatmul.mubr.bf16.gmra.mxu0 %v803
  %v2269 = vpop.f32.mrf.mxu0
  %v2270 = vadd.f32 0.0, %v2269
  %v2271 = vpop.f32.mrf.mxu0
  %v2272 = vpop.f32.mrf.mxu0
  %v2273 = vadd.f32 0.0, %v2272
  %v2274 = vpop.f32.mrf.mxu0
  %2275 = vmatprep.mubr.bf16.mxu0 0
  %2276 = vmatmul.mubr.bf16.gmra.mxu0 %v804
  %v2277 = vpop.f32.mrf.mxu0
  %v2278 = vadd.f32 0.0, %v2277
  %v2279 = vpop.f32.mrf.mxu0
  %v2280 = vpop.f32.mrf.mxu0
  %v2281 = vadd.f32 0.0, %v2280
  %v2282 = vpop.f32.mrf.mxu0
  %2283 = vmatprep.mubr.bf16.mxu0 0
  %2284 = vmatmul.mubr.bf16.gmra.mxu0 %v805
  %v2285 = vpop.f32.mrf.mxu0
  %v2286 = vadd.f32 0.0, %v2285
  %v2287 = vpop.f32.mrf.mxu0
  %v2288 = vpop.f32.mrf.mxu0
  %v2289 = vadd.f32 0.0, %v2288
  %v2290 = vpop.f32.mrf.mxu0
  %2291 = vmatprep.mubr.bf16.mxu0 0
  %2292 = vmatmul.mubr.bf16.gmra.mxu0 %v806
  %v2293 = vpop.f32.mrf.mxu0
  %v2294 = vadd.f32 0.0, %v2293
  %v2295 = vpop.f32.mrf.mxu0
  %v2296 = vpop.f32.mrf.mxu0
  %v2297 = vadd.f32 0.0, %v2296
  %v2298 = vpop.f32.mrf.mxu0
  %2299 = vmatprep.mubr.bf16.mxu0 0
  %2300 = vmatmul.mubr.bf16.gmra.mxu0 %v807
  %v2301 = vpop.f32.mrf.mxu0
  %v2302 = vadd.f32 0.0, %v2301
  %v2303 = vpop.f32.mrf.mxu0
  %v2304 = vpop.f32.mrf.mxu0
  %v2305 = vadd.f32 0.0, %v2304
  %v2306 = vpop.f32.mrf.mxu0
  %2307 = vmatprep.mubr.bf16.mxu0 0
  %2308 = vmatmul.mubr.bf16.gmra.mxu0 %v808
  %v2309 = vpop.f32.mrf.mxu0
  %v2310 = vadd.f32 0.0, %v2309
  %v2311 = vpop.f32.mrf.mxu0
  %v2312 = vpop.f32.mrf.mxu0
  %v2313 = vadd.f32 0.0, %v2312
  %v2314 = vpop.f32.mrf.mxu0
  %2315 = vmatprep.mubr.bf16.mxu0 0
  %2316 = vmatmul.mubr.bf16.gmra.mxu0 %v809
  %v2317 = vpop.f32.mrf.mxu0
  %v2318 = vadd.f32 0.0, %v2317
  %v2319 = vpop.f32.mrf.mxu0
  %v2320 = vpop.f32.mrf.mxu0
  %v2321 = vadd.f32 0.0, %v2320
  %v2322 = vpop.f32.mrf.mxu0
  %2323 = vmatprep.mubr.bf16.mxu0 0
  %2324 = vmatmul.mubr.bf16.gmra.mxu0 %v810
  %v2325 = vpop.f32.mrf.mxu0
  %v2326 = vadd.f32 0.0, %v2325
  %v2327 = vpop.f32.mrf.mxu0
  %v2328 = vpop.f32.mrf.mxu0
  %v2329 = vadd.f32 0.0, %v2328
  %v2330 = vpop.f32.mrf.mxu0
  %2331 = vmatprep.mubr.bf16.mxu0 0
  %2332 = vmatmul.mubr.bf16.gmra.mxu0 %v811
  %v2333 = vpop.f32.mrf.mxu0
  %v2334 = vadd.f32 0.0, %v2333
  %v2335 = vpop.f32.mrf.mxu0
  %v2336 = vpop.f32.mrf.mxu0
  %v2337 = vadd.f32 0.0, %v2336
  %v2338 = vpop.f32.mrf.mxu0
  %2339 = vmatprep.mubr.bf16.mxu0 0
  %2340 = vmatmul.mubr.bf16.gmra.mxu0 %v812
  %v2341 = vpop.f32.mrf.mxu0
  %v2342 = vadd.f32 0.0, %v2341
  %v2343 = vpop.f32.mrf.mxu0
  %v2344 = vpop.f32.mrf.mxu0
  %v2345 = vadd.f32 0.0, %v2344
  %v2346 = vpop.f32.mrf.mxu0
  %2347 = vmatprep.mubr.bf16.mxu0 0
  %2348 = vmatmul.mubr.bf16.gmra.mxu0 %v813
  %v2349 = vpop.f32.mrf.mxu0
  %v2350 = vadd.f32 0.0, %v2349
  %v2351 = vpop.f32.mrf.mxu0
  %v2352 = vpop.f32.mrf.mxu0
  %v2353 = vadd.f32 0.0, %v2352
  %v2354 = vpop.f32.mrf.mxu0
  %2355 = vmatprep.mubr.bf16.mxu0 0
  %2356 = vmatmul.mubr.bf16.gmra.mxu0 %v814
  %v2357 = vpop.f32.mrf.mxu0
  %v2358 = vadd.f32 0.0, %v2357
  %v2359 = vpop.f32.mrf.mxu0
  %v2360 = vpop.f32.mrf.mxu0
  %v2361 = vadd.f32 0.0, %v2360
  %v2362 = vpop.f32.mrf.mxu0
  %2363 = vmatprep.mubr.bf16.mxu0 0
  %2364 = vmatmul.mubr.bf16.gmra.mxu0 %v815
  %v2365 = vpop.f32.mrf.mxu0
  %v2366 = vadd.f32 0.0, %v2365
  %v2367 = vpop.f32.mrf.mxu0
  %v2368 = vpop.f32.mrf.mxu0
  %v2369 = vadd.f32 0.0, %v2368
  %v2370 = vpop.f32.mrf.mxu0
  %2371 = vmatprep.mubr.bf16.mxu0 0
  %2372 = vmatmul.mubr.bf16.gmra.mxu0 %v816
  %v2373 = vpop.f32.mrf.mxu0
  %v2374 = vadd.f32 0.0, %v2373
  %v2375 = vpop.f32.mrf.mxu0
  %v2376 = vpop.f32.mrf.mxu0
  %v2377 = vadd.f32 0.0, %v2376
  %v2378 = vpop.f32.mrf.mxu0
  %2379 = vmatprep.mubr.bf16.mxu0 0
  %2380 = vmatmul.mubr.bf16.gmra.mxu0 %v799
  %v2381 = vpop.f32.mrf.mxu0
  %v2382 = vadd.f32 0.0, %v2381
  %v2383 = vpop.f32.mrf.mxu0
  %v2384 = vpop.f32.mrf.mxu0
  %v2385 = vadd.f32 0.0, %v2384
  %v2386 = vpop.f32.mrf.mxu0
  %2387 = vdwg.mxu0
  %v2388 = vadd.f32 %v2110, %v2246
  %v2389 = vadd.f32 %v2111, %v2249
  %v2390 = vadd.f32 %v2112, %v2254
  %v2391 = vadd.f32 %v2113, %v2257
  %v2392 = vadd.f32 %v2114, %v2262
  %v2393 = vadd.f32 %v2115, %v2265
  %v2394 = vadd.f32 %v2116, %v2270
  %v2395 = vadd.f32 %v2117, %v2273
  %v2396 = vadd.f32 %v2118, %v2278
  %v2397 = vadd.f32 %v2119, %v2281
  %v2398 = vadd.f32 %v2120, %v2286
  %v2399 = vadd.f32 %v2121, %v2289
  %v2400 = vadd.f32 %v2122, %v2294
  %v2401 = vadd.f32 %v2123, %v2297
  %v2402 = vadd.f32 %v2124, %v2302
  %v2403 = vadd.f32 %v2125, %v2305
  %v2404 = vadd.f32 %v2126, %v2310
  %v2405 = vadd.f32 %v2127, %v2313
  %v2406 = vadd.f32 %v2128, %v2318
  %v2407 = vadd.f32 %v2129, %v2321
  %v2408 = vadd.f32 %v2130, %v2326
  %v2409 = vadd.f32 %v2131, %v2329
  %v2410 = vadd.f32 %v2132, %v2334
  %v2411 = vadd.f32 %v2133, %v2337
  %v2412 = vadd.f32 %v2134, %v2342
  %v2413 = vadd.f32 %v2135, %v2345
  %v2414 = vadd.f32 %v2136, %v2350
  %v2415 = vadd.f32 %v2137, %v2353
  %v2416 = vadd.f32 %v2138, %v2358
  %v2417 = vadd.f32 %v2139, %v2361
  %v2418 = vadd.f32 %v2140, %v2366
  %v2419 = vadd.f32 %v2141, %v2369
  %v2420 = vadd.f32 %v2142, %v2374
  %v2421 = vadd.f32 %v2143, %v2377
  %v2422 = vadd.f32 %v2144, %v2382
  %v2423 = vadd.f32 %v2145, %v2385
  %v2424 = vpack.c.bf16 %v1846, %v1847
  %v2425 = vpack.c.bf16 %v1844, %v1845
  %v2426 = vpack.c.bf16 %v1842, %v1843
  %v2427 = vpack.c.bf16 %v1840, %v1841
  %v2428 = vpack.c.bf16 %v1838, %v1839
  %v2429 = vpack.c.bf16 %v1836, %v1837
  %v2430 = vpack.c.bf16 %v1834, %v1835
  %v2431 = vpack.c.bf16 %v1832, %v1833
  %v2432 = vpack.c.bf16 %v1830, %v1831
  %v2433 = vpack.c.bf16 %v1828, %v1829
  %v2434 = vpack.c.bf16 %v1826, %v1827
  %v2435 = vpack.c.bf16 %v1824, %v1825
  %v2436 = vpack.c.bf16 %v1822, %v1823
  %v2437 = vpack.c.bf16 %v1820, %v1821
  %v2438 = vpack.c.bf16 %v1818, %v1819
  %v2439 = vpack.c.bf16 %v1816, %v1817
  %v2440 = vpack.c.bf16 %v1814, %v1815
  %v2441 = vpack.c.bf16 %v1848, %v1849
  %s2442 = scalar_lea.vmem %s1, 448
  %v2443 = vld [vmem:[%s2442] sm:$0xf]
  %v2444 = vld [vmem:[%s2442 + $0x4] sm:$0xf]
  %v2445 = vld [vmem:[%s2442 + $0x8] sm:$0xf]
  %v2446 = vld [vmem:[%s2442 + $0xc] sm:$0xf]
  %v2447 = vld [vmem:[%s2442 + $0x10] sm:$0xf]
  %v2448 = vld [vmem:[%s2442 + $0x14] sm:$0xf]
  %v2449 = vld [vmem:[%s2442 + $0x18] sm:$0xf]
  %v2450 = vld [vmem:[%s2442 + $0x1c] sm:$0xf]
  %v2451 = vld [vmem:[%s2442 + $0x20] sm:$0xf]
  %v2452 = vld [vmem:[%s2442 + $0x24] sm:$0xf]
  %v2453 = vld [vmem:[%s2442 + $0x28] sm:$0xf]
  %v2454 = vld [vmem:[%s2442 + $0x2c] sm:$0xf]
  %v2455 = vld [vmem:[%s2442 + $0x30] sm:$0xf]
  %v2456 = vld [vmem:[%s2442 + $0x34] sm:$0xf]
  %v2457 = vld [vmem:[%s2442 + $0x38] sm:$0xf]
  %v2458 = vld [vmem:[%s2442 + $0x3c] sm:$0xf]
  %v2475 = vunpack.c.l.b16 %v2443
  %v2476 = vunpack.c.l.b16 %v2444
  %v2477 = vunpack.c.l.b16 %v2445
  %v2478 = vunpack.c.l.b16 %v2446
  %v2479 = vunpack.c.l.b16 %v2447
  %v2480 = vunpack.c.l.b16 %v2448
  %v2481 = vunpack.c.l.b16 %v2449
  %v2482 = vunpack.c.l.b16 %v2450
  %v2483 = vunpack.c.l.b16 %v2451
  %v2484 = vunpack.c.l.b16 %v2452
  %v2485 = vunpack.c.l.b16 %v2453
  %v2486 = vunpack.c.l.b16 %v2454
  %v2487 = vunpack.c.l.b16 %v2455
  %v2488 = vunpack.c.l.b16 %v2456
  %v2489 = vunpack.c.l.b16 %v2457
  %v2490 = vunpack.c.l.b16 %v2458
  %v2491 = vpack.c.b16 %v2476, %v2475
  %v2492 = vpack.c.b16 %v2478, %v2477
  %v2493 = vpack.c.b16 %v2480, %v2479
  %v2494 = vpack.c.b16 %v2482, %v2481
  %v2495 = vpack.c.b16 %v2484, %v2483
  %v2496 = vpack.c.b16 %v2486, %v2485
  %v2497 = vpack.c.b16 %v2488, %v2487
  %v2498 = vpack.c.b16 %v2490, %v2489
  %2507 = vmatprep.subr.bf16.mxu0 0
  %2508 = vmatpush1.bf16.msra.mxu0 %v2498
  %2509 = vmatprep.subr.bf16.mxu0 0
  %2510 = vmatpush1.bf16.msra.mxu0 %v2497
  %2511 = vmatprep.subr.bf16.mxu0 0
  %2512 = vmatpush1.bf16.msra.mxu0 %v2496
  %2513 = vmatprep.subr.bf16.mxu0 0
  %2514 = vmatpush1.bf16.msra.mxu0 %v2495
  %2515 = vmatprep.subr.bf16.mxu0 0
  %2516 = vmatpush1.bf16.msra.mxu0 %v2494
  %2517 = vmatprep.subr.bf16.mxu0 0
  %2518 = vmatpush1.bf16.msra.mxu0 %v2493
  %2519 = vmatprep.subr.bf16.mxu0 0
  %2520 = vmatpush1.bf16.msra.mxu0 %v2492
  %2521 = vmatprep.subr.bf16.mxu0 0
  %2522 = vmatpush1.bf16.msra.mxu0 %v2491
  %2523 = vmatprep.subr.bf16.mxu0 0
  %2524 = vmatpush2.bf16.msra.mxu0 0
  %2525 = vmatprep.subr.bf16.mxu0 0
  %2526 = vmatpush2.bf16.msra.mxu0 0
  %2527 = vmatprep.subr.bf16.mxu0 0
  %2528 = vmatpush2.bf16.msra.mxu0 0
  %2529 = vmatprep.subr.bf16.mxu0 0
  %2530 = vmatpush2.bf16.msra.mxu0 0
  %2531 = vmatprep.subr.bf16.mxu0 0
  %2532 = vmatpush2.bf16.msra.mxu0 0
  %2533 = vmatprep.subr.bf16.mxu0 0
  %2534 = vmatpush2.bf16.msra.mxu0 0
  %2535 = vmatprep.subr.bf16.mxu0 0
  %2536 = vmatpush2.bf16.msra.mxu0 0
  %2537 = vmatprep.subr.bf16.mxu0 0
  %2538 = vmatpush2.bf16.msra.mxu0 0
  %2539 = vmatprep.mubr.bf16.mxu0 0
  %2540 = vmatmul.mubr.bf16.gmra.mxu0 %v2424
  %v2541 = vpop.f32.mrf.mxu0
  %v2542 = vadd.f32 0.0, %v2541
  %v2543 = vpop.f32.mrf.mxu0
  %v2544 = vpop.f32.mrf.mxu0
  %v2545 = vadd.f32 0.0, %v2544
  %v2546 = vpop.f32.mrf.mxu0
  %2547 = vmatprep.mubr.bf16.mxu0 0
  %2548 = vmatmul.mubr.bf16.gmra.mxu0 %v2425
  %v2549 = vpop.f32.mrf.mxu0
  %v2550 = vadd.f32 0.0, %v2549
  %v2551 = vpop.f32.mrf.mxu0
  %v2552 = vpop.f32.mrf.mxu0
  %v2553 = vadd.f32 0.0, %v2552
  %v2554 = vpop.f32.mrf.mxu0
  %2555 = vmatprep.mubr.bf16.mxu0 0
  %2556 = vmatmul.mubr.bf16.gmra.mxu0 %v2426
  %v2557 = vpop.f32.mrf.mxu0
  %v2558 = vadd.f32 0.0, %v2557
  %v2559 = vpop.f32.mrf.mxu0
  %v2560 = vpop.f32.mrf.mxu0
  %v2561 = vadd.f32 0.0, %v2560
  %v2562 = vpop.f32.mrf.mxu0
  %2563 = vmatprep.mubr.bf16.mxu0 0
  %2564 = vmatmul.mubr.bf16.gmra.mxu0 %v2427
  %v2565 = vpop.f32.mrf.mxu0
  %v2566 = vadd.f32 0.0, %v2565
  %v2567 = vpop.f32.mrf.mxu0
  %v2568 = vpop.f32.mrf.mxu0
  %v2569 = vadd.f32 0.0, %v2568
  %v2570 = vpop.f32.mrf.mxu0
  %2571 = vmatprep.mubr.bf16.mxu0 0
  %2572 = vmatmul.mubr.bf16.gmra.mxu0 %v2428
  %v2573 = vpop.f32.mrf.mxu0
  %v2574 = vadd.f32 0.0, %v2573
  %v2575 = vpop.f32.mrf.mxu0
  %v2576 = vpop.f32.mrf.mxu0
  %v2577 = vadd.f32 0.0, %v2576
  %v2578 = vpop.f32.mrf.mxu0
  %2579 = vmatprep.mubr.bf16.mxu0 0
  %2580 = vmatmul.mubr.bf16.gmra.mxu0 %v2429
  %v2581 = vpop.f32.mrf.mxu0
  %v2582 = vadd.f32 0.0, %v2581
  %v2583 = vpop.f32.mrf.mxu0
  %v2584 = vpop.f32.mrf.mxu0
  %v2585 = vadd.f32 0.0, %v2584
  %v2586 = vpop.f32.mrf.mxu0
  %2587 = vmatprep.mubr.bf16.mxu0 0
  %2588 = vmatmul.mubr.bf16.gmra.mxu0 %v2430
  %v2589 = vpop.f32.mrf.mxu0
  %v2590 = vadd.f32 0.0, %v2589
  %v2591 = vpop.f32.mrf.mxu0
  %v2592 = vpop.f32.mrf.mxu0
  %v2593 = vadd.f32 0.0, %v2592
  %v2594 = vpop.f32.mrf.mxu0
  %2595 = vmatprep.mubr.bf16.mxu0 0
  %2596 = vmatmul.mubr.bf16.gmra.mxu0 %v2431
  %v2597 = vpop.f32.mrf.mxu0
  %v2598 = vadd.f32 0.0, %v2597
  %v2599 = vpop.f32.mrf.mxu0
  %v2600 = vpop.f32.mrf.mxu0
  %v2601 = vadd.f32 0.0, %v2600
  %v2602 = vpop.f32.mrf.mxu0
  %2603 = vmatprep.mubr.bf16.mxu0 0
  %2604 = vmatmul.mubr.bf16.gmra.mxu0 %v2432
  %v2605 = vpop.f32.mrf.mxu0
  %v2606 = vadd.f32 0.0, %v2605
  %v2607 = vpop.f32.mrf.mxu0
  %v2608 = vpop.f32.mrf.mxu0
  %v2609 = vadd.f32 0.0, %v2608
  %v2610 = vpop.f32.mrf.mxu0
  %2611 = vmatprep.mubr.bf16.mxu0 0
  %2612 = vmatmul.mubr.bf16.gmra.mxu0 %v2433
  %v2613 = vpop.f32.mrf.mxu0
  %v2614 = vadd.f32 0.0, %v2613
  %v2615 = vpop.f32.mrf.mxu0
  %v2616 = vpop.f32.mrf.mxu0
  %v2617 = vadd.f32 0.0, %v2616
  %v2618 = vpop.f32.mrf.mxu0
  %2619 = vmatprep.mubr.bf16.mxu0 0
  %2620 = vmatmul.mubr.bf16.gmra.mxu0 %v2434
  %v2621 = vpop.f32.mrf.mxu0
  %v2622 = vadd.f32 0.0, %v2621
  %v2623 = vpop.f32.mrf.mxu0
  %v2624 = vpop.f32.mrf.mxu0
  %v2625 = vadd.f32 0.0, %v2624
  %v2626 = vpop.f32.mrf.mxu0
  %2627 = vmatprep.mubr.bf16.mxu0 0
  %2628 = vmatmul.mubr.bf16.gmra.mxu0 %v2435
  %v2629 = vpop.f32.mrf.mxu0
  %v2630 = vadd.f32 0.0, %v2629
  %v2631 = vpop.f32.mrf.mxu0
  %v2632 = vpop.f32.mrf.mxu0
  %v2633 = vadd.f32 0.0, %v2632
  %v2634 = vpop.f32.mrf.mxu0
  %2635 = vmatprep.mubr.bf16.mxu0 0
  %2636 = vmatmul.mubr.bf16.gmra.mxu0 %v2436
  %v2637 = vpop.f32.mrf.mxu0
  %v2638 = vadd.f32 0.0, %v2637
  %v2639 = vpop.f32.mrf.mxu0
  %v2640 = vpop.f32.mrf.mxu0
  %v2641 = vadd.f32 0.0, %v2640
  %v2642 = vpop.f32.mrf.mxu0
  %2643 = vmatprep.mubr.bf16.mxu0 0
  %2644 = vmatmul.mubr.bf16.gmra.mxu0 %v2437
  %v2645 = vpop.f32.mrf.mxu0
  %v2646 = vadd.f32 0.0, %v2645
  %v2647 = vpop.f32.mrf.mxu0
  %v2648 = vpop.f32.mrf.mxu0
  %v2649 = vadd.f32 0.0, %v2648
  %v2650 = vpop.f32.mrf.mxu0
  %2651 = vmatprep.mubr.bf16.mxu0 0
  %2652 = vmatmul.mubr.bf16.gmra.mxu0 %v2438
  %v2653 = vpop.f32.mrf.mxu0
  %v2654 = vadd.f32 0.0, %v2653
  %v2655 = vpop.f32.mrf.mxu0
  %v2656 = vpop.f32.mrf.mxu0
  %v2657 = vadd.f32 0.0, %v2656
  %v2658 = vpop.f32.mrf.mxu0
  %2659 = vmatprep.mubr.bf16.mxu0 0
  %2660 = vmatmul.mubr.bf16.gmra.mxu0 %v2439
  %v2661 = vpop.f32.mrf.mxu0
  %v2662 = vadd.f32 0.0, %v2661
  %v2663 = vpop.f32.mrf.mxu0
  %v2664 = vpop.f32.mrf.mxu0
  %v2665 = vadd.f32 0.0, %v2664
  %v2666 = vpop.f32.mrf.mxu0
  %2667 = vmatprep.mubr.bf16.mxu0 0
  %2668 = vmatmul.mubr.bf16.gmra.mxu0 %v2440
  %v2669 = vpop.f32.mrf.mxu0
  %v2670 = vadd.f32 0.0, %v2669
  %v2671 = vpop.f32.mrf.mxu0
  %v2672 = vpop.f32.mrf.mxu0
  %v2673 = vadd.f32 0.0, %v2672
  %v2674 = vpop.f32.mrf.mxu0
  %2675 = vmatprep.mubr.bf16.mxu0 0
  %2676 = vmatmul.mubr.bf16.gmra.mxu0 %v2441
  %v2677 = vpop.f32.mrf.mxu0
  %v2678 = vadd.f32 0.0, %v2677
  %v2679 = vpop.f32.mrf.mxu0
  %v2680 = vpop.f32.mrf.mxu0
  %v2681 = vadd.f32 0.0, %v2680
  %v2682 = vpop.f32.mrf.mxu0
  %2683 = vdwg.mxu0
  %v2684 = vadd.f32 %v2388, %v2542
  %v2685 = vadd.f32 %v2389, %v2545
  %v2686 = vadd.f32 %v2390, %v2550
  %v2687 = vadd.f32 %v2391, %v2553
  %v2688 = vadd.f32 %v2392, %v2558
  %v2689 = vadd.f32 %v2393, %v2561
  %v2690 = vadd.f32 %v2394, %v2566
  %v2691 = vadd.f32 %v2395, %v2569
  %v2692 = vadd.f32 %v2396, %v2574
  %v2693 = vadd.f32 %v2397, %v2577
  %v2694 = vadd.f32 %v2398, %v2582
  %v2695 = vadd.f32 %v2399, %v2585
  %v2696 = vadd.f32 %v2400, %v2590
  %v2697 = vadd.f32 %v2401, %v2593
  %v2698 = vadd.f32 %v2402, %v2598
  %v2699 = vadd.f32 %v2403, %v2601
  %v2700 = vadd.f32 %v2404, %v2606
  %v2701 = vadd.f32 %v2405, %v2609
  %v2702 = vadd.f32 %v2406, %v2614
  %v2703 = vadd.f32 %v2407, %v2617
  %v2704 = vadd.f32 %v2408, %v2622
  %v2705 = vadd.f32 %v2409, %v2625
  %v2706 = vadd.f32 %v2410, %v2630
  %v2707 = vadd.f32 %v2411, %v2633
  %v2708 = vadd.f32 %v2412, %v2638
  %v2709 = vadd.f32 %v2413, %v2641
  %v2710 = vadd.f32 %v2414, %v2646
  %v2711 = vadd.f32 %v2415, %v2649
  %v2712 = vadd.f32 %v2416, %v2654
  %v2713 = vadd.f32 %v2417, %v2657
  %v2714 = vadd.f32 %v2418, %v2662
  %v2715 = vadd.f32 %v2419, %v2665
  %v2716 = vadd.f32 %v2420, %v2670
  %v2717 = vadd.f32 %v2421, %v2673
  %v2718 = vadd.f32 %v2422, %v2678
  %v2719 = vadd.f32 %v2423, %v2681
  %v2720 = vrot.slane %v60, 2
  %v2721 = vrot.slane %v61, 2
  %v2722 = vrot.slane %v62, 2
  %v2723 = vrot.slane %v63, 2
  %v2724 = vrot.slane %v64, 2
  %v2725 = vrot.slane %v65, 2
  %v2726 = vrot.slane %v66, 2
  %v2727 = vrot.slane %v67, 2
  %v2728 = vrot.slane %v68, 2
  %v2729 = vrot.slane %v69, 2
  %v2730 = vrot.slane %v70, 2
  %v2731 = vrot.slane %v71, 2
  %v2732 = vrot.slane %v72, 2
  %v2733 = vrot.slane %v73, 2
  %v2734 = vrot.slane %v74, 2
  %v2735 = vrot.slane %v75, 2
  %v2736 = vrot.slane %v76, 2
  %v2737 = vrot.slane %v77, 2
  %v2738 = vrot.slane %v78, 2
  %v2739 = vrot.slane %v79, 2
  %v2740 = vrot.slane %v80, 2
  %v2741 = vrot.slane %v81, 2
  %v2742 = vrot.slane %v82, 2
  %v2743 = vrot.slane %v83, 2
  %v2744 = vrot.slane %v84, 2
  %v2745 = vrot.slane %v85, 2
  %v2746 = vrot.slane %v86, 2
  %v2747 = vrot.slane %v87, 2
  %v2748 = vrot.slane %v88, 2
  %v2749 = vrot.slane %v89, 2
  %v2750 = vrot.slane %v90, 2
  %v2751 = vrot.slane %v91, 2
  %v2752 = vrot.slane %v92, 2
  %v2753 = vrot.slane %v93, 2
  %v2754 = vrot.slane %v94, 2
  %v2755 = vrot.slane %v95, 2
  %vm2756 = vcmp.lt.s32.totalorder %v169, 6
  %v2757 = vsel %vm2756, %v2754, %v2755
  %v2758 = vsel %vm2756, %v2753, %v2754
  %v2759 = vsel %vm2756, %v2752, %v2753
  %v2760 = vsel %vm2756, %v2751, %v2752
  %v2761 = vsel %vm2756, %v2750, %v2751
  %v2762 = vsel %vm2756, %v2749, %v2750
  %v2763 = vsel %vm2756, %v2748, %v2749
  %v2764 = vsel %vm2756, %v2747, %v2748
  %v2765 = vsel %vm2756, %v2746, %v2747
  %v2766 = vsel %vm2756, %v2745, %v2746
  %v2767 = vsel %vm2756, %v2744, %v2745
  %v2768 = vsel %vm2756, %v2743, %v2744
  %v2769 = vsel %vm2756, %v2742, %v2743
  %v2770 = vsel %vm2756, %v2741, %v2742
  %v2771 = vsel %vm2756, %v2740, %v2741
  %v2772 = vsel %vm2756, %v2739, %v2740
  %v2773 = vsel %vm2756, %v2738, %v2739
  %v2774 = vsel %vm2756, %v2737, %v2738
  %v2775 = vsel %vm2756, %v2736, %v2737
  %v2776 = vsel %vm2756, %v2735, %v2736
  %v2777 = vsel %vm2756, %v2734, %v2735
  %v2778 = vsel %vm2756, %v2733, %v2734
  %v2779 = vsel %vm2756, %v2732, %v2733
  %v2780 = vsel %vm2756, %v2731, %v2732
  %v2781 = vsel %vm2756, %v2730, %v2731
  %v2782 = vsel %vm2756, %v2729, %v2730
  %v2783 = vsel %vm2756, %v2728, %v2729
  %v2784 = vsel %vm2756, %v2727, %v2728
  %v2785 = vsel %vm2756, %v2726, %v2727
  %v2786 = vsel %vm2756, %v2725, %v2726
  %v2787 = vsel %vm2756, %v2724, %v2725
  %v2788 = vsel %vm2756, %v2723, %v2724
  %v2789 = vsel %vm2756, %v2722, %v2723
  %v2790 = vsel %vm2756, %v2721, %v2722
  %v2791 = vsel %vm2756, %v2720, %v2721
  %v2792 = vsel %vm2756, %v2755, %v2720
  %v2793 = vpack.c.bf16 %v2789, %v2790
  %v2794 = vpack.c.bf16 %v2787, %v2788
  %v2795 = vpack.c.bf16 %v2785, %v2786
  %v2796 = vpack.c.bf16 %v2783, %v2784
  %v2797 = vpack.c.bf16 %v2781, %v2782
  %v2798 = vpack.c.bf16 %v2779, %v2780
  %v2799 = vpack.c.bf16 %v2777, %v2778
  %v2800 = vpack.c.bf16 %v2775, %v2776
  %v2801 = vpack.c.bf16 %v2773, %v2774
  %v2802 = vpack.c.bf16 %v2771, %v2772
  %v2803 = vpack.c.bf16 %v2769, %v2770
  %v2804 = vpack.c.bf16 %v2767, %v2768
  %v2805 = vpack.c.bf16 %v2765, %v2766
  %v2806 = vpack.c.bf16 %v2763, %v2764
  %v2807 = vpack.c.bf16 %v2761, %v2762
  %v2808 = vpack.c.bf16 %v2759, %v2760
  %v2809 = vpack.c.bf16 %v2757, %v2758
  %v2810 = vpack.c.bf16 %v2791, %v2792
  %s2811 = scalar_lea.vmem %s1, 512
  %v2812 = vld [vmem:[%s2811] sm:$0xf]
  %v2813 = vld [vmem:[%s2811 + $0x4] sm:$0xf]
  %v2814 = vld [vmem:[%s2811 + $0x8] sm:$0xf]
  %v2815 = vld [vmem:[%s2811 + $0xc] sm:$0xf]
  %v2816 = vld [vmem:[%s2811 + $0x10] sm:$0xf]
  %v2817 = vld [vmem:[%s2811 + $0x14] sm:$0xf]
  %v2818 = vld [vmem:[%s2811 + $0x18] sm:$0xf]
  %v2819 = vld [vmem:[%s2811 + $0x1c] sm:$0xf]
  %v2820 = vld [vmem:[%s2811 + $0x20] sm:$0xf]
  %v2821 = vld [vmem:[%s2811 + $0x24] sm:$0xf]
  %v2822 = vld [vmem:[%s2811 + $0x28] sm:$0xf]
  %v2823 = vld [vmem:[%s2811 + $0x2c] sm:$0xf]
  %v2824 = vld [vmem:[%s2811 + $0x30] sm:$0xf]
  %v2825 = vld [vmem:[%s2811 + $0x34] sm:$0xf]
  %v2826 = vld [vmem:[%s2811 + $0x38] sm:$0xf]
  %v2827 = vld [vmem:[%s2811 + $0x3c] sm:$0xf]
  %v2844 = vunpack.c.l.b16 %v2812
  %v2845 = vunpack.c.l.b16 %v2813
  %v2846 = vunpack.c.l.b16 %v2814
  %v2847 = vunpack.c.l.b16 %v2815
  %v2848 = vunpack.c.l.b16 %v2816
  %v2849 = vunpack.c.l.b16 %v2817
  %v2850 = vunpack.c.l.b16 %v2818
  %v2851 = vunpack.c.l.b16 %v2819
  %v2852 = vunpack.c.l.b16 %v2820
  %v2853 = vunpack.c.l.b16 %v2821
  %v2854 = vunpack.c.l.b16 %v2822
  %v2855 = vunpack.c.l.b16 %v2823
  %v2856 = vunpack.c.l.b16 %v2824
  %v2857 = vunpack.c.l.b16 %v2825
  %v2858 = vunpack.c.l.b16 %v2826
  %v2859 = vunpack.c.l.b16 %v2827
  %v2860 = vpack.c.b16 %v2845, %v2844
  %v2861 = vpack.c.b16 %v2847, %v2846
  %v2862 = vpack.c.b16 %v2849, %v2848
  %v2863 = vpack.c.b16 %v2851, %v2850
  %v2864 = vpack.c.b16 %v2853, %v2852
  %v2865 = vpack.c.b16 %v2855, %v2854
  %v2866 = vpack.c.b16 %v2857, %v2856
  %v2867 = vpack.c.b16 %v2859, %v2858
  %2876 = vmatprep.subr.bf16.mxu0 0
  %2877 = vmatpush1.bf16.msra.mxu0 %v2867
  %2878 = vmatprep.subr.bf16.mxu0 0
  %2879 = vmatpush1.bf16.msra.mxu0 %v2866
  %2880 = vmatprep.subr.bf16.mxu0 0
  %2881 = vmatpush1.bf16.msra.mxu0 %v2865
  %2882 = vmatprep.subr.bf16.mxu0 0
  %2883 = vmatpush1.bf16.msra.mxu0 %v2864
  %2884 = vmatprep.subr.bf16.mxu0 0
  %2885 = vmatpush1.bf16.msra.mxu0 %v2863
  %2886 = vmatprep.subr.bf16.mxu0 0
  %2887 = vmatpush1.bf16.msra.mxu0 %v2862
  %2888 = vmatprep.subr.bf16.mxu0 0
  %2889 = vmatpush1.bf16.msra.mxu0 %v2861
  %2890 = vmatprep.subr.bf16.mxu0 0
  %2891 = vmatpush1.bf16.msra.mxu0 %v2860
  %2892 = vmatprep.subr.bf16.mxu0 0
  %2893 = vmatpush2.bf16.msra.mxu0 0
  %2894 = vmatprep.subr.bf16.mxu0 0
  %2895 = vmatpush2.bf16.msra.mxu0 0
  %2896 = vmatprep.subr.bf16.mxu0 0
  %2897 = vmatpush2.bf16.msra.mxu0 0
  %2898 = vmatprep.subr.bf16.mxu0 0
  %2899 = vmatpush2.bf16.msra.mxu0 0
  %2900 = vmatprep.subr.bf16.mxu0 0
  %2901 = vmatpush2.bf16.msra.mxu0 0
  %2902 = vmatprep.subr.bf16.mxu0 0
  %2903 = vmatpush2.bf16.msra.mxu0 0
  %2904 = vmatprep.subr.bf16.mxu0 0
  %2905 = vmatpush2.bf16.msra.mxu0 0
  %2906 = vmatprep.subr.bf16.mxu0 0
  %2907 = vmatpush2.bf16.msra.mxu0 0
  %2908 = vmatprep.mubr.bf16.mxu0 0
  %2909 = vmatmul.mubr.bf16.gmra.mxu0 %v2793
  %v2910 = vpop.f32.mrf.mxu0
  %v2911 = vadd.f32 0.0, %v2910
  %v2912 = vpop.f32.mrf.mxu0
  %v2913 = vpop.f32.mrf.mxu0
  %v2914 = vadd.f32 0.0, %v2913
  %v2915 = vpop.f32.mrf.mxu0
  %2916 = vmatprep.mubr.bf16.mxu0 0
  %2917 = vmatmul.mubr.bf16.gmra.mxu0 %v2794
  %v2918 = vpop.f32.mrf.mxu0
  %v2919 = vadd.f32 0.0, %v2918
  %v2920 = vpop.f32.mrf.mxu0
  %v2921 = vpop.f32.mrf.mxu0
  %v2922 = vadd.f32 0.0, %v2921
  %v2923 = vpop.f32.mrf.mxu0
  %2924 = vmatprep.mubr.bf16.mxu0 0
  %2925 = vmatmul.mubr.bf16.gmra.mxu0 %v2795
  %v2926 = vpop.f32.mrf.mxu0
  %v2927 = vadd.f32 0.0, %v2926
  %v2928 = vpop.f32.mrf.mxu0
  %v2929 = vpop.f32.mrf.mxu0
  %v2930 = vadd.f32 0.0, %v2929
  %v2931 = vpop.f32.mrf.mxu0
  %2932 = vmatprep.mubr.bf16.mxu0 0
  %2933 = vmatmul.mubr.bf16.gmra.mxu0 %v2796
  %v2934 = vpop.f32.mrf.mxu0
  %v2935 = vadd.f32 0.0, %v2934
  %v2936 = vpop.f32.mrf.mxu0
  %v2937 = vpop.f32.mrf.mxu0
  %v2938 = vadd.f32 0.0, %v2937
  %v2939 = vpop.f32.mrf.mxu0
  %2940 = vmatprep.mubr.bf16.mxu0 0
  %2941 = vmatmul.mubr.bf16.gmra.mxu0 %v2797
  %v2942 = vpop.f32.mrf.mxu0
  %v2943 = vadd.f32 0.0, %v2942
  %v2944 = vpop.f32.mrf.mxu0
  %v2945 = vpop.f32.mrf.mxu0
  %v2946 = vadd.f32 0.0, %v2945
  %v2947 = vpop.f32.mrf.mxu0
  %2948 = vmatprep.mubr.bf16.mxu0 0
  %2949 = vmatmul.mubr.bf16.gmra.mxu0 %v2798
  %v2950 = vpop.f32.mrf.mxu0
  %v2951 = vadd.f32 0.0, %v2950
  %v2952 = vpop.f32.mrf.mxu0
  %v2953 = vpop.f32.mrf.mxu0
  %v2954 = vadd.f32 0.0, %v2953
  %v2955 = vpop.f32.mrf.mxu0
  %2956 = vmatprep.mubr.bf16.mxu0 0
  %2957 = vmatmul.mubr.bf16.gmra.mxu0 %v2799
  %v2958 = vpop.f32.mrf.mxu0
  %v2959 = vadd.f32 0.0, %v2958
  %v2960 = vpop.f32.mrf.mxu0
  %v2961 = vpop.f32.mrf.mxu0
  %v2962 = vadd.f32 0.0, %v2961
  %v2963 = vpop.f32.mrf.mxu0
  %2964 = vmatprep.mubr.bf16.mxu0 0
  %2965 = vmatmul.mubr.bf16.gmra.mxu0 %v2800
  %v2966 = vpop.f32.mrf.mxu0
  %v2967 = vadd.f32 0.0, %v2966
  %v2968 = vpop.f32.mrf.mxu0
  %v2969 = vpop.f32.mrf.mxu0
  %v2970 = vadd.f32 0.0, %v2969
  %v2971 = vpop.f32.mrf.mxu0
  %2972 = vmatprep.mubr.bf16.mxu0 0
  %2973 = vmatmul.mubr.bf16.gmra.mxu0 %v2801
  %v2974 = vpop.f32.mrf.mxu0
  %v2975 = vadd.f32 0.0, %v2974
  %v2976 = vpop.f32.mrf.mxu0
  %v2977 = vpop.f32.mrf.mxu0
  %v2978 = vadd.f32 0.0, %v2977
  %v2979 = vpop.f32.mrf.mxu0
  %2980 = vmatprep.mubr.bf16.mxu0 0
  %2981 = vmatmul.mubr.bf16.gmra.mxu0 %v2802
  %v2982 = vpop.f32.mrf.mxu0
  %v2983 = vadd.f32 0.0, %v2982
  %v2984 = vpop.f32.mrf.mxu0
  %v2985 = vpop.f32.mrf.mxu0
  %v2986 = vadd.f32 0.0, %v2985
  %v2987 = vpop.f32.mrf.mxu0
  %2988 = vmatprep.mubr.bf16.mxu0 0
  %2989 = vmatmul.mubr.bf16.gmra.mxu0 %v2803
  %v2990 = vpop.f32.mrf.mxu0
  %v2991 = vadd.f32 0.0, %v2990
  %v2992 = vpop.f32.mrf.mxu0
  %v2993 = vpop.f32.mrf.mxu0
  %v2994 = vadd.f32 0.0, %v2993
  %v2995 = vpop.f32.mrf.mxu0
  %2996 = vmatprep.mubr.bf16.mxu0 0
  %2997 = vmatmul.mubr.bf16.gmra.mxu0 %v2804
  %v2998 = vpop.f32.mrf.mxu0
  %v2999 = vadd.f32 0.0, %v2998
  %v3000 = vpop.f32.mrf.mxu0
  %v3001 = vpop.f32.mrf.mxu0
  %v3002 = vadd.f32 0.0, %v3001
  %v3003 = vpop.f32.mrf.mxu0
  %3004 = vmatprep.mubr.bf16.mxu0 0
  %3005 = vmatmul.mubr.bf16.gmra.mxu0 %v2805
  %v3006 = vpop.f32.mrf.mxu0
  %v3007 = vadd.f32 0.0, %v3006
  %v3008 = vpop.f32.mrf.mxu0
  %v3009 = vpop.f32.mrf.mxu0
  %v3010 = vadd.f32 0.0, %v3009
  %v3011 = vpop.f32.mrf.mxu0
  %3012 = vmatprep.mubr.bf16.mxu0 0
  %3013 = vmatmul.mubr.bf16.gmra.mxu0 %v2806
  %v3014 = vpop.f32.mrf.mxu0
  %v3015 = vadd.f32 0.0, %v3014
  %v3016 = vpop.f32.mrf.mxu0
  %v3017 = vpop.f32.mrf.mxu0
  %v3018 = vadd.f32 0.0, %v3017
  %v3019 = vpop.f32.mrf.mxu0
  %3020 = vmatprep.mubr.bf16.mxu0 0
  %3021 = vmatmul.mubr.bf16.gmra.mxu0 %v2807
  %v3022 = vpop.f32.mrf.mxu0
  %v3023 = vadd.f32 0.0, %v3022
  %v3024 = vpop.f32.mrf.mxu0
  %v3025 = vpop.f32.mrf.mxu0
  %v3026 = vadd.f32 0.0, %v3025
  %v3027 = vpop.f32.mrf.mxu0
  %3028 = vmatprep.mubr.bf16.mxu0 0
  %3029 = vmatmul.mubr.bf16.gmra.mxu0 %v2808
  %v3030 = vpop.f32.mrf.mxu0
  %v3031 = vadd.f32 0.0, %v3030
  %v3032 = vpop.f32.mrf.mxu0
  %v3033 = vpop.f32.mrf.mxu0
  %v3034 = vadd.f32 0.0, %v3033
  %v3035 = vpop.f32.mrf.mxu0
  %3036 = vmatprep.mubr.bf16.mxu0 0
  %3037 = vmatmul.mubr.bf16.gmra.mxu0 %v2809
  %v3038 = vpop.f32.mrf.mxu0
  %v3039 = vadd.f32 0.0, %v3038
  %v3040 = vpop.f32.mrf.mxu0
  %v3041 = vpop.f32.mrf.mxu0
  %v3042 = vadd.f32 0.0, %v3041
  %v3043 = vpop.f32.mrf.mxu0
  %3044 = vmatprep.mubr.bf16.mxu0 0
  %3045 = vmatmul.mubr.bf16.gmra.mxu0 %v2810
  %v3046 = vpop.f32.mrf.mxu0
  %v3047 = vadd.f32 0.0, %v3046
  %v3048 = vpop.f32.mrf.mxu0
  %v3049 = vpop.f32.mrf.mxu0
  %v3050 = vadd.f32 0.0, %v3049
  %v3051 = vpop.f32.mrf.mxu0
  %3052 = vdwg.mxu0
  %v3053 = vadd.f32 %v2684, %v2911
  %v3054 = vadd.f32 %v2685, %v2914
  %v3055 = vadd.f32 %v2686, %v2919
  %v3056 = vadd.f32 %v2687, %v2922
  %v3057 = vadd.f32 %v2688, %v2927
  %v3058 = vadd.f32 %v2689, %v2930
  %v3059 = vadd.f32 %v2690, %v2935
  %v3060 = vadd.f32 %v2691, %v2938
  %v3061 = vadd.f32 %v2692, %v2943
  %v3062 = vadd.f32 %v2693, %v2946
  %v3063 = vadd.f32 %v2694, %v2951
  %v3064 = vadd.f32 %v2695, %v2954
  %v3065 = vadd.f32 %v2696, %v2959
  %v3066 = vadd.f32 %v2697, %v2962
  %v3067 = vadd.f32 %v2698, %v2967
  %v3068 = vadd.f32 %v2699, %v2970
  %v3069 = vadd.f32 %v2700, %v2975
  %v3070 = vadd.f32 %v2701, %v2978
  %v3071 = vadd.f32 %v2702, %v2983
  %v3072 = vadd.f32 %v2703, %v2986
  %v3073 = vadd.f32 %v2704, %v2991
  %v3074 = vadd.f32 %v2705, %v2994
  %v3075 = vadd.f32 %v2706, %v2999
  %v3076 = vadd.f32 %v2707, %v3002
  %v3077 = vadd.f32 %v2708, %v3007
  %v3078 = vadd.f32 %v2709, %v3010
  %v3079 = vadd.f32 %v2710, %v3015
  %v3080 = vadd.f32 %v2711, %v3018
  %v3081 = vadd.f32 %v2712, %v3023
  %v3082 = vadd.f32 %v2713, %v3026
  %v3083 = vadd.f32 %v2714, %v3031
  %v3084 = vadd.f32 %v2715, %v3034
  %v3085 = vadd.f32 %v2716, %v3039
  %v3086 = vadd.f32 %v2717, %v3042
  %v3087 = vadd.f32 %v2718, %v3047
  %v3088 = vadd.f32 %v2719, %v3050
  %v3089 = vld [vmem:[%s2] sm:$0x1]
  %v3091 = vlaneseq
  %v3092 = vshrl.u32 %v3091, 7
  %v3093 = vsub.s32 0, %v3092
  %v3094 = vrot.slane %v3089, %v3093
  %v3096 = vadd.f32 %v3053, %v3094
  %v3097 = vadd.f32 %v3054, %v3094
  %v3098 = vadd.f32 %v3055, %v3094
  %v3099 = vadd.f32 %v3056, %v3094
  %v3100 = vadd.f32 %v3057, %v3094
  %v3101 = vadd.f32 %v3058, %v3094
  %v3102 = vadd.f32 %v3059, %v3094
  %v3103 = vadd.f32 %v3060, %v3094
  %v3104 = vadd.f32 %v3061, %v3094
  %v3105 = vadd.f32 %v3062, %v3094
  %v3106 = vadd.f32 %v3063, %v3094
  %v3107 = vadd.f32 %v3064, %v3094
  %v3108 = vadd.f32 %v3065, %v3094
  %v3109 = vadd.f32 %v3066, %v3094
  %v3110 = vadd.f32 %v3067, %v3094
  %v3111 = vadd.f32 %v3068, %v3094
  %v3112 = vadd.f32 %v3069, %v3094
  %v3113 = vadd.f32 %v3070, %v3094
  %v3114 = vadd.f32 %v3071, %v3094
  %v3115 = vadd.f32 %v3072, %v3094
  %v3116 = vadd.f32 %v3073, %v3094
  %v3117 = vadd.f32 %v3074, %v3094
  %v3118 = vadd.f32 %v3075, %v3094
  %v3119 = vadd.f32 %v3076, %v3094
  %v3120 = vadd.f32 %v3077, %v3094
  %v3121 = vadd.f32 %v3078, %v3094
  %v3122 = vadd.f32 %v3079, %v3094
  %v3123 = vadd.f32 %v3080, %v3094
  %v3124 = vadd.f32 %v3081, %v3094
  %v3125 = vadd.f32 %v3082, %v3094
  %v3126 = vadd.f32 %v3083, %v3094
  %v3127 = vadd.f32 %v3084, %v3094
  %v3128 = vadd.f32 %v3085, %v3094
  %v3129 = vadd.f32 %v3086, %v3094
  %v3130 = vadd.f32 %v3087, %v3094
  %v3131 = vadd.f32 %v3088, %v3094
  %v3132 = vmax.f32 %v3096, 0.0
  %v3133 = vmax.f32 %v3097, 0.0
  %v3134 = vmax.f32 %v3098, 0.0
  %v3135 = vmax.f32 %v3099, 0.0
  %v3136 = vmax.f32 %v3100, 0.0
  %v3137 = vmax.f32 %v3101, 0.0
  %v3138 = vmax.f32 %v3102, 0.0
  %v3139 = vmax.f32 %v3103, 0.0
  %v3140 = vmax.f32 %v3104, 0.0
  %v3141 = vmax.f32 %v3105, 0.0
  %v3142 = vmax.f32 %v3106, 0.0
  %v3143 = vmax.f32 %v3107, 0.0
  %v3144 = vmax.f32 %v3108, 0.0
  %v3145 = vmax.f32 %v3109, 0.0
  %v3146 = vmax.f32 %v3110, 0.0
  %v3147 = vmax.f32 %v3111, 0.0
  %v3148 = vmax.f32 %v3112, 0.0
  %v3149 = vmax.f32 %v3113, 0.0
  %v3150 = vmax.f32 %v3114, 0.0
  %v3151 = vmax.f32 %v3115, 0.0
  %v3152 = vmax.f32 %v3116, 0.0
  %v3153 = vmax.f32 %v3117, 0.0
  %v3154 = vmax.f32 %v3118, 0.0
  %v3155 = vmax.f32 %v3119, 0.0
  %v3156 = vmax.f32 %v3120, 0.0
  %v3157 = vmax.f32 %v3121, 0.0
  %v3158 = vmax.f32 %v3122, 0.0
  %v3159 = vmax.f32 %v3123, 0.0
  %v3160 = vmax.f32 %v3124, 0.0
  %v3161 = vmax.f32 %v3125, 0.0
  %v3162 = vmax.f32 %v3126, 0.0
  %v3163 = vmax.f32 %v3127, 0.0
  %v3164 = vmax.f32 %v3128, 0.0
  %v3165 = vmax.f32 %v3129, 0.0
  %v3166 = vmax.f32 %v3130, 0.0
  %v3167 = vmax.f32 %v3131, 0.0
  %3169 = vset.pattern.permute.xlu0 0
  %3170 = vperm.xlu0 %3169, %v96
  %v3171 = vpop.permute.xlu0 %3170
  %3174 = vset.pattern.permute.xlu0 0
  %3175 = vperm.xlu0 %3174, %v97
  %v3176 = vpop.permute.xlu0 %3175
  %3179 = vset.pattern.permute.xlu0 0
  %3180 = vperm.xlu0 %3179, %v98
  %v3181 = vpop.permute.xlu0 %3180
  %3184 = vset.pattern.permute.xlu0 0
  %3185 = vperm.xlu0 %3184, %v99
  %v3186 = vpop.permute.xlu0 %3185
  %3189 = vset.pattern.permute.xlu0 0
  %3190 = vperm.xlu0 %3189, %v100
  %v3191 = vpop.permute.xlu0 %3190
  %3194 = vset.pattern.permute.xlu0 0
  %3195 = vperm.xlu0 %3194, %v101
  %v3196 = vpop.permute.xlu0 %3195
  %3199 = vset.pattern.permute.xlu0 0
  %3200 = vperm.xlu0 %3199, %v102
  %v3201 = vpop.permute.xlu0 %3200
  %3204 = vset.pattern.permute.xlu0 0
  %3205 = vperm.xlu0 %3204, %v103
  %v3206 = vpop.permute.xlu0 %3205
  %3209 = vset.pattern.permute.xlu0 0
  %3210 = vperm.xlu0 %3209, %v104
  %v3211 = vpop.permute.xlu0 %3210
  %3214 = vset.pattern.permute.xlu0 0
  %3215 = vperm.xlu0 %3214, %v105
  %v3216 = vpop.permute.xlu0 %3215
  %3219 = vset.pattern.permute.xlu0 0
  %3220 = vperm.xlu0 %3219, %v106
  %v3221 = vpop.permute.xlu0 %3220
  %3224 = vset.pattern.permute.xlu0 0
  %3225 = vperm.xlu0 %3224, %v107
  %v3226 = vpop.permute.xlu0 %3225
  %3229 = vset.pattern.permute.xlu0 0
  %3230 = vperm.xlu0 %3229, %v108
  %v3231 = vpop.permute.xlu0 %3230
  %3234 = vset.pattern.permute.xlu0 0
  %3235 = vperm.xlu0 %3234, %v109
  %v3236 = vpop.permute.xlu0 %3235
  %3239 = vset.pattern.permute.xlu0 0
  %3240 = vperm.xlu0 %3239, %v110
  %v3241 = vpop.permute.xlu0 %3240
  %3244 = vset.pattern.permute.xlu0 0
  %3245 = vperm.xlu0 %3244, %v111
  %v3246 = vpop.permute.xlu0 %3245
  %3249 = vset.pattern.permute.xlu0 0
  %3250 = vperm.xlu0 %3249, %v112
  %v3251 = vpop.permute.xlu0 %3250
  %3254 = vset.pattern.permute.xlu0 0
  %3255 = vperm.xlu0 %3254, %v113
  %v3256 = vpop.permute.xlu0 %3255
  %3259 = vset.pattern.permute.xlu0 0
  %3260 = vperm.xlu0 %3259, %v114
  %v3261 = vpop.permute.xlu0 %3260
  %3264 = vset.pattern.permute.xlu0 0
  %3265 = vperm.xlu0 %3264, %v115
  %v3266 = vpop.permute.xlu0 %3265
  %3269 = vset.pattern.permute.xlu0 0
  %3270 = vperm.xlu0 %3269, %v116
  %v3271 = vpop.permute.xlu0 %3270
  %3274 = vset.pattern.permute.xlu0 0
  %3275 = vperm.xlu0 %3274, %v117
  %v3276 = vpop.permute.xlu0 %3275
  %3279 = vset.pattern.permute.xlu0 0
  %3280 = vperm.xlu0 %3279, %v118
  %v3281 = vpop.permute.xlu0 %3280
  %3284 = vset.pattern.permute.xlu0 0
  %3285 = vperm.xlu0 %3284, %v119
  %v3286 = vpop.permute.xlu0 %3285
  %3289 = vset.pattern.permute.xlu0 0
  %3290 = vperm.xlu0 %3289, %v120
  %v3291 = vpop.permute.xlu0 %3290
  %3294 = vset.pattern.permute.xlu0 0
  %3295 = vperm.xlu0 %3294, %v121
  %v3296 = vpop.permute.xlu0 %3295
  %3299 = vset.pattern.permute.xlu0 0
  %3300 = vperm.xlu0 %3299, %v122
  %v3301 = vpop.permute.xlu0 %3300
  %3304 = vset.pattern.permute.xlu0 0
  %3305 = vperm.xlu0 %3304, %v123
  %v3306 = vpop.permute.xlu0 %3305
  %3309 = vset.pattern.permute.xlu0 0
  %3310 = vperm.xlu0 %3309, %v124
  %v3311 = vpop.permute.xlu0 %3310
  %3314 = vset.pattern.permute.xlu0 0
  %3315 = vperm.xlu0 %3314, %v125
  %v3316 = vpop.permute.xlu0 %3315
  %3319 = vset.pattern.permute.xlu0 0
  %3320 = vperm.xlu0 %3319, %v126
  %v3321 = vpop.permute.xlu0 %3320
  %3324 = vset.pattern.permute.xlu0 0
  %3325 = vperm.xlu0 %3324, %v127
  %v3326 = vpop.permute.xlu0 %3325
  %3329 = vset.pattern.permute.xlu0 0
  %3330 = vperm.xlu0 %3329, %v128
  %v3331 = vpop.permute.xlu0 %3330
  %3334 = vset.pattern.permute.xlu0 0
  %3335 = vperm.xlu0 %3334, %v129
  %v3336 = vpop.permute.xlu0 %3335
  %3339 = vset.pattern.permute.xlu0 0
  %3340 = vperm.xlu0 %3339, %v130
  %v3341 = vpop.permute.xlu0 %3340
  %3344 = vset.pattern.permute.xlu0 0
  %3345 = vperm.xlu0 %3344, %v131
  %v3346 = vpop.permute.xlu0 %3345
  %v3348 = vmul.f32 %v3132, %v3171
  %v3349 = vmul.f32 %v3133, %v3176
  %v3350 = vmul.f32 %v3134, %v3181
  %v3351 = vmul.f32 %v3135, %v3186
  %v3352 = vmul.f32 %v3136, %v3191
  %v3353 = vmul.f32 %v3137, %v3196
  %v3354 = vmul.f32 %v3138, %v3201
  %v3355 = vmul.f32 %v3139, %v3206
  %v3356 = vmul.f32 %v3140, %v3211
  %v3357 = vmul.f32 %v3141, %v3216
  %v3358 = vmul.f32 %v3142, %v3221
  %v3359 = vmul.f32 %v3143, %v3226
  %v3360 = vmul.f32 %v3144, %v3231
  %v3361 = vmul.f32 %v3145, %v3236
  %v3362 = vmul.f32 %v3146, %v3241
  %v3363 = vmul.f32 %v3147, %v3246
  %v3364 = vmul.f32 %v3148, %v3251
  %v3365 = vmul.f32 %v3149, %v3256
  %v3366 = vmul.f32 %v3150, %v3261
  %v3367 = vmul.f32 %v3151, %v3266
  %v3368 = vmul.f32 %v3152, %v3271
  %v3369 = vmul.f32 %v3153, %v3276
  %v3370 = vmul.f32 %v3154, %v3281
  %v3371 = vmul.f32 %v3155, %v3286
  %v3372 = vmul.f32 %v3156, %v3291
  %v3373 = vmul.f32 %v3157, %v3296
  %v3374 = vmul.f32 %v3158, %v3301
  %v3375 = vmul.f32 %v3159, %v3306
  %v3376 = vmul.f32 %v3160, %v3311
  %v3377 = vmul.f32 %v3161, %v3316
  %v3378 = vmul.f32 %v3162, %v3321
  %v3379 = vmul.f32 %v3163, %v3326
  %v3380 = vmul.f32 %v3164, %v3331
  %v3381 = vmul.f32 %v3165, %v3336
  %v3382 = vmul.f32 %v3166, %v3341
  %v3383 = vmul.f32 %v3167, %v3346
  %v3384 = vrot.slane %v3348, 6
  %v3385 = vrot.slane %v3349, 6
  %v3386 = vrot.slane %v3350, 6
  %v3387 = vrot.slane %v3351, 6
  %v3388 = vrot.slane %v3352, 6
  %v3389 = vrot.slane %v3353, 6
  %v3390 = vrot.slane %v3354, 6
  %v3391 = vrot.slane %v3355, 6
  %v3392 = vrot.slane %v3356, 6
  %v3393 = vrot.slane %v3357, 6
  %v3394 = vrot.slane %v3358, 6
  %v3395 = vrot.slane %v3359, 6
  %v3396 = vrot.slane %v3360, 6
  %v3397 = vrot.slane %v3361, 6
  %v3398 = vrot.slane %v3362, 6
  %v3399 = vrot.slane %v3363, 6
  %v3400 = vrot.slane %v3364, 6
  %v3401 = vrot.slane %v3365, 6
  %v3402 = vrot.slane %v3366, 6
  %v3403 = vrot.slane %v3367, 6
  %v3404 = vrot.slane %v3368, 6
  %v3405 = vrot.slane %v3369, 6
  %v3406 = vrot.slane %v3370, 6
  %v3407 = vrot.slane %v3371, 6
  %v3408 = vrot.slane %v3372, 6
  %v3409 = vrot.slane %v3373, 6
  %v3410 = vrot.slane %v3374, 6
  %v3411 = vrot.slane %v3375, 6
  %v3412 = vrot.slane %v3376, 6
  %v3413 = vrot.slane %v3377, 6
  %v3414 = vrot.slane %v3378, 6
  %v3415 = vrot.slane %v3379, 6
  %v3416 = vrot.slane %v3380, 6
  %v3417 = vrot.slane %v3381, 6
  %v3418 = vrot.slane %v3382, 6
  %v3419 = vrot.slane %v3383, 6
  %v3420 = vsel %vm170, %v3418, %v3419
  %v3421 = vsel %vm170, %v3417, %v3418
  %v3422 = vsel %vm170, %v3416, %v3417
  %v3423 = vsel %vm170, %v3415, %v3416
  %v3424 = vsel %vm170, %v3414, %v3415
  %v3425 = vsel %vm170, %v3413, %v3414
  %v3426 = vsel %vm170, %v3412, %v3413
  %v3427 = vsel %vm170, %v3411, %v3412
  %v3428 = vsel %vm170, %v3410, %v3411
  %v3429 = vsel %vm170, %v3409, %v3410
  %v3430 = vsel %vm170, %v3408, %v3409
  %v3431 = vsel %vm170, %v3407, %v3408
  %v3432 = vsel %vm170, %v3406, %v3407
  %v3433 = vsel %vm170, %v3405, %v3406
  %v3434 = vsel %vm170, %v3404, %v3405
  %v3435 = vsel %vm170, %v3403, %v3404
  %v3436 = vsel %vm170, %v3402, %v3403
  %v3437 = vsel %vm170, %v3401, %v3402
  %v3438 = vsel %vm170, %v3400, %v3401
  %v3439 = vsel %vm170, %v3399, %v3400
  %v3440 = vsel %vm170, %v3398, %v3399
  %v3441 = vsel %vm170, %v3397, %v3398
  %v3442 = vsel %vm170, %v3396, %v3397
  %v3443 = vsel %vm170, %v3395, %v3396
  %v3444 = vsel %vm170, %v3394, %v3395
  %v3445 = vsel %vm170, %v3393, %v3394
  %v3446 = vsel %vm170, %v3392, %v3393
  %v3447 = vsel %vm170, %v3391, %v3392
  %v3448 = vsel %vm170, %v3390, %v3391
  %v3449 = vsel %vm170, %v3389, %v3390
  %v3450 = vsel %vm170, %v3388, %v3389
  %v3451 = vsel %vm170, %v3387, %v3388
  %v3452 = vsel %vm170, %v3386, %v3387
  %v3453 = vsel %vm170, %v3385, %v3386
  %v3454 = vsel %vm170, %v3384, %v3385
  %v3455 = vsel %vm170, %v3419, %v3384
  %v3456 = vpack.c.bf16 %v3455, %v3420
  %v3457 = vpack.c.bf16 %v3453, %v3454
  %v3458 = vpack.c.bf16 %v3451, %v3452
  %v3459 = vpack.c.bf16 %v3449, %v3450
  %v3460 = vpack.c.bf16 %v3447, %v3448
  %v3461 = vpack.c.bf16 %v3445, %v3446
  %v3462 = vpack.c.bf16 %v3443, %v3444
  %v3463 = vpack.c.bf16 %v3441, %v3442
  %v3464 = vpack.c.bf16 %v3439, %v3440
  %v3465 = vpack.c.bf16 %v3437, %v3438
  %v3466 = vpack.c.bf16 %v3435, %v3436
  %v3467 = vpack.c.bf16 %v3433, %v3434
  %v3468 = vpack.c.bf16 %v3431, %v3432
  %v3469 = vpack.c.bf16 %v3429, %v3430
  %v3470 = vpack.c.bf16 %v3427, %v3428
  %v3471 = vpack.c.bf16 %v3425, %v3426
  %v3472 = vpack.c.bf16 %v3423, %v3424
  %v3473 = vpack.c.bf16 %v3421, %v3422
  %v3474 = vld [vmem:[%s3] sm:$0xf]
  %v3475 = vld [vmem:[%s3 + $0x4] sm:$0xf]
  %v3476 = vld [vmem:[%s3 + $0x8] sm:$0xf]
  %v3477 = vld [vmem:[%s3 + $0xc] sm:$0xf]
  %v3478 = vld [vmem:[%s3 + $0x10] sm:$0xf]
  %v3479 = vld [vmem:[%s3 + $0x14] sm:$0xf]
  %v3480 = vld [vmem:[%s3 + $0x18] sm:$0xf]
  %v3481 = vld [vmem:[%s3 + $0x1c] sm:$0xf]
  %v3482 = vld [vmem:[%s3 + $0x20] sm:$0xf]
  %v3483 = vld [vmem:[%s3 + $0x24] sm:$0xf]
  %v3484 = vld [vmem:[%s3 + $0x28] sm:$0xf]
  %v3485 = vld [vmem:[%s3 + $0x2c] sm:$0xf]
  %v3486 = vld [vmem:[%s3 + $0x30] sm:$0xf]
  %v3487 = vld [vmem:[%s3 + $0x34] sm:$0xf]
  %v3488 = vld [vmem:[%s3 + $0x38] sm:$0xf]
  %v3489 = vld [vmem:[%s3 + $0x3c] sm:$0xf]
  %v3490 = vrot.slane %v3348, 7
  %v3491 = vrot.slane %v3349, 7
  %v3492 = vrot.slane %v3350, 7
  %v3493 = vrot.slane %v3351, 7
  %v3494 = vrot.slane %v3352, 7
  %v3495 = vrot.slane %v3353, 7
  %v3496 = vrot.slane %v3354, 7
  %v3497 = vrot.slane %v3355, 7
  %v3498 = vrot.slane %v3356, 7
  %v3499 = vrot.slane %v3357, 7
  %v3500 = vrot.slane %v3358, 7
  %v3501 = vrot.slane %v3359, 7
  %v3502 = vrot.slane %v3360, 7
  %v3503 = vrot.slane %v3361, 7
  %v3504 = vrot.slane %v3362, 7
  %v3505 = vrot.slane %v3363, 7
  %v3506 = vrot.slane %v3364, 7
  %v3507 = vrot.slane %v3365, 7
  %v3508 = vrot.slane %v3366, 7
  %v3509 = vrot.slane %v3367, 7
  %v3510 = vrot.slane %v3368, 7
  %v3511 = vrot.slane %v3369, 7
  %v3512 = vrot.slane %v3370, 7
  %v3513 = vrot.slane %v3371, 7
  %v3514 = vrot.slane %v3372, 7
  %v3515 = vrot.slane %v3373, 7
  %v3516 = vrot.slane %v3374, 7
  %v3517 = vrot.slane %v3375, 7
  %v3518 = vrot.slane %v3376, 7
  %v3519 = vrot.slane %v3377, 7
  %v3520 = vrot.slane %v3378, 7
  %v3521 = vrot.slane %v3379, 7
  %v3522 = vrot.slane %v3380, 7
  %v3523 = vrot.slane %v3381, 7
  %v3524 = vrot.slane %v3382, 7
  %v3525 = vrot.slane %v3383, 7
  %v3526 = vsel %vm277, %v3524, %v3525
  %v3527 = vsel %vm277, %v3523, %v3524
  %v3528 = vsel %vm277, %v3522, %v3523
  %v3529 = vsel %vm277, %v3521, %v3522
  %v3530 = vsel %vm277, %v3520, %v3521
  %v3531 = vsel %vm277, %v3519, %v3520
  %v3532 = vsel %vm277, %v3518, %v3519
  %v3533 = vsel %vm277, %v3517, %v3518
  %v3534 = vsel %vm277, %v3516, %v3517
  %v3535 = vsel %vm277, %v3515, %v3516
  %v3536 = vsel %vm277, %v3514, %v3515
  %v3537 = vsel %vm277, %v3513, %v3514
  %v3538 = vsel %vm277, %v3512, %v3513
  %v3539 = vsel %vm277, %v3511, %v3512
  %v3540 = vsel %vm277, %v3510, %v3511
  %v3541 = vsel %vm277, %v3509, %v3510
  %v3542 = vsel %vm277, %v3508, %v3509
  %v3543 = vsel %vm277, %v3507, %v3508
  %v3544 = vsel %vm277, %v3506, %v3507
  %v3545 = vsel %vm277, %v3505, %v3506
  %v3546 = vsel %vm277, %v3504, %v3505
  %v3547 = vsel %vm277, %v3503, %v3504
  %v3548 = vsel %vm277, %v3502, %v3503
  %v3549 = vsel %vm277, %v3501, %v3502
  %v3550 = vsel %vm277, %v3500, %v3501
  %v3551 = vsel %vm277, %v3499, %v3500
  %v3552 = vsel %vm277, %v3498, %v3499
  %v3553 = vsel %vm277, %v3497, %v3498
  %v3554 = vsel %vm277, %v3496, %v3497
  %v3555 = vsel %vm277, %v3495, %v3496
  %v3556 = vsel %vm277, %v3494, %v3495
  %v3557 = vsel %vm277, %v3493, %v3494
  %v3558 = vsel %vm277, %v3492, %v3493
  %v3559 = vsel %vm277, %v3491, %v3492
  %v3560 = vsel %vm277, %v3490, %v3491
  %v3561 = vsel %vm277, %v3525, %v3490
  %v3562 = vpack.c.bf16 %v3561, %v3526
  %v3563 = vpack.c.bf16 %v3559, %v3560
  %v3564 = vpack.c.bf16 %v3557, %v3558
  %v3565 = vpack.c.bf16 %v3555, %v3556
  %v3566 = vpack.c.bf16 %v3553, %v3554
  %v3567 = vpack.c.bf16 %v3551, %v3552
  %v3568 = vpack.c.bf16 %v3549, %v3550
  %v3569 = vpack.c.bf16 %v3547, %v3548
  %v3570 = vpack.c.bf16 %v3545, %v3546
  %v3571 = vpack.c.bf16 %v3543, %v3544
  %v3572 = vpack.c.bf16 %v3541, %v3542
  %v3573 = vpack.c.bf16 %v3539, %v3540
  %v3574 = vpack.c.bf16 %v3537, %v3538
  %v3575 = vpack.c.bf16 %v3535, %v3536
  %v3576 = vpack.c.bf16 %v3533, %v3534
  %v3577 = vpack.c.bf16 %v3531, %v3532
  %v3578 = vpack.c.bf16 %v3529, %v3530
  %v3579 = vpack.c.bf16 %v3527, %v3528
  %s3580 = scalar_lea.vmem %s3, 64
  %v3581 = vld [vmem:[%s3580] sm:$0xf]
  %v3582 = vld [vmem:[%s3580 + $0x4] sm:$0xf]
  %v3583 = vld [vmem:[%s3580 + $0x8] sm:$0xf]
  %v3584 = vld [vmem:[%s3580 + $0xc] sm:$0xf]
  %v3585 = vld [vmem:[%s3580 + $0x10] sm:$0xf]
  %v3586 = vld [vmem:[%s3580 + $0x14] sm:$0xf]
  %v3587 = vld [vmem:[%s3580 + $0x18] sm:$0xf]
  %v3588 = vld [vmem:[%s3580 + $0x1c] sm:$0xf]
  %v3589 = vld [vmem:[%s3580 + $0x20] sm:$0xf]
  %v3590 = vld [vmem:[%s3580 + $0x24] sm:$0xf]
  %v3591 = vld [vmem:[%s3580 + $0x28] sm:$0xf]
  %v3592 = vld [vmem:[%s3580 + $0x2c] sm:$0xf]
  %v3593 = vld [vmem:[%s3580 + $0x30] sm:$0xf]
  %v3594 = vld [vmem:[%s3580 + $0x34] sm:$0xf]
  %v3595 = vld [vmem:[%s3580 + $0x38] sm:$0xf]
  %v3596 = vld [vmem:[%s3580 + $0x3c] sm:$0xf]
  %v3613 = vunpack.c.l.b16 %v3581
  %v3614 = vunpack.c.l.b16 %v3582
  %v3615 = vunpack.c.l.b16 %v3583
  %v3616 = vunpack.c.l.b16 %v3584
  %v3617 = vunpack.c.l.b16 %v3585
  %v3618 = vunpack.c.l.b16 %v3586
  %v3619 = vunpack.c.l.b16 %v3587
  %v3620 = vunpack.c.l.b16 %v3588
  %v3621 = vunpack.c.l.b16 %v3589
  %v3622 = vunpack.c.l.b16 %v3590
  %v3623 = vunpack.c.l.b16 %v3591
  %v3624 = vunpack.c.l.b16 %v3592
  %v3625 = vunpack.c.l.b16 %v3593
  %v3626 = vunpack.c.l.b16 %v3594
  %v3627 = vunpack.c.l.b16 %v3595
  %v3628 = vunpack.c.l.b16 %v3596
  %v3629 = vpack.c.b16 %v3614, %v3613
  %v3630 = vpack.c.b16 %v3616, %v3615
  %v3631 = vpack.c.b16 %v3618, %v3617
  %v3632 = vpack.c.b16 %v3620, %v3619
  %v3633 = vpack.c.b16 %v3622, %v3621
  %v3634 = vpack.c.b16 %v3624, %v3623
  %v3635 = vpack.c.b16 %v3626, %v3625
  %v3636 = vpack.c.b16 %v3628, %v3627
  %3645 = vmatprep.subr.bf16.mxu0 0
  %3646 = vmatpush1.bf16.msra.mxu0 %v3636
  %3647 = vmatprep.subr.bf16.mxu0 0
  %3648 = vmatpush1.bf16.msra.mxu0 %v3635
  %3649 = vmatprep.subr.bf16.mxu0 0
  %3650 = vmatpush1.bf16.msra.mxu0 %v3634
  %3651 = vmatprep.subr.bf16.mxu0 0
  %3652 = vmatpush1.bf16.msra.mxu0 %v3633
  %3653 = vmatprep.subr.bf16.mxu0 0
  %3654 = vmatpush1.bf16.msra.mxu0 %v3632
  %3655 = vmatprep.subr.bf16.mxu0 0
  %3656 = vmatpush1.bf16.msra.mxu0 %v3631
  %3657 = vmatprep.subr.bf16.mxu0 0
  %3658 = vmatpush1.bf16.msra.mxu0 %v3630
  %3659 = vmatprep.subr.bf16.mxu0 0
  %3660 = vmatpush1.bf16.msra.mxu0 %v3629
  %3661 = vmatprep.subr.bf16.mxu0 0
  %3662 = vmatpush2.bf16.msra.mxu0 0
  %3663 = vmatprep.subr.bf16.mxu0 0
  %3664 = vmatpush2.bf16.msra.mxu0 0
  %3665 = vmatprep.subr.bf16.mxu0 0
  %3666 = vmatpush2.bf16.msra.mxu0 0
  %3667 = vmatprep.subr.bf16.mxu0 0
  %3668 = vmatpush2.bf16.msra.mxu0 0
  %3669 = vmatprep.subr.bf16.mxu0 0
  %3670 = vmatpush2.bf16.msra.mxu0 0
  %3671 = vmatprep.subr.bf16.mxu0 0
  %3672 = vmatpush2.bf16.msra.mxu0 0
  %3673 = vmatprep.subr.bf16.mxu0 0
  %3674 = vmatpush2.bf16.msra.mxu0 0
  %3675 = vmatprep.subr.bf16.mxu0 0
  %3676 = vmatpush2.bf16.msra.mxu0 0
  %3677 = vmatprep.mubr.bf16.mxu0 0
  %3678 = vmatmul.mubr.bf16.gmra.mxu0 %v3562
  %v3679 = vpop.f32.mrf.mxu0
  %v3680 = vadd.f32 0.0, %v3679
  %v3681 = vpop.f32.mrf.mxu0
  %v3682 = vpop.f32.mrf.mxu0
  %v3683 = vadd.f32 0.0, %v3682
  %v3684 = vpop.f32.mrf.mxu0
  %3685 = vmatprep.mubr.bf16.mxu0 0
  %3686 = vmatmul.mubr.bf16.gmra.mxu0 %v3563
  %v3687 = vpop.f32.mrf.mxu0
  %v3688 = vadd.f32 0.0, %v3687
  %v3689 = vpop.f32.mrf.mxu0
  %v3690 = vpop.f32.mrf.mxu0
  %v3691 = vadd.f32 0.0, %v3690
  %v3692 = vpop.f32.mrf.mxu0
  %3693 = vmatprep.mubr.bf16.mxu0 0
  %3694 = vmatmul.mubr.bf16.gmra.mxu0 %v3564
  %v3695 = vpop.f32.mrf.mxu0
  %v3696 = vadd.f32 0.0, %v3695
  %v3697 = vpop.f32.mrf.mxu0
  %v3698 = vpop.f32.mrf.mxu0
  %v3699 = vadd.f32 0.0, %v3698
  %v3700 = vpop.f32.mrf.mxu0
  %3701 = vmatprep.mubr.bf16.mxu0 0
  %3702 = vmatmul.mubr.bf16.gmra.mxu0 %v3565
  %v3703 = vpop.f32.mrf.mxu0
  %v3704 = vadd.f32 0.0, %v3703
  %v3705 = vpop.f32.mrf.mxu0
  %v3706 = vpop.f32.mrf.mxu0
  %v3707 = vadd.f32 0.0, %v3706
  %v3708 = vpop.f32.mrf.mxu0
  %3709 = vmatprep.mubr.bf16.mxu0 0
  %3710 = vmatmul.mubr.bf16.gmra.mxu0 %v3566
  %v3711 = vpop.f32.mrf.mxu0
  %v3712 = vadd.f32 0.0, %v3711
  %v3713 = vpop.f32.mrf.mxu0
  %v3714 = vpop.f32.mrf.mxu0
  %v3715 = vadd.f32 0.0, %v3714
  %v3716 = vpop.f32.mrf.mxu0
  %3717 = vmatprep.mubr.bf16.mxu0 0
  %3718 = vmatmul.mubr.bf16.gmra.mxu0 %v3567
  %v3719 = vpop.f32.mrf.mxu0
  %v3720 = vadd.f32 0.0, %v3719
  %v3721 = vpop.f32.mrf.mxu0
  %v3722 = vpop.f32.mrf.mxu0
  %v3723 = vadd.f32 0.0, %v3722
  %v3724 = vpop.f32.mrf.mxu0
  %3725 = vmatprep.mubr.bf16.mxu0 0
  %3726 = vmatmul.mubr.bf16.gmra.mxu0 %v3568
  %v3727 = vpop.f32.mrf.mxu0
  %v3728 = vadd.f32 0.0, %v3727
  %v3729 = vpop.f32.mrf.mxu0
  %v3730 = vpop.f32.mrf.mxu0
  %v3731 = vadd.f32 0.0, %v3730
  %v3732 = vpop.f32.mrf.mxu0
  %3733 = vmatprep.mubr.bf16.mxu0 0
  %3734 = vmatmul.mubr.bf16.gmra.mxu0 %v3569
  %v3735 = vpop.f32.mrf.mxu0
  %v3736 = vadd.f32 0.0, %v3735
  %v3737 = vpop.f32.mrf.mxu0
  %v3738 = vpop.f32.mrf.mxu0
  %v3739 = vadd.f32 0.0, %v3738
  %v3740 = vpop.f32.mrf.mxu0
  %3741 = vmatprep.mubr.bf16.mxu0 0
  %3742 = vmatmul.mubr.bf16.gmra.mxu0 %v3570
  %v3743 = vpop.f32.mrf.mxu0
  %v3744 = vadd.f32 0.0, %v3743
  %v3745 = vpop.f32.mrf.mxu0
  %v3746 = vpop.f32.mrf.mxu0
  %v3747 = vadd.f32 0.0, %v3746
  %v3748 = vpop.f32.mrf.mxu0
  %3749 = vmatprep.mubr.bf16.mxu0 0
  %3750 = vmatmul.mubr.bf16.gmra.mxu0 %v3571
  %v3751 = vpop.f32.mrf.mxu0
  %v3752 = vadd.f32 0.0, %v3751
  %v3753 = vpop.f32.mrf.mxu0
  %v3754 = vpop.f32.mrf.mxu0
  %v3755 = vadd.f32 0.0, %v3754
  %v3756 = vpop.f32.mrf.mxu0
  %3757 = vmatprep.mubr.bf16.mxu0 0
  %3758 = vmatmul.mubr.bf16.gmra.mxu0 %v3572
  %v3759 = vpop.f32.mrf.mxu0
  %v3760 = vadd.f32 0.0, %v3759
  %v3761 = vpop.f32.mrf.mxu0
  %v3762 = vpop.f32.mrf.mxu0
  %v3763 = vadd.f32 0.0, %v3762
  %v3764 = vpop.f32.mrf.mxu0
  %3765 = vmatprep.mubr.bf16.mxu0 0
  %3766 = vmatmul.mubr.bf16.gmra.mxu0 %v3573
  %v3767 = vpop.f32.mrf.mxu0
  %v3768 = vadd.f32 0.0, %v3767
  %v3769 = vpop.f32.mrf.mxu0
  %v3770 = vpop.f32.mrf.mxu0
  %v3771 = vadd.f32 0.0, %v3770
  %v3772 = vpop.f32.mrf.mxu0
  %3773 = vmatprep.mubr.bf16.mxu0 0
  %3774 = vmatmul.mubr.bf16.gmra.mxu0 %v3574
  %v3775 = vpop.f32.mrf.mxu0
  %v3776 = vadd.f32 0.0, %v3775
  %v3777 = vpop.f32.mrf.mxu0
  %v3778 = vpop.f32.mrf.mxu0
  %v3779 = vadd.f32 0.0, %v3778
  %v3780 = vpop.f32.mrf.mxu0
  %3781 = vmatprep.mubr.bf16.mxu0 0
  %3782 = vmatmul.mubr.bf16.gmra.mxu0 %v3575
  %v3783 = vpop.f32.mrf.mxu0
  %v3784 = vadd.f32 0.0, %v3783
  %v3785 = vpop.f32.mrf.mxu0
  %v3786 = vpop.f32.mrf.mxu0
  %v3787 = vadd.f32 0.0, %v3786
  %v3788 = vpop.f32.mrf.mxu0
  %3789 = vmatprep.mubr.bf16.mxu0 0
  %3790 = vmatmul.mubr.bf16.gmra.mxu0 %v3576
  %v3791 = vpop.f32.mrf.mxu0
  %v3792 = vadd.f32 0.0, %v3791
  %v3793 = vpop.f32.mrf.mxu0
  %v3794 = vpop.f32.mrf.mxu0
  %v3795 = vadd.f32 0.0, %v3794
  %v3796 = vpop.f32.mrf.mxu0
  %3797 = vmatprep.mubr.bf16.mxu0 0
  %3798 = vmatmul.mubr.bf16.gmra.mxu0 %v3577
  %v3799 = vpop.f32.mrf.mxu0
  %v3800 = vadd.f32 0.0, %v3799
  %v3801 = vpop.f32.mrf.mxu0
  %v3802 = vpop.f32.mrf.mxu0
  %v3803 = vadd.f32 0.0, %v3802
  %v3804 = vpop.f32.mrf.mxu0
  %3805 = vmatprep.mubr.bf16.mxu0 0
  %3806 = vmatmul.mubr.bf16.gmra.mxu0 %v3578
  %v3807 = vpop.f32.mrf.mxu0
  %v3808 = vadd.f32 0.0, %v3807
  %v3809 = vpop.f32.mrf.mxu0
  %v3810 = vpop.f32.mrf.mxu0
  %v3811 = vadd.f32 0.0, %v3810
  %v3812 = vpop.f32.mrf.mxu0
  %3813 = vmatprep.mubr.bf16.mxu0 0
  %3814 = vmatmul.mubr.bf16.gmra.mxu0 %v3579
  %v3815 = vpop.f32.mrf.mxu0
  %v3816 = vadd.f32 0.0, %v3815
  %v3817 = vpop.f32.mrf.mxu0
  %v3818 = vpop.f32.mrf.mxu0
  %v3819 = vadd.f32 0.0, %v3818
  %v3820 = vpop.f32.mrf.mxu0
  %3821 = vdwg.mxu0
  %v3838 = vunpack.c.l.b16 %v3474
  %v3839 = vunpack.c.l.b16 %v3475
  %v3840 = vunpack.c.l.b16 %v3476
  %v3841 = vunpack.c.l.b16 %v3477
  %v3842 = vunpack.c.l.b16 %v3478
  %v3843 = vunpack.c.l.b16 %v3479
  %v3844 = vunpack.c.l.b16 %v3480
  %v3845 = vunpack.c.l.b16 %v3481
  %v3846 = vunpack.c.l.b16 %v3482
  %v3847 = vunpack.c.l.b16 %v3483
  %v3848 = vunpack.c.l.b16 %v3484
  %v3849 = vunpack.c.l.b16 %v3485
  %v3850 = vunpack.c.l.b16 %v3486
  %v3851 = vunpack.c.l.b16 %v3487
  %v3852 = vunpack.c.l.b16 %v3488
  %v3853 = vunpack.c.l.b16 %v3489
  %v3854 = vpack.c.b16 %v3839, %v3838
  %v3855 = vpack.c.b16 %v3841, %v3840
  %v3856 = vpack.c.b16 %v3843, %v3842
  %v3857 = vpack.c.b16 %v3845, %v3844
  %v3858 = vpack.c.b16 %v3847, %v3846
  %v3859 = vpack.c.b16 %v3849, %v3848
  %v3860 = vpack.c.b16 %v3851, %v3850
  %v3861 = vpack.c.b16 %v3853, %v3852
  %3870 = vmatprep.subr.bf16.mxu0 0
  %3871 = vmatpush1.bf16.msra.mxu0 %v3861
  %3872 = vmatprep.subr.bf16.mxu0 0
  %3873 = vmatpush1.bf16.msra.mxu0 %v3860
  %3874 = vmatprep.subr.bf16.mxu0 0
  %3875 = vmatpush1.bf16.msra.mxu0 %v3859
  %3876 = vmatprep.subr.bf16.mxu0 0
  %3877 = vmatpush1.bf16.msra.mxu0 %v3858
  %3878 = vmatprep.subr.bf16.mxu0 0
  %3879 = vmatpush1.bf16.msra.mxu0 %v3857
  %3880 = vmatprep.subr.bf16.mxu0 0
  %3881 = vmatpush1.bf16.msra.mxu0 %v3856
  %3882 = vmatprep.subr.bf16.mxu0 0
  %3883 = vmatpush1.bf16.msra.mxu0 %v3855
  %3884 = vmatprep.subr.bf16.mxu0 0
  %3885 = vmatpush1.bf16.msra.mxu0 %v3854
  %3886 = vmatprep.subr.bf16.mxu0 0
  %3887 = vmatpush2.bf16.msra.mxu0 0
  %3888 = vmatprep.subr.bf16.mxu0 0
  %3889 = vmatpush2.bf16.msra.mxu0 0
  %3890 = vmatprep.subr.bf16.mxu0 0
  %3891 = vmatpush2.bf16.msra.mxu0 0
  %3892 = vmatprep.subr.bf16.mxu0 0
  %3893 = vmatpush2.bf16.msra.mxu0 0
  %3894 = vmatprep.subr.bf16.mxu0 0
  %3895 = vmatpush2.bf16.msra.mxu0 0
  %3896 = vmatprep.subr.bf16.mxu0 0
  %3897 = vmatpush2.bf16.msra.mxu0 0
  %3898 = vmatprep.subr.bf16.mxu0 0
  %3899 = vmatpush2.bf16.msra.mxu0 0
  %3900 = vmatprep.subr.bf16.mxu0 0
  %3901 = vmatpush2.bf16.msra.mxu0 0
  %3902 = vmatprep.mubr.bf16.mxu0 0
  %3903 = vmatmul.mubr.bf16.gmra.mxu0 %v3456
  %v3904 = vpop.f32.mrf.mxu0
  %v3905 = vadd.f32 %v3680, %v3904
  %v3906 = vpop.f32.mrf.mxu0
  %v3907 = vpop.f32.mrf.mxu0
  %v3908 = vadd.f32 %v3683, %v3907
  %v3909 = vpop.f32.mrf.mxu0
  %3910 = vmatprep.mubr.bf16.mxu0 0
  %3911 = vmatmul.mubr.bf16.gmra.mxu0 %v3457
  %v3912 = vpop.f32.mrf.mxu0
  %v3913 = vadd.f32 %v3688, %v3912
  %v3914 = vpop.f32.mrf.mxu0
  %v3915 = vpop.f32.mrf.mxu0
  %v3916 = vadd.f32 %v3691, %v3915
  %v3917 = vpop.f32.mrf.mxu0
  %3918 = vmatprep.mubr.bf16.mxu0 0
  %3919 = vmatmul.mubr.bf16.gmra.mxu0 %v3458
  %v3920 = vpop.f32.mrf.mxu0
  %v3921 = vadd.f32 %v3696, %v3920
  %v3922 = vpop.f32.mrf.mxu0
  %v3923 = vpop.f32.mrf.mxu0
  %v3924 = vadd.f32 %v3699, %v3923
  %v3925 = vpop.f32.mrf.mxu0
  %3926 = vmatprep.mubr.bf16.mxu0 0
  %3927 = vmatmul.mubr.bf16.gmra.mxu0 %v3459
  %v3928 = vpop.f32.mrf.mxu0
  %v3929 = vadd.f32 %v3704, %v3928
  %v3930 = vpop.f32.mrf.mxu0
  %v3931 = vpop.f32.mrf.mxu0
  %v3932 = vadd.f32 %v3707, %v3931
  %v3933 = vpop.f32.mrf.mxu0
  %3934 = vmatprep.mubr.bf16.mxu0 0
  %3935 = vmatmul.mubr.bf16.gmra.mxu0 %v3460
  %v3936 = vpop.f32.mrf.mxu0
  %v3937 = vadd.f32 %v3712, %v3936
  %v3938 = vpop.f32.mrf.mxu0
  %v3939 = vpop.f32.mrf.mxu0
  %v3940 = vadd.f32 %v3715, %v3939
  %v3941 = vpop.f32.mrf.mxu0
  %3942 = vmatprep.mubr.bf16.mxu0 0
  %3943 = vmatmul.mubr.bf16.gmra.mxu0 %v3461
  %v3944 = vpop.f32.mrf.mxu0
  %v3945 = vadd.f32 %v3720, %v3944
  %v3946 = vpop.f32.mrf.mxu0
  %v3947 = vpop.f32.mrf.mxu0
  %v3948 = vadd.f32 %v3723, %v3947
  %v3949 = vpop.f32.mrf.mxu0
  %3950 = vmatprep.mubr.bf16.mxu0 0
  %3951 = vmatmul.mubr.bf16.gmra.mxu0 %v3462
  %v3952 = vpop.f32.mrf.mxu0
  %v3953 = vadd.f32 %v3728, %v3952
  %v3954 = vpop.f32.mrf.mxu0
  %v3955 = vpop.f32.mrf.mxu0
  %v3956 = vadd.f32 %v3731, %v3955
  %v3957 = vpop.f32.mrf.mxu0
  %3958 = vmatprep.mubr.bf16.mxu0 0
  %3959 = vmatmul.mubr.bf16.gmra.mxu0 %v3463
  %v3960 = vpop.f32.mrf.mxu0
  %v3961 = vadd.f32 %v3736, %v3960
  %v3962 = vpop.f32.mrf.mxu0
  %v3963 = vpop.f32.mrf.mxu0
  %v3964 = vadd.f32 %v3739, %v3963
  %v3965 = vpop.f32.mrf.mxu0
  %3966 = vmatprep.mubr.bf16.mxu0 0
  %3967 = vmatmul.mubr.bf16.gmra.mxu0 %v3464
  %v3968 = vpop.f32.mrf.mxu0
  %v3969 = vadd.f32 %v3744, %v3968
  %v3970 = vpop.f32.mrf.mxu0
  %v3971 = vpop.f32.mrf.mxu0
  %v3972 = vadd.f32 %v3747, %v3971
  %v3973 = vpop.f32.mrf.mxu0
  %3974 = vmatprep.mubr.bf16.mxu0 0
  %3975 = vmatmul.mubr.bf16.gmra.mxu0 %v3465
  %v3976 = vpop.f32.mrf.mxu0
  %v3977 = vadd.f32 %v3752, %v3976
  %v3978 = vpop.f32.mrf.mxu0
  %v3979 = vpop.f32.mrf.mxu0
  %v3980 = vadd.f32 %v3755, %v3979
  %v3981 = vpop.f32.mrf.mxu0
  %3982 = vmatprep.mubr.bf16.mxu0 0
  %3983 = vmatmul.mubr.bf16.gmra.mxu0 %v3466
  %v3984 = vpop.f32.mrf.mxu0
  %v3985 = vadd.f32 %v3760, %v3984
  %v3986 = vpop.f32.mrf.mxu0
  %v3987 = vpop.f32.mrf.mxu0
  %v3988 = vadd.f32 %v3763, %v3987
  %v3989 = vpop.f32.mrf.mxu0
  %3990 = vmatprep.mubr.bf16.mxu0 0
  %3991 = vmatmul.mubr.bf16.gmra.mxu0 %v3467
  %v3992 = vpop.f32.mrf.mxu0
  %v3993 = vadd.f32 %v3768, %v3992
  %v3994 = vpop.f32.mrf.mxu0
  %v3995 = vpop.f32.mrf.mxu0
  %v3996 = vadd.f32 %v3771, %v3995
  %v3997 = vpop.f32.mrf.mxu0
  %3998 = vmatprep.mubr.bf16.mxu0 0
  %3999 = vmatmul.mubr.bf16.gmra.mxu0 %v3468
  %v4000 = vpop.f32.mrf.mxu0
  %v4001 = vadd.f32 %v3776, %v4000
  %v4002 = vpop.f32.mrf.mxu0
  %v4003 = vpop.f32.mrf.mxu0
  %v4004 = vadd.f32 %v3779, %v4003
  %v4005 = vpop.f32.mrf.mxu0
  %4006 = vmatprep.mubr.bf16.mxu0 0
  %4007 = vmatmul.mubr.bf16.gmra.mxu0 %v3469
  %v4008 = vpop.f32.mrf.mxu0
  %v4009 = vadd.f32 %v3784, %v4008
  %v4010 = vpop.f32.mrf.mxu0
  %v4011 = vpop.f32.mrf.mxu0
  %v4012 = vadd.f32 %v3787, %v4011
  %v4013 = vpop.f32.mrf.mxu0
  %4014 = vmatprep.mubr.bf16.mxu0 0
  %4015 = vmatmul.mubr.bf16.gmra.mxu0 %v3470
  %v4016 = vpop.f32.mrf.mxu0
  %v4017 = vadd.f32 %v3792, %v4016
  %v4018 = vpop.f32.mrf.mxu0
  %v4019 = vpop.f32.mrf.mxu0
  %v4020 = vadd.f32 %v3795, %v4019
  %v4021 = vpop.f32.mrf.mxu0
  %4022 = vmatprep.mubr.bf16.mxu0 0
  %4023 = vmatmul.mubr.bf16.gmra.mxu0 %v3471
  %v4024 = vpop.f32.mrf.mxu0
  %v4025 = vadd.f32 %v3800, %v4024
  %v4026 = vpop.f32.mrf.mxu0
  %v4027 = vpop.f32.mrf.mxu0
  %v4028 = vadd.f32 %v3803, %v4027
  %v4029 = vpop.f32.mrf.mxu0
  %4030 = vmatprep.mubr.bf16.mxu0 0
  %4031 = vmatmul.mubr.bf16.gmra.mxu0 %v3472
  %v4032 = vpop.f32.mrf.mxu0
  %v4033 = vadd.f32 %v3808, %v4032
  %v4034 = vpop.f32.mrf.mxu0
  %v4035 = vpop.f32.mrf.mxu0
  %v4036 = vadd.f32 %v3811, %v4035
  %v4037 = vpop.f32.mrf.mxu0
  %4038 = vmatprep.mubr.bf16.mxu0 0
  %4039 = vmatmul.mubr.bf16.gmra.mxu0 %v3473
  %v4040 = vpop.f32.mrf.mxu0
  %v4041 = vadd.f32 %v3816, %v4040
  %v4042 = vpop.f32.mrf.mxu0
  %v4043 = vpop.f32.mrf.mxu0
  %v4044 = vadd.f32 %v3819, %v4043
  %v4045 = vpop.f32.mrf.mxu0
  %4046 = vdwg.mxu0
  %v4047 = vpack.c.bf16 %v3348, %v3383
  %v4048 = vpack.c.bf16 %v3350, %v3349
  %v4049 = vpack.c.bf16 %v3352, %v3351
  %v4050 = vpack.c.bf16 %v3354, %v3353
  %v4051 = vpack.c.bf16 %v3356, %v3355
  %v4052 = vpack.c.bf16 %v3358, %v3357
  %v4053 = vpack.c.bf16 %v3360, %v3359
  %v4054 = vpack.c.bf16 %v3362, %v3361
  %v4055 = vpack.c.bf16 %v3364, %v3363
  %v4056 = vpack.c.bf16 %v3366, %v3365
  %v4057 = vpack.c.bf16 %v3368, %v3367
  %v4058 = vpack.c.bf16 %v3370, %v3369
  %v4059 = vpack.c.bf16 %v3372, %v3371
  %v4060 = vpack.c.bf16 %v3374, %v3373
  %v4061 = vpack.c.bf16 %v3376, %v3375
  %v4062 = vpack.c.bf16 %v3378, %v3377
  %v4063 = vpack.c.bf16 %v3380, %v3379
  %v4064 = vpack.c.bf16 %v3382, %v3381
  %s4065 = scalar_lea.vmem %s3, 128
  %v4066 = vld [vmem:[%s4065] sm:$0xf]
  %v4067 = vld [vmem:[%s4065 + $0x4] sm:$0xf]
  %v4068 = vld [vmem:[%s4065 + $0x8] sm:$0xf]
  %v4069 = vld [vmem:[%s4065 + $0xc] sm:$0xf]
  %v4070 = vld [vmem:[%s4065 + $0x10] sm:$0xf]
  %v4071 = vld [vmem:[%s4065 + $0x14] sm:$0xf]
  %v4072 = vld [vmem:[%s4065 + $0x18] sm:$0xf]
  %v4073 = vld [vmem:[%s4065 + $0x1c] sm:$0xf]
  %v4074 = vld [vmem:[%s4065 + $0x20] sm:$0xf]
  %v4075 = vld [vmem:[%s4065 + $0x24] sm:$0xf]
  %v4076 = vld [vmem:[%s4065 + $0x28] sm:$0xf]
  %v4077 = vld [vmem:[%s4065 + $0x2c] sm:$0xf]
  %v4078 = vld [vmem:[%s4065 + $0x30] sm:$0xf]
  %v4079 = vld [vmem:[%s4065 + $0x34] sm:$0xf]
  %v4080 = vld [vmem:[%s4065 + $0x38] sm:$0xf]
  %v4081 = vld [vmem:[%s4065 + $0x3c] sm:$0xf]
  %v4098 = vunpack.c.l.b16 %v4066
  %v4099 = vunpack.c.l.b16 %v4067
  %v4100 = vunpack.c.l.b16 %v4068
  %v4101 = vunpack.c.l.b16 %v4069
  %v4102 = vunpack.c.l.b16 %v4070
  %v4103 = vunpack.c.l.b16 %v4071
  %v4104 = vunpack.c.l.b16 %v4072
  %v4105 = vunpack.c.l.b16 %v4073
  %v4106 = vunpack.c.l.b16 %v4074
  %v4107 = vunpack.c.l.b16 %v4075
  %v4108 = vunpack.c.l.b16 %v4076
  %v4109 = vunpack.c.l.b16 %v4077
  %v4110 = vunpack.c.l.b16 %v4078
  %v4111 = vunpack.c.l.b16 %v4079
  %v4112 = vunpack.c.l.b16 %v4080
  %v4113 = vunpack.c.l.b16 %v4081
  %v4114 = vpack.c.b16 %v4099, %v4098
  %v4115 = vpack.c.b16 %v4101, %v4100
  %v4116 = vpack.c.b16 %v4103, %v4102
  %v4117 = vpack.c.b16 %v4105, %v4104
  %v4118 = vpack.c.b16 %v4107, %v4106
  %v4119 = vpack.c.b16 %v4109, %v4108
  %v4120 = vpack.c.b16 %v4111, %v4110
  %v4121 = vpack.c.b16 %v4113, %v4112
  %4130 = vmatprep.subr.bf16.mxu0 0
  %4131 = vmatpush1.bf16.msra.mxu0 %v4121
  %4132 = vmatprep.subr.bf16.mxu0 0
  %4133 = vmatpush1.bf16.msra.mxu0 %v4120
  %4134 = vmatprep.subr.bf16.mxu0 0
  %4135 = vmatpush1.bf16.msra.mxu0 %v4119
  %4136 = vmatprep.subr.bf16.mxu0 0
  %4137 = vmatpush1.bf16.msra.mxu0 %v4118
  %4138 = vmatprep.subr.bf16.mxu0 0
  %4139 = vmatpush1.bf16.msra.mxu0 %v4117
  %4140 = vmatprep.subr.bf16.mxu0 0
  %4141 = vmatpush1.bf16.msra.mxu0 %v4116
  %4142 = vmatprep.subr.bf16.mxu0 0
  %4143 = vmatpush1.bf16.msra.mxu0 %v4115
  %4144 = vmatprep.subr.bf16.mxu0 0
  %4145 = vmatpush1.bf16.msra.mxu0 %v4114
  %4146 = vmatprep.subr.bf16.mxu0 0
  %4147 = vmatpush2.bf16.msra.mxu0 0
  %4148 = vmatprep.subr.bf16.mxu0 0
  %4149 = vmatpush2.bf16.msra.mxu0 0
  %4150 = vmatprep.subr.bf16.mxu0 0
  %4151 = vmatpush2.bf16.msra.mxu0 0
  %4152 = vmatprep.subr.bf16.mxu0 0
  %4153 = vmatpush2.bf16.msra.mxu0 0
  %4154 = vmatprep.subr.bf16.mxu0 0
  %4155 = vmatpush2.bf16.msra.mxu0 0
  %4156 = vmatprep.subr.bf16.mxu0 0
  %4157 = vmatpush2.bf16.msra.mxu0 0
  %4158 = vmatprep.subr.bf16.mxu0 0
  %4159 = vmatpush2.bf16.msra.mxu0 0
  %4160 = vmatprep.subr.bf16.mxu0 0
  %4161 = vmatpush2.bf16.msra.mxu0 0
  %4162 = vmatprep.mubr.bf16.mxu0 0
  %4163 = vmatmul.mubr.bf16.gmra.mxu0 %v4047
  %v4164 = vpop.f32.mrf.mxu0
  %v4165 = vadd.f32 0.0, %v4164
  %v4166 = vpop.f32.mrf.mxu0
  %v4167 = vpop.f32.mrf.mxu0
  %v4168 = vadd.f32 0.0, %v4167
  %v4169 = vpop.f32.mrf.mxu0
  %4170 = vmatprep.mubr.bf16.mxu0 0
  %4171 = vmatmul.mubr.bf16.gmra.mxu0 %v4048
  %v4172 = vpop.f32.mrf.mxu0
  %v4173 = vadd.f32 0.0, %v4172
  %v4174 = vpop.f32.mrf.mxu0
  %v4175 = vpop.f32.mrf.mxu0
  %v4176 = vadd.f32 0.0, %v4175
  %v4177 = vpop.f32.mrf.mxu0
  %4178 = vmatprep.mubr.bf16.mxu0 0
  %4179 = vmatmul.mubr.bf16.gmra.mxu0 %v4049
  %v4180 = vpop.f32.mrf.mxu0
  %v4181 = vadd.f32 0.0, %v4180
  %v4182 = vpop.f32.mrf.mxu0
  %v4183 = vpop.f32.mrf.mxu0
  %v4184 = vadd.f32 0.0, %v4183
  %v4185 = vpop.f32.mrf.mxu0
  %4186 = vmatprep.mubr.bf16.mxu0 0
  %4187 = vmatmul.mubr.bf16.gmra.mxu0 %v4050
  %v4188 = vpop.f32.mrf.mxu0
  %v4189 = vadd.f32 0.0, %v4188
  %v4190 = vpop.f32.mrf.mxu0
  %v4191 = vpop.f32.mrf.mxu0
  %v4192 = vadd.f32 0.0, %v4191
  %v4193 = vpop.f32.mrf.mxu0
  %4194 = vmatprep.mubr.bf16.mxu0 0
  %4195 = vmatmul.mubr.bf16.gmra.mxu0 %v4051
  %v4196 = vpop.f32.mrf.mxu0
  %v4197 = vadd.f32 0.0, %v4196
  %v4198 = vpop.f32.mrf.mxu0
  %v4199 = vpop.f32.mrf.mxu0
  %v4200 = vadd.f32 0.0, %v4199
  %v4201 = vpop.f32.mrf.mxu0
  %4202 = vmatprep.mubr.bf16.mxu0 0
  %4203 = vmatmul.mubr.bf16.gmra.mxu0 %v4052
  %v4204 = vpop.f32.mrf.mxu0
  %v4205 = vadd.f32 0.0, %v4204
  %v4206 = vpop.f32.mrf.mxu0
  %v4207 = vpop.f32.mrf.mxu0
  %v4208 = vadd.f32 0.0, %v4207
  %v4209 = vpop.f32.mrf.mxu0
  %4210 = vmatprep.mubr.bf16.mxu0 0
  %4211 = vmatmul.mubr.bf16.gmra.mxu0 %v4053
  %v4212 = vpop.f32.mrf.mxu0
  %v4213 = vadd.f32 0.0, %v4212
  %v4214 = vpop.f32.mrf.mxu0
  %v4215 = vpop.f32.mrf.mxu0
  %v4216 = vadd.f32 0.0, %v4215
  %v4217 = vpop.f32.mrf.mxu0
  %4218 = vmatprep.mubr.bf16.mxu0 0
  %4219 = vmatmul.mubr.bf16.gmra.mxu0 %v4054
  %v4220 = vpop.f32.mrf.mxu0
  %v4221 = vadd.f32 0.0, %v4220
  %v4222 = vpop.f32.mrf.mxu0
  %v4223 = vpop.f32.mrf.mxu0
  %v4224 = vadd.f32 0.0, %v4223
  %v4225 = vpop.f32.mrf.mxu0
  %4226 = vmatprep.mubr.bf16.mxu0 0
  %4227 = vmatmul.mubr.bf16.gmra.mxu0 %v4055
  %v4228 = vpop.f32.mrf.mxu0
  %v4229 = vadd.f32 0.0, %v4228
  %v4230 = vpop.f32.mrf.mxu0
  %v4231 = vpop.f32.mrf.mxu0
  %v4232 = vadd.f32 0.0, %v4231
  %v4233 = vpop.f32.mrf.mxu0
  %4234 = vmatprep.mubr.bf16.mxu0 0
  %4235 = vmatmul.mubr.bf16.gmra.mxu0 %v4056
  %v4236 = vpop.f32.mrf.mxu0
  %v4237 = vadd.f32 0.0, %v4236
  %v4238 = vpop.f32.mrf.mxu0
  %v4239 = vpop.f32.mrf.mxu0
  %v4240 = vadd.f32 0.0, %v4239
  %v4241 = vpop.f32.mrf.mxu0
  %4242 = vmatprep.mubr.bf16.mxu0 0
  %4243 = vmatmul.mubr.bf16.gmra.mxu0 %v4057
  %v4244 = vpop.f32.mrf.mxu0
  %v4245 = vadd.f32 0.0, %v4244
  %v4246 = vpop.f32.mrf.mxu0
  %v4247 = vpop.f32.mrf.mxu0
  %v4248 = vadd.f32 0.0, %v4247
  %v4249 = vpop.f32.mrf.mxu0
  %4250 = vmatprep.mubr.bf16.mxu0 0
  %4251 = vmatmul.mubr.bf16.gmra.mxu0 %v4058
  %v4252 = vpop.f32.mrf.mxu0
  %v4253 = vadd.f32 0.0, %v4252
  %v4254 = vpop.f32.mrf.mxu0
  %v4255 = vpop.f32.mrf.mxu0
  %v4256 = vadd.f32 0.0, %v4255
  %v4257 = vpop.f32.mrf.mxu0
  %4258 = vmatprep.mubr.bf16.mxu0 0
  %4259 = vmatmul.mubr.bf16.gmra.mxu0 %v4059
  %v4260 = vpop.f32.mrf.mxu0
  %v4261 = vadd.f32 0.0, %v4260
  %v4262 = vpop.f32.mrf.mxu0
  %v4263 = vpop.f32.mrf.mxu0
  %v4264 = vadd.f32 0.0, %v4263
  %v4265 = vpop.f32.mrf.mxu0
  %4266 = vmatprep.mubr.bf16.mxu0 0
  %4267 = vmatmul.mubr.bf16.gmra.mxu0 %v4060
  %v4268 = vpop.f32.mrf.mxu0
  %v4269 = vadd.f32 0.0, %v4268
  %v4270 = vpop.f32.mrf.mxu0
  %v4271 = vpop.f32.mrf.mxu0
  %v4272 = vadd.f32 0.0, %v4271
  %v4273 = vpop.f32.mrf.mxu0
  %4274 = vmatprep.mubr.bf16.mxu0 0
  %4275 = vmatmul.mubr.bf16.gmra.mxu0 %v4061
  %v4276 = vpop.f32.mrf.mxu0
  %v4277 = vadd.f32 0.0, %v4276
  %v4278 = vpop.f32.mrf.mxu0
  %v4279 = vpop.f32.mrf.mxu0
  %v4280 = vadd.f32 0.0, %v4279
  %v4281 = vpop.f32.mrf.mxu0
  %4282 = vmatprep.mubr.bf16.mxu0 0
  %4283 = vmatmul.mubr.bf16.gmra.mxu0 %v4062
  %v4284 = vpop.f32.mrf.mxu0
  %v4285 = vadd.f32 0.0, %v4284
  %v4286 = vpop.f32.mrf.mxu0
  %v4287 = vpop.f32.mrf.mxu0
  %v4288 = vadd.f32 0.0, %v4287
  %v4289 = vpop.f32.mrf.mxu0
  %4290 = vmatprep.mubr.bf16.mxu0 0
  %4291 = vmatmul.mubr.bf16.gmra.mxu0 %v4063
  %v4292 = vpop.f32.mrf.mxu0
  %v4293 = vadd.f32 0.0, %v4292
  %v4294 = vpop.f32.mrf.mxu0
  %v4295 = vpop.f32.mrf.mxu0
  %v4296 = vadd.f32 0.0, %v4295
  %v4297 = vpop.f32.mrf.mxu0
  %4298 = vmatprep.mubr.bf16.mxu0 0
  %4299 = vmatmul.mubr.bf16.gmra.mxu0 %v4064
  %v4300 = vpop.f32.mrf.mxu0
  %v4301 = vadd.f32 0.0, %v4300
  %v4302 = vpop.f32.mrf.mxu0
  %v4303 = vpop.f32.mrf.mxu0
  %v4304 = vadd.f32 0.0, %v4303
  %v4305 = vpop.f32.mrf.mxu0
  %4306 = vdwg.mxu0
  %v4307 = vadd.f32 %v3905, %v4165
  %v4308 = vadd.f32 %v3908, %v4168
  %v4309 = vadd.f32 %v3913, %v4173
  %v4310 = vadd.f32 %v3916, %v4176
  %v4311 = vadd.f32 %v3921, %v4181
  %v4312 = vadd.f32 %v3924, %v4184
  %v4313 = vadd.f32 %v3929, %v4189
  %v4314 = vadd.f32 %v3932, %v4192
  %v4315 = vadd.f32 %v3937, %v4197
  %v4316 = vadd.f32 %v3940, %v4200
  %v4317 = vadd.f32 %v3945, %v4205
  %v4318 = vadd.f32 %v3948, %v4208
  %v4319 = vadd.f32 %v3953, %v4213
  %v4320 = vadd.f32 %v3956, %v4216
  %v4321 = vadd.f32 %v3961, %v4221
  %v4322 = vadd.f32 %v3964, %v4224
  %v4323 = vadd.f32 %v3969, %v4229
  %v4324 = vadd.f32 %v3972, %v4232
  %v4325 = vadd.f32 %v3977, %v4237
  %v4326 = vadd.f32 %v3980, %v4240
  %v4327 = vadd.f32 %v3985, %v4245
  %v4328 = vadd.f32 %v3988, %v4248
  %v4329 = vadd.f32 %v3993, %v4253
  %v4330 = vadd.f32 %v3996, %v4256
  %v4331 = vadd.f32 %v4001, %v4261
  %v4332 = vadd.f32 %v4004, %v4264
  %v4333 = vadd.f32 %v4009, %v4269
  %v4334 = vadd.f32 %v4012, %v4272
  %v4335 = vadd.f32 %v4017, %v4277
  %v4336 = vadd.f32 %v4020, %v4280
  %v4337 = vadd.f32 %v4025, %v4285
  %v4338 = vadd.f32 %v4028, %v4288
  %v4339 = vadd.f32 %v4033, %v4293
  %v4340 = vadd.f32 %v4036, %v4296
  %v4341 = vadd.f32 %v4041, %v4301
  %v4342 = vadd.f32 %v4044, %v4304
  %v4343 = vpack.c.bf16 %v3560, %v3561
  %v4344 = vpack.c.bf16 %v3558, %v3559
  %v4345 = vpack.c.bf16 %v3556, %v3557
  %v4346 = vpack.c.bf16 %v3554, %v3555
  %v4347 = vpack.c.bf16 %v3552, %v3553
  %v4348 = vpack.c.bf16 %v3550, %v3551
  %v4349 = vpack.c.bf16 %v3548, %v3549
  %v4350 = vpack.c.bf16 %v3546, %v3547
  %v4351 = vpack.c.bf16 %v3544, %v3545
  %v4352 = vpack.c.bf16 %v3542, %v3543
  %v4353 = vpack.c.bf16 %v3540, %v3541
  %v4354 = vpack.c.bf16 %v3538, %v3539
  %v4355 = vpack.c.bf16 %v3536, %v3537
  %v4356 = vpack.c.bf16 %v3534, %v3535
  %v4357 = vpack.c.bf16 %v3532, %v3533
  %v4358 = vpack.c.bf16 %v3530, %v3531
  %v4359 = vpack.c.bf16 %v3528, %v3529
  %v4360 = vpack.c.bf16 %v3526, %v3527
  %s4361 = scalar_lea.vmem %s3, 192
  %v4362 = vld [vmem:[%s4361] sm:$0xf]
  %v4363 = vld [vmem:[%s4361 + $0x4] sm:$0xf]
  %v4364 = vld [vmem:[%s4361 + $0x8] sm:$0xf]
  %v4365 = vld [vmem:[%s4361 + $0xc] sm:$0xf]
  %v4366 = vld [vmem:[%s4361 + $0x10] sm:$0xf]
  %v4367 = vld [vmem:[%s4361 + $0x14] sm:$0xf]
  %v4368 = vld [vmem:[%s4361 + $0x18] sm:$0xf]
  %v4369 = vld [vmem:[%s4361 + $0x1c] sm:$0xf]
  %v4370 = vld [vmem:[%s4361 + $0x20] sm:$0xf]
  %v4371 = vld [vmem:[%s4361 + $0x24] sm:$0xf]
  %v4372 = vld [vmem:[%s4361 + $0x28] sm:$0xf]
  %v4373 = vld [vmem:[%s4361 + $0x2c] sm:$0xf]
  %v4374 = vld [vmem:[%s4361 + $0x30] sm:$0xf]
  %v4375 = vld [vmem:[%s4361 + $0x34] sm:$0xf]
  %v4376 = vld [vmem:[%s4361 + $0x38] sm:$0xf]
  %v4377 = vld [vmem:[%s4361 + $0x3c] sm:$0xf]
  %v4394 = vunpack.c.l.b16 %v4362
  %v4395 = vunpack.c.l.b16 %v4363
  %v4396 = vunpack.c.l.b16 %v4364
  %v4397 = vunpack.c.l.b16 %v4365
  %v4398 = vunpack.c.l.b16 %v4366
  %v4399 = vunpack.c.l.b16 %v4367
  %v4400 = vunpack.c.l.b16 %v4368
  %v4401 = vunpack.c.l.b16 %v4369
  %v4402 = vunpack.c.l.b16 %v4370
  %v4403 = vunpack.c.l.b16 %v4371
  %v4404 = vunpack.c.l.b16 %v4372
  %v4405 = vunpack.c.l.b16 %v4373
  %v4406 = vunpack.c.l.b16 %v4374
  %v4407 = vunpack.c.l.b16 %v4375
  %v4408 = vunpack.c.l.b16 %v4376
  %v4409 = vunpack.c.l.b16 %v4377
  %v4410 = vpack.c.b16 %v4395, %v4394
  %v4411 = vpack.c.b16 %v4397, %v4396
  %v4412 = vpack.c.b16 %v4399, %v4398
  %v4413 = vpack.c.b16 %v4401, %v4400
  %v4414 = vpack.c.b16 %v4403, %v4402
  %v4415 = vpack.c.b16 %v4405, %v4404
  %v4416 = vpack.c.b16 %v4407, %v4406
  %v4417 = vpack.c.b16 %v4409, %v4408
  %4426 = vmatprep.subr.bf16.mxu0 0
  %4427 = vmatpush1.bf16.msra.mxu0 %v4417
  %4428 = vmatprep.subr.bf16.mxu0 0
  %4429 = vmatpush1.bf16.msra.mxu0 %v4416
  %4430 = vmatprep.subr.bf16.mxu0 0
  %4431 = vmatpush1.bf16.msra.mxu0 %v4415
  %4432 = vmatprep.subr.bf16.mxu0 0
  %4433 = vmatpush1.bf16.msra.mxu0 %v4414
  %4434 = vmatprep.subr.bf16.mxu0 0
  %4435 = vmatpush1.bf16.msra.mxu0 %v4413
  %4436 = vmatprep.subr.bf16.mxu0 0
  %4437 = vmatpush1.bf16.msra.mxu0 %v4412
  %4438 = vmatprep.subr.bf16.mxu0 0
  %4439 = vmatpush1.bf16.msra.mxu0 %v4411
  %4440 = vmatprep.subr.bf16.mxu0 0
  %4441 = vmatpush1.bf16.msra.mxu0 %v4410
  %4442 = vmatprep.subr.bf16.mxu0 0
  %4443 = vmatpush2.bf16.msra.mxu0 0
  %4444 = vmatprep.subr.bf16.mxu0 0
  %4445 = vmatpush2.bf16.msra.mxu0 0
  %4446 = vmatprep.subr.bf16.mxu0 0
  %4447 = vmatpush2.bf16.msra.mxu0 0
  %4448 = vmatprep.subr.bf16.mxu0 0
  %4449 = vmatpush2.bf16.msra.mxu0 0
  %4450 = vmatprep.subr.bf16.mxu0 0
  %4451 = vmatpush2.bf16.msra.mxu0 0
  %4452 = vmatprep.subr.bf16.mxu0 0
  %4453 = vmatpush2.bf16.msra.mxu0 0
  %4454 = vmatprep.subr.bf16.mxu0 0
  %4455 = vmatpush2.bf16.msra.mxu0 0
  %4456 = vmatprep.subr.bf16.mxu0 0
  %4457 = vmatpush2.bf16.msra.mxu0 0
  %4458 = vmatprep.mubr.bf16.mxu0 0
  %4459 = vmatmul.mubr.bf16.gmra.mxu0 %v4343
  %v4460 = vpop.f32.mrf.mxu0
  %v4461 = vadd.f32 0.0, %v4460
  %v4462 = vpop.f32.mrf.mxu0
  %v4463 = vpop.f32.mrf.mxu0
  %v4464 = vadd.f32 0.0, %v4463
  %v4465 = vpop.f32.mrf.mxu0
  %4466 = vmatprep.mubr.bf16.mxu0 0
  %4467 = vmatmul.mubr.bf16.gmra.mxu0 %v4344
  %v4468 = vpop.f32.mrf.mxu0
  %v4469 = vadd.f32 0.0, %v4468
  %v4470 = vpop.f32.mrf.mxu0
  %v4471 = vpop.f32.mrf.mxu0
  %v4472 = vadd.f32 0.0, %v4471
  %v4473 = vpop.f32.mrf.mxu0
  %4474 = vmatprep.mubr.bf16.mxu0 0
  %4475 = vmatmul.mubr.bf16.gmra.mxu0 %v4345
  %v4476 = vpop.f32.mrf.mxu0
  %v4477 = vadd.f32 0.0, %v4476
  %v4478 = vpop.f32.mrf.mxu0
  %v4479 = vpop.f32.mrf.mxu0
  %v4480 = vadd.f32 0.0, %v4479
  %v4481 = vpop.f32.mrf.mxu0
  %4482 = vmatprep.mubr.bf16.mxu0 0
  %4483 = vmatmul.mubr.bf16.gmra.mxu0 %v4346
  %v4484 = vpop.f32.mrf.mxu0
  %v4485 = vadd.f32 0.0, %v4484
  %v4486 = vpop.f32.mrf.mxu0
  %v4487 = vpop.f32.mrf.mxu0
  %v4488 = vadd.f32 0.0, %v4487
  %v4489 = vpop.f32.mrf.mxu0
  %4490 = vmatprep.mubr.bf16.mxu0 0
  %4491 = vmatmul.mubr.bf16.gmra.mxu0 %v4347
  %v4492 = vpop.f32.mrf.mxu0
  %v4493 = vadd.f32 0.0, %v4492
  %v4494 = vpop.f32.mrf.mxu0
  %v4495 = vpop.f32.mrf.mxu0
  %v4496 = vadd.f32 0.0, %v4495
  %v4497 = vpop.f32.mrf.mxu0
  %4498 = vmatprep.mubr.bf16.mxu0 0
  %4499 = vmatmul.mubr.bf16.gmra.mxu0 %v4348
  %v4500 = vpop.f32.mrf.mxu0
  %v4501 = vadd.f32 0.0, %v4500
  %v4502 = vpop.f32.mrf.mxu0
  %v4503 = vpop.f32.mrf.mxu0
  %v4504 = vadd.f32 0.0, %v4503
  %v4505 = vpop.f32.mrf.mxu0
  %4506 = vmatprep.mubr.bf16.mxu0 0
  %4507 = vmatmul.mubr.bf16.gmra.mxu0 %v4349
  %v4508 = vpop.f32.mrf.mxu0
  %v4509 = vadd.f32 0.0, %v4508
  %v4510 = vpop.f32.mrf.mxu0
  %v4511 = vpop.f32.mrf.mxu0
  %v4512 = vadd.f32 0.0, %v4511
  %v4513 = vpop.f32.mrf.mxu0
  %4514 = vmatprep.mubr.bf16.mxu0 0
  %4515 = vmatmul.mubr.bf16.gmra.mxu0 %v4350
  %v4516 = vpop.f32.mrf.mxu0
  %v4517 = vadd.f32 0.0, %v4516
  %v4518 = vpop.f32.mrf.mxu0
  %v4519 = vpop.f32.mrf.mxu0
  %v4520 = vadd.f32 0.0, %v4519
  %v4521 = vpop.f32.mrf.mxu0
  %4522 = vmatprep.mubr.bf16.mxu0 0
  %4523 = vmatmul.mubr.bf16.gmra.mxu0 %v4351
  %v4524 = vpop.f32.mrf.mxu0
  %v4525 = vadd.f32 0.0, %v4524
  %v4526 = vpop.f32.mrf.mxu0
  %v4527 = vpop.f32.mrf.mxu0
  %v4528 = vadd.f32 0.0, %v4527
  %v4529 = vpop.f32.mrf.mxu0
  %4530 = vmatprep.mubr.bf16.mxu0 0
  %4531 = vmatmul.mubr.bf16.gmra.mxu0 %v4352
  %v4532 = vpop.f32.mrf.mxu0
  %v4533 = vadd.f32 0.0, %v4532
  %v4534 = vpop.f32.mrf.mxu0
  %v4535 = vpop.f32.mrf.mxu0
  %v4536 = vadd.f32 0.0, %v4535
  %v4537 = vpop.f32.mrf.mxu0
  %4538 = vmatprep.mubr.bf16.mxu0 0
  %4539 = vmatmul.mubr.bf16.gmra.mxu0 %v4353
  %v4540 = vpop.f32.mrf.mxu0
  %v4541 = vadd.f32 0.0, %v4540
  %v4542 = vpop.f32.mrf.mxu0
  %v4543 = vpop.f32.mrf.mxu0
  %v4544 = vadd.f32 0.0, %v4543
  %v4545 = vpop.f32.mrf.mxu0
  %4546 = vmatprep.mubr.bf16.mxu0 0
  %4547 = vmatmul.mubr.bf16.gmra.mxu0 %v4354
  %v4548 = vpop.f32.mrf.mxu0
  %v4549 = vadd.f32 0.0, %v4548
  %v4550 = vpop.f32.mrf.mxu0
  %v4551 = vpop.f32.mrf.mxu0
  %v4552 = vadd.f32 0.0, %v4551
  %v4553 = vpop.f32.mrf.mxu0
  %4554 = vmatprep.mubr.bf16.mxu0 0
  %4555 = vmatmul.mubr.bf16.gmra.mxu0 %v4355
  %v4556 = vpop.f32.mrf.mxu0
  %v4557 = vadd.f32 0.0, %v4556
  %v4558 = vpop.f32.mrf.mxu0
  %v4559 = vpop.f32.mrf.mxu0
  %v4560 = vadd.f32 0.0, %v4559
  %v4561 = vpop.f32.mrf.mxu0
  %4562 = vmatprep.mubr.bf16.mxu0 0
  %4563 = vmatmul.mubr.bf16.gmra.mxu0 %v4356
  %v4564 = vpop.f32.mrf.mxu0
  %v4565 = vadd.f32 0.0, %v4564
  %v4566 = vpop.f32.mrf.mxu0
  %v4567 = vpop.f32.mrf.mxu0
  %v4568 = vadd.f32 0.0, %v4567
  %v4569 = vpop.f32.mrf.mxu0
  %4570 = vmatprep.mubr.bf16.mxu0 0
  %4571 = vmatmul.mubr.bf16.gmra.mxu0 %v4357
  %v4572 = vpop.f32.mrf.mxu0
  %v4573 = vadd.f32 0.0, %v4572
  %v4574 = vpop.f32.mrf.mxu0
  %v4575 = vpop.f32.mrf.mxu0
  %v4576 = vadd.f32 0.0, %v4575
  %v4577 = vpop.f32.mrf.mxu0
  %4578 = vmatprep.mubr.bf16.mxu0 0
  %4579 = vmatmul.mubr.bf16.gmra.mxu0 %v4358
  %v4580 = vpop.f32.mrf.mxu0
  %v4581 = vadd.f32 0.0, %v4580
  %v4582 = vpop.f32.mrf.mxu0
  %v4583 = vpop.f32.mrf.mxu0
  %v4584 = vadd.f32 0.0, %v4583
  %v4585 = vpop.f32.mrf.mxu0
  %4586 = vmatprep.mubr.bf16.mxu0 0
  %4587 = vmatmul.mubr.bf16.gmra.mxu0 %v4359
  %v4588 = vpop.f32.mrf.mxu0
  %v4589 = vadd.f32 0.0, %v4588
  %v4590 = vpop.f32.mrf.mxu0
  %v4591 = vpop.f32.mrf.mxu0
  %v4592 = vadd.f32 0.0, %v4591
  %v4593 = vpop.f32.mrf.mxu0
  %4594 = vmatprep.mubr.bf16.mxu0 0
  %4595 = vmatmul.mubr.bf16.gmra.mxu0 %v4360
  %v4596 = vpop.f32.mrf.mxu0
  %v4597 = vadd.f32 0.0, %v4596
  %v4598 = vpop.f32.mrf.mxu0
  %v4599 = vpop.f32.mrf.mxu0
  %v4600 = vadd.f32 0.0, %v4599
  %v4601 = vpop.f32.mrf.mxu0
  %4602 = vdwg.mxu0
  %v4603 = vadd.f32 %v4307, %v4461
  %v4604 = vadd.f32 %v4308, %v4464
  %v4605 = vadd.f32 %v4309, %v4469
  %v4606 = vadd.f32 %v4310, %v4472
  %v4607 = vadd.f32 %v4311, %v4477
  %v4608 = vadd.f32 %v4312, %v4480
  %v4609 = vadd.f32 %v4313, %v4485
  %v4610 = vadd.f32 %v4314, %v4488
  %v4611 = vadd.f32 %v4315, %v4493
  %v4612 = vadd.f32 %v4316, %v4496
  %v4613 = vadd.f32 %v4317, %v4501
  %v4614 = vadd.f32 %v4318, %v4504
  %v4615 = vadd.f32 %v4319, %v4509
  %v4616 = vadd.f32 %v4320, %v4512
  %v4617 = vadd.f32 %v4321, %v4517
  %v4618 = vadd.f32 %v4322, %v4520
  %v4619 = vadd.f32 %v4323, %v4525
  %v4620 = vadd.f32 %v4324, %v4528
  %v4621 = vadd.f32 %v4325, %v4533
  %v4622 = vadd.f32 %v4326, %v4536
  %v4623 = vadd.f32 %v4327, %v4541
  %v4624 = vadd.f32 %v4328, %v4544
  %v4625 = vadd.f32 %v4329, %v4549
  %v4626 = vadd.f32 %v4330, %v4552
  %v4627 = vadd.f32 %v4331, %v4557
  %v4628 = vadd.f32 %v4332, %v4560
  %v4629 = vadd.f32 %v4333, %v4565
  %v4630 = vadd.f32 %v4334, %v4568
  %v4631 = vadd.f32 %v4335, %v4573
  %v4632 = vadd.f32 %v4336, %v4576
  %v4633 = vadd.f32 %v4337, %v4581
  %v4634 = vadd.f32 %v4338, %v4584
  %v4635 = vadd.f32 %v4339, %v4589
  %v4636 = vadd.f32 %v4340, %v4592
  %v4637 = vadd.f32 %v4341, %v4597
  %v4638 = vadd.f32 %v4342, %v4600
  %v4639 = vpack.c.bf16 %v3349, %v3348
  %v4640 = vpack.c.bf16 %v3351, %v3350
  %v4641 = vpack.c.bf16 %v3353, %v3352
  %v4642 = vpack.c.bf16 %v3355, %v3354
  %v4643 = vpack.c.bf16 %v3357, %v3356
  %v4644 = vpack.c.bf16 %v3359, %v3358
  %v4645 = vpack.c.bf16 %v3361, %v3360
  %v4646 = vpack.c.bf16 %v3363, %v3362
  %v4647 = vpack.c.bf16 %v3365, %v3364
  %v4648 = vpack.c.bf16 %v3367, %v3366
  %v4649 = vpack.c.bf16 %v3369, %v3368
  %v4650 = vpack.c.bf16 %v3371, %v3370
  %v4651 = vpack.c.bf16 %v3373, %v3372
  %v4652 = vpack.c.bf16 %v3375, %v3374
  %v4653 = vpack.c.bf16 %v3377, %v3376
  %v4654 = vpack.c.bf16 %v3379, %v3378
  %v4655 = vpack.c.bf16 %v3381, %v3380
  %v4656 = vpack.c.bf16 %v3383, %v3382
  %s4657 = scalar_lea.vmem %s3, 256
  %v4658 = vld [vmem:[%s4657] sm:$0xf]
  %v4659 = vld [vmem:[%s4657 + $0x4] sm:$0xf]
  %v4660 = vld [vmem:[%s4657 + $0x8] sm:$0xf]
  %v4661 = vld [vmem:[%s4657 + $0xc] sm:$0xf]
  %v4662 = vld [vmem:[%s4657 + $0x10] sm:$0xf]
  %v4663 = vld [vmem:[%s4657 + $0x14] sm:$0xf]
  %v4664 = vld [vmem:[%s4657 + $0x18] sm:$0xf]
  %v4665 = vld [vmem:[%s4657 + $0x1c] sm:$0xf]
  %v4666 = vld [vmem:[%s4657 + $0x20] sm:$0xf]
  %v4667 = vld [vmem:[%s4657 + $0x24] sm:$0xf]
  %v4668 = vld [vmem:[%s4657 + $0x28] sm:$0xf]
  %v4669 = vld [vmem:[%s4657 + $0x2c] sm:$0xf]
  %v4670 = vld [vmem:[%s4657 + $0x30] sm:$0xf]
  %v4671 = vld [vmem:[%s4657 + $0x34] sm:$0xf]
  %v4672 = vld [vmem:[%s4657 + $0x38] sm:$0xf]
  %v4673 = vld [vmem:[%s4657 + $0x3c] sm:$0xf]
  %v4690 = vunpack.c.l.b16 %v4658
  %v4691 = vunpack.c.l.b16 %v4659
  %v4692 = vunpack.c.l.b16 %v4660
  %v4693 = vunpack.c.l.b16 %v4661
  %v4694 = vunpack.c.l.b16 %v4662
  %v4695 = vunpack.c.l.b16 %v4663
  %v4696 = vunpack.c.l.b16 %v4664
  %v4697 = vunpack.c.l.b16 %v4665
  %v4698 = vunpack.c.l.b16 %v4666
  %v4699 = vunpack.c.l.b16 %v4667
  %v4700 = vunpack.c.l.b16 %v4668
  %v4701 = vunpack.c.l.b16 %v4669
  %v4702 = vunpack.c.l.b16 %v4670
  %v4703 = vunpack.c.l.b16 %v4671
  %v4704 = vunpack.c.l.b16 %v4672
  %v4705 = vunpack.c.l.b16 %v4673
  %v4706 = vpack.c.b16 %v4691, %v4690
  %v4707 = vpack.c.b16 %v4693, %v4692
  %v4708 = vpack.c.b16 %v4695, %v4694
  %v4709 = vpack.c.b16 %v4697, %v4696
  %v4710 = vpack.c.b16 %v4699, %v4698
  %v4711 = vpack.c.b16 %v4701, %v4700
  %v4712 = vpack.c.b16 %v4703, %v4702
  %v4713 = vpack.c.b16 %v4705, %v4704
  %4722 = vmatprep.subr.bf16.mxu0 0
  %4723 = vmatpush1.bf16.msra.mxu0 %v4713
  %4724 = vmatprep.subr.bf16.mxu0 0
  %4725 = vmatpush1.bf16.msra.mxu0 %v4712
  %4726 = vmatprep.subr.bf16.mxu0 0
  %4727 = vmatpush1.bf16.msra.mxu0 %v4711
  %4728 = vmatprep.subr.bf16.mxu0 0
  %4729 = vmatpush1.bf16.msra.mxu0 %v4710
  %4730 = vmatprep.subr.bf16.mxu0 0
  %4731 = vmatpush1.bf16.msra.mxu0 %v4709
  %4732 = vmatprep.subr.bf16.mxu0 0
  %4733 = vmatpush1.bf16.msra.mxu0 %v4708
  %4734 = vmatprep.subr.bf16.mxu0 0
  %4735 = vmatpush1.bf16.msra.mxu0 %v4707
  %4736 = vmatprep.subr.bf16.mxu0 0
  %4737 = vmatpush1.bf16.msra.mxu0 %v4706
  %4738 = vmatprep.subr.bf16.mxu0 0
  %4739 = vmatpush2.bf16.msra.mxu0 0
  %4740 = vmatprep.subr.bf16.mxu0 0
  %4741 = vmatpush2.bf16.msra.mxu0 0
  %4742 = vmatprep.subr.bf16.mxu0 0
  %4743 = vmatpush2.bf16.msra.mxu0 0
  %4744 = vmatprep.subr.bf16.mxu0 0
  %4745 = vmatpush2.bf16.msra.mxu0 0
  %4746 = vmatprep.subr.bf16.mxu0 0
  %4747 = vmatpush2.bf16.msra.mxu0 0
  %4748 = vmatprep.subr.bf16.mxu0 0
  %4749 = vmatpush2.bf16.msra.mxu0 0
  %4750 = vmatprep.subr.bf16.mxu0 0
  %4751 = vmatpush2.bf16.msra.mxu0 0
  %4752 = vmatprep.subr.bf16.mxu0 0
  %4753 = vmatpush2.bf16.msra.mxu0 0
  %4754 = vmatprep.mubr.bf16.mxu0 0
  %4755 = vmatmul.mubr.bf16.gmra.mxu0 %v4639
  %v4756 = vpop.f32.mrf.mxu0
  %v4757 = vadd.f32 0.0, %v4756
  %v4758 = vpop.f32.mrf.mxu0
  %v4759 = vpop.f32.mrf.mxu0
  %v4760 = vadd.f32 0.0, %v4759
  %v4761 = vpop.f32.mrf.mxu0
  %4762 = vmatprep.mubr.bf16.mxu0 0
  %4763 = vmatmul.mubr.bf16.gmra.mxu0 %v4640
  %v4764 = vpop.f32.mrf.mxu0
  %v4765 = vadd.f32 0.0, %v4764
  %v4766 = vpop.f32.mrf.mxu0
  %v4767 = vpop.f32.mrf.mxu0
  %v4768 = vadd.f32 0.0, %v4767
  %v4769 = vpop.f32.mrf.mxu0
  %4770 = vmatprep.mubr.bf16.mxu0 0
  %4771 = vmatmul.mubr.bf16.gmra.mxu0 %v4641
  %v4772 = vpop.f32.mrf.mxu0
  %v4773 = vadd.f32 0.0, %v4772
  %v4774 = vpop.f32.mrf.mxu0
  %v4775 = vpop.f32.mrf.mxu0
  %v4776 = vadd.f32 0.0, %v4775
  %v4777 = vpop.f32.mrf.mxu0
  %4778 = vmatprep.mubr.bf16.mxu0 0
  %4779 = vmatmul.mubr.bf16.gmra.mxu0 %v4642
  %v4780 = vpop.f32.mrf.mxu0
  %v4781 = vadd.f32 0.0, %v4780
  %v4782 = vpop.f32.mrf.mxu0
  %v4783 = vpop.f32.mrf.mxu0
  %v4784 = vadd.f32 0.0, %v4783
  %v4785 = vpop.f32.mrf.mxu0
  %4786 = vmatprep.mubr.bf16.mxu0 0
  %4787 = vmatmul.mubr.bf16.gmra.mxu0 %v4643
  %v4788 = vpop.f32.mrf.mxu0
  %v4789 = vadd.f32 0.0, %v4788
  %v4790 = vpop.f32.mrf.mxu0
  %v4791 = vpop.f32.mrf.mxu0
  %v4792 = vadd.f32 0.0, %v4791
  %v4793 = vpop.f32.mrf.mxu0
  %4794 = vmatprep.mubr.bf16.mxu0 0
  %4795 = vmatmul.mubr.bf16.gmra.mxu0 %v4644
  %v4796 = vpop.f32.mrf.mxu0
  %v4797 = vadd.f32 0.0, %v4796
  %v4798 = vpop.f32.mrf.mxu0
  %v4799 = vpop.f32.mrf.mxu0
  %v4800 = vadd.f32 0.0, %v4799
  %v4801 = vpop.f32.mrf.mxu0
  %4802 = vmatprep.mubr.bf16.mxu0 0
  %4803 = vmatmul.mubr.bf16.gmra.mxu0 %v4645
  %v4804 = vpop.f32.mrf.mxu0
  %v4805 = vadd.f32 0.0, %v4804
  %v4806 = vpop.f32.mrf.mxu0
  %v4807 = vpop.f32.mrf.mxu0
  %v4808 = vadd.f32 0.0, %v4807
  %v4809 = vpop.f32.mrf.mxu0
  %4810 = vmatprep.mubr.bf16.mxu0 0
  %4811 = vmatmul.mubr.bf16.gmra.mxu0 %v4646
  %v4812 = vpop.f32.mrf.mxu0
  %v4813 = vadd.f32 0.0, %v4812
  %v4814 = vpop.f32.mrf.mxu0
  %v4815 = vpop.f32.mrf.mxu0
  %v4816 = vadd.f32 0.0, %v4815
  %v4817 = vpop.f32.mrf.mxu0
  %4818 = vmatprep.mubr.bf16.mxu0 0
  %4819 = vmatmul.mubr.bf16.gmra.mxu0 %v4647
  %v4820 = vpop.f32.mrf.mxu0
  %v4821 = vadd.f32 0.0, %v4820
  %v4822 = vpop.f32.mrf.mxu0
  %v4823 = vpop.f32.mrf.mxu0
  %v4824 = vadd.f32 0.0, %v4823
  %v4825 = vpop.f32.mrf.mxu0
  %4826 = vmatprep.mubr.bf16.mxu0 0
  %4827 = vmatmul.mubr.bf16.gmra.mxu0 %v4648
  %v4828 = vpop.f32.mrf.mxu0
  %v4829 = vadd.f32 0.0, %v4828
  %v4830 = vpop.f32.mrf.mxu0
  %v4831 = vpop.f32.mrf.mxu0
  %v4832 = vadd.f32 0.0, %v4831
  %v4833 = vpop.f32.mrf.mxu0
  %4834 = vmatprep.mubr.bf16.mxu0 0
  %4835 = vmatmul.mubr.bf16.gmra.mxu0 %v4649
  %v4836 = vpop.f32.mrf.mxu0
  %v4837 = vadd.f32 0.0, %v4836
  %v4838 = vpop.f32.mrf.mxu0
  %v4839 = vpop.f32.mrf.mxu0
  %v4840 = vadd.f32 0.0, %v4839
  %v4841 = vpop.f32.mrf.mxu0
  %4842 = vmatprep.mubr.bf16.mxu0 0
  %4843 = vmatmul.mubr.bf16.gmra.mxu0 %v4650
  %v4844 = vpop.f32.mrf.mxu0
  %v4845 = vadd.f32 0.0, %v4844
  %v4846 = vpop.f32.mrf.mxu0
  %v4847 = vpop.f32.mrf.mxu0
  %v4848 = vadd.f32 0.0, %v4847
  %v4849 = vpop.f32.mrf.mxu0
  %4850 = vmatprep.mubr.bf16.mxu0 0
  %4851 = vmatmul.mubr.bf16.gmra.mxu0 %v4651
  %v4852 = vpop.f32.mrf.mxu0
  %v4853 = vadd.f32 0.0, %v4852
  %v4854 = vpop.f32.mrf.mxu0
  %v4855 = vpop.f32.mrf.mxu0
  %v4856 = vadd.f32 0.0, %v4855
  %v4857 = vpop.f32.mrf.mxu0
  %4858 = vmatprep.mubr.bf16.mxu0 0
  %4859 = vmatmul.mubr.bf16.gmra.mxu0 %v4652
  %v4860 = vpop.f32.mrf.mxu0
  %v4861 = vadd.f32 0.0, %v4860
  %v4862 = vpop.f32.mrf.mxu0
  %v4863 = vpop.f32.mrf.mxu0
  %v4864 = vadd.f32 0.0, %v4863
  %v4865 = vpop.f32.mrf.mxu0
  %4866 = vmatprep.mubr.bf16.mxu0 0
  %4867 = vmatmul.mubr.bf16.gmra.mxu0 %v4653
  %v4868 = vpop.f32.mrf.mxu0
  %v4869 = vadd.f32 0.0, %v4868
  %v4870 = vpop.f32.mrf.mxu0
  %v4871 = vpop.f32.mrf.mxu0
  %v4872 = vadd.f32 0.0, %v4871
  %v4873 = vpop.f32.mrf.mxu0
  %4874 = vmatprep.mubr.bf16.mxu0 0
  %4875 = vmatmul.mubr.bf16.gmra.mxu0 %v4654
  %v4876 = vpop.f32.mrf.mxu0
  %v4877 = vadd.f32 0.0, %v4876
  %v4878 = vpop.f32.mrf.mxu0
  %v4879 = vpop.f32.mrf.mxu0
  %v4880 = vadd.f32 0.0, %v4879
  %v4881 = vpop.f32.mrf.mxu0
  %4882 = vmatprep.mubr.bf16.mxu0 0
  %4883 = vmatmul.mubr.bf16.gmra.mxu0 %v4655
  %v4884 = vpop.f32.mrf.mxu0
  %v4885 = vadd.f32 0.0, %v4884
  %v4886 = vpop.f32.mrf.mxu0
  %v4887 = vpop.f32.mrf.mxu0
  %v4888 = vadd.f32 0.0, %v4887
  %v4889 = vpop.f32.mrf.mxu0
  %4890 = vmatprep.mubr.bf16.mxu0 0
  %4891 = vmatmul.mubr.bf16.gmra.mxu0 %v4656
  %v4892 = vpop.f32.mrf.mxu0
  %v4893 = vadd.f32 0.0, %v4892
  %v4894 = vpop.f32.mrf.mxu0
  %v4895 = vpop.f32.mrf.mxu0
  %v4896 = vadd.f32 0.0, %v4895
  %v4897 = vpop.f32.mrf.mxu0
  %4898 = vdwg.mxu0
  %v4899 = vadd.f32 %v4603, %v4757
  %v4900 = vadd.f32 %v4604, %v4760
  %v4901 = vadd.f32 %v4605, %v4765
  %v4902 = vadd.f32 %v4606, %v4768
  %v4903 = vadd.f32 %v4607, %v4773
  %v4904 = vadd.f32 %v4608, %v4776
  %v4905 = vadd.f32 %v4609, %v4781
  %v4906 = vadd.f32 %v4610, %v4784
  %v4907 = vadd.f32 %v4611, %v4789
  %v4908 = vadd.f32 %v4612, %v4792
  %v4909 = vadd.f32 %v4613, %v4797
  %v4910 = vadd.f32 %v4614, %v4800
  %v4911 = vadd.f32 %v4615, %v4805
  %v4912 = vadd.f32 %v4616, %v4808
  %v4913 = vadd.f32 %v4617, %v4813
  %v4914 = vadd.f32 %v4618, %v4816
  %v4915 = vadd.f32 %v4619, %v4821
  %v4916 = vadd.f32 %v4620, %v4824
  %v4917 = vadd.f32 %v4621, %v4829
  %v4918 = vadd.f32 %v4622, %v4832
  %v4919 = vadd.f32 %v4623, %v4837
  %v4920 = vadd.f32 %v4624, %v4840
  %v4921 = vadd.f32 %v4625, %v4845
  %v4922 = vadd.f32 %v4626, %v4848
  %v4923 = vadd.f32 %v4627, %v4853
  %v4924 = vadd.f32 %v4628, %v4856
  %v4925 = vadd.f32 %v4629, %v4861
  %v4926 = vadd.f32 %v4630, %v4864
  %v4927 = vadd.f32 %v4631, %v4869
  %v4928 = vadd.f32 %v4632, %v4872
  %v4929 = vadd.f32 %v4633, %v4877
  %v4930 = vadd.f32 %v4634, %v4880
  %v4931 = vadd.f32 %v4635, %v4885
  %v4932 = vadd.f32 %v4636, %v4888
  %v4933 = vadd.f32 %v4637, %v4893
  %v4934 = vadd.f32 %v4638, %v4896
  %v4935 = vrot.slane %v3348, 1
  %v4936 = vrot.slane %v3349, 1
  %v4937 = vrot.slane %v3350, 1
  %v4938 = vrot.slane %v3351, 1
  %v4939 = vrot.slane %v3352, 1
  %v4940 = vrot.slane %v3353, 1
  %v4941 = vrot.slane %v3354, 1
  %v4942 = vrot.slane %v3355, 1
  %v4943 = vrot.slane %v3356, 1
  %v4944 = vrot.slane %v3357, 1
  %v4945 = vrot.slane %v3358, 1
  %v4946 = vrot.slane %v3359, 1
  %v4947 = vrot.slane %v3360, 1
  %v4948 = vrot.slane %v3361, 1
  %v4949 = vrot.slane %v3362, 1
  %v4950 = vrot.slane %v3363, 1
  %v4951 = vrot.slane %v3364, 1
  %v4952 = vrot.slane %v3365, 1
  %v4953 = vrot.slane %v3366, 1
  %v4954 = vrot.slane %v3367, 1
  %v4955 = vrot.slane %v3368, 1
  %v4956 = vrot.slane %v3369, 1
  %v4957 = vrot.slane %v3370, 1
  %v4958 = vrot.slane %v3371, 1
  %v4959 = vrot.slane %v3372, 1
  %v4960 = vrot.slane %v3373, 1
  %v4961 = vrot.slane %v3374, 1
  %v4962 = vrot.slane %v3375, 1
  %v4963 = vrot.slane %v3376, 1
  %v4964 = vrot.slane %v3377, 1
  %v4965 = vrot.slane %v3378, 1
  %v4966 = vrot.slane %v3379, 1
  %v4967 = vrot.slane %v3380, 1
  %v4968 = vrot.slane %v3381, 1
  %v4969 = vrot.slane %v3382, 1
  %v4970 = vrot.slane %v3383, 1
  %v4971 = vsel %vm1813, %v4969, %v4970
  %v4972 = vsel %vm1813, %v4968, %v4969
  %v4973 = vsel %vm1813, %v4967, %v4968
  %v4974 = vsel %vm1813, %v4966, %v4967
  %v4975 = vsel %vm1813, %v4965, %v4966
  %v4976 = vsel %vm1813, %v4964, %v4965
  %v4977 = vsel %vm1813, %v4963, %v4964
  %v4978 = vsel %vm1813, %v4962, %v4963
  %v4979 = vsel %vm1813, %v4961, %v4962
  %v4980 = vsel %vm1813, %v4960, %v4961
  %v4981 = vsel %vm1813, %v4959, %v4960
  %v4982 = vsel %vm1813, %v4958, %v4959
  %v4983 = vsel %vm1813, %v4957, %v4958
  %v4984 = vsel %vm1813, %v4956, %v4957
  %v4985 = vsel %vm1813, %v4955, %v4956
  %v4986 = vsel %vm1813, %v4954, %v4955
  %v4987 = vsel %vm1813, %v4953, %v4954
  %v4988 = vsel %vm1813, %v4952, %v4953
  %v4989 = vsel %vm1813, %v4951, %v4952
  %v4990 = vsel %vm1813, %v4950, %v4951
  %v4991 = vsel %vm1813, %v4949, %v4950
  %v4992 = vsel %vm1813, %v4948, %v4949
  %v4993 = vsel %vm1813, %v4947, %v4948
  %v4994 = vsel %vm1813, %v4946, %v4947
  %v4995 = vsel %vm1813, %v4945, %v4946
  %v4996 = vsel %vm1813, %v4944, %v4945
  %v4997 = vsel %vm1813, %v4943, %v4944
  %v4998 = vsel %vm1813, %v4942, %v4943
  %v4999 = vsel %vm1813, %v4941, %v4942
  %v5000 = vsel %vm1813, %v4940, %v4941
  %v5001 = vsel %vm1813, %v4939, %v4940
  %v5002 = vsel %vm1813, %v4938, %v4939
  %v5003 = vsel %vm1813, %v4937, %v4938
  %v5004 = vsel %vm1813, %v4936, %v4937
  %v5005 = vsel %vm1813, %v4935, %v4936
  %v5006 = vsel %vm1813, %v4970, %v4935
  %v5007 = vpack.c.bf16 %v5004, %v5005
  %v5008 = vpack.c.bf16 %v5002, %v5003
  %v5009 = vpack.c.bf16 %v5000, %v5001
  %v5010 = vpack.c.bf16 %v4998, %v4999
  %v5011 = vpack.c.bf16 %v4996, %v4997
  %v5012 = vpack.c.bf16 %v4994, %v4995
  %v5013 = vpack.c.bf16 %v4992, %v4993
  %v5014 = vpack.c.bf16 %v4990, %v4991
  %v5015 = vpack.c.bf16 %v4988, %v4989
  %v5016 = vpack.c.bf16 %v4986, %v4987
  %v5017 = vpack.c.bf16 %v4984, %v4985
  %v5018 = vpack.c.bf16 %v4982, %v4983
  %v5019 = vpack.c.bf16 %v4980, %v4981
  %v5020 = vpack.c.bf16 %v4978, %v4979
  %v5021 = vpack.c.bf16 %v4976, %v4977
  %v5022 = vpack.c.bf16 %v4974, %v4975
  %v5023 = vpack.c.bf16 %v4972, %v4973
  %v5024 = vpack.c.bf16 %v5006, %v4971
  %s5025 = scalar_lea.vmem %s3, 320
  %v5026 = vld [vmem:[%s5025] sm:$0xf]
  %v5027 = vld [vmem:[%s5025 + $0x4] sm:$0xf]
  %v5028 = vld [vmem:[%s5025 + $0x8] sm:$0xf]
  %v5029 = vld [vmem:[%s5025 + $0xc] sm:$0xf]
  %v5030 = vld [vmem:[%s5025 + $0x10] sm:$0xf]
  %v5031 = vld [vmem:[%s5025 + $0x14] sm:$0xf]
  %v5032 = vld [vmem:[%s5025 + $0x18] sm:$0xf]
  %v5033 = vld [vmem:[%s5025 + $0x1c] sm:$0xf]
  %v5034 = vld [vmem:[%s5025 + $0x20] sm:$0xf]
  %v5035 = vld [vmem:[%s5025 + $0x24] sm:$0xf]
  %v5036 = vld [vmem:[%s5025 + $0x28] sm:$0xf]
  %v5037 = vld [vmem:[%s5025 + $0x2c] sm:$0xf]
  %v5038 = vld [vmem:[%s5025 + $0x30] sm:$0xf]
  %v5039 = vld [vmem:[%s5025 + $0x34] sm:$0xf]
  %v5040 = vld [vmem:[%s5025 + $0x38] sm:$0xf]
  %v5041 = vld [vmem:[%s5025 + $0x3c] sm:$0xf]
  %v5058 = vunpack.c.l.b16 %v5026
  %v5059 = vunpack.c.l.b16 %v5027
  %v5060 = vunpack.c.l.b16 %v5028
  %v5061 = vunpack.c.l.b16 %v5029
  %v5062 = vunpack.c.l.b16 %v5030
  %v5063 = vunpack.c.l.b16 %v5031
  %v5064 = vunpack.c.l.b16 %v5032
  %v5065 = vunpack.c.l.b16 %v5033
  %v5066 = vunpack.c.l.b16 %v5034
  %v5067 = vunpack.c.l.b16 %v5035
  %v5068 = vunpack.c.l.b16 %v5036
  %v5069 = vunpack.c.l.b16 %v5037
  %v5070 = vunpack.c.l.b16 %v5038
  %v5071 = vunpack.c.l.b16 %v5039
  %v5072 = vunpack.c.l.b16 %v5040
  %v5073 = vunpack.c.l.b16 %v5041
  %v5074 = vpack.c.b16 %v5059, %v5058
  %v5075 = vpack.c.b16 %v5061, %v5060
  %v5076 = vpack.c.b16 %v5063, %v5062
  %v5077 = vpack.c.b16 %v5065, %v5064
  %v5078 = vpack.c.b16 %v5067, %v5066
  %v5079 = vpack.c.b16 %v5069, %v5068
  %v5080 = vpack.c.b16 %v5071, %v5070
  %v5081 = vpack.c.b16 %v5073, %v5072
  %5090 = vmatprep.subr.bf16.mxu0 0
  %5091 = vmatpush1.bf16.msra.mxu0 %v5081
  %5092 = vmatprep.subr.bf16.mxu0 0
  %5093 = vmatpush1.bf16.msra.mxu0 %v5080
  %5094 = vmatprep.subr.bf16.mxu0 0
  %5095 = vmatpush1.bf16.msra.mxu0 %v5079
  %5096 = vmatprep.subr.bf16.mxu0 0
  %5097 = vmatpush1.bf16.msra.mxu0 %v5078
  %5098 = vmatprep.subr.bf16.mxu0 0
  %5099 = vmatpush1.bf16.msra.mxu0 %v5077
  %5100 = vmatprep.subr.bf16.mxu0 0
  %5101 = vmatpush1.bf16.msra.mxu0 %v5076
  %5102 = vmatprep.subr.bf16.mxu0 0
  %5103 = vmatpush1.bf16.msra.mxu0 %v5075
  %5104 = vmatprep.subr.bf16.mxu0 0
  %5105 = vmatpush1.bf16.msra.mxu0 %v5074
  %5106 = vmatprep.subr.bf16.mxu0 0
  %5107 = vmatpush2.bf16.msra.mxu0 0
  %5108 = vmatprep.subr.bf16.mxu0 0
  %5109 = vmatpush2.bf16.msra.mxu0 0
  %5110 = vmatprep.subr.bf16.mxu0 0
  %5111 = vmatpush2.bf16.msra.mxu0 0
  %5112 = vmatprep.subr.bf16.mxu0 0
  %5113 = vmatpush2.bf16.msra.mxu0 0
  %5114 = vmatprep.subr.bf16.mxu0 0
  %5115 = vmatpush2.bf16.msra.mxu0 0
  %5116 = vmatprep.subr.bf16.mxu0 0
  %5117 = vmatpush2.bf16.msra.mxu0 0
  %5118 = vmatprep.subr.bf16.mxu0 0
  %5119 = vmatpush2.bf16.msra.mxu0 0
  %5120 = vmatprep.subr.bf16.mxu0 0
  %5121 = vmatpush2.bf16.msra.mxu0 0
  %5122 = vmatprep.mubr.bf16.mxu0 0
  %5123 = vmatmul.mubr.bf16.gmra.mxu0 %v5007
  %v5124 = vpop.f32.mrf.mxu0
  %v5125 = vadd.f32 0.0, %v5124
  %v5126 = vpop.f32.mrf.mxu0
  %v5127 = vpop.f32.mrf.mxu0
  %v5128 = vadd.f32 0.0, %v5127
  %v5129 = vpop.f32.mrf.mxu0
  %5130 = vmatprep.mubr.bf16.mxu0 0
  %5131 = vmatmul.mubr.bf16.gmra.mxu0 %v5008
  %v5132 = vpop.f32.mrf.mxu0
  %v5133 = vadd.f32 0.0, %v5132
  %v5134 = vpop.f32.mrf.mxu0
  %v5135 = vpop.f32.mrf.mxu0
  %v5136 = vadd.f32 0.0, %v5135
  %v5137 = vpop.f32.mrf.mxu0
  %5138 = vmatprep.mubr.bf16.mxu0 0
  %5139 = vmatmul.mubr.bf16.gmra.mxu0 %v5009
  %v5140 = vpop.f32.mrf.mxu0
  %v5141 = vadd.f32 0.0, %v5140
  %v5142 = vpop.f32.mrf.mxu0
  %v5143 = vpop.f32.mrf.mxu0
  %v5144 = vadd.f32 0.0, %v5143
  %v5145 = vpop.f32.mrf.mxu0
  %5146 = vmatprep.mubr.bf16.mxu0 0
  %5147 = vmatmul.mubr.bf16.gmra.mxu0 %v5010
  %v5148 = vpop.f32.mrf.mxu0
  %v5149 = vadd.f32 0.0, %v5148
  %v5150 = vpop.f32.mrf.mxu0
  %v5151 = vpop.f32.mrf.mxu0
  %v5152 = vadd.f32 0.0, %v5151
  %v5153 = vpop.f32.mrf.mxu0
  %5154 = vmatprep.mubr.bf16.mxu0 0
  %5155 = vmatmul.mubr.bf16.gmra.mxu0 %v5011
  %v5156 = vpop.f32.mrf.mxu0
  %v5157 = vadd.f32 0.0, %v5156
  %v5158 = vpop.f32.mrf.mxu0
  %v5159 = vpop.f32.mrf.mxu0
  %v5160 = vadd.f32 0.0, %v5159
  %v5161 = vpop.f32.mrf.mxu0
  %5162 = vmatprep.mubr.bf16.mxu0 0
  %5163 = vmatmul.mubr.bf16.gmra.mxu0 %v5012
  %v5164 = vpop.f32.mrf.mxu0
  %v5165 = vadd.f32 0.0, %v5164
  %v5166 = vpop.f32.mrf.mxu0
  %v5167 = vpop.f32.mrf.mxu0
  %v5168 = vadd.f32 0.0, %v5167
  %v5169 = vpop.f32.mrf.mxu0
  %5170 = vmatprep.mubr.bf16.mxu0 0
  %5171 = vmatmul.mubr.bf16.gmra.mxu0 %v5013
  %v5172 = vpop.f32.mrf.mxu0
  %v5173 = vadd.f32 0.0, %v5172
  %v5174 = vpop.f32.mrf.mxu0
  %v5175 = vpop.f32.mrf.mxu0
  %v5176 = vadd.f32 0.0, %v5175
  %v5177 = vpop.f32.mrf.mxu0
  %5178 = vmatprep.mubr.bf16.mxu0 0
  %5179 = vmatmul.mubr.bf16.gmra.mxu0 %v5014
  %v5180 = vpop.f32.mrf.mxu0
  %v5181 = vadd.f32 0.0, %v5180
  %v5182 = vpop.f32.mrf.mxu0
  %v5183 = vpop.f32.mrf.mxu0
  %v5184 = vadd.f32 0.0, %v5183
  %v5185 = vpop.f32.mrf.mxu0
  %5186 = vmatprep.mubr.bf16.mxu0 0
  %5187 = vmatmul.mubr.bf16.gmra.mxu0 %v5015
  %v5188 = vpop.f32.mrf.mxu0
  %v5189 = vadd.f32 0.0, %v5188
  %v5190 = vpop.f32.mrf.mxu0
  %v5191 = vpop.f32.mrf.mxu0
  %v5192 = vadd.f32 0.0, %v5191
  %v5193 = vpop.f32.mrf.mxu0
  %5194 = vmatprep.mubr.bf16.mxu0 0
  %5195 = vmatmul.mubr.bf16.gmra.mxu0 %v5016
  %v5196 = vpop.f32.mrf.mxu0
  %v5197 = vadd.f32 0.0, %v5196
  %v5198 = vpop.f32.mrf.mxu0
  %v5199 = vpop.f32.mrf.mxu0
  %v5200 = vadd.f32 0.0, %v5199
  %v5201 = vpop.f32.mrf.mxu0
  %5202 = vmatprep.mubr.bf16.mxu0 0
  %5203 = vmatmul.mubr.bf16.gmra.mxu0 %v5017
  %v5204 = vpop.f32.mrf.mxu0
  %v5205 = vadd.f32 0.0, %v5204
  %v5206 = vpop.f32.mrf.mxu0
  %v5207 = vpop.f32.mrf.mxu0
  %v5208 = vadd.f32 0.0, %v5207
  %v5209 = vpop.f32.mrf.mxu0
  %5210 = vmatprep.mubr.bf16.mxu0 0
  %5211 = vmatmul.mubr.bf16.gmra.mxu0 %v5018
  %v5212 = vpop.f32.mrf.mxu0
  %v5213 = vadd.f32 0.0, %v5212
  %v5214 = vpop.f32.mrf.mxu0
  %v5215 = vpop.f32.mrf.mxu0
  %v5216 = vadd.f32 0.0, %v5215
  %v5217 = vpop.f32.mrf.mxu0
  %5218 = vmatprep.mubr.bf16.mxu0 0
  %5219 = vmatmul.mubr.bf16.gmra.mxu0 %v5019
  %v5220 = vpop.f32.mrf.mxu0
  %v5221 = vadd.f32 0.0, %v5220
  %v5222 = vpop.f32.mrf.mxu0
  %v5223 = vpop.f32.mrf.mxu0
  %v5224 = vadd.f32 0.0, %v5223
  %v5225 = vpop.f32.mrf.mxu0
  %5226 = vmatprep.mubr.bf16.mxu0 0
  %5227 = vmatmul.mubr.bf16.gmra.mxu0 %v5020
  %v5228 = vpop.f32.mrf.mxu0
  %v5229 = vadd.f32 0.0, %v5228
  %v5230 = vpop.f32.mrf.mxu0
  %v5231 = vpop.f32.mrf.mxu0
  %v5232 = vadd.f32 0.0, %v5231
  %v5233 = vpop.f32.mrf.mxu0
  %5234 = vmatprep.mubr.bf16.mxu0 0
  %5235 = vmatmul.mubr.bf16.gmra.mxu0 %v5021
  %v5236 = vpop.f32.mrf.mxu0
  %v5237 = vadd.f32 0.0, %v5236
  %v5238 = vpop.f32.mrf.mxu0
  %v5239 = vpop.f32.mrf.mxu0
  %v5240 = vadd.f32 0.0, %v5239
  %v5241 = vpop.f32.mrf.mxu0
  %5242 = vmatprep.mubr.bf16.mxu0 0
  %5243 = vmatmul.mubr.bf16.gmra.mxu0 %v5022
  %v5244 = vpop.f32.mrf.mxu0
  %v5245 = vadd.f32 0.0, %v5244
  %v5246 = vpop.f32.mrf.mxu0
  %v5247 = vpop.f32.mrf.mxu0
  %v5248 = vadd.f32 0.0, %v5247
  %v5249 = vpop.f32.mrf.mxu0
  %5250 = vmatprep.mubr.bf16.mxu0 0
  %5251 = vmatmul.mubr.bf16.gmra.mxu0 %v5023
  %v5252 = vpop.f32.mrf.mxu0
  %v5253 = vadd.f32 0.0, %v5252
  %v5254 = vpop.f32.mrf.mxu0
  %v5255 = vpop.f32.mrf.mxu0
  %v5256 = vadd.f32 0.0, %v5255
  %v5257 = vpop.f32.mrf.mxu0
  %5258 = vmatprep.mubr.bf16.mxu0 0
  %5259 = vmatmul.mubr.bf16.gmra.mxu0 %v5024
  %v5260 = vpop.f32.mrf.mxu0
  %v5261 = vadd.f32 0.0, %v5260
  %v5262 = vpop.f32.mrf.mxu0
  %v5263 = vpop.f32.mrf.mxu0
  %v5264 = vadd.f32 0.0, %v5263
  %v5265 = vpop.f32.mrf.mxu0
  %5266 = vdwg.mxu0
  %v5267 = vadd.f32 %v4899, %v5125
  %v5268 = vadd.f32 %v4900, %v5128
  %v5269 = vadd.f32 %v4901, %v5133
  %v5270 = vadd.f32 %v4902, %v5136
  %v5271 = vadd.f32 %v4903, %v5141
  %v5272 = vadd.f32 %v4904, %v5144
  %v5273 = vadd.f32 %v4905, %v5149
  %v5274 = vadd.f32 %v4906, %v5152
  %v5275 = vadd.f32 %v4907, %v5157
  %v5276 = vadd.f32 %v4908, %v5160
  %v5277 = vadd.f32 %v4909, %v5165
  %v5278 = vadd.f32 %v4910, %v5168
  %v5279 = vadd.f32 %v4911, %v5173
  %v5280 = vadd.f32 %v4912, %v5176
  %v5281 = vadd.f32 %v4913, %v5181
  %v5282 = vadd.f32 %v4914, %v5184
  %v5283 = vadd.f32 %v4915, %v5189
  %v5284 = vadd.f32 %v4916, %v5192
  %v5285 = vadd.f32 %v4917, %v5197
  %v5286 = vadd.f32 %v4918, %v5200
  %v5287 = vadd.f32 %v4919, %v5205
  %v5288 = vadd.f32 %v4920, %v5208
  %v5289 = vadd.f32 %v4921, %v5213
  %v5290 = vadd.f32 %v4922, %v5216
  %v5291 = vadd.f32 %v4923, %v5221
  %v5292 = vadd.f32 %v4924, %v5224
  %v5293 = vadd.f32 %v4925, %v5229
  %v5294 = vadd.f32 %v4926, %v5232
  %v5295 = vadd.f32 %v4927, %v5237
  %v5296 = vadd.f32 %v4928, %v5240
  %v5297 = vadd.f32 %v4929, %v5245
  %v5298 = vadd.f32 %v4930, %v5248
  %v5299 = vadd.f32 %v4931, %v5253
  %v5300 = vadd.f32 %v4932, %v5256
  %v5301 = vadd.f32 %v4933, %v5261
  %v5302 = vadd.f32 %v4934, %v5264
  %s5303 = scalar_lea.vmem %s3, 384
  %v5304 = vld [vmem:[%s5303] sm:$0xf]
  %v5305 = vld [vmem:[%s5303 + $0x4] sm:$0xf]
  %v5306 = vld [vmem:[%s5303 + $0x8] sm:$0xf]
  %v5307 = vld [vmem:[%s5303 + $0xc] sm:$0xf]
  %v5308 = vld [vmem:[%s5303 + $0x10] sm:$0xf]
  %v5309 = vld [vmem:[%s5303 + $0x14] sm:$0xf]
  %v5310 = vld [vmem:[%s5303 + $0x18] sm:$0xf]
  %v5311 = vld [vmem:[%s5303 + $0x1c] sm:$0xf]
  %v5312 = vld [vmem:[%s5303 + $0x20] sm:$0xf]
  %v5313 = vld [vmem:[%s5303 + $0x24] sm:$0xf]
  %v5314 = vld [vmem:[%s5303 + $0x28] sm:$0xf]
  %v5315 = vld [vmem:[%s5303 + $0x2c] sm:$0xf]
  %v5316 = vld [vmem:[%s5303 + $0x30] sm:$0xf]
  %v5317 = vld [vmem:[%s5303 + $0x34] sm:$0xf]
  %v5318 = vld [vmem:[%s5303 + $0x38] sm:$0xf]
  %v5319 = vld [vmem:[%s5303 + $0x3c] sm:$0xf]
  %v5336 = vunpack.c.l.b16 %v5304
  %v5337 = vunpack.c.l.b16 %v5305
  %v5338 = vunpack.c.l.b16 %v5306
  %v5339 = vunpack.c.l.b16 %v5307
  %v5340 = vunpack.c.l.b16 %v5308
  %v5341 = vunpack.c.l.b16 %v5309
  %v5342 = vunpack.c.l.b16 %v5310
  %v5343 = vunpack.c.l.b16 %v5311
  %v5344 = vunpack.c.l.b16 %v5312
  %v5345 = vunpack.c.l.b16 %v5313
  %v5346 = vunpack.c.l.b16 %v5314
  %v5347 = vunpack.c.l.b16 %v5315
  %v5348 = vunpack.c.l.b16 %v5316
  %v5349 = vunpack.c.l.b16 %v5317
  %v5350 = vunpack.c.l.b16 %v5318
  %v5351 = vunpack.c.l.b16 %v5319
  %v5352 = vpack.c.b16 %v5337, %v5336
  %v5353 = vpack.c.b16 %v5339, %v5338
  %v5354 = vpack.c.b16 %v5341, %v5340
  %v5355 = vpack.c.b16 %v5343, %v5342
  %v5356 = vpack.c.b16 %v5345, %v5344
  %v5357 = vpack.c.b16 %v5347, %v5346
  %v5358 = vpack.c.b16 %v5349, %v5348
  %v5359 = vpack.c.b16 %v5351, %v5350
  %5368 = vmatprep.subr.bf16.mxu0 0
  %5369 = vmatpush1.bf16.msra.mxu0 %v5359
  %5370 = vmatprep.subr.bf16.mxu0 0
  %5371 = vmatpush1.bf16.msra.mxu0 %v5358
  %5372 = vmatprep.subr.bf16.mxu0 0
  %5373 = vmatpush1.bf16.msra.mxu0 %v5357
  %5374 = vmatprep.subr.bf16.mxu0 0
  %5375 = vmatpush1.bf16.msra.mxu0 %v5356
  %5376 = vmatprep.subr.bf16.mxu0 0
  %5377 = vmatpush1.bf16.msra.mxu0 %v5355
  %5378 = vmatprep.subr.bf16.mxu0 0
  %5379 = vmatpush1.bf16.msra.mxu0 %v5354
  %5380 = vmatprep.subr.bf16.mxu0 0
  %5381 = vmatpush1.bf16.msra.mxu0 %v5353
  %5382 = vmatprep.subr.bf16.mxu0 0
  %5383 = vmatpush1.bf16.msra.mxu0 %v5352
  %5384 = vmatprep.subr.bf16.mxu0 0
  %5385 = vmatpush2.bf16.msra.mxu0 0
  %5386 = vmatprep.subr.bf16.mxu0 0
  %5387 = vmatpush2.bf16.msra.mxu0 0
  %5388 = vmatprep.subr.bf16.mxu0 0
  %5389 = vmatpush2.bf16.msra.mxu0 0
  %5390 = vmatprep.subr.bf16.mxu0 0
  %5391 = vmatpush2.bf16.msra.mxu0 0
  %5392 = vmatprep.subr.bf16.mxu0 0
  %5393 = vmatpush2.bf16.msra.mxu0 0
  %5394 = vmatprep.subr.bf16.mxu0 0
  %5395 = vmatpush2.bf16.msra.mxu0 0
  %5396 = vmatprep.subr.bf16.mxu0 0
  %5397 = vmatpush2.bf16.msra.mxu0 0
  %5398 = vmatprep.subr.bf16.mxu0 0
  %5399 = vmatpush2.bf16.msra.mxu0 0
  %5400 = vmatprep.mubr.bf16.mxu0 0
  %5401 = vmatmul.mubr.bf16.gmra.mxu0 %v4048
  %v5402 = vpop.f32.mrf.mxu0
  %v5403 = vadd.f32 0.0, %v5402
  %v5404 = vpop.f32.mrf.mxu0
  %v5405 = vpop.f32.mrf.mxu0
  %v5406 = vadd.f32 0.0, %v5405
  %v5407 = vpop.f32.mrf.mxu0
  %5408 = vmatprep.mubr.bf16.mxu0 0
  %5409 = vmatmul.mubr.bf16.gmra.mxu0 %v4049
  %v5410 = vpop.f32.mrf.mxu0
  %v5411 = vadd.f32 0.0, %v5410
  %v5412 = vpop.f32.mrf.mxu0
  %v5413 = vpop.f32.mrf.mxu0
  %v5414 = vadd.f32 0.0, %v5413
  %v5415 = vpop.f32.mrf.mxu0
  %5416 = vmatprep.mubr.bf16.mxu0 0
  %5417 = vmatmul.mubr.bf16.gmra.mxu0 %v4050
  %v5418 = vpop.f32.mrf.mxu0
  %v5419 = vadd.f32 0.0, %v5418
  %v5420 = vpop.f32.mrf.mxu0
  %v5421 = vpop.f32.mrf.mxu0
  %v5422 = vadd.f32 0.0, %v5421
  %v5423 = vpop.f32.mrf.mxu0
  %5424 = vmatprep.mubr.bf16.mxu0 0
  %5425 = vmatmul.mubr.bf16.gmra.mxu0 %v4051
  %v5426 = vpop.f32.mrf.mxu0
  %v5427 = vadd.f32 0.0, %v5426
  %v5428 = vpop.f32.mrf.mxu0
  %v5429 = vpop.f32.mrf.mxu0
  %v5430 = vadd.f32 0.0, %v5429
  %v5431 = vpop.f32.mrf.mxu0
  %5432 = vmatprep.mubr.bf16.mxu0 0
  %5433 = vmatmul.mubr.bf16.gmra.mxu0 %v4052
  %v5434 = vpop.f32.mrf.mxu0
  %v5435 = vadd.f32 0.0, %v5434
  %v5436 = vpop.f32.mrf.mxu0
  %v5437 = vpop.f32.mrf.mxu0
  %v5438 = vadd.f32 0.0, %v5437
  %v5439 = vpop.f32.mrf.mxu0
  %5440 = vmatprep.mubr.bf16.mxu0 0
  %5441 = vmatmul.mubr.bf16.gmra.mxu0 %v4053
  %v5442 = vpop.f32.mrf.mxu0
  %v5443 = vadd.f32 0.0, %v5442
  %v5444 = vpop.f32.mrf.mxu0
  %v5445 = vpop.f32.mrf.mxu0
  %v5446 = vadd.f32 0.0, %v5445
  %v5447 = vpop.f32.mrf.mxu0
  %5448 = vmatprep.mubr.bf16.mxu0 0
  %5449 = vmatmul.mubr.bf16.gmra.mxu0 %v4054
  %v5450 = vpop.f32.mrf.mxu0
  %v5451 = vadd.f32 0.0, %v5450
  %v5452 = vpop.f32.mrf.mxu0
  %v5453 = vpop.f32.mrf.mxu0
  %v5454 = vadd.f32 0.0, %v5453
  %v5455 = vpop.f32.mrf.mxu0
  %5456 = vmatprep.mubr.bf16.mxu0 0
  %5457 = vmatmul.mubr.bf16.gmra.mxu0 %v4055
  %v5458 = vpop.f32.mrf.mxu0
  %v5459 = vadd.f32 0.0, %v5458
  %v5460 = vpop.f32.mrf.mxu0
  %v5461 = vpop.f32.mrf.mxu0
  %v5462 = vadd.f32 0.0, %v5461
  %v5463 = vpop.f32.mrf.mxu0
  %5464 = vmatprep.mubr.bf16.mxu0 0
  %5465 = vmatmul.mubr.bf16.gmra.mxu0 %v4056
  %v5466 = vpop.f32.mrf.mxu0
  %v5467 = vadd.f32 0.0, %v5466
  %v5468 = vpop.f32.mrf.mxu0
  %v5469 = vpop.f32.mrf.mxu0
  %v5470 = vadd.f32 0.0, %v5469
  %v5471 = vpop.f32.mrf.mxu0
  %5472 = vmatprep.mubr.bf16.mxu0 0
  %5473 = vmatmul.mubr.bf16.gmra.mxu0 %v4057
  %v5474 = vpop.f32.mrf.mxu0
  %v5475 = vadd.f32 0.0, %v5474
  %v5476 = vpop.f32.mrf.mxu0
  %v5477 = vpop.f32.mrf.mxu0
  %v5478 = vadd.f32 0.0, %v5477
  %v5479 = vpop.f32.mrf.mxu0
  %5480 = vmatprep.mubr.bf16.mxu0 0
  %5481 = vmatmul.mubr.bf16.gmra.mxu0 %v4058
  %v5482 = vpop.f32.mrf.mxu0
  %v5483 = vadd.f32 0.0, %v5482
  %v5484 = vpop.f32.mrf.mxu0
  %v5485 = vpop.f32.mrf.mxu0
  %v5486 = vadd.f32 0.0, %v5485
  %v5487 = vpop.f32.mrf.mxu0
  %5488 = vmatprep.mubr.bf16.mxu0 0
  %5489 = vmatmul.mubr.bf16.gmra.mxu0 %v4059
  %v5490 = vpop.f32.mrf.mxu0
  %v5491 = vadd.f32 0.0, %v5490
  %v5492 = vpop.f32.mrf.mxu0
  %v5493 = vpop.f32.mrf.mxu0
  %v5494 = vadd.f32 0.0, %v5493
  %v5495 = vpop.f32.mrf.mxu0
  %5496 = vmatprep.mubr.bf16.mxu0 0
  %5497 = vmatmul.mubr.bf16.gmra.mxu0 %v4060
  %v5498 = vpop.f32.mrf.mxu0
  %v5499 = vadd.f32 0.0, %v5498
  %v5500 = vpop.f32.mrf.mxu0
  %v5501 = vpop.f32.mrf.mxu0
  %v5502 = vadd.f32 0.0, %v5501
  %v5503 = vpop.f32.mrf.mxu0
  %5504 = vmatprep.mubr.bf16.mxu0 0
  %5505 = vmatmul.mubr.bf16.gmra.mxu0 %v4061
  %v5506 = vpop.f32.mrf.mxu0
  %v5507 = vadd.f32 0.0, %v5506
  %v5508 = vpop.f32.mrf.mxu0
  %v5509 = vpop.f32.mrf.mxu0
  %v5510 = vadd.f32 0.0, %v5509
  %v5511 = vpop.f32.mrf.mxu0
  %5512 = vmatprep.mubr.bf16.mxu0 0
  %5513 = vmatmul.mubr.bf16.gmra.mxu0 %v4062
  %v5514 = vpop.f32.mrf.mxu0
  %v5515 = vadd.f32 0.0, %v5514
  %v5516 = vpop.f32.mrf.mxu0
  %v5517 = vpop.f32.mrf.mxu0
  %v5518 = vadd.f32 0.0, %v5517
  %v5519 = vpop.f32.mrf.mxu0
  %5520 = vmatprep.mubr.bf16.mxu0 0
  %5521 = vmatmul.mubr.bf16.gmra.mxu0 %v4063
  %v5522 = vpop.f32.mrf.mxu0
  %v5523 = vadd.f32 0.0, %v5522
  %v5524 = vpop.f32.mrf.mxu0
  %v5525 = vpop.f32.mrf.mxu0
  %v5526 = vadd.f32 0.0, %v5525
  %v5527 = vpop.f32.mrf.mxu0
  %5528 = vmatprep.mubr.bf16.mxu0 0
  %5529 = vmatmul.mubr.bf16.gmra.mxu0 %v4064
  %v5530 = vpop.f32.mrf.mxu0
  %v5531 = vadd.f32 0.0, %v5530
  %v5532 = vpop.f32.mrf.mxu0
  %v5533 = vpop.f32.mrf.mxu0
  %v5534 = vadd.f32 0.0, %v5533
  %v5535 = vpop.f32.mrf.mxu0
  %5536 = vmatprep.mubr.bf16.mxu0 0
  %5537 = vmatmul.mubr.bf16.gmra.mxu0 %v4047
  %v5538 = vpop.f32.mrf.mxu0
  %v5539 = vadd.f32 0.0, %v5538
  %v5540 = vpop.f32.mrf.mxu0
  %v5541 = vpop.f32.mrf.mxu0
  %v5542 = vadd.f32 0.0, %v5541
  %v5543 = vpop.f32.mrf.mxu0
  %5544 = vdwg.mxu0
  %v5545 = vadd.f32 %v5267, %v5403
  %v5546 = vadd.f32 %v5268, %v5406
  %v5547 = vadd.f32 %v5269, %v5411
  %v5548 = vadd.f32 %v5270, %v5414
  %v5549 = vadd.f32 %v5271, %v5419
  %v5550 = vadd.f32 %v5272, %v5422
  %v5551 = vadd.f32 %v5273, %v5427
  %v5552 = vadd.f32 %v5274, %v5430
  %v5553 = vadd.f32 %v5275, %v5435
  %v5554 = vadd.f32 %v5276, %v5438
  %v5555 = vadd.f32 %v5277, %v5443
  %v5556 = vadd.f32 %v5278, %v5446
  %v5557 = vadd.f32 %v5279, %v5451
  %v5558 = vadd.f32 %v5280, %v5454
  %v5559 = vadd.f32 %v5281, %v5459
  %v5560 = vadd.f32 %v5282, %v5462
  %v5561 = vadd.f32 %v5283, %v5467
  %v5562 = vadd.f32 %v5284, %v5470
  %v5563 = vadd.f32 %v5285, %v5475
  %v5564 = vadd.f32 %v5286, %v5478
  %v5565 = vadd.f32 %v5287, %v5483
  %v5566 = vadd.f32 %v5288, %v5486
  %v5567 = vadd.f32 %v5289, %v5491
  %v5568 = vadd.f32 %v5290, %v5494
  %v5569 = vadd.f32 %v5291, %v5499
  %v5570 = vadd.f32 %v5292, %v5502
  %v5571 = vadd.f32 %v5293, %v5507
  %v5572 = vadd.f32 %v5294, %v5510
  %v5573 = vadd.f32 %v5295, %v5515
  %v5574 = vadd.f32 %v5296, %v5518
  %v5575 = vadd.f32 %v5297, %v5523
  %v5576 = vadd.f32 %v5298, %v5526
  %v5577 = vadd.f32 %v5299, %v5531
  %v5578 = vadd.f32 %v5300, %v5534
  %v5579 = vadd.f32 %v5301, %v5539
  %v5580 = vadd.f32 %v5302, %v5542
  %v5581 = vpack.c.bf16 %v5003, %v5004
  %v5582 = vpack.c.bf16 %v5001, %v5002
  %v5583 = vpack.c.bf16 %v4999, %v5000
  %v5584 = vpack.c.bf16 %v4997, %v4998
  %v5585 = vpack.c.bf16 %v4995, %v4996
  %v5586 = vpack.c.bf16 %v4993, %v4994
  %v5587 = vpack.c.bf16 %v4991, %v4992
  %v5588 = vpack.c.bf16 %v4989, %v4990
  %v5589 = vpack.c.bf16 %v4987, %v4988
  %v5590 = vpack.c.bf16 %v4985, %v4986
  %v5591 = vpack.c.bf16 %v4983, %v4984
  %v5592 = vpack.c.bf16 %v4981, %v4982
  %v5593 = vpack.c.bf16 %v4979, %v4980
  %v5594 = vpack.c.bf16 %v4977, %v4978
  %v5595 = vpack.c.bf16 %v4975, %v4976
  %v5596 = vpack.c.bf16 %v4973, %v4974
  %v5597 = vpack.c.bf16 %v4971, %v4972
  %v5598 = vpack.c.bf16 %v5005, %v5006
  %s5599 = scalar_lea.vmem %s3, 448
  %v5600 = vld [vmem:[%s5599] sm:$0xf]
  %v5601 = vld [vmem:[%s5599 + $0x4] sm:$0xf]
  %v5602 = vld [vmem:[%s5599 + $0x8] sm:$0xf]
  %v5603 = vld [vmem:[%s5599 + $0xc] sm:$0xf]
  %v5604 = vld [vmem:[%s5599 + $0x10] sm:$0xf]
  %v5605 = vld [vmem:[%s5599 + $0x14] sm:$0xf]
  %v5606 = vld [vmem:[%s5599 + $0x18] sm:$0xf]
  %v5607 = vld [vmem:[%s5599 + $0x1c] sm:$0xf]
  %v5608 = vld [vmem:[%s5599 + $0x20] sm:$0xf]
  %v5609 = vld [vmem:[%s5599 + $0x24] sm:$0xf]
  %v5610 = vld [vmem:[%s5599 + $0x28] sm:$0xf]
  %v5611 = vld [vmem:[%s5599 + $0x2c] sm:$0xf]
  %v5612 = vld [vmem:[%s5599 + $0x30] sm:$0xf]
  %v5613 = vld [vmem:[%s5599 + $0x34] sm:$0xf]
  %v5614 = vld [vmem:[%s5599 + $0x38] sm:$0xf]
  %v5615 = vld [vmem:[%s5599 + $0x3c] sm:$0xf]
  %v5632 = vunpack.c.l.b16 %v5600
  %v5633 = vunpack.c.l.b16 %v5601
  %v5634 = vunpack.c.l.b16 %v5602
  %v5635 = vunpack.c.l.b16 %v5603
  %v5636 = vunpack.c.l.b16 %v5604
  %v5637 = vunpack.c.l.b16 %v5605
  %v5638 = vunpack.c.l.b16 %v5606
  %v5639 = vunpack.c.l.b16 %v5607
  %v5640 = vunpack.c.l.b16 %v5608
  %v5641 = vunpack.c.l.b16 %v5609
  %v5642 = vunpack.c.l.b16 %v5610
  %v5643 = vunpack.c.l.b16 %v5611
  %v5644 = vunpack.c.l.b16 %v5612
  %v5645 = vunpack.c.l.b16 %v5613
  %v5646 = vunpack.c.l.b16 %v5614
  %v5647 = vunpack.c.l.b16 %v5615
  %v5648 = vpack.c.b16 %v5633, %v5632
  %v5649 = vpack.c.b16 %v5635, %v5634
  %v5650 = vpack.c.b16 %v5637, %v5636
  %v5651 = vpack.c.b16 %v5639, %v5638
  %v5652 = vpack.c.b16 %v5641, %v5640
  %v5653 = vpack.c.b16 %v5643, %v5642
  %v5654 = vpack.c.b16 %v5645, %v5644
  %v5655 = vpack.c.b16 %v5647, %v5646
  %5664 = vmatprep.subr.bf16.mxu0 0
  %5665 = vmatpush1.bf16.msra.mxu0 %v5655
  %5666 = vmatprep.subr.bf16.mxu0 0
  %5667 = vmatpush1.bf16.msra.mxu0 %v5654
  %5668 = vmatprep.subr.bf16.mxu0 0
  %5669 = vmatpush1.bf16.msra.mxu0 %v5653
  %5670 = vmatprep.subr.bf16.mxu0 0
  %5671 = vmatpush1.bf16.msra.mxu0 %v5652
  %5672 = vmatprep.subr.bf16.mxu0 0
  %5673 = vmatpush1.bf16.msra.mxu0 %v5651
  %5674 = vmatprep.subr.bf16.mxu0 0
  %5675 = vmatpush1.bf16.msra.mxu0 %v5650
  %5676 = vmatprep.subr.bf16.mxu0 0
  %5677 = vmatpush1.bf16.msra.mxu0 %v5649
  %5678 = vmatprep.subr.bf16.mxu0 0
  %5679 = vmatpush1.bf16.msra.mxu0 %v5648
  %5680 = vmatprep.subr.bf16.mxu0 0
  %5681 = vmatpush2.bf16.msra.mxu0 0
  %5682 = vmatprep.subr.bf16.mxu0 0
  %5683 = vmatpush2.bf16.msra.mxu0 0
  %5684 = vmatprep.subr.bf16.mxu0 0
  %5685 = vmatpush2.bf16.msra.mxu0 0
  %5686 = vmatprep.subr.bf16.mxu0 0
  %5687 = vmatpush2.bf16.msra.mxu0 0
  %5688 = vmatprep.subr.bf16.mxu0 0
  %5689 = vmatpush2.bf16.msra.mxu0 0
  %5690 = vmatprep.subr.bf16.mxu0 0
  %5691 = vmatpush2.bf16.msra.mxu0 0
  %5692 = vmatprep.subr.bf16.mxu0 0
  %5693 = vmatpush2.bf16.msra.mxu0 0
  %5694 = vmatprep.subr.bf16.mxu0 0
  %5695 = vmatpush2.bf16.msra.mxu0 0
  %5696 = vmatprep.mubr.bf16.mxu0 0
  %5697 = vmatmul.mubr.bf16.gmra.mxu0 %v5581
  %v5698 = vpop.f32.mrf.mxu0
  %v5699 = vadd.f32 0.0, %v5698
  %v5700 = vpop.f32.mrf.mxu0
  %v5701 = vpop.f32.mrf.mxu0
  %v5702 = vadd.f32 0.0, %v5701
  %v5703 = vpop.f32.mrf.mxu0
  %5704 = vmatprep.mubr.bf16.mxu0 0
  %5705 = vmatmul.mubr.bf16.gmra.mxu0 %v5582
  %v5706 = vpop.f32.mrf.mxu0
  %v5707 = vadd.f32 0.0, %v5706
  %v5708 = vpop.f32.mrf.mxu0
  %v5709 = vpop.f32.mrf.mxu0
  %v5710 = vadd.f32 0.0, %v5709
  %v5711 = vpop.f32.mrf.mxu0
  %5712 = vmatprep.mubr.bf16.mxu0 0
  %5713 = vmatmul.mubr.bf16.gmra.mxu0 %v5583
  %v5714 = vpop.f32.mrf.mxu0
  %v5715 = vadd.f32 0.0, %v5714
  %v5716 = vpop.f32.mrf.mxu0
  %v5717 = vpop.f32.mrf.mxu0
  %v5718 = vadd.f32 0.0, %v5717
  %v5719 = vpop.f32.mrf.mxu0
  %5720 = vmatprep.mubr.bf16.mxu0 0
  %5721 = vmatmul.mubr.bf16.gmra.mxu0 %v5584
  %v5722 = vpop.f32.mrf.mxu0
  %v5723 = vadd.f32 0.0, %v5722
  %v5724 = vpop.f32.mrf.mxu0
  %v5725 = vpop.f32.mrf.mxu0
  %v5726 = vadd.f32 0.0, %v5725
  %v5727 = vpop.f32.mrf.mxu0
  %5728 = vmatprep.mubr.bf16.mxu0 0
  %5729 = vmatmul.mubr.bf16.gmra.mxu0 %v5585
  %v5730 = vpop.f32.mrf.mxu0
  %v5731 = vadd.f32 0.0, %v5730
  %v5732 = vpop.f32.mrf.mxu0
  %v5733 = vpop.f32.mrf.mxu0
  %v5734 = vadd.f32 0.0, %v5733
  %v5735 = vpop.f32.mrf.mxu0
  %5736 = vmatprep.mubr.bf16.mxu0 0
  %5737 = vmatmul.mubr.bf16.gmra.mxu0 %v5586
  %v5738 = vpop.f32.mrf.mxu0
  %v5739 = vadd.f32 0.0, %v5738
  %v5740 = vpop.f32.mrf.mxu0
  %v5741 = vpop.f32.mrf.mxu0
  %v5742 = vadd.f32 0.0, %v5741
  %v5743 = vpop.f32.mrf.mxu0
  %5744 = vmatprep.mubr.bf16.mxu0 0
  %5745 = vmatmul.mubr.bf16.gmra.mxu0 %v5587
  %v5746 = vpop.f32.mrf.mxu0
  %v5747 = vadd.f32 0.0, %v5746
  %v5748 = vpop.f32.mrf.mxu0
  %v5749 = vpop.f32.mrf.mxu0
  %v5750 = vadd.f32 0.0, %v5749
  %v5751 = vpop.f32.mrf.mxu0
  %5752 = vmatprep.mubr.bf16.mxu0 0
  %5753 = vmatmul.mubr.bf16.gmra.mxu0 %v5588
  %v5754 = vpop.f32.mrf.mxu0
  %v5755 = vadd.f32 0.0, %v5754
  %v5756 = vpop.f32.mrf.mxu0
  %v5757 = vpop.f32.mrf.mxu0
  %v5758 = vadd.f32 0.0, %v5757
  %v5759 = vpop.f32.mrf.mxu0
  %5760 = vmatprep.mubr.bf16.mxu0 0
  %5761 = vmatmul.mubr.bf16.gmra.mxu0 %v5589
  %v5762 = vpop.f32.mrf.mxu0
  %v5763 = vadd.f32 0.0, %v5762
  %v5764 = vpop.f32.mrf.mxu0
  %v5765 = vpop.f32.mrf.mxu0
  %v5766 = vadd.f32 0.0, %v5765
  %v5767 = vpop.f32.mrf.mxu0
  %5768 = vmatprep.mubr.bf16.mxu0 0
  %5769 = vmatmul.mubr.bf16.gmra.mxu0 %v5590
  %v5770 = vpop.f32.mrf.mxu0
  %v5771 = vadd.f32 0.0, %v5770
  %v5772 = vpop.f32.mrf.mxu0
  %v5773 = vpop.f32.mrf.mxu0
  %v5774 = vadd.f32 0.0, %v5773
  %v5775 = vpop.f32.mrf.mxu0
  %5776 = vmatprep.mubr.bf16.mxu0 0
  %5777 = vmatmul.mubr.bf16.gmra.mxu0 %v5591
  %v5778 = vpop.f32.mrf.mxu0
  %v5779 = vadd.f32 0.0, %v5778
  %v5780 = vpop.f32.mrf.mxu0
  %v5781 = vpop.f32.mrf.mxu0
  %v5782 = vadd.f32 0.0, %v5781
  %v5783 = vpop.f32.mrf.mxu0
  %5784 = vmatprep.mubr.bf16.mxu0 0
  %5785 = vmatmul.mubr.bf16.gmra.mxu0 %v5592
  %v5786 = vpop.f32.mrf.mxu0
  %v5787 = vadd.f32 0.0, %v5786
  %v5788 = vpop.f32.mrf.mxu0
  %v5789 = vpop.f32.mrf.mxu0
  %v5790 = vadd.f32 0.0, %v5789
  %v5791 = vpop.f32.mrf.mxu0
  %5792 = vmatprep.mubr.bf16.mxu0 0
  %5793 = vmatmul.mubr.bf16.gmra.mxu0 %v5593
  %v5794 = vpop.f32.mrf.mxu0
  %v5795 = vadd.f32 0.0, %v5794
  %v5796 = vpop.f32.mrf.mxu0
  %v5797 = vpop.f32.mrf.mxu0
  %v5798 = vadd.f32 0.0, %v5797
  %v5799 = vpop.f32.mrf.mxu0
  %5800 = vmatprep.mubr.bf16.mxu0 0
  %5801 = vmatmul.mubr.bf16.gmra.mxu0 %v5594
  %v5802 = vpop.f32.mrf.mxu0
  %v5803 = vadd.f32 0.0, %v5802
  %v5804 = vpop.f32.mrf.mxu0
  %v5805 = vpop.f32.mrf.mxu0
  %v5806 = vadd.f32 0.0, %v5805
  %v5807 = vpop.f32.mrf.mxu0
  %5808 = vmatprep.mubr.bf16.mxu0 0
  %5809 = vmatmul.mubr.bf16.gmra.mxu0 %v5595
  %v5810 = vpop.f32.mrf.mxu0
  %v5811 = vadd.f32 0.0, %v5810
  %v5812 = vpop.f32.mrf.mxu0
  %v5813 = vpop.f32.mrf.mxu0
  %v5814 = vadd.f32 0.0, %v5813
  %v5815 = vpop.f32.mrf.mxu0
  %5816 = vmatprep.mubr.bf16.mxu0 0
  %5817 = vmatmul.mubr.bf16.gmra.mxu0 %v5596
  %v5818 = vpop.f32.mrf.mxu0
  %v5819 = vadd.f32 0.0, %v5818
  %v5820 = vpop.f32.mrf.mxu0
  %v5821 = vpop.f32.mrf.mxu0
  %v5822 = vadd.f32 0.0, %v5821
  %v5823 = vpop.f32.mrf.mxu0
  %5824 = vmatprep.mubr.bf16.mxu0 0
  %5825 = vmatmul.mubr.bf16.gmra.mxu0 %v5597
  %v5826 = vpop.f32.mrf.mxu0
  %v5827 = vadd.f32 0.0, %v5826
  %v5828 = vpop.f32.mrf.mxu0
  %v5829 = vpop.f32.mrf.mxu0
  %v5830 = vadd.f32 0.0, %v5829
  %v5831 = vpop.f32.mrf.mxu0
  %5832 = vmatprep.mubr.bf16.mxu0 0
  %5833 = vmatmul.mubr.bf16.gmra.mxu0 %v5598
  %v5834 = vpop.f32.mrf.mxu0
  %v5835 = vadd.f32 0.0, %v5834
  %v5836 = vpop.f32.mrf.mxu0
  %v5837 = vpop.f32.mrf.mxu0
  %v5838 = vadd.f32 0.0, %v5837
  %v5839 = vpop.f32.mrf.mxu0
  %5840 = vdwg.mxu0
  %v5841 = vadd.f32 %v5545, %v5699
  %v5842 = vadd.f32 %v5546, %v5702
  %v5843 = vadd.f32 %v5547, %v5707
  %v5844 = vadd.f32 %v5548, %v5710
  %v5845 = vadd.f32 %v5549, %v5715
  %v5846 = vadd.f32 %v5550, %v5718
  %v5847 = vadd.f32 %v5551, %v5723
  %v5848 = vadd.f32 %v5552, %v5726
  %v5849 = vadd.f32 %v5553, %v5731
  %v5850 = vadd.f32 %v5554, %v5734
  %v5851 = vadd.f32 %v5555, %v5739
  %v5852 = vadd.f32 %v5556, %v5742
  %v5853 = vadd.f32 %v5557, %v5747
  %v5854 = vadd.f32 %v5558, %v5750
  %v5855 = vadd.f32 %v5559, %v5755
  %v5856 = vadd.f32 %v5560, %v5758
  %v5857 = vadd.f32 %v5561, %v5763
  %v5858 = vadd.f32 %v5562, %v5766
  %v5859 = vadd.f32 %v5563, %v5771
  %v5860 = vadd.f32 %v5564, %v5774
  %v5861 = vadd.f32 %v5565, %v5779
  %v5862 = vadd.f32 %v5566, %v5782
  %v5863 = vadd.f32 %v5567, %v5787
  %v5864 = vadd.f32 %v5568, %v5790
  %v5865 = vadd.f32 %v5569, %v5795
  %v5866 = vadd.f32 %v5570, %v5798
  %v5867 = vadd.f32 %v5571, %v5803
  %v5868 = vadd.f32 %v5572, %v5806
  %v5869 = vadd.f32 %v5573, %v5811
  %v5870 = vadd.f32 %v5574, %v5814
  %v5871 = vadd.f32 %v5575, %v5819
  %v5872 = vadd.f32 %v5576, %v5822
  %v5873 = vadd.f32 %v5577, %v5827
  %v5874 = vadd.f32 %v5578, %v5830
  %v5875 = vadd.f32 %v5579, %v5835
  %v5876 = vadd.f32 %v5580, %v5838
  %v5877 = vrot.slane %v3348, 2
  %v5878 = vrot.slane %v3349, 2
  %v5879 = vrot.slane %v3350, 2
  %v5880 = vrot.slane %v3351, 2
  %v5881 = vrot.slane %v3352, 2
  %v5882 = vrot.slane %v3353, 2
  %v5883 = vrot.slane %v3354, 2
  %v5884 = vrot.slane %v3355, 2
  %v5885 = vrot.slane %v3356, 2
  %v5886 = vrot.slane %v3357, 2
  %v5887 = vrot.slane %v3358, 2
  %v5888 = vrot.slane %v3359, 2
  %v5889 = vrot.slane %v3360, 2
  %v5890 = vrot.slane %v3361, 2
  %v5891 = vrot.slane %v3362, 2
  %v5892 = vrot.slane %v3363, 2
  %v5893 = vrot.slane %v3364, 2
  %v5894 = vrot.slane %v3365, 2
  %v5895 = vrot.slane %v3366, 2
  %v5896 = vrot.slane %v3367, 2
  %v5897 = vrot.slane %v3368, 2
  %v5898 = vrot.slane %v3369, 2
  %v5899 = vrot.slane %v3370, 2
  %v5900 = vrot.slane %v3371, 2
  %v5901 = vrot.slane %v3372, 2
  %v5902 = vrot.slane %v3373, 2
  %v5903 = vrot.slane %v3374, 2
  %v5904 = vrot.slane %v3375, 2
  %v5905 = vrot.slane %v3376, 2
  %v5906 = vrot.slane %v3377, 2
  %v5907 = vrot.slane %v3378, 2
  %v5908 = vrot.slane %v3379, 2
  %v5909 = vrot.slane %v3380, 2
  %v5910 = vrot.slane %v3381, 2
  %v5911 = vrot.slane %v3382, 2
  %v5912 = vrot.slane %v3383, 2
  %v5913 = vsel %vm2756, %v5911, %v5912
  %v5914 = vsel %vm2756, %v5910, %v5911
  %v5915 = vsel %vm2756, %v5909, %v5910
  %v5916 = vsel %vm2756, %v5908, %v5909
  %v5917 = vsel %vm2756, %v5907, %v5908
  %v5918 = vsel %vm2756, %v5906, %v5907
  %v5919 = vsel %vm2756, %v5905, %v5906
  %v5920 = vsel %vm2756, %v5904, %v5905
  %v5921 = vsel %vm2756, %v5903, %v5904
  %v5922 = vsel %vm2756, %v5902, %v5903
  %v5923 = vsel %vm2756, %v5901, %v5902
  %v5924 = vsel %vm2756, %v5900, %v5901
  %v5925 = vsel %vm2756, %v5899, %v5900
  %v5926 = vsel %vm2756, %v5898, %v5899
  %v5927 = vsel %vm2756, %v5897, %v5898
  %v5928 = vsel %vm2756, %v5896, %v5897
  %v5929 = vsel %vm2756, %v5895, %v5896
  %v5930 = vsel %vm2756, %v5894, %v5895
  %v5931 = vsel %vm2756, %v5893, %v5894
  %v5932 = vsel %vm2756, %v5892, %v5893
  %v5933 = vsel %vm2756, %v5891, %v5892
  %v5934 = vsel %vm2756, %v5890, %v5891
  %v5935 = vsel %vm2756, %v5889, %v5890
  %v5936 = vsel %vm2756, %v5888, %v5889
  %v5937 = vsel %vm2756, %v5887, %v5888
  %v5938 = vsel %vm2756, %v5886, %v5887
  %v5939 = vsel %vm2756, %v5885, %v5886
  %v5940 = vsel %vm2756, %v5884, %v5885
  %v5941 = vsel %vm2756, %v5883, %v5884
  %v5942 = vsel %vm2756, %v5882, %v5883
  %v5943 = vsel %vm2756, %v5881, %v5882
  %v5944 = vsel %vm2756, %v5880, %v5881
  %v5945 = vsel %vm2756, %v5879, %v5880
  %v5946 = vsel %vm2756, %v5878, %v5879
  %v5947 = vsel %vm2756, %v5877, %v5878
  %v5948 = vsel %vm2756, %v5912, %v5877
  %v5949 = vpack.c.bf16 %v5945, %v5946
  %v5950 = vpack.c.bf16 %v5943, %v5944
  %v5951 = vpack.c.bf16 %v5941, %v5942
  %v5952 = vpack.c.bf16 %v5939, %v5940
  %v5953 = vpack.c.bf16 %v5937, %v5938
  %v5954 = vpack.c.bf16 %v5935, %v5936
  %v5955 = vpack.c.bf16 %v5933, %v5934
  %v5956 = vpack.c.bf16 %v5931, %v5932
  %v5957 = vpack.c.bf16 %v5929, %v5930
  %v5958 = vpack.c.bf16 %v5927, %v5928
  %v5959 = vpack.c.bf16 %v5925, %v5926
  %v5960 = vpack.c.bf16 %v5923, %v5924
  %v5961 = vpack.c.bf16 %v5921, %v5922
  %v5962 = vpack.c.bf16 %v5919, %v5920
  %v5963 = vpack.c.bf16 %v5917, %v5918
  %v5964 = vpack.c.bf16 %v5915, %v5916
  %v5965 = vpack.c.bf16 %v5913, %v5914
  %v5966 = vpack.c.bf16 %v5947, %v5948
  %s5967 = scalar_lea.vmem %s3, 512
  %v5968 = vld [vmem:[%s5967] sm:$0xf]
  %v5969 = vld [vmem:[%s5967 + $0x4] sm:$0xf]
  %v5970 = vld [vmem:[%s5967 + $0x8] sm:$0xf]
  %v5971 = vld [vmem:[%s5967 + $0xc] sm:$0xf]
  %v5972 = vld [vmem:[%s5967 + $0x10] sm:$0xf]
  %v5973 = vld [vmem:[%s5967 + $0x14] sm:$0xf]
  %v5974 = vld [vmem:[%s5967 + $0x18] sm:$0xf]
  %v5975 = vld [vmem:[%s5967 + $0x1c] sm:$0xf]
  %v5976 = vld [vmem:[%s5967 + $0x20] sm:$0xf]
  %v5977 = vld [vmem:[%s5967 + $0x24] sm:$0xf]
  %v5978 = vld [vmem:[%s5967 + $0x28] sm:$0xf]
  %v5979 = vld [vmem:[%s5967 + $0x2c] sm:$0xf]
  %v5980 = vld [vmem:[%s5967 + $0x30] sm:$0xf]
  %v5981 = vld [vmem:[%s5967 + $0x34] sm:$0xf]
  %v5982 = vld [vmem:[%s5967 + $0x38] sm:$0xf]
  %v5983 = vld [vmem:[%s5967 + $0x3c] sm:$0xf]
  %v6000 = vunpack.c.l.b16 %v5968
  %v6001 = vunpack.c.l.b16 %v5969
  %v6002 = vunpack.c.l.b16 %v5970
  %v6003 = vunpack.c.l.b16 %v5971
  %v6004 = vunpack.c.l.b16 %v5972
  %v6005 = vunpack.c.l.b16 %v5973
  %v6006 = vunpack.c.l.b16 %v5974
  %v6007 = vunpack.c.l.b16 %v5975
  %v6008 = vunpack.c.l.b16 %v5976
  %v6009 = vunpack.c.l.b16 %v5977
  %v6010 = vunpack.c.l.b16 %v5978
  %v6011 = vunpack.c.l.b16 %v5979
  %v6012 = vunpack.c.l.b16 %v5980
  %v6013 = vunpack.c.l.b16 %v5981
  %v6014 = vunpack.c.l.b16 %v5982
  %v6015 = vunpack.c.l.b16 %v5983
  %v6016 = vpack.c.b16 %v6001, %v6000
  %v6017 = vpack.c.b16 %v6003, %v6002
  %v6018 = vpack.c.b16 %v6005, %v6004
  %v6019 = vpack.c.b16 %v6007, %v6006
  %v6020 = vpack.c.b16 %v6009, %v6008
  %v6021 = vpack.c.b16 %v6011, %v6010
  %v6022 = vpack.c.b16 %v6013, %v6012
  %v6023 = vpack.c.b16 %v6015, %v6014
  %6032 = vmatprep.subr.bf16.mxu0 0
  %6033 = vmatpush1.bf16.msra.mxu0 %v6023
  %6034 = vmatprep.subr.bf16.mxu0 0
  %6035 = vmatpush1.bf16.msra.mxu0 %v6022
  %6036 = vmatprep.subr.bf16.mxu0 0
  %6037 = vmatpush1.bf16.msra.mxu0 %v6021
  %6038 = vmatprep.subr.bf16.mxu0 0
  %6039 = vmatpush1.bf16.msra.mxu0 %v6020
  %6040 = vmatprep.subr.bf16.mxu0 0
  %6041 = vmatpush1.bf16.msra.mxu0 %v6019
  %6042 = vmatprep.subr.bf16.mxu0 0
  %6043 = vmatpush1.bf16.msra.mxu0 %v6018
  %6044 = vmatprep.subr.bf16.mxu0 0
  %6045 = vmatpush1.bf16.msra.mxu0 %v6017
  %6046 = vmatprep.subr.bf16.mxu0 0
  %6047 = vmatpush1.bf16.msra.mxu0 %v6016
  %6048 = vmatprep.subr.bf16.mxu0 0
  %6049 = vmatpush2.bf16.msra.mxu0 0
  %6050 = vmatprep.subr.bf16.mxu0 0
  %6051 = vmatpush2.bf16.msra.mxu0 0
  %6052 = vmatprep.subr.bf16.mxu0 0
  %6053 = vmatpush2.bf16.msra.mxu0 0
  %6054 = vmatprep.subr.bf16.mxu0 0
  %6055 = vmatpush2.bf16.msra.mxu0 0
  %6056 = vmatprep.subr.bf16.mxu0 0
  %6057 = vmatpush2.bf16.msra.mxu0 0
  %6058 = vmatprep.subr.bf16.mxu0 0
  %6059 = vmatpush2.bf16.msra.mxu0 0
  %6060 = vmatprep.subr.bf16.mxu0 0
  %6061 = vmatpush2.bf16.msra.mxu0 0
  %6062 = vmatprep.subr.bf16.mxu0 0
  %6063 = vmatpush2.bf16.msra.mxu0 0
  %6064 = vmatprep.mubr.bf16.mxu0 0
  %6065 = vmatmul.mubr.bf16.gmra.mxu0 %v5949
  %v6066 = vpop.f32.mrf.mxu0
  %v6067 = vadd.f32 0.0, %v6066
  %v6068 = vpop.f32.mrf.mxu0
  %v6069 = vpop.f32.mrf.mxu0
  %v6070 = vadd.f32 0.0, %v6069
  %v6071 = vpop.f32.mrf.mxu0
  %6072 = vmatprep.mubr.bf16.mxu0 0
  %6073 = vmatmul.mubr.bf16.gmra.mxu0 %v5950
  %v6074 = vpop.f32.mrf.mxu0
  %v6075 = vadd.f32 0.0, %v6074
  %v6076 = vpop.f32.mrf.mxu0
  %v6077 = vpop.f32.mrf.mxu0
  %v6078 = vadd.f32 0.0, %v6077
  %v6079 = vpop.f32.mrf.mxu0
  %6080 = vmatprep.mubr.bf16.mxu0 0
  %6081 = vmatmul.mubr.bf16.gmra.mxu0 %v5951
  %v6082 = vpop.f32.mrf.mxu0
  %v6083 = vadd.f32 0.0, %v6082
  %v6084 = vpop.f32.mrf.mxu0
  %v6085 = vpop.f32.mrf.mxu0
  %v6086 = vadd.f32 0.0, %v6085
  %v6087 = vpop.f32.mrf.mxu0
  %6088 = vmatprep.mubr.bf16.mxu0 0
  %6089 = vmatmul.mubr.bf16.gmra.mxu0 %v5952
  %v6090 = vpop.f32.mrf.mxu0
  %v6091 = vadd.f32 0.0, %v6090
  %v6092 = vpop.f32.mrf.mxu0
  %v6093 = vpop.f32.mrf.mxu0
  %v6094 = vadd.f32 0.0, %v6093
  %v6095 = vpop.f32.mrf.mxu0
  %6096 = vmatprep.mubr.bf16.mxu0 0
  %6097 = vmatmul.mubr.bf16.gmra.mxu0 %v5953
  %v6098 = vpop.f32.mrf.mxu0
  %v6099 = vadd.f32 0.0, %v6098
  %v6100 = vpop.f32.mrf.mxu0
  %v6101 = vpop.f32.mrf.mxu0
  %v6102 = vadd.f32 0.0, %v6101
  %v6103 = vpop.f32.mrf.mxu0
  %6104 = vmatprep.mubr.bf16.mxu0 0
  %6105 = vmatmul.mubr.bf16.gmra.mxu0 %v5954
  %v6106 = vpop.f32.mrf.mxu0
  %v6107 = vadd.f32 0.0, %v6106
  %v6108 = vpop.f32.mrf.mxu0
  %v6109 = vpop.f32.mrf.mxu0
  %v6110 = vadd.f32 0.0, %v6109
  %v6111 = vpop.f32.mrf.mxu0
  %6112 = vmatprep.mubr.bf16.mxu0 0
  %6113 = vmatmul.mubr.bf16.gmra.mxu0 %v5955
  %v6114 = vpop.f32.mrf.mxu0
  %v6115 = vadd.f32 0.0, %v6114
  %v6116 = vpop.f32.mrf.mxu0
  %v6117 = vpop.f32.mrf.mxu0
  %v6118 = vadd.f32 0.0, %v6117
  %v6119 = vpop.f32.mrf.mxu0
  %6120 = vmatprep.mubr.bf16.mxu0 0
  %6121 = vmatmul.mubr.bf16.gmra.mxu0 %v5956
  %v6122 = vpop.f32.mrf.mxu0
  %v6123 = vadd.f32 0.0, %v6122
  %v6124 = vpop.f32.mrf.mxu0
  %v6125 = vpop.f32.mrf.mxu0
  %v6126 = vadd.f32 0.0, %v6125
  %v6127 = vpop.f32.mrf.mxu0
  %6128 = vmatprep.mubr.bf16.mxu0 0
  %6129 = vmatmul.mubr.bf16.gmra.mxu0 %v5957
  %v6130 = vpop.f32.mrf.mxu0
  %v6131 = vadd.f32 0.0, %v6130
  %v6132 = vpop.f32.mrf.mxu0
  %v6133 = vpop.f32.mrf.mxu0
  %v6134 = vadd.f32 0.0, %v6133
  %v6135 = vpop.f32.mrf.mxu0
  %6136 = vmatprep.mubr.bf16.mxu0 0
  %6137 = vmatmul.mubr.bf16.gmra.mxu0 %v5958
  %v6138 = vpop.f32.mrf.mxu0
  %v6139 = vadd.f32 0.0, %v6138
  %v6140 = vpop.f32.mrf.mxu0
  %v6141 = vpop.f32.mrf.mxu0
  %v6142 = vadd.f32 0.0, %v6141
  %v6143 = vpop.f32.mrf.mxu0
  %6144 = vmatprep.mubr.bf16.mxu0 0
  %6145 = vmatmul.mubr.bf16.gmra.mxu0 %v5959
  %v6146 = vpop.f32.mrf.mxu0
  %v6147 = vadd.f32 0.0, %v6146
  %v6148 = vpop.f32.mrf.mxu0
  %v6149 = vpop.f32.mrf.mxu0
  %v6150 = vadd.f32 0.0, %v6149
  %v6151 = vpop.f32.mrf.mxu0
  %6152 = vmatprep.mubr.bf16.mxu0 0
  %6153 = vmatmul.mubr.bf16.gmra.mxu0 %v5960
  %v6154 = vpop.f32.mrf.mxu0
  %v6155 = vadd.f32 0.0, %v6154
  %v6156 = vpop.f32.mrf.mxu0
  %v6157 = vpop.f32.mrf.mxu0
  %v6158 = vadd.f32 0.0, %v6157
  %v6159 = vpop.f32.mrf.mxu0
  %6160 = vmatprep.mubr.bf16.mxu0 0
  %6161 = vmatmul.mubr.bf16.gmra.mxu0 %v5961
  %v6162 = vpop.f32.mrf.mxu0
  %v6163 = vadd.f32 0.0, %v6162
  %v6164 = vpop.f32.mrf.mxu0
  %v6165 = vpop.f32.mrf.mxu0
  %v6166 = vadd.f32 0.0, %v6165
  %v6167 = vpop.f32.mrf.mxu0
  %6168 = vmatprep.mubr.bf16.mxu0 0
  %6169 = vmatmul.mubr.bf16.gmra.mxu0 %v5962
  %v6170 = vpop.f32.mrf.mxu0
  %v6171 = vadd.f32 0.0, %v6170
  %v6172 = vpop.f32.mrf.mxu0
  %v6173 = vpop.f32.mrf.mxu0
  %v6174 = vadd.f32 0.0, %v6173
  %v6175 = vpop.f32.mrf.mxu0
  %6176 = vmatprep.mubr.bf16.mxu0 0
  %6177 = vmatmul.mubr.bf16.gmra.mxu0 %v5963
  %v6178 = vpop.f32.mrf.mxu0
  %v6179 = vadd.f32 0.0, %v6178
  %v6180 = vpop.f32.mrf.mxu0
  %v6181 = vpop.f32.mrf.mxu0
  %v6182 = vadd.f32 0.0, %v6181
  %v6183 = vpop.f32.mrf.mxu0
  %6184 = vmatprep.mubr.bf16.mxu0 0
  %6185 = vmatmul.mubr.bf16.gmra.mxu0 %v5964
  %v6186 = vpop.f32.mrf.mxu0
  %v6187 = vadd.f32 0.0, %v6186
  %v6188 = vpop.f32.mrf.mxu0
  %v6189 = vpop.f32.mrf.mxu0
  %v6190 = vadd.f32 0.0, %v6189
  %v6191 = vpop.f32.mrf.mxu0
  %6192 = vmatprep.mubr.bf16.mxu0 0
  %6193 = vmatmul.mubr.bf16.gmra.mxu0 %v5965
  %v6194 = vpop.f32.mrf.mxu0
  %v6195 = vadd.f32 0.0, %v6194
  %v6196 = vpop.f32.mrf.mxu0
  %v6197 = vpop.f32.mrf.mxu0
  %v6198 = vadd.f32 0.0, %v6197
  %v6199 = vpop.f32.mrf.mxu0
  %6200 = vmatprep.mubr.bf16.mxu0 0
  %6201 = vmatmul.mubr.bf16.gmra.mxu0 %v5966
  %v6202 = vpop.f32.mrf.mxu0
  %v6203 = vadd.f32 0.0, %v6202
  %v6204 = vpop.f32.mrf.mxu0
  %v6205 = vpop.f32.mrf.mxu0
  %v6206 = vadd.f32 0.0, %v6205
  %v6207 = vpop.f32.mrf.mxu0
  %6208 = vdwg.mxu0
  %v6209 = vadd.f32 %v5841, %v6067
  %v6210 = vadd.f32 %v5842, %v6070
  %v6211 = vadd.f32 %v5843, %v6075
  %v6212 = vadd.f32 %v5844, %v6078
  %v6213 = vadd.f32 %v5845, %v6083
  %v6214 = vadd.f32 %v5846, %v6086
  %v6215 = vadd.f32 %v5847, %v6091
  %v6216 = vadd.f32 %v5848, %v6094
  %v6217 = vadd.f32 %v5849, %v6099
  %v6218 = vadd.f32 %v5850, %v6102
  %v6219 = vadd.f32 %v5851, %v6107
  %v6220 = vadd.f32 %v5852, %v6110
  %v6221 = vadd.f32 %v5853, %v6115
  %v6222 = vadd.f32 %v5854, %v6118
  %v6223 = vadd.f32 %v5855, %v6123
  %v6224 = vadd.f32 %v5856, %v6126
  %v6225 = vadd.f32 %v5857, %v6131
  %v6226 = vadd.f32 %v5858, %v6134
  %v6227 = vadd.f32 %v5859, %v6139
  %v6228 = vadd.f32 %v5860, %v6142
  %v6229 = vadd.f32 %v5861, %v6147
  %v6230 = vadd.f32 %v5862, %v6150
  %v6231 = vadd.f32 %v5863, %v6155
  %v6232 = vadd.f32 %v5864, %v6158
  %v6233 = vadd.f32 %v5865, %v6163
  %v6234 = vadd.f32 %v5866, %v6166
  %v6235 = vadd.f32 %v5867, %v6171
  %v6236 = vadd.f32 %v5868, %v6174
  %v6237 = vadd.f32 %v5869, %v6179
  %v6238 = vadd.f32 %v5870, %v6182
  %v6239 = vadd.f32 %v5871, %v6187
  %v6240 = vadd.f32 %v5872, %v6190
  %v6241 = vadd.f32 %v5873, %v6195
  %v6242 = vadd.f32 %v5874, %v6198
  %v6243 = vadd.f32 %v5875, %v6203
  %v6244 = vadd.f32 %v5876, %v6206
  %v6245 = vld [vmem:[%s4] sm:$0x1]
  %v6247 = vlaneseq
  %v6248 = vshrl.u32 %v6247, 7
  %v6249 = vsub.s32 0, %v6248
  %v6250 = vrot.slane %v6245, %v6249
  %v6252 = vadd.f32 %v6209, %v6250
  %v6253 = vadd.f32 %v6210, %v6250
  %v6254 = vadd.f32 %v6211, %v6250
  %v6255 = vadd.f32 %v6212, %v6250
  %v6256 = vadd.f32 %v6213, %v6250
  %v6257 = vadd.f32 %v6214, %v6250
  %v6258 = vadd.f32 %v6215, %v6250
  %v6259 = vadd.f32 %v6216, %v6250
  %v6260 = vadd.f32 %v6217, %v6250
  %v6261 = vadd.f32 %v6218, %v6250
  %v6262 = vadd.f32 %v6219, %v6250
  %v6263 = vadd.f32 %v6220, %v6250
  %v6264 = vadd.f32 %v6221, %v6250
  %v6265 = vadd.f32 %v6222, %v6250
  %v6266 = vadd.f32 %v6223, %v6250
  %v6267 = vadd.f32 %v6224, %v6250
  %v6268 = vadd.f32 %v6225, %v6250
  %v6269 = vadd.f32 %v6226, %v6250
  %v6270 = vadd.f32 %v6227, %v6250
  %v6271 = vadd.f32 %v6228, %v6250
  %v6272 = vadd.f32 %v6229, %v6250
  %v6273 = vadd.f32 %v6230, %v6250
  %v6274 = vadd.f32 %v6231, %v6250
  %v6275 = vadd.f32 %v6232, %v6250
  %v6276 = vadd.f32 %v6233, %v6250
  %v6277 = vadd.f32 %v6234, %v6250
  %v6278 = vadd.f32 %v6235, %v6250
  %v6279 = vadd.f32 %v6236, %v6250
  %v6280 = vadd.f32 %v6237, %v6250
  %v6281 = vadd.f32 %v6238, %v6250
  %v6282 = vadd.f32 %v6239, %v6250
  %v6283 = vadd.f32 %v6240, %v6250
  %v6284 = vadd.f32 %v6241, %v6250
  %v6285 = vadd.f32 %v6242, %v6250
  %v6286 = vadd.f32 %v6243, %v6250
  %v6287 = vadd.f32 %v6244, %v6250
  %v6288 = vadd.f32 %v6252, %v60
  %v6289 = vadd.f32 %v6253, %v61
  %v6290 = vadd.f32 %v6254, %v62
  %v6291 = vadd.f32 %v6255, %v63
  %v6292 = vadd.f32 %v6256, %v64
  %v6293 = vadd.f32 %v6257, %v65
  %v6294 = vadd.f32 %v6258, %v66
  %v6295 = vadd.f32 %v6259, %v67
  %v6296 = vadd.f32 %v6260, %v68
  %v6297 = vadd.f32 %v6261, %v69
  %v6298 = vadd.f32 %v6262, %v70
  %v6299 = vadd.f32 %v6263, %v71
  %v6300 = vadd.f32 %v6264, %v72
  %v6301 = vadd.f32 %v6265, %v73
  %v6302 = vadd.f32 %v6266, %v74
  %v6303 = vadd.f32 %v6267, %v75
  %v6304 = vadd.f32 %v6268, %v76
  %v6305 = vadd.f32 %v6269, %v77
  %v6306 = vadd.f32 %v6270, %v78
  %v6307 = vadd.f32 %v6271, %v79
  %v6308 = vadd.f32 %v6272, %v80
  %v6309 = vadd.f32 %v6273, %v81
  %v6310 = vadd.f32 %v6274, %v82
  %v6311 = vadd.f32 %v6275, %v83
  %v6312 = vadd.f32 %v6276, %v84
  %v6313 = vadd.f32 %v6277, %v85
  %v6314 = vadd.f32 %v6278, %v86
  %v6315 = vadd.f32 %v6279, %v87
  %v6316 = vadd.f32 %v6280, %v88
  %v6317 = vadd.f32 %v6281, %v89
  %v6318 = vadd.f32 %v6282, %v90
  %v6319 = vadd.f32 %v6283, %v91
  %v6320 = vadd.f32 %v6284, %v92
  %v6321 = vadd.f32 %v6285, %v93
  %v6322 = vadd.f32 %v6286, %v94
  %v6323 = vadd.f32 %v6287, %v95
  %v6324 = vmax.f32 %v6288, 0.0
  %v6325 = vmax.f32 %v6289, 0.0
  %v6326 = vmax.f32 %v6290, 0.0
  %v6327 = vmax.f32 %v6291, 0.0
  %v6328 = vmax.f32 %v6292, 0.0
  %v6329 = vmax.f32 %v6293, 0.0
  %v6330 = vmax.f32 %v6294, 0.0
  %v6331 = vmax.f32 %v6295, 0.0
  %v6332 = vmax.f32 %v6296, 0.0
  %v6333 = vmax.f32 %v6297, 0.0
  %v6334 = vmax.f32 %v6298, 0.0
  %v6335 = vmax.f32 %v6299, 0.0
  %v6336 = vmax.f32 %v6300, 0.0
  %v6337 = vmax.f32 %v6301, 0.0
  %v6338 = vmax.f32 %v6302, 0.0
  %v6339 = vmax.f32 %v6303, 0.0
  %v6340 = vmax.f32 %v6304, 0.0
  %v6341 = vmax.f32 %v6305, 0.0
  %v6342 = vmax.f32 %v6306, 0.0
  %v6343 = vmax.f32 %v6307, 0.0
  %v6344 = vmax.f32 %v6308, 0.0
  %v6345 = vmax.f32 %v6309, 0.0
  %v6346 = vmax.f32 %v6310, 0.0
  %v6347 = vmax.f32 %v6311, 0.0
  %v6348 = vmax.f32 %v6312, 0.0
  %v6349 = vmax.f32 %v6313, 0.0
  %v6350 = vmax.f32 %v6314, 0.0
  %v6351 = vmax.f32 %v6315, 0.0
  %v6352 = vmax.f32 %v6316, 0.0
  %v6353 = vmax.f32 %v6317, 0.0
  %v6354 = vmax.f32 %v6318, 0.0
  %v6355 = vmax.f32 %v6319, 0.0
  %v6356 = vmax.f32 %v6320, 0.0
  %v6357 = vmax.f32 %v6321, 0.0
  %v6358 = vmax.f32 %v6322, 0.0
  %v6359 = vmax.f32 %v6323, 0.0
  %v6360 = vmul.f32 %v6324, %v3171
  %v6361 = vmul.f32 %v6325, %v3176
  %v6362 = vmul.f32 %v6326, %v3181
  %v6363 = vmul.f32 %v6327, %v3186
  %v6364 = vmul.f32 %v6328, %v3191
  %v6365 = vmul.f32 %v6329, %v3196
  %v6366 = vmul.f32 %v6330, %v3201
  %v6367 = vmul.f32 %v6331, %v3206
  %v6368 = vmul.f32 %v6332, %v3211
  %v6369 = vmul.f32 %v6333, %v3216
  %v6370 = vmul.f32 %v6334, %v3221
  %v6371 = vmul.f32 %v6335, %v3226
  %v6372 = vmul.f32 %v6336, %v3231
  %v6373 = vmul.f32 %v6337, %v3236
  %v6374 = vmul.f32 %v6338, %v3241
  %v6375 = vmul.f32 %v6339, %v3246
  %v6376 = vmul.f32 %v6340, %v3251
  %v6377 = vmul.f32 %v6341, %v3256
  %v6378 = vmul.f32 %v6342, %v3261
  %v6379 = vmul.f32 %v6343, %v3266
  %v6380 = vmul.f32 %v6344, %v3271
  %v6381 = vmul.f32 %v6345, %v3276
  %v6382 = vmul.f32 %v6346, %v3281
  %v6383 = vmul.f32 %v6347, %v3286
  %v6384 = vmul.f32 %v6348, %v3291
  %v6385 = vmul.f32 %v6349, %v3296
  %v6386 = vmul.f32 %v6350, %v3301
  %v6387 = vmul.f32 %v6351, %v3306
  %v6388 = vmul.f32 %v6352, %v3311
  %v6389 = vmul.f32 %v6353, %v3316
  %v6390 = vmul.f32 %v6354, %v3321
  %v6391 = vmul.f32 %v6355, %v3326
  %v6392 = vmul.f32 %v6356, %v3331
  %v6393 = vmul.f32 %v6357, %v3336
  %v6394 = vmul.f32 %v6358, %v3341
  %v6395 = vmul.f32 %v6359, %v3346
  %v6396 = vpack.c.bf16 %v6361, %v6360
  %v6397 = vpack.c.bf16 %v6363, %v6362
  %v6398 = vpack.c.bf16 %v6365, %v6364
  %v6399 = vpack.c.bf16 %v6367, %v6366
  %v6400 = vpack.c.bf16 %v6369, %v6368
  %v6401 = vpack.c.bf16 %v6371, %v6370
  %v6402 = vpack.c.bf16 %v6373, %v6372
  %v6403 = vpack.c.bf16 %v6375, %v6374
  %v6404 = vpack.c.bf16 %v6377, %v6376
  %v6405 = vpack.c.bf16 %v6379, %v6378
  %v6406 = vpack.c.bf16 %v6381, %v6380
  %v6407 = vpack.c.bf16 %v6383, %v6382
  %v6408 = vpack.c.bf16 %v6385, %v6384
  %v6409 = vpack.c.bf16 %v6387, %v6386
  %v6410 = vpack.c.bf16 %v6389, %v6388
  %v6411 = vpack.c.bf16 %v6391, %v6390
  %v6412 = vpack.c.bf16 %v6393, %v6392
  %v6413 = vpack.c.bf16 %v6395, %v6394
  %v6432 = vunpack.c.l.b16 %v6396
  %v6433 = vunpack.c.h.b16 %v6396
  %v6434 = vunpack.c.l.b16 %v6397
  %v6435 = vunpack.c.h.b16 %v6397
  %v6436 = vunpack.c.l.b16 %v6398
  %v6437 = vunpack.c.h.b16 %v6398
  %v6438 = vunpack.c.l.b16 %v6399
  %v6439 = vunpack.c.h.b16 %v6399
  %v6440 = vunpack.c.l.b16 %v6400
  %v6441 = vunpack.c.h.b16 %v6400
  %v6442 = vunpack.c.l.b16 %v6401
  %v6443 = vunpack.c.h.b16 %v6401
  %v6444 = vunpack.c.l.b16 %v6402
  %v6445 = vunpack.c.h.b16 %v6402
  %v6446 = vunpack.c.l.b16 %v6403
  %v6447 = vunpack.c.h.b16 %v6403
  %v6448 = vunpack.c.l.b16 %v6404
  %v6449 = vunpack.c.h.b16 %v6404
  %v6450 = vunpack.c.l.b16 %v6405
  %v6451 = vunpack.c.h.b16 %v6405
  %v6452 = vunpack.c.l.b16 %v6406
  %v6453 = vunpack.c.h.b16 %v6406
  %v6454 = vunpack.c.l.b16 %v6407
  %v6455 = vunpack.c.h.b16 %v6407
  %v6456 = vunpack.c.l.b16 %v6408
  %v6457 = vunpack.c.h.b16 %v6408
  %v6458 = vunpack.c.l.b16 %v6409
  %v6459 = vunpack.c.h.b16 %v6409
  %v6460 = vunpack.c.l.b16 %v6410
  %v6461 = vunpack.c.h.b16 %v6410
  %v6462 = vunpack.c.l.b16 %v6411
  %v6463 = vunpack.c.h.b16 %v6411
  %v6464 = vunpack.c.l.b16 %v6412
  %v6465 = vunpack.c.h.b16 %v6412
  %v6466 = vunpack.c.l.b16 %v6413
  %v6467 = vunpack.c.h.b16 %v6413
  %v6468 = vpack.c.b16 %v6432, %v6432
  %v6469 = vpack.c.b16 %v6433, %v6433
  %v6470 = vpack.c.b16 %v6434, %v6434
  %v6471 = vpack.c.b16 %v6435, %v6435
  %v6472 = vpack.c.b16 %v6436, %v6436
  %v6473 = vpack.c.b16 %v6437, %v6437
  %v6474 = vpack.c.b16 %v6438, %v6438
  %v6475 = vpack.c.b16 %v6439, %v6439
  %v6476 = vpack.c.b16 %v6440, %v6440
  %v6477 = vpack.c.b16 %v6441, %v6441
  %v6478 = vpack.c.b16 %v6442, %v6442
  %v6479 = vpack.c.b16 %v6443, %v6443
  %v6480 = vpack.c.b16 %v6444, %v6444
  %v6481 = vpack.c.b16 %v6445, %v6445
  %v6482 = vpack.c.b16 %v6446, %v6446
  %v6483 = vpack.c.b16 %v6447, %v6447
  %v6484 = vpack.c.b16 %v6448, %v6448
  %v6485 = vpack.c.b16 %v6449, %v6449
  %v6486 = vpack.c.b16 %v6450, %v6450
  %v6487 = vpack.c.b16 %v6451, %v6451
  %v6488 = vpack.c.b16 %v6452, %v6452
  %v6489 = vpack.c.b16 %v6453, %v6453
  %v6490 = vpack.c.b16 %v6454, %v6454
  %v6491 = vpack.c.b16 %v6455, %v6455
  %v6492 = vpack.c.b16 %v6456, %v6456
  %v6493 = vpack.c.b16 %v6457, %v6457
  %v6494 = vpack.c.b16 %v6458, %v6458
  %v6495 = vpack.c.b16 %v6459, %v6459
  %v6496 = vpack.c.b16 %v6460, %v6460
  %v6497 = vpack.c.b16 %v6461, %v6461
  %v6498 = vpack.c.b16 %v6462, %v6462
  %v6499 = vpack.c.b16 %v6463, %v6463
  %v6500 = vpack.c.b16 %v6464, %v6464
  %v6501 = vpack.c.b16 %v6465, %v6465
  %v6502 = vpack.c.b16 %v6466, %v6466
  %v6503 = vpack.c.b16 %v6467, %v6467
  %6540 = vst [vmem:[%s6] sm:$0xf] %v6468
  %6541 = vst [vmem:[%s6 + $0x4] sm:$0xf] %v6469
  %6542 = vst [vmem:[%s6 + $0x8] sm:$0xf] %v6470
  %6543 = vst [vmem:[%s6 + $0xc] sm:$0xf] %v6471
  %6544 = vst [vmem:[%s6 + $0x10] sm:$0xf] %v6472
  %6545 = vst [vmem:[%s6 + $0x14] sm:$0xf] %v6473
  %6546 = vst [vmem:[%s6 + $0x18] sm:$0xf] %v6474
  %6547 = vst [vmem:[%s6 + $0x1c] sm:$0xf] %v6475
  %6548 = vst [vmem:[%s6 + $0x20] sm:$0xf] %v6476
  %6549 = vst [vmem:[%s6 + $0x24] sm:$0xf] %v6477
  %6550 = vst [vmem:[%s6 + $0x28] sm:$0xf] %v6478
  %6551 = vst [vmem:[%s6 + $0x2c] sm:$0xf] %v6479
  %6552 = vst [vmem:[%s6 + $0x30] sm:$0xf] %v6480
  %6553 = vst [vmem:[%s6 + $0x34] sm:$0xf] %v6481
  %6554 = vst [vmem:[%s6 + $0x38] sm:$0xf] %v6482
  %6555 = vst [vmem:[%s6 + $0x3c] sm:$0xf] %v6483
  %6556 = vst [vmem:[%s6 + $0x40] sm:$0xf] %v6484
  %6557 = vst [vmem:[%s6 + $0x44] sm:$0xf] %v6485
  %6558 = vst [vmem:[%s6 + $0x48] sm:$0xf] %v6486
  %6559 = vst [vmem:[%s6 + $0x4c] sm:$0xf] %v6487
  %6560 = vst [vmem:[%s6 + $0x50] sm:$0xf] %v6488
  %6561 = vst [vmem:[%s6 + $0x54] sm:$0xf] %v6489
  %6562 = vst [vmem:[%s6 + $0x58] sm:$0xf] %v6490
  %6563 = vst [vmem:[%s6 + $0x5c] sm:$0xf] %v6491
  %6564 = vst [vmem:[%s6 + $0x60] sm:$0xf] %v6492
  %6565 = vst [vmem:[%s6 + $0x64] sm:$0xf] %v6493
  %6566 = vst [vmem:[%s6 + $0x68] sm:$0xf] %v6494
  %6567 = vst [vmem:[%s6 + $0x6c] sm:$0xf] %v6495
  %6568 = vst [vmem:[%s6 + $0x70] sm:$0xf] %v6496
  %6569 = vst [vmem:[%s6 + $0x74] sm:$0xf] %v6497
  %6570 = vst [vmem:[%s6 + $0x78] sm:$0xf] %v6498
  %6571 = vst [vmem:[%s6 + $0x7c] sm:$0xf] %v6499
  %6572 = vst [vmem:[%s6 + $0x80] sm:$0xf] %v6500
  %6573 = vst [vmem:[%s6 + $0x84] sm:$0xf] %v6501
  %6574 = vst [vmem:[%s6 + $0x88] sm:$0xf] %v6502
  %6575 = vst [vmem:[%s6 + $0x8c] sm:$0xf] %v6503
  // Predicated region
  $region26: #{alphazero_forward.8} parent=0 // pred_check
    _
  $region27: #{alphazero_forward.8} parent=0 // pred_check_branch
    %6577 = sbr.rel (0) target = $region29
  $region28: #{alphazero_forward.8} parent=0 // pred_region
    _
  $region29: #{alphazero_forward.8} parent=0 // pred_fallthru
    _
  // Predicated region
  $region30: #{alphazero_forward.8} parent=0 // pred_check
    _
  $region31: #{alphazero_forward.8} parent=0 // pred_check_branch
    %6579 = sbr.rel (0) target = $region33
  $region32: #{alphazero_forward.8} parent=0 // pred_region
    _
  $region33: #{alphazero_forward.8} parent=0 // pred_fallthru
    _

</llo_original>
